<compile_context>
chip_gen: v7x
topology: tpu7x:2x2x1
jax: 0.10.0
libtpu: 0.0.40
codegen_flags: <defaults>
</compile_context>

<pallas_src>
import functools

import jax
import jax.numpy as jnp
from jax import lax
from jax.experimental import pallas as pl
from jax.experimental.pallas import tpu as pltpu

LANE = 128
SUBLANE = 8
HG = LANE // 2  # half-tile: one gate per 64 lanes (hidden_size <= 64)


def _round_up(x, m):
    return ((x + m - 1) // m) * m


def decoder_kernel(x_ref, w_ih_ref, w_hh_ref, b_ref, w_out_ref, b_out_ref,
                   out_ref, cur_ref, gx_ref, h_ref, c_ref, *, unroll):
    T, Bb, HL = cur_ref.shape          # HL = 128 (lane-padded hidden storage)
    L = w_ih_ref.shape[0]
    G = gx_ref.shape[-1]               # 256: two gates per 128-lane tile
    Op = out_ref.shape[-1]
    wdtype = w_ih_ref.dtype
    cdtype = cur_ref.dtype

    # Hoisted constants (broadcast_in_dim is not CSE'd -> build once).
    lane = lax.broadcasted_iota(jnp.int32, (Bb, LANE), 1)
    g_mask = lane < HG                 # first half of tile 1 holds the g gate

    for l in range(L):                 # static layer loop
        w_ih = w_ih_ref[l]             # (HL, G), zero rows beyond H
        w_hh = w_hh_ref[l]             # (HL, G)
        b = b_ref[pl.ds(l, 1), :]      # (1, G) f32, b_ih + b_hh fused

        # ---- hoisted input projection (+ bias): one big MXU matmul ----
        src = x_ref if l == 0 else cur_ref            # (T, Bb, HL) time-major
        xin = src[...].reshape(T * Bb, HL).astype(wdtype)
        gx = jnp.dot(xin, w_ih, preferred_element_type=jnp.float32) + b
        gx_ref[...] = gx.reshape(T, Bb, G).astype(cdtype)

        # ---- serial recurrence: only h @ W_hh on the critical path ----
        # State lives in small VMEM scratch (robust for any batch block).
        # Zero initial state; padded lanes stay harmless because the padded
        # weight rows/columns (and the head weight rows) are zero.
        h_ref[...] = jnp.zeros((Bb, HL), jnp.float32)
        c_ref[...] = jnp.zeros((Bb, HL), jnp.float32)

        def step(t, _):
            h = h_ref[...]
            gates = (jnp.dot(h.astype(wdtype), w_hh,
                             preferred_element_type=jnp.float32)
                     + gx_ref[t].astype(jnp.float32))          # (Bb, 256) f32
            # tile 0 = [i_pre | f_pre], tile 1 = [2*g_pre | o_pre]
            a0 = jax.nn.sigmoid(gates[:, :LANE])               # [i | f]
            s1 = jax.nn.sigmoid(gates[:, LANE:])               # [sig(2g) | o]
            a1 = jnp.where(g_mask, 2.0 * s1 - 1.0, s1)         # [tanh(g) | o]
            f_al = pltpu.roll(a0, HG, axis=1)                  # [f | i]
            o_al = pltpu.roll(a1, HG, axis=1)                  # [o | tanh(g)]
            c_new = f_al * c_ref[...] + a0 * a1   # lanes 0:H = f*c + i*g
            h_new = o_al * jnp.tanh(c_new)        # lanes 0:H = o*tanh(c_new)
            c_ref[...] = c_new
            h_ref[...] = h_new
            cur_ref[t] = h_new.astype(cdtype)     # dense (Bb, HL) store
            return 0

        lax.fori_loop(0, T, step, 0, unroll=unroll)

    # ---- output Linear head (lane-dense, Op multiple of 128) ----
    seq = cur_ref[...].reshape(T * Bb, HL).astype(wdtype)
    y = jnp.dot(seq, w_out_ref[...], preferred_element_type=jnp.float32)
    y = y + b_out_ref[...]
    out_ref[...] = y.reshape(T, Bb, Op).astype(out_ref.dtype)


# ---------------------------------------------------------------------------
# Weight packing (layout plumbing done once, in plain XLA outside the kernel)
# ---------------------------------------------------------------------------
_GATE_COL = (0, HG, LANE, LANE + HG)     # i, f, g, o column offsets
_GATE_SCALE = (1.0, 1.0, 2.0, 1.0)       # g pre-scaled by 2 (tanh via sigmoid)


def _pack_lstm_weight(w, H, HL):
    """torch (4H, H_in) -> (HL, 2*LANE): transposed, two gates per lane tile,
    g columns scaled by 2, zero-padded rows/columns."""
    w_t = jnp.asarray(w, jnp.float32).T                  # (H_in, 4H)
    h_in = w_t.shape[0]
    out = jnp.zeros((HL, 2 * LANE), jnp.float32)
    for g in range(4):
        blk = w_t[:, g * H:(g + 1) * H] * _GATE_SCALE[g]
        out = out.at[:h_in, _GATE_COL[g]:_GATE_COL[g] + H].set(blk)
    return out


def _pack_lstm_bias(b, H):
    out = jnp.zeros((2 * LANE,), jnp.float32)
    for g in range(4):
        out = out.at[_GATE_COL[g]:_GATE_COL[g] + H].set(
            jnp.asarray(b[g * H:(g + 1) * H], jnp.float32) * _GATE_SCALE[g])
    return out


def decoder_pallas(x, params, *, param_dtype=jnp.bfloat16, batch_block=None):
    """x: (B, T, H) float32; params: torch-layout dict. Returns (B, T, O) f32."""
    B, T, H = x.shape
    L = params["w_ih"].shape[0]
    O = params["w_out"].shape[0]

    if H > HG:
        # TODO(synk): dense two-gates-per-tile packing assumes hidden <= 64;
        # fall back to per-gate 128-lane padding for larger hidden sizes.
        raise NotImplementedError("decoder_pallas requires hidden_size <= 64")

    HL = _round_up(H, LANE)              # 128: storage width of h/c/activations
    G = 2 * LANE                         # 256: dense-packed gate width
    Op = _round_up(O, LANE)              # lane-dense output head
    cdtype = param_dtype                 # compute/storage dtype (weights, acts)
    cbytes = jnp.dtype(cdtype).itemsize
    sub = 16 if cbytes == 2 else SUBLANE  # batch quantum: exact vreg tile rows

    # ---- batch blocking: big blocks for MXU rows, >=2 blocks for v7x 2 TCs --
    Bp0 = _round_up(B, sub)
    if batch_block is None:
        if Bp0 >= 2 * sub:
            Bb = min(256, _round_up(-(-Bp0 // 2), sub))
        else:
            Bb = Bp0
    else:
        Bb = _round_up(batch_block, sub)
    Bp = _round_up(Bp0, Bb)

    # Unroll scales down with the batch block to bound vreg pressure.
    if T <= 8:
        unroll = True
    elif Bb >= 128:
        unroll = 2
    elif Bb >= 32:
        unroll = 4
    else:
        unroll = 8

    # ---- pack / pad weights (weights in cdtype, biases stay f32) ----
    w_ih = jnp.stack([_pack_lstm_weight(params["w_ih"][l], H, HL)
                      for l in range(L)]).astype(cdtype)
    w_hh = jnp.stack([_pack_lstm_weight(params["w_hh"][l], H, HL)
                      for l in range(L)]).astype(cdtype)
    b = jnp.stack([_pack_lstm_bias(params["b_ih"][l] + params["b_hh"][l], H)
                   for l in range(L)])                                # (L, G)
    w_out = jnp.zeros((HL, Op), jnp.float32).at[:H, :O].set(
        jnp.asarray(params["w_out"], jnp.float32).T).astype(cdtype)
    b_out = jnp.zeros((1, Op), jnp.float32).at[0, :O].set(
        jnp.asarray(params["b_out"], jnp.float32))

    # Pad batch + hidden with zeros, go time-major (T, Bp, HL), compute dtype.
    x_p = jnp.zeros((Bp, T, HL), cdtype).at[:B, :, :H].set(x.astype(cdtype))
    x_tm = jnp.transpose(x_p, (1, 0, 2))

    # ---- explicit scoped-VMEM budget from actual block/scratch sizes ----
    need = (2 * T * Bb * HL * cbytes            # x block (double-buffered)
            + 2 * T * Bb * Op * 4               # out block (double-buffered)
            + 2 * 2 * L * HL * G * cbytes       # W_ih + W_hh (double-buffered)
            + 2 * L * G * 4                     # fused bias
            + 2 * (HL * Op * cbytes + Op * 4)   # head weight + bias
            + T * Bb * HL * cbytes              # cur scratch
            + T * Bb * G * cbytes               # gx scratch
            + 2 * Bb * HL * 4)                  # h, c scratch
    vmem_limit = int(min(max(int(need * 1.4), 32 * 1024 * 1024),
                         96 * 1024 * 1024))

    out_tm = pl.pallas_call(
        functools.partial(decoder_kernel, unroll=unroll),
        out_shape=jax.ShapeDtypeStruct((T, Bp, Op), jnp.float32),
        grid=(Bp // Bb,),
        in_specs=[
            pl.BlockSpec((T, Bb, HL), lambda i: (0, i, 0)),   # x (time-major)
            pl.BlockSpec((L, HL, G), lambda i: (0, 0, 0)),    # W_ih packed
            pl.BlockSpec((L, HL, G), lambda i: (0, 0, 0)),    # W_hh packed
            pl.BlockSpec((L, G), lambda i: (0, 0)),           # fused bias
            pl.BlockSpec((HL, Op), lambda i: (0, 0)),         # head weight
            pl.BlockSpec((1, Op), lambda i: (0, 0)),          # head bias
        ],
        out_specs=pl.BlockSpec((T, Bb, Op), lambda i: (0, i, 0)),
        scratch_shapes=[
            pltpu.VMEM((T, Bb, HL), cdtype),      # layer activations
            pltpu.VMEM((T, Bb, G), cdtype),       # hoisted input gates
            pltpu.VMEM((Bb, HL), jnp.float32),    # h state
            pltpu.VMEM((Bb, HL), jnp.float32),    # c state
        ],
        compiler_params=pltpu.CompilerParams(
            dimension_semantics=("parallel",),    # batch blocks -> cores
            vmem_limit_bytes=vmem_limit),
    )(x_tm, w_ih, w_hh, b, w_out, b_out)

    out = jnp.transpose(out_tm, (1, 0, 2))        # (Bp, T, Op)
    return out[:B, :, :O]


# ---------------------------------------------------------------------------
# Pure-JAX reference matching torch.nn.LSTM(batch_first=True) + nn.Linear
# ---------------------------------------------------------------------------
def decoder_ref(x, params):
    B, T, H = x.shape
    L = params["w_ih"].shape[0]
    cur = x.astype(jnp.float32)
    for l in range(L):
        w_ih_t = params["w_ih"][l].T
        w_hh_t = params["w_hh"][l].T
        bias = params["b_ih"][l] + params["b_hh"][l]
        h = jnp.zeros((B, H), jnp.float32)
        c = jnp.zeros((B, H), jnp.float32)
        outs = []
        for t in range(T):
            gates = cur[:, t, :] @ w_ih_t + h @ w_hh_t + bias
            i_g = jax.nn.sigmoid(gates[:, 0 * H:1 * H])
            f_g = jax.nn.sigmoid(gates[:, 1 * H:2 * H])
            g_g = jnp.tanh(gates[:, 2 * H:3 * H])
            o_g = jax.nn.sigmoid(gates[:, 3 * H:4 * H])
            c = f_g * c + i_g * g_g
            h = o_g * jnp.tanh(c)
            outs.append(h)
        cur = jnp.stack(outs, axis=1)
    return cur @ params["w_out"].T + params["b_out"]


def init_decoder_params(key, H, O, L):
    """PyTorch default init: uniform(-1/sqrt(H), 1/sqrt(H)), torch layouts."""
    k = 1.0 / float(H) ** 0.5
    keys = jax.random.split(key, 6)
    u = lambda kk, shape: jax.random.uniform(kk, shape, jnp.float32, -k, k)
    return dict(
        w_ih=u(keys[0], (L, 4 * H, H)),   # gate order i, f, g, o
        w_hh=u(keys[1], (L, 4 * H, H)),
        b_ih=u(keys[2], (L, 4 * H)),
        b_hh=u(keys[3], (L, 4 * H)),
        w_out=u(keys[4], (O, H)),
        b_out=u(keys[5], (O,)),
    )


if __name__ == "__main__":
    # Shapes consistent with the module spec: hidden_size=64, num_layers=5.
    B, T, H, O, L = 2, 8, 64, 32, 5

    key = jax.random.PRNGKey(0)
    kx, kp = jax.random.split(key)
    x = jax.random.normal(kx, (B, T, H), jnp.float32)
    params = init_decoder_params(kp, H, O, L)

    y_ref = decoder_ref(x, params)

    # f32 weights + f32 activations: should match the reference closely.
    y_f32 = jax.block_until_ready(
        decoder_pallas(x, params, param_dtype=jnp.float32))
    assert y_f32.shape == (B, T, O)
    assert jnp.allclose(y_f32, y_ref, atol=2e-2, rtol=2e-2), (
        "f32 mismatch, max abs err = "
        + str(float(jnp.max(jnp.abs(y_f32 - y_ref)))))

    # bf16 weights + bf16 activations/gx (perf default on all generations);
    # gate accumulation and h/c state remain f32.
    y_bf16 = jax.block_until_ready(
        decoder_pallas(x, params, param_dtype=jnp.bfloat16))
    assert y_bf16.shape == (B, T, O)
    assert jnp.allclose(y_bf16, y_ref, atol=1.5e-1, rtol=1.5e-1), (
        "bf16 mismatch, max abs err = "
        + str(float(jnp.max(jnp.abs(y_bf16 - y_ref)))))

    print("KERNEL_OK")
</pallas_src>

<mosaic_0001>
module attributes {stable_mosaic.version = 11 : i64} {
  func.func @decoder_kernel(%arg0: i32, %arg1: memref<8x8x128xf32, #tpu.memory_space<vmem>>, %arg2: memref<5x128x256xf32, #tpu.memory_space<vmem>>, %arg3: memref<5x128x256xf32, #tpu.memory_space<vmem>>, %arg4: memref<5x256xf32, #tpu.memory_space<vmem>>, %arg5: memref<128x128xf32, #tpu.memory_space<vmem>>, %arg6: memref<1x128xf32, #tpu.memory_space<vmem>>, %arg7: memref<8x8x128xf32, #tpu.memory_space<vmem>>, %arg8: memref<8x8x128xf32, #tpu.memory_space<vmem>>, %arg9: memref<8x8x256xf32, #tpu.memory_space<vmem>>, %arg10: memref<8x128xf32, #tpu.memory_space<vmem>>, %arg11: memref<8x128xf32, #tpu.memory_space<vmem>>) attributes {dimension_semantics = [#tpu.dimension_semantics<parallel>], iteration_bounds = array<i64: 1>, scalar_prefetch = 0 : i64, scratch_operands = 4 : i64, tpu.core_type = #tpu.core_type<tc>, window_params = [{transform_indices = @transform_0, window_bounds = array<i64: 8, 8, 128>}, {pipeline_mode = #tpu.pipeline_mode<synchronous>, transform_indices = @transform_1, window_bounds = array<i64: 5, 128, 256>}, {pipeline_mode = #tpu.pipeline_mode<synchronous>, transform_indices = @transform_2, window_bounds = array<i64: 5, 128, 256>}, {pipeline_mode = #tpu.pipeline_mode<synchronous>, transform_indices = @transform_3, window_bounds = array<i64: 5, 256>}, {pipeline_mode = #tpu.pipeline_mode<synchronous>, transform_indices = @transform_4, window_bounds = array<i64: 128, 128>}, {pipeline_mode = #tpu.pipeline_mode<synchronous>, transform_indices = @transform_5, window_bounds = array<i64: 1, 128>}, {transform_indices = @transform_6, window_bounds = array<i64: 8, 8, 128>}]} {
    %0 = tpu.iota {dimensions = array<i32: 1>} : vector<8x128xi32>
    %c64_i32 = arith.constant 64 : i32
    %1 = vector.broadcast %c64_i32 : i32 to vector<8x128xi32>
    %2 = arith.cmpi slt, %0, %1 : vector<8x128xi32>
    %c0 = arith.constant 0 : index
    %c0_0 = arith.constant 0 : index
    %c0_1 = arith.constant 0 : index
    %3 = vector.load %arg2[%c0, %c0_0, %c0_1] : memref<5x128x256xf32, #tpu.memory_space<vmem>>, vector<1x128x256xf32>
    %4 = vector.shape_cast %3 : vector<1x128x256xf32> to vector<128x256xf32>
    %c0_2 = arith.constant 0 : index
    %c0_3 = arith.constant 0 : index
    %c0_4 = arith.constant 0 : index
    %5 = vector.load %arg3[%c0_2, %c0_3, %c0_4] : memref<5x128x256xf32, #tpu.memory_space<vmem>>, vector<1x128x256xf32>
    %6 = vector.shape_cast %5 : vector<1x128x256xf32> to vector<128x256xf32>
    %c0_5 = arith.constant 0 : index
    %c0_6 = arith.constant 0 : index
    %7 = vector.load %arg4[%c0_5, %c0_6] : memref<5x256xf32, #tpu.memory_space<vmem>>, vector<1x256xf32>
    %c0_7 = arith.constant 0 : index
    %c0_8 = arith.constant 0 : index
    %c0_9 = arith.constant 0 : index
    %8 = vector.load %arg1[%c0_7, %c0_8, %c0_9] : memref<8x8x128xf32, #tpu.memory_space<vmem>>, vector<8x8x128xf32>
    %9 = vector.shape_cast %8 : vector<8x8x128xf32> to vector<64x128xf32>
    %cst = arith.constant dense<0.000000e+00> : vector<64x256xf32>
    %10 = tpu.matmul %9, %4, %cst {dimension_numbers = #tpu.dot_dimension_numbers<[1], [0], [0], [1], [0, 0, 1, 1], [], []>} : vector<64x128xf32>, vector<128x256xf32>, vector<64x256xf32> -> vector<64x256xf32>
    %11 = vector.broadcast %7 : vector<1x256xf32> to vector<64x256xf32>
    %12 = arith.addf %10, %11 : vector<64x256xf32>
    %13 = vector.shape_cast %12 : vector<64x256xf32> to vector<8x8x256xf32>
    %c0_10 = arith.constant 0 : index
    %c0_11 = arith.constant 0 : index
    %c0_12 = arith.constant 0 : index
    %14 = vector.load %arg9[%c0_10, %c0_11, %c0_12] : memref<8x8x256xf32, #tpu.memory_space<vmem>>, vector<8x8x256xf32>
    tpu.vector_store %arg9[%c0_10, %c0_11, %c0_12], %13 {strides = array<i32>} : memref<8x8x256xf32, #tpu.memory_space<vmem>>, vector<8x8x256xf32>,
    %cst_13 = arith.constant 0.000000e+00 : f32
    %15 = vector.broadcast %cst_13 : f32 to vector<8x128xf32>
    %c0_14 = arith.constant 0 : index
    %c0_15 = arith.constant 0 : index
    %16 = vector.load %arg10[%c0_14, %c0_15] : memref<8x128xf32, #tpu.memory_space<vmem>>, vector<8x128xf32>
    tpu.vector_store %arg10[%c0_14, %c0_15], %15 {strides = array<i32>} : memref<8x128xf32, #tpu.memory_space<vmem>>, vector<8x128xf32>,
    %cst_16 = arith.constant 0.000000e+00 : f32
    %17 = vector.broadcast %cst_16 : f32 to vector<8x128xf32>
    %c0_17 = arith.constant 0 : index
    %c0_18 = arith.constant 0 : index
    %18 = vector.load %arg11[%c0_17, %c0_18] : memref<8x128xf32, #tpu.memory_space<vmem>>, vector<8x128xf32>
    tpu.vector_store %arg11[%c0_17, %c0_18], %17 {strides = array<i32>} : memref<8x128xf32, #tpu.memory_space<vmem>>, vector<8x128xf32>,
    %c0_i32 = arith.constant 0 : i32
    %c0_19 = arith.constant 0 : index
    %c0_20 = arith.constant 0 : index
    %19 = vector.load %arg10[%c0_19, %c0_20] : memref<8x128xf32, #tpu.memory_space<vmem>>, vector<8x128xf32>
    %cst_21 = arith.constant dense<0.000000e+00> : vector<8x256xf32>
    %20 = tpu.matmul %19, %6, %cst_21 {dimension_numbers = #tpu.dot_dimension_numbers<[1], [0], [0], [1], [0, 0, 1, 1], [], []>} : vector<8x128xf32>, vector<128x256xf32>, vector<8x256xf32> -> vector<8x256xf32>
    %21 = arith.index_cast %c0_i32 : i32 to index
    %c0_22 = arith.constant 0 : index
    %c0_23 = arith.constant 0 : index
    %22 = vector.load %arg9[%21, %c0_22, %c0_23] : memref<8x8x256xf32, #tpu.memory_space<vmem>>, vector<1x8x256xf32>
    %23 = vector.shape_cast %22 : vector<1x8x256xf32> to vector<8x256xf32>
    %24 = arith.addf %20, %23 : vector<8x256xf32>
    %25 = vector.extract_strided_slice %24 {offsets = [0, 0], sizes = [8, 128], strides = [1, 1]} : vector<8x256xf32> to vector<8x128xf32>
    %26 = arith.negf %25 : vector<8x128xf32>
    %27 = math.exp %26 : vector<8x128xf32>
    %cst_24 = arith.constant 1.000000e+00 : f32
    %28 = vector.broadcast %cst_24 : f32 to vector<8x128xf32>
    %29 = arith.addf %28, %27 : vector<8x128xf32>
    %30 = arith.divf %28, %29 : vector<8x128xf32>
    %31 = vector.extract_strided_slice %24 {offsets = [0, 128], sizes = [8, 128], strides = [1, 1]} : vector<8x256xf32> to vector<8x128xf32>
    %32 = arith.negf %31 : vector<8x128xf32>
    %33 = math.exp %32 : vector<8x128xf32>
    %cst_25 = arith.constant 1.000000e+00 : f32
    %34 = vector.broadcast %cst_25 : f32 to vector<8x128xf32>
    %35 = arith.addf %34, %33 : vector<8x128xf32>
    %36 = arith.divf %34, %35 : vector<8x128xf32>
    %cst_26 = arith.constant 2.000000e+00 : f32
    %37 = vector.broadcast %cst_26 : f32 to vector<8x128xf32>
    %38 = arith.mulf %37, %36 : vector<8x128xf32>
    %cst_27 = arith.constant 1.000000e+00 : f32
    %39 = vector.broadcast %cst_27 : f32 to vector<8x128xf32>
    %40 = arith.subf %38, %39 : vector<8x128xf32>
    %41 = arith.select %2, %40, %36 : vector<8x128xi1>, vector<8x128xf32>
    %c64_i32_28 = arith.constant 64 : i32
    %42 = tpu.dynamic_rotate %30 by %c64_i32_28 dim 1 : vector<8x128xf32>, i32 -> vector<8x128xf32>
    %c64_i32_29 = arith.constant 64 : i32
    %43 = tpu.dynamic_rotate %41 by %c64_i32_29 dim 1 : vector<8x128xf32>, i32 -> vector<8x128xf32>
    %c0_30 = arith.constant 0 : index
    %c0_31 = arith.constant 0 : index
    %44 = vector.load %arg11[%c0_30, %c0_31] : memref<8x128xf32, #tpu.memory_space<vmem>>, vector<8x128xf32>
    %45 = arith.mulf %42, %44 : vector<8x128xf32>
    %46 = arith.mulf %30, %41 : vector<8x128xf32>
    %47 = arith.addf %45, %46 : vector<8x128xf32>
    %48 = math.tanh %47 : vector<8x128xf32>
    %49 = arith.mulf %43, %48 : vector<8x128xf32>
    %c0_32 = arith.constant 0 : index
    %c0_33 = arith.constant 0 : index
    %50 = vector.load %arg11[%c0_32, %c0_33] : memref<8x128xf32, #tpu.memory_space<vmem>>, vector<8x128xf32>
    tpu.vector_store %arg11[%c0_32, %c0_33], %47 {strides = array<i32>} : memref<8x128xf32, #tpu.memory_space<vmem>>, vector<8x128xf32>,
    %c0_34 = arith.constant 0 : index
    %c0_35 = arith.constant 0 : index
    %51 = vector.load %arg10[%c0_34, %c0_35] : memref<8x128xf32, #tpu.memory_space<vmem>>, vector<8x128xf32>
    tpu.vector_store %arg10[%c0_34, %c0_35], %49 {strides = array<i32>} : memref<8x128xf32, #tpu.memory_space<vmem>>, vector<8x128xf32>,
    %52 = arith.index_cast %c0_i32 : i32 to index
    %c0_36 = arith.constant 0 : index
    %c0_37 = arith.constant 0 : index
    %53 = vector.load %arg8[%52, %c0_36, %c0_37] : memref<8x8x128xf32, #tpu.memory_space<vmem>>, vector<1x8x128xf32>
    %54 = vector.shape_cast %53 : vector<1x8x128xf32> to vector<8x128xf32>
    %55 = vector.shape_cast %49 : vector<8x128xf32> to vector<1x8x128xf32>
    tpu.vector_store %arg8[%52, %c0_36, %c0_37], %55 {strides = array<i32>} : memref<8x8x128xf32, #tpu.memory_space<vmem>>, vector<1x8x128xf32>,
    %c1_i32 = arith.constant 1 : i32
    %c0_38 = arith.constant 0 : index
    %c0_39 = arith.constant 0 : index
    %56 = vector.load %arg10[%c0_38, %c0_39] : memref<8x128xf32, #tpu.memory_space<vmem>>, vector<8x128xf32>
    %cst_40 = arith.constant dense<0.000000e+00> : vector<8x256xf32>
    %57 = tpu.matmul %56, %6, %cst_40 {dimension_numbers = #tpu.dot_dimension_numbers<[1], [0], [0], [1], [0, 0, 1, 1], [], []>} : vector<8x128xf32>, vector<128x256xf32>, vector<8x256xf32> -> vector<8x256xf32>
    %58 = arith.index_cast %c1_i32 : i32 to index
    %c0_41 = arith.constant 0 : index
    %c0_42 = arith.constant 0 : index
    %59 = vector.load %arg9[%58, %c0_41, %c0_42] : memref<8x8x256xf32, #tpu.memory_space<vmem>>, vector<1x8x256xf32>
    %60 = vector.shape_cast %59 : vector<1x8x256xf32> to vector<8x256xf32>
    %61 = arith.addf %57, %60 : vector<8x256xf32>
    %62 = vector.extract_strided_slice %61 {offsets = [0, 0], sizes = [8, 128], strides = [1, 1]} : vector<8x256xf32> to vector<8x128xf32>
    %63 = arith.negf %62 : vector<8x128xf32>
    %64 = math.exp %63 : vector<8x128xf32>
    %cst_43 = arith.constant 1.000000e+00 : f32
    %65 = vector.broadcast %cst_43 : f32 to vector<8x128xf32>
    %66 = arith.addf %65, %64 : vector<8x128xf32>
    %67 = arith.divf %65, %66 : vector<8x128xf32>
    %68 = vector.extract_strided_slice %61 {offsets = [0, 128], sizes = [8, 128], strides = [1, 1]} : vector<8x256xf32> to vector<8x128xf32>
    %69 = arith.negf %68 : vector<8x128xf32>
    %70 = math.exp %69 : vector<8x128xf32>
    %cst_44 = arith.constant 1.000000e+00 : f32
    %71 = vector.broadcast %cst_44 : f32 to vector<8x128xf32>
    %72 = arith.addf %71, %70 : vector<8x128xf32>
    %73 = arith.divf %71, %72 : vector<8x128xf32>
    %cst_45 = arith.constant 2.000000e+00 : f32
    %74 = vector.broadcast %cst_45 : f32 to vector<8x128xf32>
    %75 = arith.mulf %74, %73 : vector<8x128xf32>
    %cst_46 = arith.constant 1.000000e+00 : f32
    %76 = vector.broadcast %cst_46 : f32 to vector<8x128xf32>
    %77 = arith.subf %75, %76 : vector<8x128xf32>
    %78 = arith.select %2, %77, %73 : vector<8x128xi1>, vector<8x128xf32>
    %c64_i32_47 = arith.constant 64 : i32
    %79 = tpu.dynamic_rotate %67 by %c64_i32_47 dim 1 : vector<8x128xf32>, i32 -> vector<8x128xf32>
    %c64_i32_48 = arith.constant 64 : i32
    %80 = tpu.dynamic_rotate %78 by %c64_i32_48 dim 1 : vector<8x128xf32>, i32 -> vector<8x128xf32>
    %c0_49 = arith.constant 0 : index
    %c0_50 = arith.constant 0 : index
    %81 = vector.load %arg11[%c0_49, %c0_50] : memref<8x128xf32, #tpu.memory_space<vmem>>, vector<8x128xf32>
    %82 = arith.mulf %79, %81 : vector<8x128xf32>
    %83 = arith.mulf %67, %78 : vector<8x128xf32>
    %84 = arith.addf %82, %83 : vector<8x128xf32>
    %85 = math.tanh %84 : vector<8x128xf32>
    %86 = arith.mulf %80, %85 : vector<8x128xf32>
    %c0_51 = arith.constant 0 : index
    %c0_52 = arith.constant 0 : index
    %87 = vector.load %arg11[%c0_51, %c0_52] : memref<8x128xf32, #tpu.memory_space<vmem>>, vector<8x128xf32>
    tpu.vector_store %arg11[%c0_51, %c0_52], %84 {strides = array<i32>} : memref<8x128xf32, #tpu.memory_space<vmem>>, vector<8x128xf32>,
    %c0_53 = arith.constant 0 : index
    %c0_54 = arith.constant 0 : index
    %88 = vector.load %arg10[%c0_53, %c0_54] : memref<8x128xf32, #tpu.memory_space<vmem>>, vector<8x128xf32>
    tpu.vector_store %arg10[%c0_53, %c0_54], %86 {strides = array<i32>} : memref<8x128xf32, #tpu.memory_space<vmem>>, vector<8x128xf32>,
    %89 = arith.index_cast %c1_i32 : i32 to index
    %c0_55 = arith.constant 0 : index
    %c0_56 = arith.constant 0 : index
    %90 = vector.load %arg8[%89, %c0_55, %c0_56] : memref<8x8x128xf32, #tpu.memory_space<vmem>>, vector<1x8x128xf32>
    %91 = vector.shape_cast %90 : vector<1x8x128xf32> to vector<8x128xf32>
    %92 = vector.shape_cast %86 : vector<8x128xf32> to vector<1x8x128xf32>
    tpu.vector_store %arg8[%89, %c0_55, %c0_56], %92 {strides = array<i32>} : memref<8x8x128xf32, #tpu.memory_space<vmem>>, vector<1x8x128xf32>,
    %c2_i32 = arith.constant 2 : i32
    %c0_57 = arith.constant 0 : index
    %c0_58 = arith.constant 0 : index
    %93 = vector.load %arg10[%c0_57, %c0_58] : memref<8x128xf32, #tpu.memory_space<vmem>>, vector<8x128xf32>
    %cst_59 = arith.constant dense<0.000000e+00> : vector<8x256xf32>
    %94 = tpu.matmul %93, %6, %cst_59 {dimension_numbers = #tpu.dot_dimension_numbers<[1], [0], [0], [1], [0, 0, 1, 1], [], []>} : vector<8x128xf32>, vector<128x256xf32>, vector<8x256xf32> -> vector<8x256xf32>
    %95 = arith.index_cast %c2_i32 : i32 to index
    %c0_60 = arith.constant 0 : index
    %c0_61 = arith.constant 0 : index
    %96 = vector.load %arg9[%95, %c0_60, %c0_61] : memref<8x8x256xf32, #tpu.memory_space<vmem>>, vector<1x8x256xf32>
    %97 = vector.shape_cast %96 : vector<1x8x256xf32> to vector<8x256xf32>
    %98 = arith.addf %94, %97 : vector<8x256xf32>
    %99 = vector.extract_strided_slice %98 {offsets = [0, 0], sizes = [8, 128], strides = [1, 1]} : vector<8x256xf32> to vector<8x128xf32>
    %100 = arith.negf %99 : vector<8x128xf32>
    %101 = math.exp %100 : vector<8x128xf32>
    %cst_62 = arith.constant 1.000000e+00 : f32
    %102 = vector.broadcast %cst_62 : f32 to vector<8x128xf32>
    %103 = arith.addf %102, %101 : vector<8x128xf32>
    %104 = arith.divf %102, %103 : vector<8x128xf32>
    %105 = vector.extract_strided_slice %98 {offsets = [0, 128], sizes = [8, 128], strides = [1, 1]} : vector<8x256xf32> to vector<8x128xf32>
    %106 = arith.negf %105 : vector<8x128xf32>
    %107 = math.exp %106 : vector<8x128xf32>
    %cst_63 = arith.constant 1.000000e+00 : f32
    %108 = vector.broadcast %cst_63 : f32 to vector<8x128xf32>
    %109 = arith.addf %108, %107 : vector<8x128xf32>
    %110 = arith.divf %108, %109 : vector<8x128xf32>
    %cst_64 = arith.constant 2.000000e+00 : f32
    %111 = vector.broadcast %cst_64 : f32 to vector<8x128xf32>
    %112 = arith.mulf %111, %110 : vector<8x128xf32>
    %cst_65 = arith.constant 1.000000e+00 : f32
    %113 = vector.broadcast %cst_65 : f32 to vector<8x128xf32>
    %114 = arith.subf %112, %113 : vector<8x128xf32>
    %115 = arith.select %2, %114, %110 : vector<8x128xi1>, vector<8x128xf32>
    %c64_i32_66 = arith.constant 64 : i32
    %116 = tpu.dynamic_rotate %104 by %c64_i32_66 dim 1 : vector<8x128xf32>, i32 -> vector<8x128xf32>
    %c64_i32_67 = arith.constant 64 : i32
    %117 = tpu.dynamic_rotate %115 by %c64_i32_67 dim 1 : vector<8x128xf32>, i32 -> vector<8x128xf32>
    %c0_68 = arith.constant 0 : index
    %c0_69 = arith.constant 0 : index
    %118 = vector.load %arg11[%c0_68, %c0_69] : memref<8x128xf32, #tpu.memory_space<vmem>>, vector<8x128xf32>
    %119 = arith.mulf %116, %118 : vector<8x128xf32>
    %120 = arith.mulf %104, %115 : vector<8x128xf32>
    %121 = arith.addf %119, %120 : vector<8x128xf32>
    %122 = math.tanh %121 : vector<8x128xf32>
    %123 = arith.mulf %117, %122 : vector<8x128xf32>
    %c0_70 = arith.constant 0 : index
    %c0_71 = arith.constant 0 : index
    %124 = vector.load %arg11[%c0_70, %c0_71] : memref<8x128xf32, #tpu.memory_space<vmem>>, vector<8x128xf32>
    tpu.vector_store %arg11[%c0_70, %c0_71], %121 {strides = array<i32>} : memref<8x128xf32, #tpu.memory_space<vmem>>, vector<8x128xf32>,
    %c0_72 = arith.constant 0 : index
    %c0_73 = arith.constant 0 : index
    %125 = vector.load %arg10[%c0_72, %c0_73] : memref<8x128xf32, #tpu.memory_space<vmem>>, vector<8x128xf32>
    tpu.vector_store %arg10[%c0_72, %c0_73], %123 {strides = array<i32>} : memref<8x128xf32, #tpu.memory_space<vmem>>, vector<8x128xf32>,
    %126 = arith.index_cast %c2_i32 : i32 to index
    %c0_74 = arith.constant 0 : index
    %c0_75 = arith.constant 0 : index
    %127 = vector.load %arg8[%126, %c0_74, %c0_75] : memref<8x8x128xf32, #tpu.memory_space<vmem>>, vector<1x8x128xf32>
    %128 = vector.shape_cast %127 : vector<1x8x128xf32> to vector<8x128xf32>
    %129 = vector.shape_cast %123 : vector<8x128xf32> to vector<1x8x128xf32>
    tpu.vector_store %arg8[%126, %c0_74, %c0_75], %129 {strides = array<i32>} : memref<8x8x128xf32, #tpu.memory_space<vmem>>, vector<1x8x128xf32>,
    %c3_i32 = arith.constant 3 : i32
    %c0_76 = arith.constant 0 : index
    %c0_77 = arith.constant 0 : index
    %130 = vector.load %arg10[%c0_76, %c0_77] : memref<8x128xf32, #tpu.memory_space<vmem>>, vector<8x128xf32>
    %cst_78 = arith.constant dense<0.000000e+00> : vector<8x256xf32>
    %131 = tpu.matmul %130, %6, %cst_78 {dimension_numbers = #tpu.dot_dimension_numbers<[1], [0], [0], [1], [0, 0, 1, 1], [], []>} : vector<8x128xf32>, vector<128x256xf32>, vector<8x256xf32> -> vector<8x256xf32>
    %132 = arith.index_cast %c3_i32 : i32 to index
    %c0_79 = arith.constant 0 : index
    %c0_80 = arith.constant 0 : index
    %133 = vector.load %arg9[%132, %c0_79, %c0_80] : memref<8x8x256xf32, #tpu.memory_space<vmem>>, vector<1x8x256xf32>
    %134 = vector.shape_cast %133 : vector<1x8x256xf32> to vector<8x256xf32>
    %135 = arith.addf %131, %134 : vector<8x256xf32>
    %136 = vector.extract_strided_slice %135 {offsets = [0, 0], sizes = [8, 128], strides = [1, 1]} : vector<8x256xf32> to vector<8x128xf32>
    %137 = arith.negf %136 : vector<8x128xf32>
    %138 = math.exp %137 : vector<8x128xf32>
    %cst_81 = arith.constant 1.000000e+00 : f32
    %139 = vector.broadcast %cst_81 : f32 to vector<8x128xf32>
    %140 = arith.addf %139, %138 : vector<8x128xf32>
    %141 = arith.divf %139, %140 : vector<8x128xf32>
    %142 = vector.extract_strided_slice %135 {offsets = [0, 128], sizes = [8, 128], strides = [1, 1]} : vector<8x256xf32> to vector<8x128xf32>
    %143 = arith.negf %142 : vector<8x128xf32>
    %144 = math.exp %143 : vector<8x128xf32>
    %cst_82 = arith.constant 1.000000e+00 : f32
    %145 = vector.broadcast %cst_82 : f32 to vector<8x128xf32>
    %146 = arith.addf %145, %144 : vector<8x128xf32>
    %147 = arith.divf %145, %146 : vector<8x128xf32>
    %cst_83 = arith.constant 2.000000e+00 : f32
    %148 = vector.broadcast %cst_83 : f32 to vector<8x128xf32>
    %149 = arith.mulf %148, %147 : vector<8x128xf32>
    %cst_84 = arith.constant 1.000000e+00 : f32
    %150 = vector.broadcast %cst_84 : f32 to vector<8x128xf32>
    %151 = arith.subf %149, %150 : vector<8x128xf32>
    %152 = arith.select %2, %151, %147 : vector<8x128xi1>, vector<8x128xf32>
    %c64_i32_85 = arith.constant 64 : i32
    %153 = tpu.dynamic_rotate %141 by %c64_i32_85 dim 1 : vector<8x128xf32>, i32 -> vector<8x128xf32>
    %c64_i32_86 = arith.constant 64 : i32
    %154 = tpu.dynamic_rotate %152 by %c64_i32_86 dim 1 : vector<8x128xf32>, i32 -> vector<8x128xf32>
    %c0_87 = arith.constant 0 : index
    %c0_88 = arith.constant 0 : index
    %155 = vector.load %arg11[%c0_87, %c0_88] : memref<8x128xf32, #tpu.memory_space<vmem>>, vector<8x128xf32>
    %156 = arith.mulf %153, %155 : vector<8x128xf32>
    %157 = arith.mulf %141, %152 : vector<8x128xf32>
    %158 = arith.addf %156, %157 : vector<8x128xf32>
    %159 = math.tanh %158 : vector<8x128xf32>
    %160 = arith.mulf %154, %159 : vector<8x128xf32>
    %c0_89 = arith.constant 0 : index
    %c0_90 = arith.constant 0 : index
    %161 = vector.load %arg11[%c0_89, %c0_90] : memref<8x128xf32, #tpu.memory_space<vmem>>, vector<8x128xf32>
    tpu.vector_store %arg11[%c0_89, %c0_90], %158 {strides = array<i32>} : memref<8x128xf32, #tpu.memory_space<vmem>>, vector<8x128xf32>,
    %c0_91 = arith.constant 0 : index
    %c0_92 = arith.constant 0 : index
    %162 = vector.load %arg10[%c0_91, %c0_92] : memref<8x128xf32, #tpu.memory_space<vmem>>, vector<8x128xf32>
    tpu.vector_store %arg10[%c0_91, %c0_92], %160 {strides = array<i32>} : memref<8x128xf32, #tpu.memory_space<vmem>>, vector<8x128xf32>,
    %163 = arith.index_cast %c3_i32 : i32 to index
    %c0_93 = arith.constant 0 : index
    %c0_94 = arith.constant 0 : index
    %164 = vector.load %arg8[%163, %c0_93, %c0_94] : memref<8x8x128xf32, #tpu.memory_space<vmem>>, vector<1x8x128xf32>
    %165 = vector.shape_cast %164 : vector<1x8x128xf32> to vector<8x128xf32>
    %166 = vector.shape_cast %160 : vector<8x128xf32> to vector<1x8x128xf32>
    tpu.vector_store %arg8[%163, %c0_93, %c0_94], %166 {strides = array<i32>} : memref<8x8x128xf32, #tpu.memory_space<vmem>>, vector<1x8x128xf32>,
    %c4_i32 = arith.constant 4 : i32
    %c0_95 = arith.constant 0 : index
    %c0_96 = arith.constant 0 : index
    %167 = vector.load %arg10[%c0_95, %c0_96] : memref<8x128xf32, #tpu.memory_space<vmem>>, vector<8x128xf32>
    %cst_97 = arith.constant dense<0.000000e+00> : vector<8x256xf32>
    %168 = tpu.matmul %167, %6, %cst_97 {dimension_numbers = #tpu.dot_dimension_numbers<[1], [0], [0], [1], [0, 0, 1, 1], [], []>} : vector<8x128xf32>, vector<128x256xf32>, vector<8x256xf32> -> vector<8x256xf32>
    %169 = arith.index_cast %c4_i32 : i32 to index
    %c0_98 = arith.constant 0 : index
    %c0_99 = arith.constant 0 : index
    %170 = vector.load %arg9[%169, %c0_98, %c0_99] : memref<8x8x256xf32, #tpu.memory_space<vmem>>, vector<1x8x256xf32>
    %171 = vector.shape_cast %170 : vector<1x8x256xf32> to vector<8x256xf32>
    %172 = arith.addf %168, %171 : vector<8x256xf32>
    %173 = vector.extract_strided_slice %172 {offsets = [0, 0], sizes = [8, 128], strides = [1, 1]} : vector<8x256xf32> to vector<8x128xf32>
    %174 = arith.negf %173 : vector<8x128xf32>
    %175 = math.exp %174 : vector<8x128xf32>
    %cst_100 = arith.constant 1.000000e+00 : f32
    %176 = vector.broadcast %cst_100 : f32 to vector<8x128xf32>
    %177 = arith.addf %176, %175 : vector<8x128xf32>
    %178 = arith.divf %176, %177 : vector<8x128xf32>
    %179 = vector.extract_strided_slice %172 {offsets = [0, 128], sizes = [8, 128], strides = [1, 1]} : vector<8x256xf32> to vector<8x128xf32>
    %180 = arith.negf %179 : vector<8x128xf32>
    %181 = math.exp %180 : vector<8x128xf32>
    %cst_101 = arith.constant 1.000000e+00 : f32
    %182 = vector.broadcast %cst_101 : f32 to vector<8x128xf32>
    %183 = arith.addf %182, %181 : vector<8x128xf32>
    %184 = arith.divf %182, %183 : vector<8x128xf32>
    %cst_102 = arith.constant 2.000000e+00 : f32
    %185 = vector.broadcast %cst_102 : f32 to vector<8x128xf32>
    %186 = arith.mulf %185, %184 : vector<8x128xf32>
    %cst_103 = arith.constant 1.000000e+00 : f32
    %187 = vector.broadcast %cst_103 : f32 to vector<8x128xf32>
    %188 = arith.subf %186, %187 : vector<8x128xf32>
    %189 = arith.select %2, %188, %184 : vector<8x128xi1>, vector<8x128xf32>
    %c64_i32_104 = arith.constant 64 : i32
    %190 = tpu.dynamic_rotate %178 by %c64_i32_104 dim 1 : vector<8x128xf32>, i32 -> vector<8x128xf32>
    %c64_i32_105 = arith.constant 64 : i32
    %191 = tpu.dynamic_rotate %189 by %c64_i32_105 dim 1 : vector<8x128xf32>, i32 -> vector<8x128xf32>
    %c0_106 = arith.constant 0 : index
    %c0_107 = arith.constant 0 : index
    %192 = vector.load %arg11[%c0_106, %c0_107] : memref<8x128xf32, #tpu.memory_space<vmem>>, vector<8x128xf32>
    %193 = arith.mulf %190, %192 : vector<8x128xf32>
    %194 = arith.mulf %178, %189 : vector<8x128xf32>
    %195 = arith.addf %193, %194 : vector<8x128xf32>
    %196 = math.tanh %195 : vector<8x128xf32>
    %197 = arith.mulf %191, %196 : vector<8x128xf32>
    %c0_108 = arith.constant 0 : index
    %c0_109 = arith.constant 0 : index
    %198 = vector.load %arg11[%c0_108, %c0_109] : memref<8x128xf32, #tpu.memory_space<vmem>>, vector<8x128xf32>
    tpu.vector_store %arg11[%c0_108, %c0_109], %195 {strides = array<i32>} : memref<8x128xf32, #tpu.memory_space<vmem>>, vector<8x128xf32>,
    %c0_110 = arith.constant 0 : index
    %c0_111 = arith.constant 0 : index
    %199 = vector.load %arg10[%c0_110, %c0_111] : memref<8x128xf32, #tpu.memory_space<vmem>>, vector<8x128xf32>
    tpu.vector_store %arg10[%c0_110, %c0_111], %197 {strides = array<i32>} : memref<8x128xf32, #tpu.memory_space<vmem>>, vector<8x128xf32>,
    %200 = arith.index_cast %c4_i32 : i32 to index
    %c0_112 = arith.constant 0 : index
    %c0_113 = arith.constant 0 : index
    %201 = vector.load %arg8[%200, %c0_112, %c0_113] : memref<8x8x128xf32, #tpu.memory_space<vmem>>, vector<1x8x128xf32>
    %202 = vector.shape_cast %201 : vector<1x8x128xf32> to vector<8x128xf32>
    %203 = vector.shape_cast %197 : vector<8x128xf32> to vector<1x8x128xf32>
    tpu.vector_store %arg8[%200, %c0_112, %c0_113], %203 {strides = array<i32>} : memref<8x8x128xf32, #tpu.memory_space<vmem>>, vector<1x8x128xf32>,
    %c5_i32 = arith.constant 5 : i32
    %c0_114 = arith.constant 0 : index
    %c0_115 = arith.constant 0 : index
    %204 = vector.load %arg10[%c0_114, %c0_115] : memref<8x128xf32, #tpu.memory_space<vmem>>, vector<8x128xf32>
    %cst_116 = arith.constant dense<0.000000e+00> : vector<8x256xf32>
    %205 = tpu.matmul %204, %6, %cst_116 {dimension_numbers = #tpu.dot_dimension_numbers<[1], [0], [0], [1], [0, 0, 1, 1], [], []>} : vector<8x128xf32>, vector<128x256xf32>, vector<8x256xf32> -> vector<8x256xf32>
    %206 = arith.index_cast %c5_i32 : i32 to index
    %c0_117 = arith.constant 0 : index
    %c0_118 = arith.constant 0 : index
    %207 = vector.load %arg9[%206, %c0_117, %c0_118] : memref<8x8x256xf32, #tpu.memory_space<vmem>>, vector<1x8x256xf32>
    %208 = vector.shape_cast %207 : vector<1x8x256xf32> to vector<8x256xf32>
    %209 = arith.addf %205, %208 : vector<8x256xf32>
    %210 = vector.extract_strided_slice %209 {offsets = [0, 0], sizes = [8, 128], strides = [1, 1]} : vector<8x256xf32> to vector<8x128xf32>
    %211 = arith.negf %210 : vector<8x128xf32>
    %212 = math.exp %211 : vector<8x128xf32>
    %cst_119 = arith.constant 1.000000e+00 : f32
    %213 = vector.broadcast %cst_119 : f32 to vector<8x128xf32>
    %214 = arith.addf %213, %212 : vector<8x128xf32>
    %215 = arith.divf %213, %214 : vector<8x128xf32>
    %216 = vector.extract_strided_slice %209 {offsets = [0, 128], sizes = [8, 128], strides = [1, 1]} : vector<8x256xf32> to vector<8x128xf32>
    %217 = arith.negf %216 : vector<8x128xf32>
    %218 = math.exp %217 : vector<8x128xf32>
    %cst_120 = arith.constant 1.000000e+00 : f32
    %219 = vector.broadcast %cst_120 : f32 to vector<8x128xf32>
    %220 = arith.addf %219, %218 : vector<8x128xf32>
    %221 = arith.divf %219, %220 : vector<8x128xf32>
    %cst_121 = arith.constant 2.000000e+00 : f32
    %222 = vector.broadcast %cst_121 : f32 to vector<8x128xf32>
    %223 = arith.mulf %222, %221 : vector<8x128xf32>
    %cst_122 = arith.constant 1.000000e+00 : f32
    %224 = vector.broadcast %cst_122 : f32 to vector<8x128xf32>
    %225 = arith.subf %223, %224 : vector<8x128xf32>
    %226 = arith.select %2, %225, %221 : vector<8x128xi1>, vector<8x128xf32>
    %c64_i32_123 = arith.constant 64 : i32
    %227 = tpu.dynamic_rotate %215 by %c64_i32_123 dim 1 : vector<8x128xf32>, i32 -> vector<8x128xf32>
    %c64_i32_124 = arith.constant 64 : i32
    %228 = tpu.dynamic_rotate %226 by %c64_i32_124 dim 1 : vector<8x128xf32>, i32 -> vector<8x128xf32>
    %c0_125 = arith.constant 0 : index
    %c0_126 = arith.constant 0 : index
    %229 = vector.load %arg11[%c0_125, %c0_126] : memref<8x128xf32, #tpu.memory_space<vmem>>, vector<8x128xf32>
    %230 = arith.mulf %227, %229 : vector<8x128xf32>
    %231 = arith.mulf %215, %226 : vector<8x128xf32>
    %232 = arith.addf %230, %231 : vector<8x128xf32>
    %233 = math.tanh %232 : vector<8x128xf32>
    %234 = arith.mulf %228, %233 : vector<8x128xf32>
    %c0_127 = arith.constant 0 : index
    %c0_128 = arith.constant 0 : index
    %235 = vector.load %arg11[%c0_127, %c0_128] : memref<8x128xf32, #tpu.memory_space<vmem>>, vector<8x128xf32>
    tpu.vector_store %arg11[%c0_127, %c0_128], %232 {strides = array<i32>} : memref<8x128xf32, #tpu.memory_space<vmem>>, vector<8x128xf32>,
    %c0_129 = arith.constant 0 : index
    %c0_130 = arith.constant 0 : index
    %236 = vector.load %arg10[%c0_129, %c0_130] : memref<8x128xf32, #tpu.memory_space<vmem>>, vector<8x128xf32>
    tpu.vector_store %arg10[%c0_129, %c0_130], %234 {strides = array<i32>} : memref<8x128xf32, #tpu.memory_space<vmem>>, vector<8x128xf32>,
    %237 = arith.index_cast %c5_i32 : i32 to index
    %c0_131 = arith.constant 0 : index
    %c0_132 = arith.constant 0 : index
    %238 = vector.load %arg8[%237, %c0_131, %c0_132] : memref<8x8x128xf32, #tpu.memory_space<vmem>>, vector<1x8x128xf32>
    %239 = vector.shape_cast %238 : vector<1x8x128xf32> to vector<8x128xf32>
    %240 = vector.shape_cast %234 : vector<8x128xf32> to vector<1x8x128xf32>
    tpu.vector_store %arg8[%237, %c0_131, %c0_132], %240 {strides = array<i32>} : memref<8x8x128xf32, #tpu.memory_space<vmem>>, vector<1x8x128xf32>,
    %c6_i32 = arith.constant 6 : i32
    %c0_133 = arith.constant 0 : index
    %c0_134 = arith.constant 0 : index
    %241 = vector.load %arg10[%c0_133, %c0_134] : memref<8x128xf32, #tpu.memory_space<vmem>>, vector<8x128xf32>
    %cst_135 = arith.constant dense<0.000000e+00> : vector<8x256xf32>
    %242 = tpu.matmul %241, %6, %cst_135 {dimension_numbers = #tpu.dot_dimension_numbers<[1], [0], [0], [1], [0, 0, 1, 1], [], []>} : vector<8x128xf32>, vector<128x256xf32>, vector<8x256xf32> -> vector<8x256xf32>
    %243 = arith.index_cast %c6_i32 : i32 to index
    %c0_136 = arith.constant 0 : index
    %c0_137 = arith.constant 0 : index
    %244 = vector.load %arg9[%243, %c0_136, %c0_137] : memref<8x8x256xf32, #tpu.memory_space<vmem>>, vector<1x8x256xf32>
    %245 = vector.shape_cast %244 : vector<1x8x256xf32> to vector<8x256xf32>
    %246 = arith.addf %242, %245 : vector<8x256xf32>
    %247 = vector.extract_strided_slice %246 {offsets = [0, 0], sizes = [8, 128], strides = [1, 1]} : vector<8x256xf32> to vector<8x128xf32>
    %248 = arith.negf %247 : vector<8x128xf32>
    %249 = math.exp %248 : vector<8x128xf32>
    %cst_138 = arith.constant 1.000000e+00 : f32
    %250 = vector.broadcast %cst_138 : f32 to vector<8x128xf32>
    %251 = arith.addf %250, %249 : vector<8x128xf32>
    %252 = arith.divf %250, %251 : vector<8x128xf32>
    %253 = vector.extract_strided_slice %246 {offsets = [0, 128], sizes = [8, 128], strides = [1, 1]} : vector<8x256xf32> to vector<8x128xf32>
    %254 = arith.negf %253 : vector<8x128xf32>
    %255 = math.exp %254 : vector<8x128xf32>
    %cst_139 = arith.constant 1.000000e+00 : f32
    %256 = vector.broadcast %cst_139 : f32 to vector<8x128xf32>
    %257 = arith.addf %256, %255 : vector<8x128xf32>
    %258 = arith.divf %256, %257 : vector<8x128xf32>
    %cst_140 = arith.constant 2.000000e+00 : f32
    %259 = vector.broadcast %cst_140 : f32 to vector<8x128xf32>
    %260 = arith.mulf %259, %258 : vector<8x128xf32>
    %cst_141 = arith.constant 1.000000e+00 : f32
    %261 = vector.broadcast %cst_141 : f32 to vector<8x128xf32>
    %262 = arith.subf %260, %261 : vector<8x128xf32>
    %263 = arith.select %2, %262, %258 : vector<8x128xi1>, vector<8x128xf32>
    %c64_i32_142 = arith.constant 64 : i32
    %264 = tpu.dynamic_rotate %252 by %c64_i32_142 dim 1 : vector<8x128xf32>, i32 -> vector<8x128xf32>
    %c64_i32_143 = arith.constant 64 : i32
    %265 = tpu.dynamic_rotate %263 by %c64_i32_143 dim 1 : vector<8x128xf32>, i32 -> vector<8x128xf32>
    %c0_144 = arith.constant 0 : index
    %c0_145 = arith.constant 0 : index
    %266 = vector.load %arg11[%c0_144, %c0_145] : memref<8x128xf32, #tpu.memory_space<vmem>>, vector<8x128xf32>
    %267 = arith.mulf %264, %266 : vector<8x128xf32>
    %268 = arith.mulf %252, %263 : vector<8x128xf32>
    %269 = arith.addf %267, %268 : vector<8x128xf32>
    %270 = math.tanh %269 : vector<8x128xf32>
    %271 = arith.mulf %265, %270 : vector<8x128xf32>
    %c0_146 = arith.constant 0 : index
    %c0_147 = arith.constant 0 : index
    %272 = vector.load %arg11[%c0_146, %c0_147] : memref<8x128xf32, #tpu.memory_space<vmem>>, vector<8x128xf32>
    tpu.vector_store %arg11[%c0_146, %c0_147], %269 {strides = array<i32>} : memref<8x128xf32, #tpu.memory_space<vmem>>, vector<8x128xf32>,
    %c0_148 = arith.constant 0 : index
    %c0_149 = arith.constant 0 : index
    %273 = vector.load %arg10[%c0_148, %c0_149] : memref<8x128xf32, #tpu.memory_space<vmem>>, vector<8x128xf32>
    tpu.vector_store %arg10[%c0_148, %c0_149], %271 {strides = array<i32>} : memref<8x128xf32, #tpu.memory_space<vmem>>, vector<8x128xf32>,
    %274 = arith.index_cast %c6_i32 : i32 to index
    %c0_150 = arith.constant 0 : index
    %c0_151 = arith.constant 0 : index
    %275 = vector.load %arg8[%274, %c0_150, %c0_151] : memref<8x8x128xf32, #tpu.memory_space<vmem>>, vector<1x8x128xf32>
    %276 = vector.shape_cast %275 : vector<1x8x128xf32> to vector<8x128xf32>
    %277 = vector.shape_cast %271 : vector<8x128xf32> to vector<1x8x128xf32>
    tpu.vector_store %arg8[%274, %c0_150, %c0_151], %277 {strides = array<i32>} : memref<8x8x128xf32, #tpu.memory_space<vmem>>, vector<1x8x128xf32>,
    %c7_i32 = arith.constant 7 : i32
    %c0_152 = arith.constant 0 : index
    %c0_153 = arith.constant 0 : index
    %278 = vector.load %arg10[%c0_152, %c0_153] : memref<8x128xf32, #tpu.memory_space<vmem>>, vector<8x128xf32>
    %cst_154 = arith.constant dense<0.000000e+00> : vector<8x256xf32>
    %279 = tpu.matmul %278, %6, %cst_154 {dimension_numbers = #tpu.dot_dimension_numbers<[1], [0], [0], [1], [0, 0, 1, 1], [], []>} : vector<8x128xf32>, vector<128x256xf32>, vector<8x256xf32> -> vector<8x256xf32>
    %280 = arith.index_cast %c7_i32 : i32 to index
    %c0_155 = arith.constant 0 : index
    %c0_156 = arith.constant 0 : index
    %281 = vector.load %arg9[%280, %c0_155, %c0_156] : memref<8x8x256xf32, #tpu.memory_space<vmem>>, vector<1x8x256xf32>
    %282 = vector.shape_cast %281 : vector<1x8x256xf32> to vector<8x256xf32>
    %283 = arith.addf %279, %282 : vector<8x256xf32>
    %284 = vector.extract_strided_slice %283 {offsets = [0, 0], sizes = [8, 128], strides = [1, 1]} : vector<8x256xf32> to vector<8x128xf32>
    %285 = arith.negf %284 : vector<8x128xf32>
    %286 = math.exp %285 : vector<8x128xf32>
    %cst_157 = arith.constant 1.000000e+00 : f32
    %287 = vector.broadcast %cst_157 : f32 to vector<8x128xf32>
    %288 = arith.addf %287, %286 : vector<8x128xf32>
    %289 = arith.divf %287, %288 : vector<8x128xf32>
    %290 = vector.extract_strided_slice %283 {offsets = [0, 128], sizes = [8, 128], strides = [1, 1]} : vector<8x256xf32> to vector<8x128xf32>
    %291 = arith.negf %290 : vector<8x128xf32>
    %292 = math.exp %291 : vector<8x128xf32>
    %cst_158 = arith.constant 1.000000e+00 : f32
    %293 = vector.broadcast %cst_158 : f32 to vector<8x128xf32>
    %294 = arith.addf %293, %292 : vector<8x128xf32>
    %295 = arith.divf %293, %294 : vector<8x128xf32>
    %cst_159 = arith.constant 2.000000e+00 : f32
    %296 = vector.broadcast %cst_159 : f32 to vector<8x128xf32>
    %297 = arith.mulf %296, %295 : vector<8x128xf32>
    %cst_160 = arith.constant 1.000000e+00 : f32
    %298 = vector.broadcast %cst_160 : f32 to vector<8x128xf32>
    %299 = arith.subf %297, %298 : vector<8x128xf32>
    %300 = arith.select %2, %299, %295 : vector<8x128xi1>, vector<8x128xf32>
    %c64_i32_161 = arith.constant 64 : i32
    %301 = tpu.dynamic_rotate %289 by %c64_i32_161 dim 1 : vector<8x128xf32>, i32 -> vector<8x128xf32>
    %c64_i32_162 = arith.constant 64 : i32
    %302 = tpu.dynamic_rotate %300 by %c64_i32_162 dim 1 : vector<8x128xf32>, i32 -> vector<8x128xf32>
    %c0_163 = arith.constant 0 : index
    %c0_164 = arith.constant 0 : index
    %303 = vector.load %arg11[%c0_163, %c0_164] : memref<8x128xf32, #tpu.memory_space<vmem>>, vector<8x128xf32>
    %304 = arith.mulf %301, %303 : vector<8x128xf32>
    %305 = arith.mulf %289, %300 : vector<8x128xf32>
    %306 = arith.addf %304, %305 : vector<8x128xf32>
    %307 = math.tanh %306 : vector<8x128xf32>
    %308 = arith.mulf %302, %307 : vector<8x128xf32>
    %c0_165 = arith.constant 0 : index
    %c0_166 = arith.constant 0 : index
    %309 = vector.load %arg11[%c0_165, %c0_166] : memref<8x128xf32, #tpu.memory_space<vmem>>, vector<8x128xf32>
    tpu.vector_store %arg11[%c0_165, %c0_166], %306 {strides = array<i32>} : memref<8x128xf32, #tpu.memory_space<vmem>>, vector<8x128xf32>,
    %c0_167 = arith.constant 0 : index
    %c0_168 = arith.constant 0 : index
    %310 = vector.load %arg10[%c0_167, %c0_168] : memref<8x128xf32, #tpu.memory_space<vmem>>, vector<8x128xf32>
    tpu.vector_store %arg10[%c0_167, %c0_168], %308 {strides = array<i32>} : memref<8x128xf32, #tpu.memory_space<vmem>>, vector<8x128xf32>,
    %311 = arith.index_cast %c7_i32 : i32 to index
    %c0_169 = arith.constant 0 : index
    %c0_170 = arith.constant 0 : index
    %312 = vector.load %arg8[%311, %c0_169, %c0_170] : memref<8x8x128xf32, #tpu.memory_space<vmem>>, vector<1x8x128xf32>
    %313 = vector.shape_cast %312 : vector<1x8x128xf32> to vector<8x128xf32>
    %314 = vector.shape_cast %308 : vector<8x128xf32> to vector<1x8x128xf32>
    tpu.vector_store %arg8[%311, %c0_169, %c0_170], %314 {strides = array<i32>} : memref<8x8x128xf32, #tpu.memory_space<vmem>>, vector<1x8x128xf32>,
    %c8_i32 = arith.constant 8 : i32
    %c1 = arith.constant 1 : index
    %c0_171 = arith.constant 0 : index
    %c0_172 = arith.constant 0 : index
    %315 = vector.load %arg2[%c1, %c0_171, %c0_172] : memref<5x128x256xf32, #tpu.memory_space<vmem>>, vector<1x128x256xf32>
    %316 = vector.shape_cast %315 : vector<1x128x256xf32> to vector<128x256xf32>
    %c1_173 = arith.constant 1 : index
    %c0_174 = arith.constant 0 : index
    %c0_175 = arith.constant 0 : index
    %317 = vector.load %arg3[%c1_173, %c0_174, %c0_175] : memref<5x128x256xf32, #tpu.memory_space<vmem>>, vector<1x128x256xf32>
    %318 = vector.shape_cast %317 : vector<1x128x256xf32> to vector<128x256xf32>
    %c1_176 = arith.constant 1 : index
    %c0_177 = arith.constant 0 : index
    %319 = vector.load %arg4[%c1_176, %c0_177] : memref<5x256xf32, #tpu.memory_space<vmem>>, vector<1x256xf32>
    %c0_178 = arith.constant 0 : index
    %c0_179 = arith.constant 0 : index
    %c0_180 = arith.constant 0 : index
    %320 = vector.load %arg8[%c0_178, %c0_179, %c0_180] : memref<8x8x128xf32, #tpu.memory_space<vmem>>, vector<8x8x128xf32>
    %321 = vector.shape_cast %320 : vector<8x8x128xf32> to vector<64x128xf32>
    %cst_181 = arith.constant dense<0.000000e+00> : vector<64x256xf32>
    %322 = tpu.matmul %321, %316, %cst_181 {dimension_numbers = #tpu.dot_dimension_numbers<[1], [0], [0], [1], [0, 0, 1, 1], [], []>} : vector<64x128xf32>, vector<128x256xf32>, vector<64x256xf32> -> vector<64x256xf32>
    %323 = vector.broadcast %319 : vector<1x256xf32> to vector<64x256xf32>
    %324 = arith.addf %322, %323 : vector<64x256xf32>
    %325 = vector.shape_cast %324 : vector<64x256xf32> to vector<8x8x256xf32>
    %c0_182 = arith.constant 0 : index
    %c0_183 = arith.constant 0 : index
    %c0_184 = arith.constant 0 : index
    %326 = vector.load %arg9[%c0_182, %c0_183, %c0_184] : memref<8x8x256xf32, #tpu.memory_space<vmem>>, vector<8x8x256xf32>
    tpu.vector_store %arg9[%c0_182, %c0_183, %c0_184], %325 {strides = array<i32>} : memref<8x8x256xf32, #tpu.memory_space<vmem>>, vector<8x8x256xf32>,
    %cst_185 = arith.constant 0.000000e+00 : f32
    %327 = vector.broadcast %cst_185 : f32 to vector<8x128xf32>
    %c0_186 = arith.constant 0 : index
    %c0_187 = arith.constant 0 : index
    %328 = vector.load %arg10[%c0_186, %c0_187] : memref<8x128xf32, #tpu.memory_space<vmem>>, vector<8x128xf32>
    tpu.vector_store %arg10[%c0_186, %c0_187], %327 {strides = array<i32>} : memref<8x128xf32, #tpu.memory_space<vmem>>, vector<8x128xf32>,
    %cst_188 = arith.constant 0.000000e+00 : f32
    %329 = vector.broadcast %cst_188 : f32 to vector<8x128xf32>
    %c0_189 = arith.constant 0 : index
    %c0_190 = arith.constant 0 : index
    %330 = vector.load %arg11[%c0_189, %c0_190] : memref<8x128xf32, #tpu.memory_space<vmem>>, vector<8x128xf32>
    tpu.vector_store %arg11[%c0_189, %c0_190], %329 {strides = array<i32>} : memref<8x128xf32, #tpu.memory_space<vmem>>, vector<8x128xf32>,
    %c0_i32_191 = arith.constant 0 : i32
    %c0_192 = arith.constant 0 : index
    %c0_193 = arith.constant 0 : index
    %331 = vector.load %arg10[%c0_192, %c0_193] : memref<8x128xf32, #tpu.memory_space<vmem>>, vector<8x128xf32>
    %cst_194 = arith.constant dense<0.000000e+00> : vector<8x256xf32>
    %332 = tpu.matmul %331, %318, %cst_194 {dimension_numbers = #tpu.dot_dimension_numbers<[1], [0], [0], [1], [0, 0, 1, 1], [], []>} : vector<8x128xf32>, vector<128x256xf32>, vector<8x256xf32> -> vector<8x256xf32>
    %333 = arith.index_cast %c0_i32_191 : i32 to index
    %c0_195 = arith.constant 0 : index
    %c0_196 = arith.constant 0 : index
    %334 = vector.load %arg9[%333, %c0_195, %c0_196] : memref<8x8x256xf32, #tpu.memory_space<vmem>>, vector<1x8x256xf32>
    %335 = vector.shape_cast %334 : vector<1x8x256xf32> to vector<8x256xf32>
    %336 = arith.addf %332, %335 : vector<8x256xf32>
    %337 = vector.extract_strided_slice %336 {offsets = [0, 0], sizes = [8, 128], strides = [1, 1]} : vector<8x256xf32> to vector<8x128xf32>
    %338 = arith.negf %337 : vector<8x128xf32>
    %339 = math.exp %338 : vector<8x128xf32>
    %cst_197 = arith.constant 1.000000e+00 : f32
    %340 = vector.broadcast %cst_197 : f32 to vector<8x128xf32>
    %341 = arith.addf %340, %339 : vector<8x128xf32>
    %342 = arith.divf %340, %341 : vector<8x128xf32>
    %343 = vector.extract_strided_slice %336 {offsets = [0, 128], sizes = [8, 128], strides = [1, 1]} : vector<8x256xf32> to vector<8x128xf32>
    %344 = arith.negf %343 : vector<8x128xf32>
    %345 = math.exp %344 : vector<8x128xf32>
    %cst_198 = arith.constant 1.000000e+00 : f32
    %346 = vector.broadcast %cst_198 : f32 to vector<8x128xf32>
    %347 = arith.addf %346, %345 : vector<8x128xf32>
    %348 = arith.divf %346, %347 : vector<8x128xf32>
    %cst_199 = arith.constant 2.000000e+00 : f32
    %349 = vector.broadcast %cst_199 : f32 to vector<8x128xf32>
    %350 = arith.mulf %349, %348 : vector<8x128xf32>
    %cst_200 = arith.constant 1.000000e+00 : f32
    %351 = vector.broadcast %cst_200 : f32 to vector<8x128xf32>
    %352 = arith.subf %350, %351 : vector<8x128xf32>
    %353 = arith.select %2, %352, %348 : vector<8x128xi1>, vector<8x128xf32>
    %c64_i32_201 = arith.constant 64 : i32
    %354 = tpu.dynamic_rotate %342 by %c64_i32_201 dim 1 : vector<8x128xf32>, i32 -> vector<8x128xf32>
    %c64_i32_202 = arith.constant 64 : i32
    %355 = tpu.dynamic_rotate %353 by %c64_i32_202 dim 1 : vector<8x128xf32>, i32 -> vector<8x128xf32>
    %c0_203 = arith.constant 0 : index
    %c0_204 = arith.constant 0 : index
    %356 = vector.load %arg11[%c0_203, %c0_204] : memref<8x128xf32, #tpu.memory_space<vmem>>, vector<8x128xf32>
    %357 = arith.mulf %354, %356 : vector<8x128xf32>
    %358 = arith.mulf %342, %353 : vector<8x128xf32>
    %359 = arith.addf %357, %358 : vector<8x128xf32>
    %360 = math.tanh %359 : vector<8x128xf32>
    %361 = arith.mulf %355, %360 : vector<8x128xf32>
    %c0_205 = arith.constant 0 : index
    %c0_206 = arith.constant 0 : index
    %362 = vector.load %arg11[%c0_205, %c0_206] : memref<8x128xf32, #tpu.memory_space<vmem>>, vector<8x128xf32>
    tpu.vector_store %arg11[%c0_205, %c0_206], %359 {strides = array<i32>} : memref<8x128xf32, #tpu.memory_space<vmem>>, vector<8x128xf32>,
    %c0_207 = arith.constant 0 : index
    %c0_208 = arith.constant 0 : index
    %363 = vector.load %arg10[%c0_207, %c0_208] : memref<8x128xf32, #tpu.memory_space<vmem>>, vector<8x128xf32>
    tpu.vector_store %arg10[%c0_207, %c0_208], %361 {strides = array<i32>} : memref<8x128xf32, #tpu.memory_space<vmem>>, vector<8x128xf32>,
    %364 = arith.index_cast %c0_i32_191 : i32 to index
    %c0_209 = arith.constant 0 : index
    %c0_210 = arith.constant 0 : index
    %365 = vector.load %arg8[%364, %c0_209, %c0_210] : memref<8x8x128xf32, #tpu.memory_space<vmem>>, vector<1x8x128xf32>
    %366 = vector.shape_cast %365 : vector<1x8x128xf32> to vector<8x128xf32>
    %367 = vector.shape_cast %361 : vector<8x128xf32> to vector<1x8x128xf32>
    tpu.vector_store %arg8[%364, %c0_209, %c0_210], %367 {strides = array<i32>} : memref<8x8x128xf32, #tpu.memory_space<vmem>>, vector<1x8x128xf32>,
    %c1_i32_211 = arith.constant 1 : i32
    %c0_212 = arith.constant 0 : index
    %c0_213 = arith.constant 0 : index
    %368 = vector.load %arg10[%c0_212, %c0_213] : memref<8x128xf32, #tpu.memory_space<vmem>>, vector<8x128xf32>
    %cst_214 = arith.constant dense<0.000000e+00> : vector<8x256xf32>
    %369 = tpu.matmul %368, %318, %cst_214 {dimension_numbers = #tpu.dot_dimension_numbers<[1], [0], [0], [1], [0, 0, 1, 1], [], []>} : vector<8x128xf32>, vector<128x256xf32>, vector<8x256xf32> -> vector<8x256xf32>
    %370 = arith.index_cast %c1_i32_211 : i32 to index
    %c0_215 = arith.constant 0 : index
    %c0_216 = arith.constant 0 : index
    %371 = vector.load %arg9[%370, %c0_215, %c0_216] : memref<8x8x256xf32, #tpu.memory_space<vmem>>, vector<1x8x256xf32>
    %372 = vector.shape_cast %371 : vector<1x8x256xf32> to vector<8x256xf32>
    %373 = arith.addf %369, %372 : vector<8x256xf32>
    %374 = vector.extract_strided_slice %373 {offsets = [0, 0], sizes = [8, 128], strides = [1, 1]} : vector<8x256xf32> to vector<8x128xf32>
    %375 = arith.negf %374 : vector<8x128xf32>
    %376 = math.exp %375 : vector<8x128xf32>
    %cst_217 = arith.constant 1.000000e+00 : f32
    %377 = vector.broadcast %cst_217 : f32 to vector<8x128xf32>
    %378 = arith.addf %377, %376 : vector<8x128xf32>
    %379 = arith.divf %377, %378 : vector<8x128xf32>
    %380 = vector.extract_strided_slice %373 {offsets = [0, 128], sizes = [8, 128], strides = [1, 1]} : vector<8x256xf32> to vector<8x128xf32>
    %381 = arith.negf %380 : vector<8x128xf32>
    %382 = math.exp %381 : vector<8x128xf32>
    %cst_218 = arith.constant 1.000000e+00 : f32
    %383 = vector.broadcast %cst_218 : f32 to vector<8x128xf32>
    %384 = arith.addf %383, %382 : vector<8x128xf32>
    %385 = arith.divf %383, %384 : vector<8x128xf32>
    %cst_219 = arith.constant 2.000000e+00 : f32
    %386 = vector.broadcast %cst_219 : f32 to vector<8x128xf32>
    %387 = arith.mulf %386, %385 : vector<8x128xf32>
    %cst_220 = arith.constant 1.000000e+00 : f32
    %388 = vector.broadcast %cst_220 : f32 to vector<8x128xf32>
    %389 = arith.subf %387, %388 : vector<8x128xf32>
    %390 = arith.select %2, %389, %385 : vector<8x128xi1>, vector<8x128xf32>
    %c64_i32_221 = arith.constant 64 : i32
    %391 = tpu.dynamic_rotate %379 by %c64_i32_221 dim 1 : vector<8x128xf32>, i32 -> vector<8x128xf32>
    %c64_i32_222 = arith.constant 64 : i32
    %392 = tpu.dynamic_rotate %390 by %c64_i32_222 dim 1 : vector<8x128xf32>, i32 -> vector<8x128xf32>
    %c0_223 = arith.constant 0 : index
    %c0_224 = arith.constant 0 : index
    %393 = vector.load %arg11[%c0_223, %c0_224] : memref<8x128xf32, #tpu.memory_space<vmem>>, vector<8x128xf32>
    %394 = arith.mulf %391, %393 : vector<8x128xf32>
    %395 = arith.mulf %379, %390 : vector<8x128xf32>
    %396 = arith.addf %394, %395 : vector<8x128xf32>
    %397 = math.tanh %396 : vector<8x128xf32>
    %398 = arith.mulf %392, %397 : vector<8x128xf32>
    %c0_225 = arith.constant 0 : index
    %c0_226 = arith.constant 0 : index
    %399 = vector.load %arg11[%c0_225, %c0_226] : memref<8x128xf32, #tpu.memory_space<vmem>>, vector<8x128xf32>
    tpu.vector_store %arg11[%c0_225, %c0_226], %396 {strides = array<i32>} : memref<8x128xf32, #tpu.memory_space<vmem>>, vector<8x128xf32>,
    %c0_227 = arith.constant 0 : index
    %c0_228 = arith.constant 0 : index
    %400 = vector.load %arg10[%c0_227, %c0_228] : memref<8x128xf32, #tpu.memory_space<vmem>>, vector<8x128xf32>
    tpu.vector_store %arg10[%c0_227, %c0_228], %398 {strides = array<i32>} : memref<8x128xf32, #tpu.memory_space<vmem>>, vector<8x128xf32>,
    %401 = arith.index_cast %c1_i32_211 : i32 to index
    %c0_229 = arith.constant 0 : index
    %c0_230 = arith.constant 0 : index
    %402 = vector.load %arg8[%401, %c0_229, %c0_230] : memref<8x8x128xf32, #tpu.memory_space<vmem>>, vector<1x8x128xf32>
    %403 = vector.shape_cast %402 : vector<1x8x128xf32> to vector<8x128xf32>
    %404 = vector.shape_cast %398 : vector<8x128xf32> to vector<1x8x128xf32>
    tpu.vector_store %arg8[%401, %c0_229, %c0_230], %404 {strides = array<i32>} : memref<8x8x128xf32, #tpu.memory_space<vmem>>, vector<1x8x128xf32>,
    %c2_i32_231 = arith.constant 2 : i32
    %c0_232 = arith.constant 0 : index
    %c0_233 = arith.constant 0 : index
    %405 = vector.load %arg10[%c0_232, %c0_233] : memref<8x128xf32, #tpu.memory_space<vmem>>, vector<8x128xf32>
    %cst_234 = arith.constant dense<0.000000e+00> : vector<8x256xf32>
    %406 = tpu.matmul %405, %318, %cst_234 {dimension_numbers = #tpu.dot_dimension_numbers<[1], [0], [0], [1], [0, 0, 1, 1], [], []>} : vector<8x128xf32>, vector<128x256xf32>, vector<8x256xf32> -> vector<8x256xf32>
    %407 = arith.index_cast %c2_i32_231 : i32 to index
    %c0_235 = arith.constant 0 : index
    %c0_236 = arith.constant 0 : index
    %408 = vector.load %arg9[%407, %c0_235, %c0_236] : memref<8x8x256xf32, #tpu.memory_space<vmem>>, vector<1x8x256xf32>
    %409 = vector.shape_cast %408 : vector<1x8x256xf32> to vector<8x256xf32>
    %410 = arith.addf %406, %409 : vector<8x256xf32>
    %411 = vector.extract_strided_slice %410 {offsets = [0, 0], sizes = [8, 128], strides = [1, 1]} : vector<8x256xf32> to vector<8x128xf32>
    %412 = arith.negf %411 : vector<8x128xf32>
    %413 = math.exp %412 : vector<8x128xf32>
    %cst_237 = arith.constant 1.000000e+00 : f32
    %414 = vector.broadcast %cst_237 : f32 to vector<8x128xf32>
    %415 = arith.addf %414, %413 : vector<8x128xf32>
    %416 = arith.divf %414, %415 : vector<8x128xf32>
    %417 = vector.extract_strided_slice %410 {offsets = [0, 128], sizes = [8, 128], strides = [1, 1]} : vector<8x256xf32> to vector<8x128xf32>
    %418 = arith.negf %417 : vector<8x128xf32>
    %419 = math.exp %418 : vector<8x128xf32>
    %cst_238 = arith.constant 1.000000e+00 : f32
    %420 = vector.broadcast %cst_238 : f32 to vector<8x128xf32>
    %421 = arith.addf %420, %419 : vector<8x128xf32>
    %422 = arith.divf %420, %421 : vector<8x128xf32>
    %cst_239 = arith.constant 2.000000e+00 : f32
    %423 = vector.broadcast %cst_239 : f32 to vector<8x128xf32>
    %424 = arith.mulf %423, %422 : vector<8x128xf32>
    %cst_240 = arith.constant 1.000000e+00 : f32
    %425 = vector.broadcast %cst_240 : f32 to vector<8x128xf32>
    %426 = arith.subf %424, %425 : vector<8x128xf32>
    %427 = arith.select %2, %426, %422 : vector<8x128xi1>, vector<8x128xf32>
    %c64_i32_241 = arith.constant 64 : i32
    %428 = tpu.dynamic_rotate %416 by %c64_i32_241 dim 1 : vector<8x128xf32>, i32 -> vector<8x128xf32>
    %c64_i32_242 = arith.constant 64 : i32
    %429 = tpu.dynamic_rotate %427 by %c64_i32_242 dim 1 : vector<8x128xf32>, i32 -> vector<8x128xf32>
    %c0_243 = arith.constant 0 : index
    %c0_244 = arith.constant 0 : index
    %430 = vector.load %arg11[%c0_243, %c0_244] : memref<8x128xf32, #tpu.memory_space<vmem>>, vector<8x128xf32>
    %431 = arith.mulf %428, %430 : vector<8x128xf32>
    %432 = arith.mulf %416, %427 : vector<8x128xf32>
    %433 = arith.addf %431, %432 : vector<8x128xf32>
    %434 = math.tanh %433 : vector<8x128xf32>
    %435 = arith.mulf %429, %434 : vector<8x128xf32>
    %c0_245 = arith.constant 0 : index
    %c0_246 = arith.constant 0 : index
    %436 = vector.load %arg11[%c0_245, %c0_246] : memref<8x128xf32, #tpu.memory_space<vmem>>, vector<8x128xf32>
    tpu.vector_store %arg11[%c0_245, %c0_246], %433 {strides = array<i32>} : memref<8x128xf32, #tpu.memory_space<vmem>>, vector<8x128xf32>,
    %c0_247 = arith.constant 0 : index
    %c0_248 = arith.constant 0 : index
    %437 = vector.load %arg10[%c0_247, %c0_248] : memref<8x128xf32, #tpu.memory_space<vmem>>, vector<8x128xf32>
    tpu.vector_store %arg10[%c0_247, %c0_248], %435 {strides = array<i32>} : memref<8x128xf32, #tpu.memory_space<vmem>>, vector<8x128xf32>,
    %438 = arith.index_cast %c2_i32_231 : i32 to index
    %c0_249 = arith.constant 0 : index
    %c0_250 = arith.constant 0 : index
    %439 = vector.load %arg8[%438, %c0_249, %c0_250] : memref<8x8x128xf32, #tpu.memory_space<vmem>>, vector<1x8x128xf32>
    %440 = vector.shape_cast %439 : vector<1x8x128xf32> to vector<8x128xf32>
    %441 = vector.shape_cast %435 : vector<8x128xf32> to vector<1x8x128xf32>
    tpu.vector_store %arg8[%438, %c0_249, %c0_250], %441 {strides = array<i32>} : memref<8x8x128xf32, #tpu.memory_space<vmem>>, vector<1x8x128xf32>,
    %c3_i32_251 = arith.constant 3 : i32
    %c0_252 = arith.constant 0 : index
    %c0_253 = arith.constant 0 : index
    %442 = vector.load %arg10[%c0_252, %c0_253] : memref<8x128xf32, #tpu.memory_space<vmem>>, vector<8x128xf32>
    %cst_254 = arith.constant dense<0.000000e+00> : vector<8x256xf32>
    %443 = tpu.matmul %442, %318, %cst_254 {dimension_numbers = #tpu.dot_dimension_numbers<[1], [0], [0], [1], [0, 0, 1, 1], [], []>} : vector<8x128xf32>, vector<128x256xf32>, vector<8x256xf32> -> vector<8x256xf32>
    %444 = arith.index_cast %c3_i32_251 : i32 to index
    %c0_255 = arith.constant 0 : index
    %c0_256 = arith.constant 0 : index
    %445 = vector.load %arg9[%444, %c0_255, %c0_256] : memref<8x8x256xf32, #tpu.memory_space<vmem>>, vector<1x8x256xf32>
    %446 = vector.shape_cast %445 : vector<1x8x256xf32> to vector<8x256xf32>
    %447 = arith.addf %443, %446 : vector<8x256xf32>
    %448 = vector.extract_strided_slice %447 {offsets = [0, 0], sizes = [8, 128], strides = [1, 1]} : vector<8x256xf32> to vector<8x128xf32>
    %449 = arith.negf %448 : vector<8x128xf32>
    %450 = math.exp %449 : vector<8x128xf32>
    %cst_257 = arith.constant 1.000000e+00 : f32
    %451 = vector.broadcast %cst_257 : f32 to vector<8x128xf32>
    %452 = arith.addf %451, %450 : vector<8x128xf32>
    %453 = arith.divf %451, %452 : vector<8x128xf32>
    %454 = vector.extract_strided_slice %447 {offsets = [0, 128], sizes = [8, 128], strides = [1, 1]} : vector<8x256xf32> to vector<8x128xf32>
    %455 = arith.negf %454 : vector<8x128xf32>
    %456 = math.exp %455 : vector<8x128xf32>
    %cst_258 = arith.constant 1.000000e+00 : f32
    %457 = vector.broadcast %cst_258 : f32 to vector<8x128xf32>
    %458 = arith.addf %457, %456 : vector<8x128xf32>
    %459 = arith.divf %457, %458 : vector<8x128xf32>
    %cst_259 = arith.constant 2.000000e+00 : f32
    %460 = vector.broadcast %cst_259 : f32 to vector<8x128xf32>
    %461 = arith.mulf %460, %459 : vector<8x128xf32>
    %cst_260 = arith.constant 1.000000e+00 : f32
    %462 = vector.broadcast %cst_260 : f32 to vector<8x128xf32>
    %463 = arith.subf %461, %462 : vector<8x128xf32>
    %464 = arith.select %2, %463, %459 : vector<8x128xi1>, vector<8x128xf32>
    %c64_i32_261 = arith.constant 64 : i32
    %465 = tpu.dynamic_rotate %453 by %c64_i32_261 dim 1 : vector<8x128xf32>, i32 -> vector<8x128xf32>
    %c64_i32_262 = arith.constant 64 : i32
    %466 = tpu.dynamic_rotate %464 by %c64_i32_262 dim 1 : vector<8x128xf32>, i32 -> vector<8x128xf32>
    %c0_263 = arith.constant 0 : index
    %c0_264 = arith.constant 0 : index
    %467 = vector.load %arg11[%c0_263, %c0_264] : memref<8x128xf32, #tpu.memory_space<vmem>>, vector<8x128xf32>
    %468 = arith.mulf %465, %467 : vector<8x128xf32>
    %469 = arith.mulf %453, %464 : vector<8x128xf32>
    %470 = arith.addf %468, %469 : vector<8x128xf32>
    %471 = math.tanh %470 : vector<8x128xf32>
    %472 = arith.mulf %466, %471 : vector<8x128xf32>
    %c0_265 = arith.constant 0 : index
    %c0_266 = arith.constant 0 : index
    %473 = vector.load %arg11[%c0_265, %c0_266] : memref<8x128xf32, #tpu.memory_space<vmem>>, vector<8x128xf32>
    tpu.vector_store %arg11[%c0_265, %c0_266], %470 {strides = array<i32>} : memref<8x128xf32, #tpu.memory_space<vmem>>, vector<8x128xf32>,
    %c0_267 = arith.constant 0 : index
    %c0_268 = arith.constant 0 : index
    %474 = vector.load %arg10[%c0_267, %c0_268] : memref<8x128xf32, #tpu.memory_space<vmem>>, vector<8x128xf32>
    tpu.vector_store %arg10[%c0_267, %c0_268], %472 {strides = array<i32>} : memref<8x128xf32, #tpu.memory_space<vmem>>, vector<8x128xf32>,
    %475 = arith.index_cast %c3_i32_251 : i32 to index
    %c0_269 = arith.constant 0 : index
    %c0_270 = arith.constant 0 : index
    %476 = vector.load %arg8[%475, %c0_269, %c0_270] : memref<8x8x128xf32, #tpu.memory_space<vmem>>, vector<1x8x128xf32>
    %477 = vector.shape_cast %476 : vector<1x8x128xf32> to vector<8x128xf32>
    %478 = vector.shape_cast %472 : vector<8x128xf32> to vector<1x8x128xf32>
    tpu.vector_store %arg8[%475, %c0_269, %c0_270], %478 {strides = array<i32>} : memref<8x8x128xf32, #tpu.memory_space<vmem>>, vector<1x8x128xf32>,
    %c4_i32_271 = arith.constant 4 : i32
    %c0_272 = arith.constant 0 : index
    %c0_273 = arith.constant 0 : index
    %479 = vector.load %arg10[%c0_272, %c0_273] : memref<8x128xf32, #tpu.memory_space<vmem>>, vector<8x128xf32>
    %cst_274 = arith.constant dense<0.000000e+00> : vector<8x256xf32>
    %480 = tpu.matmul %479, %318, %cst_274 {dimension_numbers = #tpu.dot_dimension_numbers<[1], [0], [0], [1], [0, 0, 1, 1], [], []>} : vector<8x128xf32>, vector<128x256xf32>, vector<8x256xf32> -> vector<8x256xf32>
    %481 = arith.index_cast %c4_i32_271 : i32 to index
    %c0_275 = arith.constant 0 : index
    %c0_276 = arith.constant 0 : index
    %482 = vector.load %arg9[%481, %c0_275, %c0_276] : memref<8x8x256xf32, #tpu.memory_space<vmem>>, vector<1x8x256xf32>
    %483 = vector.shape_cast %482 : vector<1x8x256xf32> to vector<8x256xf32>
    %484 = arith.addf %480, %483 : vector<8x256xf32>
    %485 = vector.extract_strided_slice %484 {offsets = [0, 0], sizes = [8, 128], strides = [1, 1]} : vector<8x256xf32> to vector<8x128xf32>
    %486 = arith.negf %485 : vector<8x128xf32>
    %487 = math.exp %486 : vector<8x128xf32>
    %cst_277 = arith.constant 1.000000e+00 : f32
    %488 = vector.broadcast %cst_277 : f32 to vector<8x128xf32>
    %489 = arith.addf %488, %487 : vector<8x128xf32>
    %490 = arith.divf %488, %489 : vector<8x128xf32>
    %491 = vector.extract_strided_slice %484 {offsets = [0, 128], sizes = [8, 128], strides = [1, 1]} : vector<8x256xf32> to vector<8x128xf32>
    %492 = arith.negf %491 : vector<8x128xf32>
    %493 = math.exp %492 : vector<8x128xf32>
    %cst_278 = arith.constant 1.000000e+00 : f32
    %494 = vector.broadcast %cst_278 : f32 to vector<8x128xf32>
    %495 = arith.addf %494, %493 : vector<8x128xf32>
    %496 = arith.divf %494, %495 : vector<8x128xf32>
    %cst_279 = arith.constant 2.000000e+00 : f32
    %497 = vector.broadcast %cst_279 : f32 to vector<8x128xf32>
    %498 = arith.mulf %497, %496 : vector<8x128xf32>
    %cst_280 = arith.constant 1.000000e+00 : f32
    %499 = vector.broadcast %cst_280 : f32 to vector<8x128xf32>
    %500 = arith.subf %498, %499 : vector<8x128xf32>
    %501 = arith.select %2, %500, %496 : vector<8x128xi1>, vector<8x128xf32>
    %c64_i32_281 = arith.constant 64 : i32
    %502 = tpu.dynamic_rotate %490 by %c64_i32_281 dim 1 : vector<8x128xf32>, i32 -> vector<8x128xf32>
    %c64_i32_282 = arith.constant 64 : i32
    %503 = tpu.dynamic_rotate %501 by %c64_i32_282 dim 1 : vector<8x128xf32>, i32 -> vector<8x128xf32>
    %c0_283 = arith.constant 0 : index
    %c0_284 = arith.constant 0 : index
    %504 = vector.load %arg11[%c0_283, %c0_284] : memref<8x128xf32, #tpu.memory_space<vmem>>, vector<8x128xf32>
    %505 = arith.mulf %502, %504 : vector<8x128xf32>
    %506 = arith.mulf %490, %501 : vector<8x128xf32>
    %507 = arith.addf %505, %506 : vector<8x128xf32>
    %508 = math.tanh %507 : vector<8x128xf32>
    %509 = arith.mulf %503, %508 : vector<8x128xf32>
    %c0_285 = arith.constant 0 : index
    %c0_286 = arith.constant 0 : index
    %510 = vector.load %arg11[%c0_285, %c0_286] : memref<8x128xf32, #tpu.memory_space<vmem>>, vector<8x128xf32>
    tpu.vector_store %arg11[%c0_285, %c0_286], %507 {strides = array<i32>} : memref<8x128xf32, #tpu.memory_space<vmem>>, vector<8x128xf32>,
    %c0_287 = arith.constant 0 : index
    %c0_288 = arith.constant 0 : index
    %511 = vector.load %arg10[%c0_287, %c0_288] : memref<8x128xf32, #tpu.memory_space<vmem>>, vector<8x128xf32>
    tpu.vector_store %arg10[%c0_287, %c0_288], %509 {strides = array<i32>} : memref<8x128xf32, #tpu.memory_space<vmem>>, vector<8x128xf32>,
    %512 = arith.index_cast %c4_i32_271 : i32 to index
    %c0_289 = arith.constant 0 : index
    %c0_290 = arith.constant 0 : index
    %513 = vector.load %arg8[%512, %c0_289, %c0_290] : memref<8x8x128xf32, #tpu.memory_space<vmem>>, vector<1x8x128xf32>
    %514 = vector.shape_cast %513 : vector<1x8x128xf32> to vector<8x128xf32>
    %515 = vector.shape_cast %509 : vector<8x128xf32> to vector<1x8x128xf32>
    tpu.vector_store %arg8[%512, %c0_289, %c0_290], %515 {strides = array<i32>} : memref<8x8x128xf32, #tpu.memory_space<vmem>>, vector<1x8x128xf32>,
    %c5_i32_291 = arith.constant 5 : i32
    %c0_292 = arith.constant 0 : index
    %c0_293 = arith.constant 0 : index
    %516 = vector.load %arg10[%c0_292, %c0_293] : memref<8x128xf32, #tpu.memory_space<vmem>>, vector<8x128xf32>
    %cst_294 = arith.constant dense<0.000000e+00> : vector<8x256xf32>
    %517 = tpu.matmul %516, %318, %cst_294 {dimension_numbers = #tpu.dot_dimension_numbers<[1], [0], [0], [1], [0, 0, 1, 1], [], []>} : vector<8x128xf32>, vector<128x256xf32>, vector<8x256xf32> -> vector<8x256xf32>
    %518 = arith.index_cast %c5_i32_291 : i32 to index
    %c0_295 = arith.constant 0 : index
    %c0_296 = arith.constant 0 : index
    %519 = vector.load %arg9[%518, %c0_295, %c0_296] : memref<8x8x256xf32, #tpu.memory_space<vmem>>, vector<1x8x256xf32>
    %520 = vector.shape_cast %519 : vector<1x8x256xf32> to vector<8x256xf32>
    %521 = arith.addf %517, %520 : vector<8x256xf32>
    %522 = vector.extract_strided_slice %521 {offsets = [0, 0], sizes = [8, 128], strides = [1, 1]} : vector<8x256xf32> to vector<8x128xf32>
    %523 = arith.negf %522 : vector<8x128xf32>
    %524 = math.exp %523 : vector<8x128xf32>
    %cst_297 = arith.constant 1.000000e+00 : f32
    %525 = vector.broadcast %cst_297 : f32 to vector<8x128xf32>
    %526 = arith.addf %525, %524 : vector<8x128xf32>
    %527 = arith.divf %525, %526 : vector<8x128xf32>
    %528 = vector.extract_strided_slice %521 {offsets = [0, 128], sizes = [8, 128], strides = [1, 1]} : vector<8x256xf32> to vector<8x128xf32>
    %529 = arith.negf %528 : vector<8x128xf32>
    %530 = math.exp %529 : vector<8x128xf32>
    %cst_298 = arith.constant 1.000000e+00 : f32
    %531 = vector.broadcast %cst_298 : f32 to vector<8x128xf32>
    %532 = arith.addf %531, %530 : vector<8x128xf32>
    %533 = arith.divf %531, %532 : vector<8x128xf32>
    %cst_299 = arith.constant 2.000000e+00 : f32
    %534 = vector.broadcast %cst_299 : f32 to vector<8x128xf32>
    %535 = arith.mulf %534, %533 : vector<8x128xf32>
    %cst_300 = arith.constant 1.000000e+00 : f32
    %536 = vector.broadcast %cst_300 : f32 to vector<8x128xf32>
    %537 = arith.subf %535, %536 : vector<8x128xf32>
    %538 = arith.select %2, %537, %533 : vector<8x128xi1>, vector<8x128xf32>
    %c64_i32_301 = arith.constant 64 : i32
    %539 = tpu.dynamic_rotate %527 by %c64_i32_301 dim 1 : vector<8x128xf32>, i32 -> vector<8x128xf32>
    %c64_i32_302 = arith.constant 64 : i32
    %540 = tpu.dynamic_rotate %538 by %c64_i32_302 dim 1 : vector<8x128xf32>, i32 -> vector<8x128xf32>
    %c0_303 = arith.constant 0 : index
    %c0_304 = arith.constant 0 : index
    %541 = vector.load %arg11[%c0_303, %c0_304] : memref<8x128xf32, #tpu.memory_space<vmem>>, vector<8x128xf32>
    %542 = arith.mulf %539, %541 : vector<8x128xf32>
    %543 = arith.mulf %527, %538 : vector<8x128xf32>
    %544 = arith.addf %542, %543 : vector<8x128xf32>
    %545 = math.tanh %544 : vector<8x128xf32>
    %546 = arith.mulf %540, %545 : vector<8x128xf32>
    %c0_305 = arith.constant 0 : index
    %c0_306 = arith.constant 0 : index
    %547 = vector.load %arg11[%c0_305, %c0_306] : memref<8x128xf32, #tpu.memory_space<vmem>>, vector<8x128xf32>
    tpu.vector_store %arg11[%c0_305, %c0_306], %544 {strides = array<i32>} : memref<8x128xf32, #tpu.memory_space<vmem>>, vector<8x128xf32>,
    %c0_307 = arith.constant 0 : index
    %c0_308 = arith.constant 0 : index
    %548 = vector.load %arg10[%c0_307, %c0_308] : memref<8x128xf32, #tpu.memory_space<vmem>>, vector<8x128xf32>
    tpu.vector_store %arg10[%c0_307, %c0_308], %546 {strides = array<i32>} : memref<8x128xf32, #tpu.memory_space<vmem>>, vector<8x128xf32>,
    %549 = arith.index_cast %c5_i32_291 : i32 to index
    %c0_309 = arith.constant 0 : index
    %c0_310 = arith.constant 0 : index
    %550 = vector.load %arg8[%549, %c0_309, %c0_310] : memref<8x8x128xf32, #tpu.memory_space<vmem>>, vector<1x8x128xf32>
    %551 = vector.shape_cast %550 : vector<1x8x128xf32> to vector<8x128xf32>
    %552 = vector.shape_cast %546 : vector<8x128xf32> to vector<1x8x128xf32>
    tpu.vector_store %arg8[%549, %c0_309, %c0_310], %552 {strides = array<i32>} : memref<8x8x128xf32, #tpu.memory_space<vmem>>, vector<1x8x128xf32>,
    %c6_i32_311 = arith.constant 6 : i32
    %c0_312 = arith.constant 0 : index
    %c0_313 = arith.constant 0 : index
    %553 = vector.load %arg10[%c0_312, %c0_313] : memref<8x128xf32, #tpu.memory_space<vmem>>, vector<8x128xf32>
    %cst_314 = arith.constant dense<0.000000e+00> : vector<8x256xf32>
    %554 = tpu.matmul %553, %318, %cst_314 {dimension_numbers = #tpu.dot_dimension_numbers<[1], [0], [0], [1], [0, 0, 1, 1], [], []>} : vector<8x128xf32>, vector<128x256xf32>, vector<8x256xf32> -> vector<8x256xf32>
    %555 = arith.index_cast %c6_i32_311 : i32 to index
    %c0_315 = arith.constant 0 : index
    %c0_316 = arith.constant 0 : index
    %556 = vector.load %arg9[%555, %c0_315, %c0_316] : memref<8x8x256xf32, #tpu.memory_space<vmem>>, vector<1x8x256xf32>
    %557 = vector.shape_cast %556 : vector<1x8x256xf32> to vector<8x256xf32>
    %558 = arith.addf %554, %557 : vector<8x256xf32>
    %559 = vector.extract_strided_slice %558 {offsets = [0, 0], sizes = [8, 128], strides = [1, 1]} : vector<8x256xf32> to vector<8x128xf32>
    %560 = arith.negf %559 : vector<8x128xf32>
    %561 = math.exp %560 : vector<8x128xf32>
    %cst_317 = arith.constant 1.000000e+00 : f32
    %562 = vector.broadcast %cst_317 : f32 to vector<8x128xf32>
    %563 = arith.addf %562, %561 : vector<8x128xf32>
    %564 = arith.divf %562, %563 : vector<8x128xf32>
    %565 = vector.extract_strided_slice %558 {offsets = [0, 128], sizes = [8, 128], strides = [1, 1]} : vector<8x256xf32> to vector<8x128xf32>
    %566 = arith.negf %565 : vector<8x128xf32>
    %567 = math.exp %566 : vector<8x128xf32>
    %cst_318 = arith.constant 1.000000e+00 : f32
    %568 = vector.broadcast %cst_318 : f32 to vector<8x128xf32>
    %569 = arith.addf %568, %567 : vector<8x128xf32>
    %570 = arith.divf %568, %569 : vector<8x128xf32>
    %cst_319 = arith.constant 2.000000e+00 : f32
    %571 = vector.broadcast %cst_319 : f32 to vector<8x128xf32>
    %572 = arith.mulf %571, %570 : vector<8x128xf32>
    %cst_320 = arith.constant 1.000000e+00 : f32
    %573 = vector.broadcast %cst_320 : f32 to vector<8x128xf32>
    %574 = arith.subf %572, %573 : vector<8x128xf32>
    %575 = arith.select %2, %574, %570 : vector<8x128xi1>, vector<8x128xf32>
    %c64_i32_321 = arith.constant 64 : i32
    %576 = tpu.dynamic_rotate %564 by %c64_i32_321 dim 1 : vector<8x128xf32>, i32 -> vector<8x128xf32>
    %c64_i32_322 = arith.constant 64 : i32
    %577 = tpu.dynamic_rotate %575 by %c64_i32_322 dim 1 : vector<8x128xf32>, i32 -> vector<8x128xf32>
    %c0_323 = arith.constant 0 : index
    %c0_324 = arith.constant 0 : index
    %578 = vector.load %arg11[%c0_323, %c0_324] : memref<8x128xf32, #tpu.memory_space<vmem>>, vector<8x128xf32>
    %579 = arith.mulf %576, %578 : vector<8x128xf32>
    %580 = arith.mulf %564, %575 : vector<8x128xf32>
    %581 = arith.addf %579, %580 : vector<8x128xf32>
    %582 = math.tanh %581 : vector<8x128xf32>
    %583 = arith.mulf %577, %582 : vector<8x128xf32>
    %c0_325 = arith.constant 0 : index
    %c0_326 = arith.constant 0 : index
    %584 = vector.load %arg11[%c0_325, %c0_326] : memref<8x128xf32, #tpu.memory_space<vmem>>, vector<8x128xf32>
    tpu.vector_store %arg11[%c0_325, %c0_326], %581 {strides = array<i32>} : memref<8x128xf32, #tpu.memory_space<vmem>>, vector<8x128xf32>,
    %c0_327 = arith.constant 0 : index
    %c0_328 = arith.constant 0 : index
    %585 = vector.load %arg10[%c0_327, %c0_328] : memref<8x128xf32, #tpu.memory_space<vmem>>, vector<8x128xf32>
    tpu.vector_store %arg10[%c0_327, %c0_328], %583 {strides = array<i32>} : memref<8x128xf32, #tpu.memory_space<vmem>>, vector<8x128xf32>,
    %586 = arith.index_cast %c6_i32_311 : i32 to index
    %c0_329 = arith.constant 0 : index
    %c0_330 = arith.constant 0 : index
    %587 = vector.load %arg8[%586, %c0_329, %c0_330] : memref<8x8x128xf32, #tpu.memory_space<vmem>>, vector<1x8x128xf32>
    %588 = vector.shape_cast %587 : vector<1x8x128xf32> to vector<8x128xf32>
    %589 = vector.shape_cast %583 : vector<8x128xf32> to vector<1x8x128xf32>
    tpu.vector_store %arg8[%586, %c0_329, %c0_330], %589 {strides = array<i32>} : memref<8x8x128xf32, #tpu.memory_space<vmem>>, vector<1x8x128xf32>,
    %c7_i32_331 = arith.constant 7 : i32
    %c0_332 = arith.constant 0 : index
    %c0_333 = arith.constant 0 : index
    %590 = vector.load %arg10[%c0_332, %c0_333] : memref<8x128xf32, #tpu.memory_space<vmem>>, vector<8x128xf32>
    %cst_334 = arith.constant dense<0.000000e+00> : vector<8x256xf32>
    %591 = tpu.matmul %590, %318, %cst_334 {dimension_numbers = #tpu.dot_dimension_numbers<[1], [0], [0], [1], [0, 0, 1, 1], [], []>} : vector<8x128xf32>, vector<128x256xf32>, vector<8x256xf32> -> vector<8x256xf32>
    %592 = arith.index_cast %c7_i32_331 : i32 to index
    %c0_335 = arith.constant 0 : index
    %c0_336 = arith.constant 0 : index
    %593 = vector.load %arg9[%592, %c0_335, %c0_336] : memref<8x8x256xf32, #tpu.memory_space<vmem>>, vector<1x8x256xf32>
    %594 = vector.shape_cast %593 : vector<1x8x256xf32> to vector<8x256xf32>
    %595 = arith.addf %591, %594 : vector<8x256xf32>
    %596 = vector.extract_strided_slice %595 {offsets = [0, 0], sizes = [8, 128], strides = [1, 1]} : vector<8x256xf32> to vector<8x128xf32>
    %597 = arith.negf %596 : vector<8x128xf32>
    %598 = math.exp %597 : vector<8x128xf32>
    %cst_337 = arith.constant 1.000000e+00 : f32
    %599 = vector.broadcast %cst_337 : f32 to vector<8x128xf32>
    %600 = arith.addf %599, %598 : vector<8x128xf32>
    %601 = arith.divf %599, %600 : vector<8x128xf32>
    %602 = vector.extract_strided_slice %595 {offsets = [0, 128], sizes = [8, 128], strides = [1, 1]} : vector<8x256xf32> to vector<8x128xf32>
    %603 = arith.negf %602 : vector<8x128xf32>
    %604 = math.exp %603 : vector<8x128xf32>
    %cst_338 = arith.constant 1.000000e+00 : f32
    %605 = vector.broadcast %cst_338 : f32 to vector<8x128xf32>
    %606 = arith.addf %605, %604 : vector<8x128xf32>
    %607 = arith.divf %605, %606 : vector<8x128xf32>
    %cst_339 = arith.constant 2.000000e+00 : f32
    %608 = vector.broadcast %cst_339 : f32 to vector<8x128xf32>
    %609 = arith.mulf %608, %607 : vector<8x128xf32>
    %cst_340 = arith.constant 1.000000e+00 : f32
    %610 = vector.broadcast %cst_340 : f32 to vector<8x128xf32>
    %611 = arith.subf %609, %610 : vector<8x128xf32>
    %612 = arith.select %2, %611, %607 : vector<8x128xi1>, vector<8x128xf32>
    %c64_i32_341 = arith.constant 64 : i32
    %613 = tpu.dynamic_rotate %601 by %c64_i32_341 dim 1 : vector<8x128xf32>, i32 -> vector<8x128xf32>
    %c64_i32_342 = arith.constant 64 : i32
    %614 = tpu.dynamic_rotate %612 by %c64_i32_342 dim 1 : vector<8x128xf32>, i32 -> vector<8x128xf32>
    %c0_343 = arith.constant 0 : index
    %c0_344 = arith.constant 0 : index
    %615 = vector.load %arg11[%c0_343, %c0_344] : memref<8x128xf32, #tpu.memory_space<vmem>>, vector<8x128xf32>
    %616 = arith.mulf %613, %615 : vector<8x128xf32>
    %617 = arith.mulf %601, %612 : vector<8x128xf32>
    %618 = arith.addf %616, %617 : vector<8x128xf32>
    %619 = math.tanh %618 : vector<8x128xf32>
    %620 = arith.mulf %614, %619 : vector<8x128xf32>
    %c0_345 = arith.constant 0 : index
    %c0_346 = arith.constant 0 : index
    %621 = vector.load %arg11[%c0_345, %c0_346] : memref<8x128xf32, #tpu.memory_space<vmem>>, vector<8x128xf32>
    tpu.vector_store %arg11[%c0_345, %c0_346], %618 {strides = array<i32>} : memref<8x128xf32, #tpu.memory_space<vmem>>, vector<8x128xf32>,
    %c0_347 = arith.constant 0 : index
    %c0_348 = arith.constant 0 : index
    %622 = vector.load %arg10[%c0_347, %c0_348] : memref<8x128xf32, #tpu.memory_space<vmem>>, vector<8x128xf32>
    tpu.vector_store %arg10[%c0_347, %c0_348], %620 {strides = array<i32>} : memref<8x128xf32, #tpu.memory_space<vmem>>, vector<8x128xf32>,
    %623 = arith.index_cast %c7_i32_331 : i32 to index
    %c0_349 = arith.constant 0 : index
    %c0_350 = arith.constant 0 : index
    %624 = vector.load %arg8[%623, %c0_349, %c0_350] : memref<8x8x128xf32, #tpu.memory_space<vmem>>, vector<1x8x128xf32>
    %625 = vector.shape_cast %624 : vector<1x8x128xf32> to vector<8x128xf32>
    %626 = vector.shape_cast %620 : vector<8x128xf32> to vector<1x8x128xf32>
    tpu.vector_store %arg8[%623, %c0_349, %c0_350], %626 {strides = array<i32>} : memref<8x8x128xf32, #tpu.memory_space<vmem>>, vector<1x8x128xf32>,
    %c8_i32_351 = arith.constant 8 : i32
    %c2 = arith.constant 2 : index
    %c0_352 = arith.constant 0 : index
    %c0_353 = arith.constant 0 : index
    %627 = vector.load %arg2[%c2, %c0_352, %c0_353] : memref<5x128x256xf32, #tpu.memory_space<vmem>>, vector<1x128x256xf32>
    %628 = vector.shape_cast %627 : vector<1x128x256xf32> to vector<128x256xf32>
    %c2_354 = arith.constant 2 : index
    %c0_355 = arith.constant 0 : index
    %c0_356 = arith.constant 0 : index
    %629 = vector.load %arg3[%c2_354, %c0_355, %c0_356] : memref<5x128x256xf32, #tpu.memory_space<vmem>>, vector<1x128x256xf32>
    %630 = vector.shape_cast %629 : vector<1x128x256xf32> to vector<128x256xf32>
    %c2_357 = arith.constant 2 : index
    %c0_358 = arith.constant 0 : index
    %631 = vector.load %arg4[%c2_357, %c0_358] : memref<5x256xf32, #tpu.memory_space<vmem>>, vector<1x256xf32>
    %c0_359 = arith.constant 0 : index
    %c0_360 = arith.constant 0 : index
    %c0_361 = arith.constant 0 : index
    %632 = vector.load %arg8[%c0_359, %c0_360, %c0_361] : memref<8x8x128xf32, #tpu.memory_space<vmem>>, vector<8x8x128xf32>
    %633 = vector.shape_cast %632 : vector<8x8x128xf32> to vector<64x128xf32>
    %cst_362 = arith.constant dense<0.000000e+00> : vector<64x256xf32>
    %634 = tpu.matmul %633, %628, %cst_362 {dimension_numbers = #tpu.dot_dimension_numbers<[1], [0], [0], [1], [0, 0, 1, 1], [], []>} : vector<64x128xf32>, vector<128x256xf32>, vector<64x256xf32> -> vector<64x256xf32>
    %635 = vector.broadcast %631 : vector<1x256xf32> to vector<64x256xf32>
    %636 = arith.addf %634, %635 : vector<64x256xf32>
    %637 = vector.shape_cast %636 : vector<64x256xf32> to vector<8x8x256xf32>
    %c0_363 = arith.constant 0 : index
    %c0_364 = arith.constant 0 : index
    %c0_365 = arith.constant 0 : index
    %638 = vector.load %arg9[%c0_363, %c0_364, %c0_365] : memref<8x8x256xf32, #tpu.memory_space<vmem>>, vector<8x8x256xf32>
    tpu.vector_store %arg9[%c0_363, %c0_364, %c0_365], %637 {strides = array<i32>} : memref<8x8x256xf32, #tpu.memory_space<vmem>>, vector<8x8x256xf32>,
    %cst_366 = arith.constant 0.000000e+00 : f32
    %639 = vector.broadcast %cst_366 : f32 to vector<8x128xf32>
    %c0_367 = arith.constant 0 : index
    %c0_368 = arith.constant 0 : index
    %640 = vector.load %arg10[%c0_367, %c0_368] : memref<8x128xf32, #tpu.memory_space<vmem>>, vector<8x128xf32>
    tpu.vector_store %arg10[%c0_367, %c0_368], %639 {strides = array<i32>} : memref<8x128xf32, #tpu.memory_space<vmem>>, vector<8x128xf32>,
    %cst_369 = arith.constant 0.000000e+00 : f32
    %641 = vector.broadcast %cst_369 : f32 to vector<8x128xf32>
    %c0_370 = arith.constant 0 : index
    %c0_371 = arith.constant 0 : index
    %642 = vector.load %arg11[%c0_370, %c0_371] : memref<8x128xf32, #tpu.memory_space<vmem>>, vector<8x128xf32>
    tpu.vector_store %arg11[%c0_370, %c0_371], %641 {strides = array<i32>} : memref<8x128xf32, #tpu.memory_space<vmem>>, vector<8x128xf32>,
    %c0_i32_372 = arith.constant 0 : i32
    %c0_373 = arith.constant 0 : index
    %c0_374 = arith.constant 0 : index
    %643 = vector.load %arg10[%c0_373, %c0_374] : memref<8x128xf32, #tpu.memory_space<vmem>>, vector<8x128xf32>
    %cst_375 = arith.constant dense<0.000000e+00> : vector<8x256xf32>
    %644 = tpu.matmul %643, %630, %cst_375 {dimension_numbers = #tpu.dot_dimension_numbers<[1], [0], [0], [1], [0, 0, 1, 1], [], []>} : vector<8x128xf32>, vector<128x256xf32>, vector<8x256xf32> -> vector<8x256xf32>
    %645 = arith.index_cast %c0_i32_372 : i32 to index
    %c0_376 = arith.constant 0 : index
    %c0_377 = arith.constant 0 : index
    %646 = vector.load %arg9[%645, %c0_376, %c0_377] : memref<8x8x256xf32, #tpu.memory_space<vmem>>, vector<1x8x256xf32>
    %647 = vector.shape_cast %646 : vector<1x8x256xf32> to vector<8x256xf32>
    %648 = arith.addf %644, %647 : vector<8x256xf32>
    %649 = vector.extract_strided_slice %648 {offsets = [0, 0], sizes = [8, 128], strides = [1, 1]} : vector<8x256xf32> to vector<8x128xf32>
    %650 = arith.negf %649 : vector<8x128xf32>
    %651 = math.exp %650 : vector<8x128xf32>
    %cst_378 = arith.constant 1.000000e+00 : f32
    %652 = vector.broadcast %cst_378 : f32 to vector<8x128xf32>
    %653 = arith.addf %652, %651 : vector<8x128xf32>
    %654 = arith.divf %652, %653 : vector<8x128xf32>
    %655 = vector.extract_strided_slice %648 {offsets = [0, 128], sizes = [8, 128], strides = [1, 1]} : vector<8x256xf32> to vector<8x128xf32>
    %656 = arith.negf %655 : vector<8x128xf32>
    %657 = math.exp %656 : vector<8x128xf32>
    %cst_379 = arith.constant 1.000000e+00 : f32
    %658 = vector.broadcast %cst_379 : f32 to vector<8x128xf32>
    %659 = arith.addf %658, %657 : vector<8x128xf32>
    %660 = arith.divf %658, %659 : vector<8x128xf32>
    %cst_380 = arith.constant 2.000000e+00 : f32
    %661 = vector.broadcast %cst_380 : f32 to vector<8x128xf32>
    %662 = arith.mulf %661, %660 : vector<8x128xf32>
    %cst_381 = arith.constant 1.000000e+00 : f32
    %663 = vector.broadcast %cst_381 : f32 to vector<8x128xf32>
    %664 = arith.subf %662, %663 : vector<8x128xf32>
    %665 = arith.select %2, %664, %660 : vector<8x128xi1>, vector<8x128xf32>
    %c64_i32_382 = arith.constant 64 : i32
    %666 = tpu.dynamic_rotate %654 by %c64_i32_382 dim 1 : vector<8x128xf32>, i32 -> vector<8x128xf32>
    %c64_i32_383 = arith.constant 64 : i32
    %667 = tpu.dynamic_rotate %665 by %c64_i32_383 dim 1 : vector<8x128xf32>, i32 -> vector<8x128xf32>
    %c0_384 = arith.constant 0 : index
    %c0_385 = arith.constant 0 : index
    %668 = vector.load %arg11[%c0_384, %c0_385] : memref<8x128xf32, #tpu.memory_space<vmem>>, vector<8x128xf32>
    %669 = arith.mulf %666, %668 : vector<8x128xf32>
    %670 = arith.mulf %654, %665 : vector<8x128xf32>
    %671 = arith.addf %669, %670 : vector<8x128xf32>
    %672 = math.tanh %671 : vector<8x128xf32>
    %673 = arith.mulf %667, %672 : vector<8x128xf32>
    %c0_386 = arith.constant 0 : index
    %c0_387 = arith.constant 0 : index
    %674 = vector.load %arg11[%c0_386, %c0_387] : memref<8x128xf32, #tpu.memory_space<vmem>>, vector<8x128xf32>
    tpu.vector_store %arg11[%c0_386, %c0_387], %671 {strides = array<i32>} : memref<8x128xf32, #tpu.memory_space<vmem>>, vector<8x128xf32>,
    %c0_388 = arith.constant 0 : index
    %c0_389 = arith.constant 0 : index
    %675 = vector.load %arg10[%c0_388, %c0_389] : memref<8x128xf32, #tpu.memory_space<vmem>>, vector<8x128xf32>
    tpu.vector_store %arg10[%c0_388, %c0_389], %673 {strides = array<i32>} : memref<8x128xf32, #tpu.memory_space<vmem>>, vector<8x128xf32>,
    %676 = arith.index_cast %c0_i32_372 : i32 to index
    %c0_390 = arith.constant 0 : index
    %c0_391 = arith.constant 0 : index
    %677 = vector.load %arg8[%676, %c0_390, %c0_391] : memref<8x8x128xf32, #tpu.memory_space<vmem>>, vector<1x8x128xf32>
    %678 = vector.shape_cast %677 : vector<1x8x128xf32> to vector<8x128xf32>
    %679 = vector.shape_cast %673 : vector<8x128xf32> to vector<1x8x128xf32>
    tpu.vector_store %arg8[%676, %c0_390, %c0_391], %679 {strides = array<i32>} : memref<8x8x128xf32, #tpu.memory_space<vmem>>, vector<1x8x128xf32>,
    %c1_i32_392 = arith.constant 1 : i32
    %c0_393 = arith.constant 0 : index
    %c0_394 = arith.constant 0 : index
    %680 = vector.load %arg10[%c0_393, %c0_394] : memref<8x128xf32, #tpu.memory_space<vmem>>, vector<8x128xf32>
    %cst_395 = arith.constant dense<0.000000e+00> : vector<8x256xf32>
    %681 = tpu.matmul %680, %630, %cst_395 {dimension_numbers = #tpu.dot_dimension_numbers<[1], [0], [0], [1], [0, 0, 1, 1], [], []>} : vector<8x128xf32>, vector<128x256xf32>, vector<8x256xf32> -> vector<8x256xf32>
    %682 = arith.index_cast %c1_i32_392 : i32 to index
    %c0_396 = arith.constant 0 : index
    %c0_397 = arith.constant 0 : index
    %683 = vector.load %arg9[%682, %c0_396, %c0_397] : memref<8x8x256xf32, #tpu.memory_space<vmem>>, vector<1x8x256xf32>
    %684 = vector.shape_cast %683 : vector<1x8x256xf32> to vector<8x256xf32>
    %685 = arith.addf %681, %684 : vector<8x256xf32>
    %686 = vector.extract_strided_slice %685 {offsets = [0, 0], sizes = [8, 128], strides = [1, 1]} : vector<8x256xf32> to vector<8x128xf32>
    %687 = arith.negf %686 : vector<8x128xf32>
    %688 = math.exp %687 : vector<8x128xf32>
    %cst_398 = arith.constant 1.000000e+00 : f32
    %689 = vector.broadcast %cst_398 : f32 to vector<8x128xf32>
    %690 = arith.addf %689, %688 : vector<8x128xf32>
    %691 = arith.divf %689, %690 : vector<8x128xf32>
    %692 = vector.extract_strided_slice %685 {offsets = [0, 128], sizes = [8, 128], strides = [1, 1]} : vector<8x256xf32> to vector<8x128xf32>
    %693 = arith.negf %692 : vector<8x128xf32>
    %694 = math.exp %693 : vector<8x128xf32>
    %cst_399 = arith.constant 1.000000e+00 : f32
    %695 = vector.broadcast %cst_399 : f32 to vector<8x128xf32>
    %696 = arith.addf %695, %694 : vector<8x128xf32>
    %697 = arith.divf %695, %696 : vector<8x128xf32>
    %cst_400 = arith.constant 2.000000e+00 : f32
    %698 = vector.broadcast %cst_400 : f32 to vector<8x128xf32>
    %699 = arith.mulf %698, %697 : vector<8x128xf32>
    %cst_401 = arith.constant 1.000000e+00 : f32
    %700 = vector.broadcast %cst_401 : f32 to vector<8x128xf32>
    %701 = arith.subf %699, %700 : vector<8x128xf32>
    %702 = arith.select %2, %701, %697 : vector<8x128xi1>, vector<8x128xf32>
    %c64_i32_402 = arith.constant 64 : i32
    %703 = tpu.dynamic_rotate %691 by %c64_i32_402 dim 1 : vector<8x128xf32>, i32 -> vector<8x128xf32>
    %c64_i32_403 = arith.constant 64 : i32
    %704 = tpu.dynamic_rotate %702 by %c64_i32_403 dim 1 : vector<8x128xf32>, i32 -> vector<8x128xf32>
    %c0_404 = arith.constant 0 : index
    %c0_405 = arith.constant 0 : index
    %705 = vector.load %arg11[%c0_404, %c0_405] : memref<8x128xf32, #tpu.memory_space<vmem>>, vector<8x128xf32>
    %706 = arith.mulf %703, %705 : vector<8x128xf32>
    %707 = arith.mulf %691, %702 : vector<8x128xf32>
    %708 = arith.addf %706, %707 : vector<8x128xf32>
    %709 = math.tanh %708 : vector<8x128xf32>
    %710 = arith.mulf %704, %709 : vector<8x128xf32>
    %c0_406 = arith.constant 0 : index
    %c0_407 = arith.constant 0 : index
    %711 = vector.load %arg11[%c0_406, %c0_407] : memref<8x128xf32, #tpu.memory_space<vmem>>, vector<8x128xf32>
    tpu.vector_store %arg11[%c0_406, %c0_407], %708 {strides = array<i32>} : memref<8x128xf32, #tpu.memory_space<vmem>>, vector<8x128xf32>,
    %c0_408 = arith.constant 0 : index
    %c0_409 = arith.constant 0 : index
    %712 = vector.load %arg10[%c0_408, %c0_409] : memref<8x128xf32, #tpu.memory_space<vmem>>, vector<8x128xf32>
    tpu.vector_store %arg10[%c0_408, %c0_409], %710 {strides = array<i32>} : memref<8x128xf32, #tpu.memory_space<vmem>>, vector<8x128xf32>,
    %713 = arith.index_cast %c1_i32_392 : i32 to index
    %c0_410 = arith.constant 0 : index
    %c0_411 = arith.constant 0 : index
    %714 = vector.load %arg8[%713, %c0_410, %c0_411] : memref<8x8x128xf32, #tpu.memory_space<vmem>>, vector<1x8x128xf32>
    %715 = vector.shape_cast %714 : vector<1x8x128xf32> to vector<8x128xf32>
    %716 = vector.shape_cast %710 : vector<8x128xf32> to vector<1x8x128xf32>
    tpu.vector_store %arg8[%713, %c0_410, %c0_411], %716 {strides = array<i32>} : memref<8x8x128xf32, #tpu.memory_space<vmem>>, vector<1x8x128xf32>,
    %c2_i32_412 = arith.constant 2 : i32
    %c0_413 = arith.constant 0 : index
    %c0_414 = arith.constant 0 : index
    %717 = vector.load %arg10[%c0_413, %c0_414] : memref<8x128xf32, #tpu.memory_space<vmem>>, vector<8x128xf32>
    %cst_415 = arith.constant dense<0.000000e+00> : vector<8x256xf32>
    %718 = tpu.matmul %717, %630, %cst_415 {dimension_numbers = #tpu.dot_dimension_numbers<[1], [0], [0], [1], [0, 0, 1, 1], [], []>} : vector<8x128xf32>, vector<128x256xf32>, vector<8x256xf32> -> vector<8x256xf32>
    %719 = arith.index_cast %c2_i32_412 : i32 to index
    %c0_416 = arith.constant 0 : index
    %c0_417 = arith.constant 0 : index
    %720 = vector.load %arg9[%719, %c0_416, %c0_417] : memref<8x8x256xf32, #tpu.memory_space<vmem>>, vector<1x8x256xf32>
    %721 = vector.shape_cast %720 : vector<1x8x256xf32> to vector<8x256xf32>
    %722 = arith.addf %718, %721 : vector<8x256xf32>
    %723 = vector.extract_strided_slice %722 {offsets = [0, 0], sizes = [8, 128], strides = [1, 1]} : vector<8x256xf32> to vector<8x128xf32>
    %724 = arith.negf %723 : vector<8x128xf32>
    %725 = math.exp %724 : vector<8x128xf32>
    %cst_418 = arith.constant 1.000000e+00 : f32
    %726 = vector.broadcast %cst_418 : f32 to vector<8x128xf32>
    %727 = arith.addf %726, %725 : vector<8x128xf32>
    %728 = arith.divf %726, %727 : vector<8x128xf32>
    %729 = vector.extract_strided_slice %722 {offsets = [0, 128], sizes = [8, 128], strides = [1, 1]} : vector<8x256xf32> to vector<8x128xf32>
    %730 = arith.negf %729 : vector<8x128xf32>
    %731 = math.exp %730 : vector<8x128xf32>
    %cst_419 = arith.constant 1.000000e+00 : f32
    %732 = vector.broadcast %cst_419 : f32 to vector<8x128xf32>
    %733 = arith.addf %732, %731 : vector<8x128xf32>
    %734 = arith.divf %732, %733 : vector<8x128xf32>
    %cst_420 = arith.constant 2.000000e+00 : f32
    %735 = vector.broadcast %cst_420 : f32 to vector<8x128xf32>
    %736 = arith.mulf %735, %734 : vector<8x128xf32>
    %cst_421 = arith.constant 1.000000e+00 : f32
    %737 = vector.broadcast %cst_421 : f32 to vector<8x128xf32>
    %738 = arith.subf %736, %737 : vector<8x128xf32>
    %739 = arith.select %2, %738, %734 : vector<8x128xi1>, vector<8x128xf32>
    %c64_i32_422 = arith.constant 64 : i32
    %740 = tpu.dynamic_rotate %728 by %c64_i32_422 dim 1 : vector<8x128xf32>, i32 -> vector<8x128xf32>
    %c64_i32_423 = arith.constant 64 : i32
    %741 = tpu.dynamic_rotate %739 by %c64_i32_423 dim 1 : vector<8x128xf32>, i32 -> vector<8x128xf32>
    %c0_424 = arith.constant 0 : index
    %c0_425 = arith.constant 0 : index
    %742 = vector.load %arg11[%c0_424, %c0_425] : memref<8x128xf32, #tpu.memory_space<vmem>>, vector<8x128xf32>
    %743 = arith.mulf %740, %742 : vector<8x128xf32>
    %744 = arith.mulf %728, %739 : vector<8x128xf32>
    %745 = arith.addf %743, %744 : vector<8x128xf32>
    %746 = math.tanh %745 : vector<8x128xf32>
    %747 = arith.mulf %741, %746 : vector<8x128xf32>
    %c0_426 = arith.constant 0 : index
    %c0_427 = arith.constant 0 : index
    %748 = vector.load %arg11[%c0_426, %c0_427] : memref<8x128xf32, #tpu.memory_space<vmem>>, vector<8x128xf32>
    tpu.vector_store %arg11[%c0_426, %c0_427], %745 {strides = array<i32>} : memref<8x128xf32, #tpu.memory_space<vmem>>, vector<8x128xf32>,
    %c0_428 = arith.constant 0 : index
    %c0_429 = arith.constant 0 : index
    %749 = vector.load %arg10[%c0_428, %c0_429] : memref<8x128xf32, #tpu.memory_space<vmem>>, vector<8x128xf32>
    tpu.vector_store %arg10[%c0_428, %c0_429], %747 {strides = array<i32>} : memref<8x128xf32, #tpu.memory_space<vmem>>, vector<8x128xf32>,
    %750 = arith.index_cast %c2_i32_412 : i32 to index
    %c0_430 = arith.constant 0 : index
    %c0_431 = arith.constant 0 : index
    %751 = vector.load %arg8[%750, %c0_430, %c0_431] : memref<8x8x128xf32, #tpu.memory_space<vmem>>, vector<1x8x128xf32>
    %752 = vector.shape_cast %751 : vector<1x8x128xf32> to vector<8x128xf32>
    %753 = vector.shape_cast %747 : vector<8x128xf32> to vector<1x8x128xf32>
    tpu.vector_store %arg8[%750, %c0_430, %c0_431], %753 {strides = array<i32>} : memref<8x8x128xf32, #tpu.memory_space<vmem>>, vector<1x8x128xf32>,
    %c3_i32_432 = arith.constant 3 : i32
    %c0_433 = arith.constant 0 : index
    %c0_434 = arith.constant 0 : index
    %754 = vector.load %arg10[%c0_433, %c0_434] : memref<8x128xf32, #tpu.memory_space<vmem>>, vector<8x128xf32>
    %cst_435 = arith.constant dense<0.000000e+00> : vector<8x256xf32>
    %755 = tpu.matmul %754, %630, %cst_435 {dimension_numbers = #tpu.dot_dimension_numbers<[1], [0], [0], [1], [0, 0, 1, 1], [], []>} : vector<8x128xf32>, vector<128x256xf32>, vector<8x256xf32> -> vector<8x256xf32>
    %756 = arith.index_cast %c3_i32_432 : i32 to index
    %c0_436 = arith.constant 0 : index
    %c0_437 = arith.constant 0 : index
    %757 = vector.load %arg9[%756, %c0_436, %c0_437] : memref<8x8x256xf32, #tpu.memory_space<vmem>>, vector<1x8x256xf32>
    %758 = vector.shape_cast %757 : vector<1x8x256xf32> to vector<8x256xf32>
    %759 = arith.addf %755, %758 : vector<8x256xf32>
    %760 = vector.extract_strided_slice %759 {offsets = [0, 0], sizes = [8, 128], strides = [1, 1]} : vector<8x256xf32> to vector<8x128xf32>
    %761 = arith.negf %760 : vector<8x128xf32>
    %762 = math.exp %761 : vector<8x128xf32>
    %cst_438 = arith.constant 1.000000e+00 : f32
    %763 = vector.broadcast %cst_438 : f32 to vector<8x128xf32>
    %764 = arith.addf %763, %762 : vector<8x128xf32>
    %765 = arith.divf %763, %764 : vector<8x128xf32>
    %766 = vector.extract_strided_slice %759 {offsets = [0, 128], sizes = [8, 128], strides = [1, 1]} : vector<8x256xf32> to vector<8x128xf32>
    %767 = arith.negf %766 : vector<8x128xf32>
    %768 = math.exp %767 : vector<8x128xf32>
    %cst_439 = arith.constant 1.000000e+00 : f32
    %769 = vector.broadcast %cst_439 : f32 to vector<8x128xf32>
    %770 = arith.addf %769, %768 : vector<8x128xf32>
    %771 = arith.divf %769, %770 : vector<8x128xf32>
    %cst_440 = arith.constant 2.000000e+00 : f32
    %772 = vector.broadcast %cst_440 : f32 to vector<8x128xf32>
    %773 = arith.mulf %772, %771 : vector<8x128xf32>
    %cst_441 = arith.constant 1.000000e+00 : f32
    %774 = vector.broadcast %cst_441 : f32 to vector<8x128xf32>
    %775 = arith.subf %773, %774 : vector<8x128xf32>
    %776 = arith.select %2, %775, %771 : vector<8x128xi1>, vector<8x128xf32>
    %c64_i32_442 = arith.constant 64 : i32
    %777 = tpu.dynamic_rotate %765 by %c64_i32_442 dim 1 : vector<8x128xf32>, i32 -> vector<8x128xf32>
    %c64_i32_443 = arith.constant 64 : i32
    %778 = tpu.dynamic_rotate %776 by %c64_i32_443 dim 1 : vector<8x128xf32>, i32 -> vector<8x128xf32>
    %c0_444 = arith.constant 0 : index
    %c0_445 = arith.constant 0 : index
    %779 = vector.load %arg11[%c0_444, %c0_445] : memref<8x128xf32, #tpu.memory_space<vmem>>, vector<8x128xf32>
    %780 = arith.mulf %777, %779 : vector<8x128xf32>
    %781 = arith.mulf %765, %776 : vector<8x128xf32>
    %782 = arith.addf %780, %781 : vector<8x128xf32>
    %783 = math.tanh %782 : vector<8x128xf32>
    %784 = arith.mulf %778, %783 : vector<8x128xf32>
    %c0_446 = arith.constant 0 : index
    %c0_447 = arith.constant 0 : index
    %785 = vector.load %arg11[%c0_446, %c0_447] : memref<8x128xf32, #tpu.memory_space<vmem>>, vector<8x128xf32>
    tpu.vector_store %arg11[%c0_446, %c0_447], %782 {strides = array<i32>} : memref<8x128xf32, #tpu.memory_space<vmem>>, vector<8x128xf32>,
    %c0_448 = arith.constant 0 : index
    %c0_449 = arith.constant 0 : index
    %786 = vector.load %arg10[%c0_448, %c0_449] : memref<8x128xf32, #tpu.memory_space<vmem>>, vector<8x128xf32>
    tpu.vector_store %arg10[%c0_448, %c0_449], %784 {strides = array<i32>} : memref<8x128xf32, #tpu.memory_space<vmem>>, vector<8x128xf32>,
    %787 = arith.index_cast %c3_i32_432 : i32 to index
    %c0_450 = arith.constant 0 : index
    %c0_451 = arith.constant 0 : index
    %788 = vector.load %arg8[%787, %c0_450, %c0_451] : memref<8x8x128xf32, #tpu.memory_space<vmem>>, vector<1x8x128xf32>
    %789 = vector.shape_cast %788 : vector<1x8x128xf32> to vector<8x128xf32>
    %790 = vector.shape_cast %784 : vector<8x128xf32> to vector<1x8x128xf32>
    tpu.vector_store %arg8[%787, %c0_450, %c0_451], %790 {strides = array<i32>} : memref<8x8x128xf32, #tpu.memory_space<vmem>>, vector<1x8x128xf32>,
    %c4_i32_452 = arith.constant 4 : i32
    %c0_453 = arith.constant 0 : index
    %c0_454 = arith.constant 0 : index
    %791 = vector.load %arg10[%c0_453, %c0_454] : memref<8x128xf32, #tpu.memory_space<vmem>>, vector<8x128xf32>
    %cst_455 = arith.constant dense<0.000000e+00> : vector<8x256xf32>
    %792 = tpu.matmul %791, %630, %cst_455 {dimension_numbers = #tpu.dot_dimension_numbers<[1], [0], [0], [1], [0, 0, 1, 1], [], []>} : vector<8x128xf32>, vector<128x256xf32>, vector<8x256xf32> -> vector<8x256xf32>
    %793 = arith.index_cast %c4_i32_452 : i32 to index
    %c0_456 = arith.constant 0 : index
    %c0_457 = arith.constant 0 : index
    %794 = vector.load %arg9[%793, %c0_456, %c0_457] : memref<8x8x256xf32, #tpu.memory_space<vmem>>, vector<1x8x256xf32>
    %795 = vector.shape_cast %794 : vector<1x8x256xf32> to vector<8x256xf32>
    %796 = arith.addf %792, %795 : vector<8x256xf32>
    %797 = vector.extract_strided_slice %796 {offsets = [0, 0], sizes = [8, 128], strides = [1, 1]} : vector<8x256xf32> to vector<8x128xf32>
    %798 = arith.negf %797 : vector<8x128xf32>
    %799 = math.exp %798 : vector<8x128xf32>
    %cst_458 = arith.constant 1.000000e+00 : f32
    %800 = vector.broadcast %cst_458 : f32 to vector<8x128xf32>
    %801 = arith.addf %800, %799 : vector<8x128xf32>
    %802 = arith.divf %800, %801 : vector<8x128xf32>
    %803 = vector.extract_strided_slice %796 {offsets = [0, 128], sizes = [8, 128], strides = [1, 1]} : vector<8x256xf32> to vector<8x128xf32>
    %804 = arith.negf %803 : vector<8x128xf32>
    %805 = math.exp %804 : vector<8x128xf32>
    %cst_459 = arith.constant 1.000000e+00 : f32
    %806 = vector.broadcast %cst_459 : f32 to vector<8x128xf32>
    %807 = arith.addf %806, %805 : vector<8x128xf32>
    %808 = arith.divf %806, %807 : vector<8x128xf32>
    %cst_460 = arith.constant 2.000000e+00 : f32
    %809 = vector.broadcast %cst_460 : f32 to vector<8x128xf32>
    %810 = arith.mulf %809, %808 : vector<8x128xf32>
    %cst_461 = arith.constant 1.000000e+00 : f32
    %811 = vector.broadcast %cst_461 : f32 to vector<8x128xf32>
    %812 = arith.subf %810, %811 : vector<8x128xf32>
    %813 = arith.select %2, %812, %808 : vector<8x128xi1>, vector<8x128xf32>
    %c64_i32_462 = arith.constant 64 : i32
    %814 = tpu.dynamic_rotate %802 by %c64_i32_462 dim 1 : vector<8x128xf32>, i32 -> vector<8x128xf32>
    %c64_i32_463 = arith.constant 64 : i32
    %815 = tpu.dynamic_rotate %813 by %c64_i32_463 dim 1 : vector<8x128xf32>, i32 -> vector<8x128xf32>
    %c0_464 = arith.constant 0 : index
    %c0_465 = arith.constant 0 : index
    %816 = vector.load %arg11[%c0_464, %c0_465] : memref<8x128xf32, #tpu.memory_space<vmem>>, vector<8x128xf32>
    %817 = arith.mulf %814, %816 : vector<8x128xf32>
    %818 = arith.mulf %802, %813 : vector<8x128xf32>
    %819 = arith.addf %817, %818 : vector<8x128xf32>
    %820 = math.tanh %819 : vector<8x128xf32>
    %821 = arith.mulf %815, %820 : vector<8x128xf32>
    %c0_466 = arith.constant 0 : index
    %c0_467 = arith.constant 0 : index
    %822 = vector.load %arg11[%c0_466, %c0_467] : memref<8x128xf32, #tpu.memory_space<vmem>>, vector<8x128xf32>
    tpu.vector_store %arg11[%c0_466, %c0_467], %819 {strides = array<i32>} : memref<8x128xf32, #tpu.memory_space<vmem>>, vector<8x128xf32>,
    %c0_468 = arith.constant 0 : index
    %c0_469 = arith.constant 0 : index
    %823 = vector.load %arg10[%c0_468, %c0_469] : memref<8x128xf32, #tpu.memory_space<vmem>>, vector<8x128xf32>
    tpu.vector_store %arg10[%c0_468, %c0_469], %821 {strides = array<i32>} : memref<8x128xf32, #tpu.memory_space<vmem>>, vector<8x128xf32>,
    %824 = arith.index_cast %c4_i32_452 : i32 to index
    %c0_470 = arith.constant 0 : index
    %c0_471 = arith.constant 0 : index
    %825 = vector.load %arg8[%824, %c0_470, %c0_471] : memref<8x8x128xf32, #tpu.memory_space<vmem>>, vector<1x8x128xf32>
    %826 = vector.shape_cast %825 : vector<1x8x128xf32> to vector<8x128xf32>
    %827 = vector.shape_cast %821 : vector<8x128xf32> to vector<1x8x128xf32>
    tpu.vector_store %arg8[%824, %c0_470, %c0_471], %827 {strides = array<i32>} : memref<8x8x128xf32, #tpu.memory_space<vmem>>, vector<1x8x128xf32>,
    %c5_i32_472 = arith.constant 5 : i32
    %c0_473 = arith.constant 0 : index
    %c0_474 = arith.constant 0 : index
    %828 = vector.load %arg10[%c0_473, %c0_474] : memref<8x128xf32, #tpu.memory_space<vmem>>, vector<8x128xf32>
    %cst_475 = arith.constant dense<0.000000e+00> : vector<8x256xf32>
    %829 = tpu.matmul %828, %630, %cst_475 {dimension_numbers = #tpu.dot_dimension_numbers<[1], [0], [0], [1], [0, 0, 1, 1], [], []>} : vector<8x128xf32>, vector<128x256xf32>, vector<8x256xf32> -> vector<8x256xf32>
    %830 = arith.index_cast %c5_i32_472 : i32 to index
    %c0_476 = arith.constant 0 : index
    %c0_477 = arith.constant 0 : index
    %831 = vector.load %arg9[%830, %c0_476, %c0_477] : memref<8x8x256xf32, #tpu.memory_space<vmem>>, vector<1x8x256xf32>
    %832 = vector.shape_cast %831 : vector<1x8x256xf32> to vector<8x256xf32>
    %833 = arith.addf %829, %832 : vector<8x256xf32>
    %834 = vector.extract_strided_slice %833 {offsets = [0, 0], sizes = [8, 128], strides = [1, 1]} : vector<8x256xf32> to vector<8x128xf32>
    %835 = arith.negf %834 : vector<8x128xf32>
    %836 = math.exp %835 : vector<8x128xf32>
    %cst_478 = arith.constant 1.000000e+00 : f32
    %837 = vector.broadcast %cst_478 : f32 to vector<8x128xf32>
    %838 = arith.addf %837, %836 : vector<8x128xf32>
    %839 = arith.divf %837, %838 : vector<8x128xf32>
    %840 = vector.extract_strided_slice %833 {offsets = [0, 128], sizes = [8, 128], strides = [1, 1]} : vector<8x256xf32> to vector<8x128xf32>
    %841 = arith.negf %840 : vector<8x128xf32>
    %842 = math.exp %841 : vector<8x128xf32>
    %cst_479 = arith.constant 1.000000e+00 : f32
    %843 = vector.broadcast %cst_479 : f32 to vector<8x128xf32>
    %844 = arith.addf %843, %842 : vector<8x128xf32>
    %845 = arith.divf %843, %844 : vector<8x128xf32>
    %cst_480 = arith.constant 2.000000e+00 : f32
    %846 = vector.broadcast %cst_480 : f32 to vector<8x128xf32>
    %847 = arith.mulf %846, %845 : vector<8x128xf32>
    %cst_481 = arith.constant 1.000000e+00 : f32
    %848 = vector.broadcast %cst_481 : f32 to vector<8x128xf32>
    %849 = arith.subf %847, %848 : vector<8x128xf32>
    %850 = arith.select %2, %849, %845 : vector<8x128xi1>, vector<8x128xf32>
    %c64_i32_482 = arith.constant 64 : i32
    %851 = tpu.dynamic_rotate %839 by %c64_i32_482 dim 1 : vector<8x128xf32>, i32 -> vector<8x128xf32>
    %c64_i32_483 = arith.constant 64 : i32
    %852 = tpu.dynamic_rotate %850 by %c64_i32_483 dim 1 : vector<8x128xf32>, i32 -> vector<8x128xf32>
    %c0_484 = arith.constant 0 : index
    %c0_485 = arith.constant 0 : index
    %853 = vector.load %arg11[%c0_484, %c0_485] : memref<8x128xf32, #tpu.memory_space<vmem>>, vector<8x128xf32>
    %854 = arith.mulf %851, %853 : vector<8x128xf32>
    %855 = arith.mulf %839, %850 : vector<8x128xf32>
    %856 = arith.addf %854, %855 : vector<8x128xf32>
    %857 = math.tanh %856 : vector<8x128xf32>
    %858 = arith.mulf %852, %857 : vector<8x128xf32>
    %c0_486 = arith.constant 0 : index
    %c0_487 = arith.constant 0 : index
    %859 = vector.load %arg11[%c0_486, %c0_487] : memref<8x128xf32, #tpu.memory_space<vmem>>, vector<8x128xf32>
    tpu.vector_store %arg11[%c0_486, %c0_487], %856 {strides = array<i32>} : memref<8x128xf32, #tpu.memory_space<vmem>>, vector<8x128xf32>,
    %c0_488 = arith.constant 0 : index
    %c0_489 = arith.constant 0 : index
    %860 = vector.load %arg10[%c0_488, %c0_489] : memref<8x128xf32, #tpu.memory_space<vmem>>, vector<8x128xf32>
    tpu.vector_store %arg10[%c0_488, %c0_489], %858 {strides = array<i32>} : memref<8x128xf32, #tpu.memory_space<vmem>>, vector<8x128xf32>,
    %861 = arith.index_cast %c5_i32_472 : i32 to index
    %c0_490 = arith.constant 0 : index
    %c0_491 = arith.constant 0 : index
    %862 = vector.load %arg8[%861, %c0_490, %c0_491] : memref<8x8x128xf32, #tpu.memory_space<vmem>>, vector<1x8x128xf32>
    %863 = vector.shape_cast %862 : vector<1x8x128xf32> to vector<8x128xf32>
    %864 = vector.shape_cast %858 : vector<8x128xf32> to vector<1x8x128xf32>
    tpu.vector_store %arg8[%861, %c0_490, %c0_491], %864 {strides = array<i32>} : memref<8x8x128xf32, #tpu.memory_space<vmem>>, vector<1x8x128xf32>,
    %c6_i32_492 = arith.constant 6 : i32
    %c0_493 = arith.constant 0 : index
    %c0_494 = arith.constant 0 : index
    %865 = vector.load %arg10[%c0_493, %c0_494] : memref<8x128xf32, #tpu.memory_space<vmem>>, vector<8x128xf32>
    %cst_495 = arith.constant dense<0.000000e+00> : vector<8x256xf32>
    %866 = tpu.matmul %865, %630, %cst_495 {dimension_numbers = #tpu.dot_dimension_numbers<[1], [0], [0], [1], [0, 0, 1, 1], [], []>} : vector<8x128xf32>, vector<128x256xf32>, vector<8x256xf32> -> vector<8x256xf32>
    %867 = arith.index_cast %c6_i32_492 : i32 to index
    %c0_496 = arith.constant 0 : index
    %c0_497 = arith.constant 0 : index
    %868 = vector.load %arg9[%867, %c0_496, %c0_497] : memref<8x8x256xf32, #tpu.memory_space<vmem>>, vector<1x8x256xf32>
    %869 = vector.shape_cast %868 : vector<1x8x256xf32> to vector<8x256xf32>
    %870 = arith.addf %866, %869 : vector<8x256xf32>
    %871 = vector.extract_strided_slice %870 {offsets = [0, 0], sizes = [8, 128], strides = [1, 1]} : vector<8x256xf32> to vector<8x128xf32>
    %872 = arith.negf %871 : vector<8x128xf32>
    %873 = math.exp %872 : vector<8x128xf32>
    %cst_498 = arith.constant 1.000000e+00 : f32
    %874 = vector.broadcast %cst_498 : f32 to vector<8x128xf32>
    %875 = arith.addf %874, %873 : vector<8x128xf32>
    %876 = arith.divf %874, %875 : vector<8x128xf32>
    %877 = vector.extract_strided_slice %870 {offsets = [0, 128], sizes = [8, 128], strides = [1, 1]} : vector<8x256xf32> to vector<8x128xf32>
    %878 = arith.negf %877 : vector<8x128xf32>
    %879 = math.exp %878 : vector<8x128xf32>
    %cst_499 = arith.constant 1.000000e+00 : f32
    %880 = vector.broadcast %cst_499 : f32 to vector<8x128xf32>
    %881 = arith.addf %880, %879 : vector<8x128xf32>
    %882 = arith.divf %880, %881 : vector<8x128xf32>
    %cst_500 = arith.constant 2.000000e+00 : f32
    %883 = vector.broadcast %cst_500 : f32 to vector<8x128xf32>
    %884 = arith.mulf %883, %882 : vector<8x128xf32>
    %cst_501 = arith.constant 1.000000e+00 : f32
    %885 = vector.broadcast %cst_501 : f32 to vector<8x128xf32>
    %886 = arith.subf %884, %885 : vector<8x128xf32>
    %887 = arith.select %2, %886, %882 : vector<8x128xi1>, vector<8x128xf32>
    %c64_i32_502 = arith.constant 64 : i32
    %888 = tpu.dynamic_rotate %876 by %c64_i32_502 dim 1 : vector<8x128xf32>, i32 -> vector<8x128xf32>
    %c64_i32_503 = arith.constant 64 : i32
    %889 = tpu.dynamic_rotate %887 by %c64_i32_503 dim 1 : vector<8x128xf32>, i32 -> vector<8x128xf32>
    %c0_504 = arith.constant 0 : index
    %c0_505 = arith.constant 0 : index
    %890 = vector.load %arg11[%c0_504, %c0_505] : memref<8x128xf32, #tpu.memory_space<vmem>>, vector<8x128xf32>
    %891 = arith.mulf %888, %890 : vector<8x128xf32>
    %892 = arith.mulf %876, %887 : vector<8x128xf32>
    %893 = arith.addf %891, %892 : vector<8x128xf32>
    %894 = math.tanh %893 : vector<8x128xf32>
    %895 = arith.mulf %889, %894 : vector<8x128xf32>
    %c0_506 = arith.constant 0 : index
    %c0_507 = arith.constant 0 : index
    %896 = vector.load %arg11[%c0_506, %c0_507] : memref<8x128xf32, #tpu.memory_space<vmem>>, vector<8x128xf32>
    tpu.vector_store %arg11[%c0_506, %c0_507], %893 {strides = array<i32>} : memref<8x128xf32, #tpu.memory_space<vmem>>, vector<8x128xf32>,
    %c0_508 = arith.constant 0 : index
    %c0_509 = arith.constant 0 : index
    %897 = vector.load %arg10[%c0_508, %c0_509] : memref<8x128xf32, #tpu.memory_space<vmem>>, vector<8x128xf32>
    tpu.vector_store %arg10[%c0_508, %c0_509], %895 {strides = array<i32>} : memref<8x128xf32, #tpu.memory_space<vmem>>, vector<8x128xf32>,
    %898 = arith.index_cast %c6_i32_492 : i32 to index
    %c0_510 = arith.constant 0 : index
    %c0_511 = arith.constant 0 : index
    %899 = vector.load %arg8[%898, %c0_510, %c0_511] : memref<8x8x128xf32, #tpu.memory_space<vmem>>, vector<1x8x128xf32>
    %900 = vector.shape_cast %899 : vector<1x8x128xf32> to vector<8x128xf32>
    %901 = vector.shape_cast %895 : vector<8x128xf32> to vector<1x8x128xf32>
    tpu.vector_store %arg8[%898, %c0_510, %c0_511], %901 {strides = array<i32>} : memref<8x8x128xf32, #tpu.memory_space<vmem>>, vector<1x8x128xf32>,
    %c7_i32_512 = arith.constant 7 : i32
    %c0_513 = arith.constant 0 : index
    %c0_514 = arith.constant 0 : index
    %902 = vector.load %arg10[%c0_513, %c0_514] : memref<8x128xf32, #tpu.memory_space<vmem>>, vector<8x128xf32>
    %cst_515 = arith.constant dense<0.000000e+00> : vector<8x256xf32>
    %903 = tpu.matmul %902, %630, %cst_515 {dimension_numbers = #tpu.dot_dimension_numbers<[1], [0], [0], [1], [0, 0, 1, 1], [], []>} : vector<8x128xf32>, vector<128x256xf32>, vector<8x256xf32> -> vector<8x256xf32>
    %904 = arith.index_cast %c7_i32_512 : i32 to index
    %c0_516 = arith.constant 0 : index
    %c0_517 = arith.constant 0 : index
    %905 = vector.load %arg9[%904, %c0_516, %c0_517] : memref<8x8x256xf32, #tpu.memory_space<vmem>>, vector<1x8x256xf32>
    %906 = vector.shape_cast %905 : vector<1x8x256xf32> to vector<8x256xf32>
    %907 = arith.addf %903, %906 : vector<8x256xf32>
    %908 = vector.extract_strided_slice %907 {offsets = [0, 0], sizes = [8, 128], strides = [1, 1]} : vector<8x256xf32> to vector<8x128xf32>
    %909 = arith.negf %908 : vector<8x128xf32>
    %910 = math.exp %909 : vector<8x128xf32>
    %cst_518 = arith.constant 1.000000e+00 : f32
    %911 = vector.broadcast %cst_518 : f32 to vector<8x128xf32>
    %912 = arith.addf %911, %910 : vector<8x128xf32>
    %913 = arith.divf %911, %912 : vector<8x128xf32>
    %914 = vector.extract_strided_slice %907 {offsets = [0, 128], sizes = [8, 128], strides = [1, 1]} : vector<8x256xf32> to vector<8x128xf32>
    %915 = arith.negf %914 : vector<8x128xf32>
    %916 = math.exp %915 : vector<8x128xf32>
    %cst_519 = arith.constant 1.000000e+00 : f32
    %917 = vector.broadcast %cst_519 : f32 to vector<8x128xf32>
    %918 = arith.addf %917, %916 : vector<8x128xf32>
    %919 = arith.divf %917, %918 : vector<8x128xf32>
    %cst_520 = arith.constant 2.000000e+00 : f32
    %920 = vector.broadcast %cst_520 : f32 to vector<8x128xf32>
    %921 = arith.mulf %920, %919 : vector<8x128xf32>
    %cst_521 = arith.constant 1.000000e+00 : f32
    %922 = vector.broadcast %cst_521 : f32 to vector<8x128xf32>
    %923 = arith.subf %921, %922 : vector<8x128xf32>
    %924 = arith.select %2, %923, %919 : vector<8x128xi1>, vector<8x128xf32>
    %c64_i32_522 = arith.constant 64 : i32
    %925 = tpu.dynamic_rotate %913 by %c64_i32_522 dim 1 : vector<8x128xf32>, i32 -> vector<8x128xf32>
    %c64_i32_523 = arith.constant 64 : i32
    %926 = tpu.dynamic_rotate %924 by %c64_i32_523 dim 1 : vector<8x128xf32>, i32 -> vector<8x128xf32>
    %c0_524 = arith.constant 0 : index
    %c0_525 = arith.constant 0 : index
    %927 = vector.load %arg11[%c0_524, %c0_525] : memref<8x128xf32, #tpu.memory_space<vmem>>, vector<8x128xf32>
    %928 = arith.mulf %925, %927 : vector<8x128xf32>
    %929 = arith.mulf %913, %924 : vector<8x128xf32>
    %930 = arith.addf %928, %929 : vector<8x128xf32>
    %931 = math.tanh %930 : vector<8x128xf32>
    %932 = arith.mulf %926, %931 : vector<8x128xf32>
    %c0_526 = arith.constant 0 : index
    %c0_527 = arith.constant 0 : index
    %933 = vector.load %arg11[%c0_526, %c0_527] : memref<8x128xf32, #tpu.memory_space<vmem>>, vector<8x128xf32>
    tpu.vector_store %arg11[%c0_526, %c0_527], %930 {strides = array<i32>} : memref<8x128xf32, #tpu.memory_space<vmem>>, vector<8x128xf32>,
    %c0_528 = arith.constant 0 : index
    %c0_529 = arith.constant 0 : index
    %934 = vector.load %arg10[%c0_528, %c0_529] : memref<8x128xf32, #tpu.memory_space<vmem>>, vector<8x128xf32>
    tpu.vector_store %arg10[%c0_528, %c0_529], %932 {strides = array<i32>} : memref<8x128xf32, #tpu.memory_space<vmem>>, vector<8x128xf32>,
    %935 = arith.index_cast %c7_i32_512 : i32 to index
    %c0_530 = arith.constant 0 : index
    %c0_531 = arith.constant 0 : index
    %936 = vector.load %arg8[%935, %c0_530, %c0_531] : memref<8x8x128xf32, #tpu.memory_space<vmem>>, vector<1x8x128xf32>
    %937 = vector.shape_cast %936 : vector<1x8x128xf32> to vector<8x128xf32>
    %938 = vector.shape_cast %932 : vector<8x128xf32> to vector<1x8x128xf32>
    tpu.vector_store %arg8[%935, %c0_530, %c0_531], %938 {strides = array<i32>} : memref<8x8x128xf32, #tpu.memory_space<vmem>>, vector<1x8x128xf32>,
    %c8_i32_532 = arith.constant 8 : i32
    %c3 = arith.constant 3 : index
    %c0_533 = arith.constant 0 : index
    %c0_534 = arith.constant 0 : index
    %939 = vector.load %arg2[%c3, %c0_533, %c0_534] : memref<5x128x256xf32, #tpu.memory_space<vmem>>, vector<1x128x256xf32>
    %940 = vector.shape_cast %939 : vector<1x128x256xf32> to vector<128x256xf32>
    %c3_535 = arith.constant 3 : index
    %c0_536 = arith.constant 0 : index
    %c0_537 = arith.constant 0 : index
    %941 = vector.load %arg3[%c3_535, %c0_536, %c0_537] : memref<5x128x256xf32, #tpu.memory_space<vmem>>, vector<1x128x256xf32>
    %942 = vector.shape_cast %941 : vector<1x128x256xf32> to vector<128x256xf32>
    %c3_538 = arith.constant 3 : index
    %c0_539 = arith.constant 0 : index
    %943 = vector.load %arg4[%c3_538, %c0_539] : memref<5x256xf32, #tpu.memory_space<vmem>>, vector<1x256xf32>
    %c0_540 = arith.constant 0 : index
    %c0_541 = arith.constant 0 : index
    %c0_542 = arith.constant 0 : index
    %944 = vector.load %arg8[%c0_540, %c0_541, %c0_542] : memref<8x8x128xf32, #tpu.memory_space<vmem>>, vector<8x8x128xf32>
    %945 = vector.shape_cast %944 : vector<8x8x128xf32> to vector<64x128xf32>
    %cst_543 = arith.constant dense<0.000000e+00> : vector<64x256xf32>
    %946 = tpu.matmul %945, %940, %cst_543 {dimension_numbers = #tpu.dot_dimension_numbers<[1], [0], [0], [1], [0, 0, 1, 1], [], []>} : vector<64x128xf32>, vector<128x256xf32>, vector<64x256xf32> -> vector<64x256xf32>
    %947 = vector.broadcast %943 : vector<1x256xf32> to vector<64x256xf32>
    %948 = arith.addf %946, %947 : vector<64x256xf32>
    %949 = vector.shape_cast %948 : vector<64x256xf32> to vector<8x8x256xf32>
    %c0_544 = arith.constant 0 : index
    %c0_545 = arith.constant 0 : index
    %c0_546 = arith.constant 0 : index
    %950 = vector.load %arg9[%c0_544, %c0_545, %c0_546] : memref<8x8x256xf32, #tpu.memory_space<vmem>>, vector<8x8x256xf32>
    tpu.vector_store %arg9[%c0_544, %c0_545, %c0_546], %949 {strides = array<i32>} : memref<8x8x256xf32, #tpu.memory_space<vmem>>, vector<8x8x256xf32>,
    %cst_547 = arith.constant 0.000000e+00 : f32
    %951 = vector.broadcast %cst_547 : f32 to vector<8x128xf32>
    %c0_548 = arith.constant 0 : index
    %c0_549 = arith.constant 0 : index
    %952 = vector.load %arg10[%c0_548, %c0_549] : memref<8x128xf32, #tpu.memory_space<vmem>>, vector<8x128xf32>
    tpu.vector_store %arg10[%c0_548, %c0_549], %951 {strides = array<i32>} : memref<8x128xf32, #tpu.memory_space<vmem>>, vector<8x128xf32>,
    %cst_550 = arith.constant 0.000000e+00 : f32
    %953 = vector.broadcast %cst_550 : f32 to vector<8x128xf32>
    %c0_551 = arith.constant 0 : index
    %c0_552 = arith.constant 0 : index
    %954 = vector.load %arg11[%c0_551, %c0_552] : memref<8x128xf32, #tpu.memory_space<vmem>>, vector<8x128xf32>
    tpu.vector_store %arg11[%c0_551, %c0_552], %953 {strides = array<i32>} : memref<8x128xf32, #tpu.memory_space<vmem>>, vector<8x128xf32>,
    %c0_i32_553 = arith.constant 0 : i32
    %c0_554 = arith.constant 0 : index
    %c0_555 = arith.constant 0 : index
    %955 = vector.load %arg10[%c0_554, %c0_555] : memref<8x128xf32, #tpu.memory_space<vmem>>, vector<8x128xf32>
    %cst_556 = arith.constant dense<0.000000e+00> : vector<8x256xf32>
    %956 = tpu.matmul %955, %942, %cst_556 {dimension_numbers = #tpu.dot_dimension_numbers<[1], [0], [0], [1], [0, 0, 1, 1], [], []>} : vector<8x128xf32>, vector<128x256xf32>, vector<8x256xf32> -> vector<8x256xf32>
    %957 = arith.index_cast %c0_i32_553 : i32 to index
    %c0_557 = arith.constant 0 : index
    %c0_558 = arith.constant 0 : index
    %958 = vector.load %arg9[%957, %c0_557, %c0_558] : memref<8x8x256xf32, #tpu.memory_space<vmem>>, vector<1x8x256xf32>
    %959 = vector.shape_cast %958 : vector<1x8x256xf32> to vector<8x256xf32>
    %960 = arith.addf %956, %959 : vector<8x256xf32>
    %961 = vector.extract_strided_slice %960 {offsets = [0, 0], sizes = [8, 128], strides = [1, 1]} : vector<8x256xf32> to vector<8x128xf32>
    %962 = arith.negf %961 : vector<8x128xf32>
    %963 = math.exp %962 : vector<8x128xf32>
    %cst_559 = arith.constant 1.000000e+00 : f32
    %964 = vector.broadcast %cst_559 : f32 to vector<8x128xf32>
    %965 = arith.addf %964, %963 : vector<8x128xf32>
    %966 = arith.divf %964, %965 : vector<8x128xf32>
    %967 = vector.extract_strided_slice %960 {offsets = [0, 128], sizes = [8, 128], strides = [1, 1]} : vector<8x256xf32> to vector<8x128xf32>
    %968 = arith.negf %967 : vector<8x128xf32>
    %969 = math.exp %968 : vector<8x128xf32>
    %cst_560 = arith.constant 1.000000e+00 : f32
    %970 = vector.broadcast %cst_560 : f32 to vector<8x128xf32>
    %971 = arith.addf %970, %969 : vector<8x128xf32>
    %972 = arith.divf %970, %971 : vector<8x128xf32>
    %cst_561 = arith.constant 2.000000e+00 : f32
    %973 = vector.broadcast %cst_561 : f32 to vector<8x128xf32>
    %974 = arith.mulf %973, %972 : vector<8x128xf32>
    %cst_562 = arith.constant 1.000000e+00 : f32
    %975 = vector.broadcast %cst_562 : f32 to vector<8x128xf32>
    %976 = arith.subf %974, %975 : vector<8x128xf32>
    %977 = arith.select %2, %976, %972 : vector<8x128xi1>, vector<8x128xf32>
    %c64_i32_563 = arith.constant 64 : i32
    %978 = tpu.dynamic_rotate %966 by %c64_i32_563 dim 1 : vector<8x128xf32>, i32 -> vector<8x128xf32>
    %c64_i32_564 = arith.constant 64 : i32
    %979 = tpu.dynamic_rotate %977 by %c64_i32_564 dim 1 : vector<8x128xf32>, i32 -> vector<8x128xf32>
    %c0_565 = arith.constant 0 : index
    %c0_566 = arith.constant 0 : index
    %980 = vector.load %arg11[%c0_565, %c0_566] : memref<8x128xf32, #tpu.memory_space<vmem>>, vector<8x128xf32>
    %981 = arith.mulf %978, %980 : vector<8x128xf32>
    %982 = arith.mulf %966, %977 : vector<8x128xf32>
    %983 = arith.addf %981, %982 : vector<8x128xf32>
    %984 = math.tanh %983 : vector<8x128xf32>
    %985 = arith.mulf %979, %984 : vector<8x128xf32>
    %c0_567 = arith.constant 0 : index
    %c0_568 = arith.constant 0 : index
    %986 = vector.load %arg11[%c0_567, %c0_568] : memref<8x128xf32, #tpu.memory_space<vmem>>, vector<8x128xf32>
    tpu.vector_store %arg11[%c0_567, %c0_568], %983 {strides = array<i32>} : memref<8x128xf32, #tpu.memory_space<vmem>>, vector<8x128xf32>,
    %c0_569 = arith.constant 0 : index
    %c0_570 = arith.constant 0 : index
    %987 = vector.load %arg10[%c0_569, %c0_570] : memref<8x128xf32, #tpu.memory_space<vmem>>, vector<8x128xf32>
    tpu.vector_store %arg10[%c0_569, %c0_570], %985 {strides = array<i32>} : memref<8x128xf32, #tpu.memory_space<vmem>>, vector<8x128xf32>,
    %988 = arith.index_cast %c0_i32_553 : i32 to index
    %c0_571 = arith.constant 0 : index
    %c0_572 = arith.constant 0 : index
    %989 = vector.load %arg8[%988, %c0_571, %c0_572] : memref<8x8x128xf32, #tpu.memory_space<vmem>>, vector<1x8x128xf32>
    %990 = vector.shape_cast %989 : vector<1x8x128xf32> to vector<8x128xf32>
    %991 = vector.shape_cast %985 : vector<8x128xf32> to vector<1x8x128xf32>
    tpu.vector_store %arg8[%988, %c0_571, %c0_572], %991 {strides = array<i32>} : memref<8x8x128xf32, #tpu.memory_space<vmem>>, vector<1x8x128xf32>,
    %c1_i32_573 = arith.constant 1 : i32
    %c0_574 = arith.constant 0 : index
    %c0_575 = arith.constant 0 : index
    %992 = vector.load %arg10[%c0_574, %c0_575] : memref<8x128xf32, #tpu.memory_space<vmem>>, vector<8x128xf32>
    %cst_576 = arith.constant dense<0.000000e+00> : vector<8x256xf32>
    %993 = tpu.matmul %992, %942, %cst_576 {dimension_numbers = #tpu.dot_dimension_numbers<[1], [0], [0], [1], [0, 0, 1, 1], [], []>} : vector<8x128xf32>, vector<128x256xf32>, vector<8x256xf32> -> vector<8x256xf32>
    %994 = arith.index_cast %c1_i32_573 : i32 to index
    %c0_577 = arith.constant 0 : index
    %c0_578 = arith.constant 0 : index
    %995 = vector.load %arg9[%994, %c0_577, %c0_578] : memref<8x8x256xf32, #tpu.memory_space<vmem>>, vector<1x8x256xf32>
    %996 = vector.shape_cast %995 : vector<1x8x256xf32> to vector<8x256xf32>
    %997 = arith.addf %993, %996 : vector<8x256xf32>
    %998 = vector.extract_strided_slice %997 {offsets = [0, 0], sizes = [8, 128], strides = [1, 1]} : vector<8x256xf32> to vector<8x128xf32>
    %999 = arith.negf %998 : vector<8x128xf32>
    %1000 = math.exp %999 : vector<8x128xf32>
    %cst_579 = arith.constant 1.000000e+00 : f32
    %1001 = vector.broadcast %cst_579 : f32 to vector<8x128xf32>
    %1002 = arith.addf %1001, %1000 : vector<8x128xf32>
    %1003 = arith.divf %1001, %1002 : vector<8x128xf32>
    %1004 = vector.extract_strided_slice %997 {offsets = [0, 128], sizes = [8, 128], strides = [1, 1]} : vector<8x256xf32> to vector<8x128xf32>
    %1005 = arith.negf %1004 : vector<8x128xf32>
    %1006 = math.exp %1005 : vector<8x128xf32>
    %cst_580 = arith.constant 1.000000e+00 : f32
    %1007 = vector.broadcast %cst_580 : f32 to vector<8x128xf32>
    %1008 = arith.addf %1007, %1006 : vector<8x128xf32>
    %1009 = arith.divf %1007, %1008 : vector<8x128xf32>
    %cst_581 = arith.constant 2.000000e+00 : f32
    %1010 = vector.broadcast %cst_581 : f32 to vector<8x128xf32>
    %1011 = arith.mulf %1010, %1009 : vector<8x128xf32>
    %cst_582 = arith.constant 1.000000e+00 : f32
    %1012 = vector.broadcast %cst_582 : f32 to vector<8x128xf32>
    %1013 = arith.subf %1011, %1012 : vector<8x128xf32>
    %1014 = arith.select %2, %1013, %1009 : vector<8x128xi1>, vector<8x128xf32>
    %c64_i32_583 = arith.constant 64 : i32
    %1015 = tpu.dynamic_rotate %1003 by %c64_i32_583 dim 1 : vector<8x128xf32>, i32 -> vector<8x128xf32>
    %c64_i32_584 = arith.constant 64 : i32
    %1016 = tpu.dynamic_rotate %1014 by %c64_i32_584 dim 1 : vector<8x128xf32>, i32 -> vector<8x128xf32>
    %c0_585 = arith.constant 0 : index
    %c0_586 = arith.constant 0 : index
    %1017 = vector.load %arg11[%c0_585, %c0_586] : memref<8x128xf32, #tpu.memory_space<vmem>>, vector<8x128xf32>
    %1018 = arith.mulf %1015, %1017 : vector<8x128xf32>
    %1019 = arith.mulf %1003, %1014 : vector<8x128xf32>
    %1020 = arith.addf %1018, %1019 : vector<8x128xf32>
    %1021 = math.tanh %1020 : vector<8x128xf32>
    %1022 = arith.mulf %1016, %1021 : vector<8x128xf32>
    %c0_587 = arith.constant 0 : index
    %c0_588 = arith.constant 0 : index
    %1023 = vector.load %arg11[%c0_587, %c0_588] : memref<8x128xf32, #tpu.memory_space<vmem>>, vector<8x128xf32>
    tpu.vector_store %arg11[%c0_587, %c0_588], %1020 {strides = array<i32>} : memref<8x128xf32, #tpu.memory_space<vmem>>, vector<8x128xf32>,
    %c0_589 = arith.constant 0 : index
    %c0_590 = arith.constant 0 : index
    %1024 = vector.load %arg10[%c0_589, %c0_590] : memref<8x128xf32, #tpu.memory_space<vmem>>, vector<8x128xf32>
    tpu.vector_store %arg10[%c0_589, %c0_590], %1022 {strides = array<i32>} : memref<8x128xf32, #tpu.memory_space<vmem>>, vector<8x128xf32>,
    %1025 = arith.index_cast %c1_i32_573 : i32 to index
    %c0_591 = arith.constant 0 : index
    %c0_592 = arith.constant 0 : index
    %1026 = vector.load %arg8[%1025, %c0_591, %c0_592] : memref<8x8x128xf32, #tpu.memory_space<vmem>>, vector<1x8x128xf32>
    %1027 = vector.shape_cast %1026 : vector<1x8x128xf32> to vector<8x128xf32>
    %1028 = vector.shape_cast %1022 : vector<8x128xf32> to vector<1x8x128xf32>
    tpu.vector_store %arg8[%1025, %c0_591, %c0_592], %1028 {strides = array<i32>} : memref<8x8x128xf32, #tpu.memory_space<vmem>>, vector<1x8x128xf32>,
    %c2_i32_593 = arith.constant 2 : i32
    %c0_594 = arith.constant 0 : index
    %c0_595 = arith.constant 0 : index
    %1029 = vector.load %arg10[%c0_594, %c0_595] : memref<8x128xf32, #tpu.memory_space<vmem>>, vector<8x128xf32>
    %cst_596 = arith.constant dense<0.000000e+00> : vector<8x256xf32>
    %1030 = tpu.matmul %1029, %942, %cst_596 {dimension_numbers = #tpu.dot_dimension_numbers<[1], [0], [0], [1], [0, 0, 1, 1], [], []>} : vector<8x128xf32>, vector<128x256xf32>, vector<8x256xf32> -> vector<8x256xf32>
    %1031 = arith.index_cast %c2_i32_593 : i32 to index
    %c0_597 = arith.constant 0 : index
    %c0_598 = arith.constant 0 : index
    %1032 = vector.load %arg9[%1031, %c0_597, %c0_598] : memref<8x8x256xf32, #tpu.memory_space<vmem>>, vector<1x8x256xf32>
    %1033 = vector.shape_cast %1032 : vector<1x8x256xf32> to vector<8x256xf32>
    %1034 = arith.addf %1030, %1033 : vector<8x256xf32>
    %1035 = vector.extract_strided_slice %1034 {offsets = [0, 0], sizes = [8, 128], strides = [1, 1]} : vector<8x256xf32> to vector<8x128xf32>
    %1036 = arith.negf %1035 : vector<8x128xf32>
    %1037 = math.exp %1036 : vector<8x128xf32>
    %cst_599 = arith.constant 1.000000e+00 : f32
    %1038 = vector.broadcast %cst_599 : f32 to vector<8x128xf32>
    %1039 = arith.addf %1038, %1037 : vector<8x128xf32>
    %1040 = arith.divf %1038, %1039 : vector<8x128xf32>
    %1041 = vector.extract_strided_slice %1034 {offsets = [0, 128], sizes = [8, 128], strides = [1, 1]} : vector<8x256xf32> to vector<8x128xf32>
    %1042 = arith.negf %1041 : vector<8x128xf32>
    %1043 = math.exp %1042 : vector<8x128xf32>
    %cst_600 = arith.constant 1.000000e+00 : f32
    %1044 = vector.broadcast %cst_600 : f32 to vector<8x128xf32>
    %1045 = arith.addf %1044, %1043 : vector<8x128xf32>
    %1046 = arith.divf %1044, %1045 : vector<8x128xf32>
    %cst_601 = arith.constant 2.000000e+00 : f32
    %1047 = vector.broadcast %cst_601 : f32 to vector<8x128xf32>
    %1048 = arith.mulf %1047, %1046 : vector<8x128xf32>
    %cst_602 = arith.constant 1.000000e+00 : f32
    %1049 = vector.broadcast %cst_602 : f32 to vector<8x128xf32>
    %1050 = arith.subf %1048, %1049 : vector<8x128xf32>
    %1051 = arith.select %2, %1050, %1046 : vector<8x128xi1>, vector<8x128xf32>
    %c64_i32_603 = arith.constant 64 : i32
    %1052 = tpu.dynamic_rotate %1040 by %c64_i32_603 dim 1 : vector<8x128xf32>, i32 -> vector<8x128xf32>
    %c64_i32_604 = arith.constant 64 : i32
    %1053 = tpu.dynamic_rotate %1051 by %c64_i32_604 dim 1 : vector<8x128xf32>, i32 -> vector<8x128xf32>
    %c0_605 = arith.constant 0 : index
    %c0_606 = arith.constant 0 : index
    %1054 = vector.load %arg11[%c0_605, %c0_606] : memref<8x128xf32, #tpu.memory_space<vmem>>, vector<8x128xf32>
    %1055 = arith.mulf %1052, %1054 : vector<8x128xf32>
    %1056 = arith.mulf %1040, %1051 : vector<8x128xf32>
    %1057 = arith.addf %1055, %1056 : vector<8x128xf32>
    %1058 = math.tanh %1057 : vector<8x128xf32>
    %1059 = arith.mulf %1053, %1058 : vector<8x128xf32>
    %c0_607 = arith.constant 0 : index
    %c0_608 = arith.constant 0 : index
    %1060 = vector.load %arg11[%c0_607, %c0_608] : memref<8x128xf32, #tpu.memory_space<vmem>>, vector<8x128xf32>
    tpu.vector_store %arg11[%c0_607, %c0_608], %1057 {strides = array<i32>} : memref<8x128xf32, #tpu.memory_space<vmem>>, vector<8x128xf32>,
    %c0_609 = arith.constant 0 : index
    %c0_610 = arith.constant 0 : index
    %1061 = vector.load %arg10[%c0_609, %c0_610] : memref<8x128xf32, #tpu.memory_space<vmem>>, vector<8x128xf32>
    tpu.vector_store %arg10[%c0_609, %c0_610], %1059 {strides = array<i32>} : memref<8x128xf32, #tpu.memory_space<vmem>>, vector<8x128xf32>,
    %1062 = arith.index_cast %c2_i32_593 : i32 to index
    %c0_611 = arith.constant 0 : index
    %c0_612 = arith.constant 0 : index
    %1063 = vector.load %arg8[%1062, %c0_611, %c0_612] : memref<8x8x128xf32, #tpu.memory_space<vmem>>, vector<1x8x128xf32>
    %1064 = vector.shape_cast %1063 : vector<1x8x128xf32> to vector<8x128xf32>
    %1065 = vector.shape_cast %1059 : vector<8x128xf32> to vector<1x8x128xf32>
    tpu.vector_store %arg8[%1062, %c0_611, %c0_612], %1065 {strides = array<i32>} : memref<8x8x128xf32, #tpu.memory_space<vmem>>, vector<1x8x128xf32>,
    %c3_i32_613 = arith.constant 3 : i32
    %c0_614 = arith.constant 0 : index
    %c0_615 = arith.constant 0 : index
    %1066 = vector.load %arg10[%c0_614, %c0_615] : memref<8x128xf32, #tpu.memory_space<vmem>>, vector<8x128xf32>
    %cst_616 = arith.constant dense<0.000000e+00> : vector<8x256xf32>
    %1067 = tpu.matmul %1066, %942, %cst_616 {dimension_numbers = #tpu.dot_dimension_numbers<[1], [0], [0], [1], [0, 0, 1, 1], [], []>} : vector<8x128xf32>, vector<128x256xf32>, vector<8x256xf32> -> vector<8x256xf32>
    %1068 = arith.index_cast %c3_i32_613 : i32 to index
    %c0_617 = arith.constant 0 : index
    %c0_618 = arith.constant 0 : index
    %1069 = vector.load %arg9[%1068, %c0_617, %c0_618] : memref<8x8x256xf32, #tpu.memory_space<vmem>>, vector<1x8x256xf32>
    %1070 = vector.shape_cast %1069 : vector<1x8x256xf32> to vector<8x256xf32>
    %1071 = arith.addf %1067, %1070 : vector<8x256xf32>
    %1072 = vector.extract_strided_slice %1071 {offsets = [0, 0], sizes = [8, 128], strides = [1, 1]} : vector<8x256xf32> to vector<8x128xf32>
    %1073 = arith.negf %1072 : vector<8x128xf32>
    %1074 = math.exp %1073 : vector<8x128xf32>
    %cst_619 = arith.constant 1.000000e+00 : f32
    %1075 = vector.broadcast %cst_619 : f32 to vector<8x128xf32>
    %1076 = arith.addf %1075, %1074 : vector<8x128xf32>
    %1077 = arith.divf %1075, %1076 : vector<8x128xf32>
    %1078 = vector.extract_strided_slice %1071 {offsets = [0, 128], sizes = [8, 128], strides = [1, 1]} : vector<8x256xf32> to vector<8x128xf32>
    %1079 = arith.negf %1078 : vector<8x128xf32>
    %1080 = math.exp %1079 : vector<8x128xf32>
    %cst_620 = arith.constant 1.000000e+00 : f32
    %1081 = vector.broadcast %cst_620 : f32 to vector<8x128xf32>
    %1082 = arith.addf %1081, %1080 : vector<8x128xf32>
    %1083 = arith.divf %1081, %1082 : vector<8x128xf32>
    %cst_621 = arith.constant 2.000000e+00 : f32
    %1084 = vector.broadcast %cst_621 : f32 to vector<8x128xf32>
    %1085 = arith.mulf %1084, %1083 : vector<8x128xf32>
    %cst_622 = arith.constant 1.000000e+00 : f32
    %1086 = vector.broadcast %cst_622 : f32 to vector<8x128xf32>
    %1087 = arith.subf %1085, %1086 : vector<8x128xf32>
    %1088 = arith.select %2, %1087, %1083 : vector<8x128xi1>, vector<8x128xf32>
    %c64_i32_623 = arith.constant 64 : i32
    %1089 = tpu.dynamic_rotate %1077 by %c64_i32_623 dim 1 : vector<8x128xf32>, i32 -> vector<8x128xf32>
    %c64_i32_624 = arith.constant 64 : i32
    %1090 = tpu.dynamic_rotate %1088 by %c64_i32_624 dim 1 : vector<8x128xf32>, i32 -> vector<8x128xf32>
    %c0_625 = arith.constant 0 : index
    %c0_626 = arith.constant 0 : index
    %1091 = vector.load %arg11[%c0_625, %c0_626] : memref<8x128xf32, #tpu.memory_space<vmem>>, vector<8x128xf32>
    %1092 = arith.mulf %1089, %1091 : vector<8x128xf32>
    %1093 = arith.mulf %1077, %1088 : vector<8x128xf32>
    %1094 = arith.addf %1092, %1093 : vector<8x128xf32>
    %1095 = math.tanh %1094 : vector<8x128xf32>
    %1096 = arith.mulf %1090, %1095 : vector<8x128xf32>
    %c0_627 = arith.constant 0 : index
    %c0_628 = arith.constant 0 : index
    %1097 = vector.load %arg11[%c0_627, %c0_628] : memref<8x128xf32, #tpu.memory_space<vmem>>, vector<8x128xf32>
    tpu.vector_store %arg11[%c0_627, %c0_628], %1094 {strides = array<i32>} : memref<8x128xf32, #tpu.memory_space<vmem>>, vector<8x128xf32>,
    %c0_629 = arith.constant 0 : index
    %c0_630 = arith.constant 0 : index
    %1098 = vector.load %arg10[%c0_629, %c0_630] : memref<8x128xf32, #tpu.memory_space<vmem>>, vector<8x128xf32>
    tpu.vector_store %arg10[%c0_629, %c0_630], %1096 {strides = array<i32>} : memref<8x128xf32, #tpu.memory_space<vmem>>, vector<8x128xf32>,
    %1099 = arith.index_cast %c3_i32_613 : i32 to index
    %c0_631 = arith.constant 0 : index
    %c0_632 = arith.constant 0 : index
    %1100 = vector.load %arg8[%1099, %c0_631, %c0_632] : memref<8x8x128xf32, #tpu.memory_space<vmem>>, vector<1x8x128xf32>
    %1101 = vector.shape_cast %1100 : vector<1x8x128xf32> to vector<8x128xf32>
    %1102 = vector.shape_cast %1096 : vector<8x128xf32> to vector<1x8x128xf32>
    tpu.vector_store %arg8[%1099, %c0_631, %c0_632], %1102 {strides = array<i32>} : memref<8x8x128xf32, #tpu.memory_space<vmem>>, vector<1x8x128xf32>,
    %c4_i32_633 = arith.constant 4 : i32
    %c0_634 = arith.constant 0 : index
    %c0_635 = arith.constant 0 : index
    %1103 = vector.load %arg10[%c0_634, %c0_635] : memref<8x128xf32, #tpu.memory_space<vmem>>, vector<8x128xf32>
    %cst_636 = arith.constant dense<0.000000e+00> : vector<8x256xf32>
    %1104 = tpu.matmul %1103, %942, %cst_636 {dimension_numbers = #tpu.dot_dimension_numbers<[1], [0], [0], [1], [0, 0, 1, 1], [], []>} : vector<8x128xf32>, vector<128x256xf32>, vector<8x256xf32> -> vector<8x256xf32>
    %1105 = arith.index_cast %c4_i32_633 : i32 to index
    %c0_637 = arith.constant 0 : index
    %c0_638 = arith.constant 0 : index
    %1106 = vector.load %arg9[%1105, %c0_637, %c0_638] : memref<8x8x256xf32, #tpu.memory_space<vmem>>, vector<1x8x256xf32>
    %1107 = vector.shape_cast %1106 : vector<1x8x256xf32> to vector<8x256xf32>
    %1108 = arith.addf %1104, %1107 : vector<8x256xf32>
    %1109 = vector.extract_strided_slice %1108 {offsets = [0, 0], sizes = [8, 128], strides = [1, 1]} : vector<8x256xf32> to vector<8x128xf32>
    %1110 = arith.negf %1109 : vector<8x128xf32>
    %1111 = math.exp %1110 : vector<8x128xf32>
    %cst_639 = arith.constant 1.000000e+00 : f32
    %1112 = vector.broadcast %cst_639 : f32 to vector<8x128xf32>
    %1113 = arith.addf %1112, %1111 : vector<8x128xf32>
    %1114 = arith.divf %1112, %1113 : vector<8x128xf32>
    %1115 = vector.extract_strided_slice %1108 {offsets = [0, 128], sizes = [8, 128], strides = [1, 1]} : vector<8x256xf32> to vector<8x128xf32>
    %1116 = arith.negf %1115 : vector<8x128xf32>
    %1117 = math.exp %1116 : vector<8x128xf32>
    %cst_640 = arith.constant 1.000000e+00 : f32
    %1118 = vector.broadcast %cst_640 : f32 to vector<8x128xf32>
    %1119 = arith.addf %1118, %1117 : vector<8x128xf32>
    %1120 = arith.divf %1118, %1119 : vector<8x128xf32>
    %cst_641 = arith.constant 2.000000e+00 : f32
    %1121 = vector.broadcast %cst_641 : f32 to vector<8x128xf32>
    %1122 = arith.mulf %1121, %1120 : vector<8x128xf32>
    %cst_642 = arith.constant 1.000000e+00 : f32
    %1123 = vector.broadcast %cst_642 : f32 to vector<8x128xf32>
    %1124 = arith.subf %1122, %1123 : vector<8x128xf32>
    %1125 = arith.select %2, %1124, %1120 : vector<8x128xi1>, vector<8x128xf32>
    %c64_i32_643 = arith.constant 64 : i32
    %1126 = tpu.dynamic_rotate %1114 by %c64_i32_643 dim 1 : vector<8x128xf32>, i32 -> vector<8x128xf32>
    %c64_i32_644 = arith.constant 64 : i32
    %1127 = tpu.dynamic_rotate %1125 by %c64_i32_644 dim 1 : vector<8x128xf32>, i32 -> vector<8x128xf32>
    %c0_645 = arith.constant 0 : index
    %c0_646 = arith.constant 0 : index
    %1128 = vector.load %arg11[%c0_645, %c0_646] : memref<8x128xf32, #tpu.memory_space<vmem>>, vector<8x128xf32>
    %1129 = arith.mulf %1126, %1128 : vector<8x128xf32>
    %1130 = arith.mulf %1114, %1125 : vector<8x128xf32>
    %1131 = arith.addf %1129, %1130 : vector<8x128xf32>
    %1132 = math.tanh %1131 : vector<8x128xf32>
    %1133 = arith.mulf %1127, %1132 : vector<8x128xf32>
    %c0_647 = arith.constant 0 : index
    %c0_648 = arith.constant 0 : index
    %1134 = vector.load %arg11[%c0_647, %c0_648] : memref<8x128xf32, #tpu.memory_space<vmem>>, vector<8x128xf32>
    tpu.vector_store %arg11[%c0_647, %c0_648], %1131 {strides = array<i32>} : memref<8x128xf32, #tpu.memory_space<vmem>>, vector<8x128xf32>,
    %c0_649 = arith.constant 0 : index
    %c0_650 = arith.constant 0 : index
    %1135 = vector.load %arg10[%c0_649, %c0_650] : memref<8x128xf32, #tpu.memory_space<vmem>>, vector<8x128xf32>
    tpu.vector_store %arg10[%c0_649, %c0_650], %1133 {strides = array<i32>} : memref<8x128xf32, #tpu.memory_space<vmem>>, vector<8x128xf32>,
    %1136 = arith.index_cast %c4_i32_633 : i32 to index
    %c0_651 = arith.constant 0 : index
    %c0_652 = arith.constant 0 : index
    %1137 = vector.load %arg8[%1136, %c0_651, %c0_652] : memref<8x8x128xf32, #tpu.memory_space<vmem>>, vector<1x8x128xf32>
    %1138 = vector.shape_cast %1137 : vector<1x8x128xf32> to vector<8x128xf32>
    %1139 = vector.shape_cast %1133 : vector<8x128xf32> to vector<1x8x128xf32>
    tpu.vector_store %arg8[%1136, %c0_651, %c0_652], %1139 {strides = array<i32>} : memref<8x8x128xf32, #tpu.memory_space<vmem>>, vector<1x8x128xf32>,
    %c5_i32_653 = arith.constant 5 : i32
    %c0_654 = arith.constant 0 : index
    %c0_655 = arith.constant 0 : index
    %1140 = vector.load %arg10[%c0_654, %c0_655] : memref<8x128xf32, #tpu.memory_space<vmem>>, vector<8x128xf32>
    %cst_656 = arith.constant dense<0.000000e+00> : vector<8x256xf32>
    %1141 = tpu.matmul %1140, %942, %cst_656 {dimension_numbers = #tpu.dot_dimension_numbers<[1], [0], [0], [1], [0, 0, 1, 1], [], []>} : vector<8x128xf32>, vector<128x256xf32>, vector<8x256xf32> -> vector<8x256xf32>
    %1142 = arith.index_cast %c5_i32_653 : i32 to index
    %c0_657 = arith.constant 0 : index
    %c0_658 = arith.constant 0 : index
    %1143 = vector.load %arg9[%1142, %c0_657, %c0_658] : memref<8x8x256xf32, #tpu.memory_space<vmem>>, vector<1x8x256xf32>
    %1144 = vector.shape_cast %1143 : vector<1x8x256xf32> to vector<8x256xf32>
    %1145 = arith.addf %1141, %1144 : vector<8x256xf32>
    %1146 = vector.extract_strided_slice %1145 {offsets = [0, 0], sizes = [8, 128], strides = [1, 1]} : vector<8x256xf32> to vector<8x128xf32>
    %1147 = arith.negf %1146 : vector<8x128xf32>
    %1148 = math.exp %1147 : vector<8x128xf32>
    %cst_659 = arith.constant 1.000000e+00 : f32
    %1149 = vector.broadcast %cst_659 : f32 to vector<8x128xf32>
    %1150 = arith.addf %1149, %1148 : vector<8x128xf32>
    %1151 = arith.divf %1149, %1150 : vector<8x128xf32>
    %1152 = vector.extract_strided_slice %1145 {offsets = [0, 128], sizes = [8, 128], strides = [1, 1]} : vector<8x256xf32> to vector<8x128xf32>
    %1153 = arith.negf %1152 : vector<8x128xf32>
    %1154 = math.exp %1153 : vector<8x128xf32>
    %cst_660 = arith.constant 1.000000e+00 : f32
    %1155 = vector.broadcast %cst_660 : f32 to vector<8x128xf32>
    %1156 = arith.addf %1155, %1154 : vector<8x128xf32>
    %1157 = arith.divf %1155, %1156 : vector<8x128xf32>
    %cst_661 = arith.constant 2.000000e+00 : f32
    %1158 = vector.broadcast %cst_661 : f32 to vector<8x128xf32>
    %1159 = arith.mulf %1158, %1157 : vector<8x128xf32>
    %cst_662 = arith.constant 1.000000e+00 : f32
    %1160 = vector.broadcast %cst_662 : f32 to vector<8x128xf32>
    %1161 = arith.subf %1159, %1160 : vector<8x128xf32>
    %1162 = arith.select %2, %1161, %1157 : vector<8x128xi1>, vector<8x128xf32>
    %c64_i32_663 = arith.constant 64 : i32
    %1163 = tpu.dynamic_rotate %1151 by %c64_i32_663 dim 1 : vector<8x128xf32>, i32 -> vector<8x128xf32>
    %c64_i32_664 = arith.constant 64 : i32
    %1164 = tpu.dynamic_rotate %1162 by %c64_i32_664 dim 1 : vector<8x128xf32>, i32 -> vector<8x128xf32>
    %c0_665 = arith.constant 0 : index
    %c0_666 = arith.constant 0 : index
    %1165 = vector.load %arg11[%c0_665, %c0_666] : memref<8x128xf32, #tpu.memory_space<vmem>>, vector<8x128xf32>
    %1166 = arith.mulf %1163, %1165 : vector<8x128xf32>
    %1167 = arith.mulf %1151, %1162 : vector<8x128xf32>
    %1168 = arith.addf %1166, %1167 : vector<8x128xf32>
    %1169 = math.tanh %1168 : vector<8x128xf32>
    %1170 = arith.mulf %1164, %1169 : vector<8x128xf32>
    %c0_667 = arith.constant 0 : index
    %c0_668 = arith.constant 0 : index
    %1171 = vector.load %arg11[%c0_667, %c0_668] : memref<8x128xf32, #tpu.memory_space<vmem>>, vector<8x128xf32>
    tpu.vector_store %arg11[%c0_667, %c0_668], %1168 {strides = array<i32>} : memref<8x128xf32, #tpu.memory_space<vmem>>, vector<8x128xf32>,
    %c0_669 = arith.constant 0 : index
    %c0_670 = arith.constant 0 : index
    %1172 = vector.load %arg10[%c0_669, %c0_670] : memref<8x128xf32, #tpu.memory_space<vmem>>, vector<8x128xf32>
    tpu.vector_store %arg10[%c0_669, %c0_670], %1170 {strides = array<i32>} : memref<8x128xf32, #tpu.memory_space<vmem>>, vector<8x128xf32>,
    %1173 = arith.index_cast %c5_i32_653 : i32 to index
    %c0_671 = arith.constant 0 : index
    %c0_672 = arith.constant 0 : index
    %1174 = vector.load %arg8[%1173, %c0_671, %c0_672] : memref<8x8x128xf32, #tpu.memory_space<vmem>>, vector<1x8x128xf32>
    %1175 = vector.shape_cast %1174 : vector<1x8x128xf32> to vector<8x128xf32>
    %1176 = vector.shape_cast %1170 : vector<8x128xf32> to vector<1x8x128xf32>
    tpu.vector_store %arg8[%1173, %c0_671, %c0_672], %1176 {strides = array<i32>} : memref<8x8x128xf32, #tpu.memory_space<vmem>>, vector<1x8x128xf32>,
    %c6_i32_673 = arith.constant 6 : i32
    %c0_674 = arith.constant 0 : index
    %c0_675 = arith.constant 0 : index
    %1177 = vector.load %arg10[%c0_674, %c0_675] : memref<8x128xf32, #tpu.memory_space<vmem>>, vector<8x128xf32>
    %cst_676 = arith.constant dense<0.000000e+00> : vector<8x256xf32>
    %1178 = tpu.matmul %1177, %942, %cst_676 {dimension_numbers = #tpu.dot_dimension_numbers<[1], [0], [0], [1], [0, 0, 1, 1], [], []>} : vector<8x128xf32>, vector<128x256xf32>, vector<8x256xf32> -> vector<8x256xf32>
    %1179 = arith.index_cast %c6_i32_673 : i32 to index
    %c0_677 = arith.constant 0 : index
    %c0_678 = arith.constant 0 : index
    %1180 = vector.load %arg9[%1179, %c0_677, %c0_678] : memref<8x8x256xf32, #tpu.memory_space<vmem>>, vector<1x8x256xf32>
    %1181 = vector.shape_cast %1180 : vector<1x8x256xf32> to vector<8x256xf32>
    %1182 = arith.addf %1178, %1181 : vector<8x256xf32>
    %1183 = vector.extract_strided_slice %1182 {offsets = [0, 0], sizes = [8, 128], strides = [1, 1]} : vector<8x256xf32> to vector<8x128xf32>
    %1184 = arith.negf %1183 : vector<8x128xf32>
    %1185 = math.exp %1184 : vector<8x128xf32>
    %cst_679 = arith.constant 1.000000e+00 : f32
    %1186 = vector.broadcast %cst_679 : f32 to vector<8x128xf32>
    %1187 = arith.addf %1186, %1185 : vector<8x128xf32>
    %1188 = arith.divf %1186, %1187 : vector<8x128xf32>
    %1189 = vector.extract_strided_slice %1182 {offsets = [0, 128], sizes = [8, 128], strides = [1, 1]} : vector<8x256xf32> to vector<8x128xf32>
    %1190 = arith.negf %1189 : vector<8x128xf32>
    %1191 = math.exp %1190 : vector<8x128xf32>
    %cst_680 = arith.constant 1.000000e+00 : f32
    %1192 = vector.broadcast %cst_680 : f32 to vector<8x128xf32>
    %1193 = arith.addf %1192, %1191 : vector<8x128xf32>
    %1194 = arith.divf %1192, %1193 : vector<8x128xf32>
    %cst_681 = arith.constant 2.000000e+00 : f32
    %1195 = vector.broadcast %cst_681 : f32 to vector<8x128xf32>
    %1196 = arith.mulf %1195, %1194 : vector<8x128xf32>
    %cst_682 = arith.constant 1.000000e+00 : f32
    %1197 = vector.broadcast %cst_682 : f32 to vector<8x128xf32>
    %1198 = arith.subf %1196, %1197 : vector<8x128xf32>
    %1199 = arith.select %2, %1198, %1194 : vector<8x128xi1>, vector<8x128xf32>
    %c64_i32_683 = arith.constant 64 : i32
    %1200 = tpu.dynamic_rotate %1188 by %c64_i32_683 dim 1 : vector<8x128xf32>, i32 -> vector<8x128xf32>
    %c64_i32_684 = arith.constant 64 : i32
    %1201 = tpu.dynamic_rotate %1199 by %c64_i32_684 dim 1 : vector<8x128xf32>, i32 -> vector<8x128xf32>
    %c0_685 = arith.constant 0 : index
    %c0_686 = arith.constant 0 : index
    %1202 = vector.load %arg11[%c0_685, %c0_686] : memref<8x128xf32, #tpu.memory_space<vmem>>, vector<8x128xf32>
    %1203 = arith.mulf %1200, %1202 : vector<8x128xf32>
    %1204 = arith.mulf %1188, %1199 : vector<8x128xf32>
    %1205 = arith.addf %1203, %1204 : vector<8x128xf32>
    %1206 = math.tanh %1205 : vector<8x128xf32>
    %1207 = arith.mulf %1201, %1206 : vector<8x128xf32>
    %c0_687 = arith.constant 0 : index
    %c0_688 = arith.constant 0 : index
    %1208 = vector.load %arg11[%c0_687, %c0_688] : memref<8x128xf32, #tpu.memory_space<vmem>>, vector<8x128xf32>
    tpu.vector_store %arg11[%c0_687, %c0_688], %1205 {strides = array<i32>} : memref<8x128xf32, #tpu.memory_space<vmem>>, vector<8x128xf32>,
    %c0_689 = arith.constant 0 : index
    %c0_690 = arith.constant 0 : index
    %1209 = vector.load %arg10[%c0_689, %c0_690] : memref<8x128xf32, #tpu.memory_space<vmem>>, vector<8x128xf32>
    tpu.vector_store %arg10[%c0_689, %c0_690], %1207 {strides = array<i32>} : memref<8x128xf32, #tpu.memory_space<vmem>>, vector<8x128xf32>,
    %1210 = arith.index_cast %c6_i32_673 : i32 to index
    %c0_691 = arith.constant 0 : index
    %c0_692 = arith.constant 0 : index
    %1211 = vector.load %arg8[%1210, %c0_691, %c0_692] : memref<8x8x128xf32, #tpu.memory_space<vmem>>, vector<1x8x128xf32>
    %1212 = vector.shape_cast %1211 : vector<1x8x128xf32> to vector<8x128xf32>
    %1213 = vector.shape_cast %1207 : vector<8x128xf32> to vector<1x8x128xf32>
    tpu.vector_store %arg8[%1210, %c0_691, %c0_692], %1213 {strides = array<i32>} : memref<8x8x128xf32, #tpu.memory_space<vmem>>, vector<1x8x128xf32>,
    %c7_i32_693 = arith.constant 7 : i32
    %c0_694 = arith.constant 0 : index
    %c0_695 = arith.constant 0 : index
    %1214 = vector.load %arg10[%c0_694, %c0_695] : memref<8x128xf32, #tpu.memory_space<vmem>>, vector<8x128xf32>
    %cst_696 = arith.constant dense<0.000000e+00> : vector<8x256xf32>
    %1215 = tpu.matmul %1214, %942, %cst_696 {dimension_numbers = #tpu.dot_dimension_numbers<[1], [0], [0], [1], [0, 0, 1, 1], [], []>} : vector<8x128xf32>, vector<128x256xf32>, vector<8x256xf32> -> vector<8x256xf32>
    %1216 = arith.index_cast %c7_i32_693 : i32 to index
    %c0_697 = arith.constant 0 : index
    %c0_698 = arith.constant 0 : index
    %1217 = vector.load %arg9[%1216, %c0_697, %c0_698] : memref<8x8x256xf32, #tpu.memory_space<vmem>>, vector<1x8x256xf32>
    %1218 = vector.shape_cast %1217 : vector<1x8x256xf32> to vector<8x256xf32>
    %1219 = arith.addf %1215, %1218 : vector<8x256xf32>
    %1220 = vector.extract_strided_slice %1219 {offsets = [0, 0], sizes = [8, 128], strides = [1, 1]} : vector<8x256xf32> to vector<8x128xf32>
    %1221 = arith.negf %1220 : vector<8x128xf32>
    %1222 = math.exp %1221 : vector<8x128xf32>
    %cst_699 = arith.constant 1.000000e+00 : f32
    %1223 = vector.broadcast %cst_699 : f32 to vector<8x128xf32>
    %1224 = arith.addf %1223, %1222 : vector<8x128xf32>
    %1225 = arith.divf %1223, %1224 : vector<8x128xf32>
    %1226 = vector.extract_strided_slice %1219 {offsets = [0, 128], sizes = [8, 128], strides = [1, 1]} : vector<8x256xf32> to vector<8x128xf32>
    %1227 = arith.negf %1226 : vector<8x128xf32>
    %1228 = math.exp %1227 : vector<8x128xf32>
    %cst_700 = arith.constant 1.000000e+00 : f32
    %1229 = vector.broadcast %cst_700 : f32 to vector<8x128xf32>
    %1230 = arith.addf %1229, %1228 : vector<8x128xf32>
    %1231 = arith.divf %1229, %1230 : vector<8x128xf32>
    %cst_701 = arith.constant 2.000000e+00 : f32
    %1232 = vector.broadcast %cst_701 : f32 to vector<8x128xf32>
    %1233 = arith.mulf %1232, %1231 : vector<8x128xf32>
    %cst_702 = arith.constant 1.000000e+00 : f32
    %1234 = vector.broadcast %cst_702 : f32 to vector<8x128xf32>
    %1235 = arith.subf %1233, %1234 : vector<8x128xf32>
    %1236 = arith.select %2, %1235, %1231 : vector<8x128xi1>, vector<8x128xf32>
    %c64_i32_703 = arith.constant 64 : i32
    %1237 = tpu.dynamic_rotate %1225 by %c64_i32_703 dim 1 : vector<8x128xf32>, i32 -> vector<8x128xf32>
    %c64_i32_704 = arith.constant 64 : i32
    %1238 = tpu.dynamic_rotate %1236 by %c64_i32_704 dim 1 : vector<8x128xf32>, i32 -> vector<8x128xf32>
    %c0_705 = arith.constant 0 : index
    %c0_706 = arith.constant 0 : index
    %1239 = vector.load %arg11[%c0_705, %c0_706] : memref<8x128xf32, #tpu.memory_space<vmem>>, vector<8x128xf32>
    %1240 = arith.mulf %1237, %1239 : vector<8x128xf32>
    %1241 = arith.mulf %1225, %1236 : vector<8x128xf32>
    %1242 = arith.addf %1240, %1241 : vector<8x128xf32>
    %1243 = math.tanh %1242 : vector<8x128xf32>
    %1244 = arith.mulf %1238, %1243 : vector<8x128xf32>
    %c0_707 = arith.constant 0 : index
    %c0_708 = arith.constant 0 : index
    %1245 = vector.load %arg11[%c0_707, %c0_708] : memref<8x128xf32, #tpu.memory_space<vmem>>, vector<8x128xf32>
    tpu.vector_store %arg11[%c0_707, %c0_708], %1242 {strides = array<i32>} : memref<8x128xf32, #tpu.memory_space<vmem>>, vector<8x128xf32>,
    %c0_709 = arith.constant 0 : index
    %c0_710 = arith.constant 0 : index
    %1246 = vector.load %arg10[%c0_709, %c0_710] : memref<8x128xf32, #tpu.memory_space<vmem>>, vector<8x128xf32>
    tpu.vector_store %arg10[%c0_709, %c0_710], %1244 {strides = array<i32>} : memref<8x128xf32, #tpu.memory_space<vmem>>, vector<8x128xf32>,
    %1247 = arith.index_cast %c7_i32_693 : i32 to index
    %c0_711 = arith.constant 0 : index
    %c0_712 = arith.constant 0 : index
    %1248 = vector.load %arg8[%1247, %c0_711, %c0_712] : memref<8x8x128xf32, #tpu.memory_space<vmem>>, vector<1x8x128xf32>
    %1249 = vector.shape_cast %1248 : vector<1x8x128xf32> to vector<8x128xf32>
    %1250 = vector.shape_cast %1244 : vector<8x128xf32> to vector<1x8x128xf32>
    tpu.vector_store %arg8[%1247, %c0_711, %c0_712], %1250 {strides = array<i32>} : memref<8x8x128xf32, #tpu.memory_space<vmem>>, vector<1x8x128xf32>,
    %c8_i32_713 = arith.constant 8 : i32
    %c4 = arith.constant 4 : index
    %c0_714 = arith.constant 0 : index
    %c0_715 = arith.constant 0 : index
    %1251 = vector.load %arg2[%c4, %c0_714, %c0_715] : memref<5x128x256xf32, #tpu.memory_space<vmem>>, vector<1x128x256xf32>
    %1252 = vector.shape_cast %1251 : vector<1x128x256xf32> to vector<128x256xf32>
    %c4_716 = arith.constant 4 : index
    %c0_717 = arith.constant 0 : index
    %c0_718 = arith.constant 0 : index
    %1253 = vector.load %arg3[%c4_716, %c0_717, %c0_718] : memref<5x128x256xf32, #tpu.memory_space<vmem>>, vector<1x128x256xf32>
    %1254 = vector.shape_cast %1253 : vector<1x128x256xf32> to vector<128x256xf32>
    %c4_719 = arith.constant 4 : index
    %c0_720 = arith.constant 0 : index
    %1255 = vector.load %arg4[%c4_719, %c0_720] : memref<5x256xf32, #tpu.memory_space<vmem>>, vector<1x256xf32>
    %c0_721 = arith.constant 0 : index
    %c0_722 = arith.constant 0 : index
    %c0_723 = arith.constant 0 : index
    %1256 = vector.load %arg8[%c0_721, %c0_722, %c0_723] : memref<8x8x128xf32, #tpu.memory_space<vmem>>, vector<8x8x128xf32>
    %1257 = vector.shape_cast %1256 : vector<8x8x128xf32> to vector<64x128xf32>
    %cst_724 = arith.constant dense<0.000000e+00> : vector<64x256xf32>
    %1258 = tpu.matmul %1257, %1252, %cst_724 {dimension_numbers = #tpu.dot_dimension_numbers<[1], [0], [0], [1], [0, 0, 1, 1], [], []>} : vector<64x128xf32>, vector<128x256xf32>, vector<64x256xf32> -> vector<64x256xf32>
    %1259 = vector.broadcast %1255 : vector<1x256xf32> to vector<64x256xf32>
    %1260 = arith.addf %1258, %1259 : vector<64x256xf32>
    %1261 = vector.shape_cast %1260 : vector<64x256xf32> to vector<8x8x256xf32>
    %c0_725 = arith.constant 0 : index
    %c0_726 = arith.constant 0 : index
    %c0_727 = arith.constant 0 : index
    %1262 = vector.load %arg9[%c0_725, %c0_726, %c0_727] : memref<8x8x256xf32, #tpu.memory_space<vmem>>, vector<8x8x256xf32>
    tpu.vector_store %arg9[%c0_725, %c0_726, %c0_727], %1261 {strides = array<i32>} : memref<8x8x256xf32, #tpu.memory_space<vmem>>, vector<8x8x256xf32>,
    %cst_728 = arith.constant 0.000000e+00 : f32
    %1263 = vector.broadcast %cst_728 : f32 to vector<8x128xf32>
    %c0_729 = arith.constant 0 : index
    %c0_730 = arith.constant 0 : index
    %1264 = vector.load %arg10[%c0_729, %c0_730] : memref<8x128xf32, #tpu.memory_space<vmem>>, vector<8x128xf32>
    tpu.vector_store %arg10[%c0_729, %c0_730], %1263 {strides = array<i32>} : memref<8x128xf32, #tpu.memory_space<vmem>>, vector<8x128xf32>,
    %cst_731 = arith.constant 0.000000e+00 : f32
    %1265 = vector.broadcast %cst_731 : f32 to vector<8x128xf32>
    %c0_732 = arith.constant 0 : index
    %c0_733 = arith.constant 0 : index
    %1266 = vector.load %arg11[%c0_732, %c0_733] : memref<8x128xf32, #tpu.memory_space<vmem>>, vector<8x128xf32>
    tpu.vector_store %arg11[%c0_732, %c0_733], %1265 {strides = array<i32>} : memref<8x128xf32, #tpu.memory_space<vmem>>, vector<8x128xf32>,
    %c0_i32_734 = arith.constant 0 : i32
    %c0_735 = arith.constant 0 : index
    %c0_736 = arith.constant 0 : index
    %1267 = vector.load %arg10[%c0_735, %c0_736] : memref<8x128xf32, #tpu.memory_space<vmem>>, vector<8x128xf32>
    %cst_737 = arith.constant dense<0.000000e+00> : vector<8x256xf32>
    %1268 = tpu.matmul %1267, %1254, %cst_737 {dimension_numbers = #tpu.dot_dimension_numbers<[1], [0], [0], [1], [0, 0, 1, 1], [], []>} : vector<8x128xf32>, vector<128x256xf32>, vector<8x256xf32> -> vector<8x256xf32>
    %1269 = arith.index_cast %c0_i32_734 : i32 to index
    %c0_738 = arith.constant 0 : index
    %c0_739 = arith.constant 0 : index
    %1270 = vector.load %arg9[%1269, %c0_738, %c0_739] : memref<8x8x256xf32, #tpu.memory_space<vmem>>, vector<1x8x256xf32>
    %1271 = vector.shape_cast %1270 : vector<1x8x256xf32> to vector<8x256xf32>
    %1272 = arith.addf %1268, %1271 : vector<8x256xf32>
    %1273 = vector.extract_strided_slice %1272 {offsets = [0, 0], sizes = [8, 128], strides = [1, 1]} : vector<8x256xf32> to vector<8x128xf32>
    %1274 = arith.negf %1273 : vector<8x128xf32>
    %1275 = math.exp %1274 : vector<8x128xf32>
    %cst_740 = arith.constant 1.000000e+00 : f32
    %1276 = vector.broadcast %cst_740 : f32 to vector<8x128xf32>
    %1277 = arith.addf %1276, %1275 : vector<8x128xf32>
    %1278 = arith.divf %1276, %1277 : vector<8x128xf32>
    %1279 = vector.extract_strided_slice %1272 {offsets = [0, 128], sizes = [8, 128], strides = [1, 1]} : vector<8x256xf32> to vector<8x128xf32>
    %1280 = arith.negf %1279 : vector<8x128xf32>
    %1281 = math.exp %1280 : vector<8x128xf32>
    %cst_741 = arith.constant 1.000000e+00 : f32
    %1282 = vector.broadcast %cst_741 : f32 to vector<8x128xf32>
    %1283 = arith.addf %1282, %1281 : vector<8x128xf32>
    %1284 = arith.divf %1282, %1283 : vector<8x128xf32>
    %cst_742 = arith.constant 2.000000e+00 : f32
    %1285 = vector.broadcast %cst_742 : f32 to vector<8x128xf32>
    %1286 = arith.mulf %1285, %1284 : vector<8x128xf32>
    %cst_743 = arith.constant 1.000000e+00 : f32
    %1287 = vector.broadcast %cst_743 : f32 to vector<8x128xf32>
    %1288 = arith.subf %1286, %1287 : vector<8x128xf32>
    %1289 = arith.select %2, %1288, %1284 : vector<8x128xi1>, vector<8x128xf32>
    %c64_i32_744 = arith.constant 64 : i32
    %1290 = tpu.dynamic_rotate %1278 by %c64_i32_744 dim 1 : vector<8x128xf32>, i32 -> vector<8x128xf32>
    %c64_i32_745 = arith.constant 64 : i32
    %1291 = tpu.dynamic_rotate %1289 by %c64_i32_745 dim 1 : vector<8x128xf32>, i32 -> vector<8x128xf32>
    %c0_746 = arith.constant 0 : index
    %c0_747 = arith.constant 0 : index
    %1292 = vector.load %arg11[%c0_746, %c0_747] : memref<8x128xf32, #tpu.memory_space<vmem>>, vector<8x128xf32>
    %1293 = arith.mulf %1290, %1292 : vector<8x128xf32>
    %1294 = arith.mulf %1278, %1289 : vector<8x128xf32>
    %1295 = arith.addf %1293, %1294 : vector<8x128xf32>
    %1296 = math.tanh %1295 : vector<8x128xf32>
    %1297 = arith.mulf %1291, %1296 : vector<8x128xf32>
    %c0_748 = arith.constant 0 : index
    %c0_749 = arith.constant 0 : index
    %1298 = vector.load %arg11[%c0_748, %c0_749] : memref<8x128xf32, #tpu.memory_space<vmem>>, vector<8x128xf32>
    tpu.vector_store %arg11[%c0_748, %c0_749], %1295 {strides = array<i32>} : memref<8x128xf32, #tpu.memory_space<vmem>>, vector<8x128xf32>,
    %c0_750 = arith.constant 0 : index
    %c0_751 = arith.constant 0 : index
    %1299 = vector.load %arg10[%c0_750, %c0_751] : memref<8x128xf32, #tpu.memory_space<vmem>>, vector<8x128xf32>
    tpu.vector_store %arg10[%c0_750, %c0_751], %1297 {strides = array<i32>} : memref<8x128xf32, #tpu.memory_space<vmem>>, vector<8x128xf32>,
    %1300 = arith.index_cast %c0_i32_734 : i32 to index
    %c0_752 = arith.constant 0 : index
    %c0_753 = arith.constant 0 : index
    %1301 = vector.load %arg8[%1300, %c0_752, %c0_753] : memref<8x8x128xf32, #tpu.memory_space<vmem>>, vector<1x8x128xf32>
    %1302 = vector.shape_cast %1301 : vector<1x8x128xf32> to vector<8x128xf32>
    %1303 = vector.shape_cast %1297 : vector<8x128xf32> to vector<1x8x128xf32>
    tpu.vector_store %arg8[%1300, %c0_752, %c0_753], %1303 {strides = array<i32>} : memref<8x8x128xf32, #tpu.memory_space<vmem>>, vector<1x8x128xf32>,
    %c1_i32_754 = arith.constant 1 : i32
    %c0_755 = arith.constant 0 : index
    %c0_756 = arith.constant 0 : index
    %1304 = vector.load %arg10[%c0_755, %c0_756] : memref<8x128xf32, #tpu.memory_space<vmem>>, vector<8x128xf32>
    %cst_757 = arith.constant dense<0.000000e+00> : vector<8x256xf32>
    %1305 = tpu.matmul %1304, %1254, %cst_757 {dimension_numbers = #tpu.dot_dimension_numbers<[1], [0], [0], [1], [0, 0, 1, 1], [], []>} : vector<8x128xf32>, vector<128x256xf32>, vector<8x256xf32> -> vector<8x256xf32>
    %1306 = arith.index_cast %c1_i32_754 : i32 to index
    %c0_758 = arith.constant 0 : index
    %c0_759 = arith.constant 0 : index
    %1307 = vector.load %arg9[%1306, %c0_758, %c0_759] : memref<8x8x256xf32, #tpu.memory_space<vmem>>, vector<1x8x256xf32>
    %1308 = vector.shape_cast %1307 : vector<1x8x256xf32> to vector<8x256xf32>
    %1309 = arith.addf %1305, %1308 : vector<8x256xf32>
    %1310 = vector.extract_strided_slice %1309 {offsets = [0, 0], sizes = [8, 128], strides = [1, 1]} : vector<8x256xf32> to vector<8x128xf32>
    %1311 = arith.negf %1310 : vector<8x128xf32>
    %1312 = math.exp %1311 : vector<8x128xf32>
    %cst_760 = arith.constant 1.000000e+00 : f32
    %1313 = vector.broadcast %cst_760 : f32 to vector<8x128xf32>
    %1314 = arith.addf %1313, %1312 : vector<8x128xf32>
    %1315 = arith.divf %1313, %1314 : vector<8x128xf32>
    %1316 = vector.extract_strided_slice %1309 {offsets = [0, 128], sizes = [8, 128], strides = [1, 1]} : vector<8x256xf32> to vector<8x128xf32>
    %1317 = arith.negf %1316 : vector<8x128xf32>
    %1318 = math.exp %1317 : vector<8x128xf32>
    %cst_761 = arith.constant 1.000000e+00 : f32
    %1319 = vector.broadcast %cst_761 : f32 to vector<8x128xf32>
    %1320 = arith.addf %1319, %1318 : vector<8x128xf32>
    %1321 = arith.divf %1319, %1320 : vector<8x128xf32>
    %cst_762 = arith.constant 2.000000e+00 : f32
    %1322 = vector.broadcast %cst_762 : f32 to vector<8x128xf32>
    %1323 = arith.mulf %1322, %1321 : vector<8x128xf32>
    %cst_763 = arith.constant 1.000000e+00 : f32
    %1324 = vector.broadcast %cst_763 : f32 to vector<8x128xf32>
    %1325 = arith.subf %1323, %1324 : vector<8x128xf32>
    %1326 = arith.select %2, %1325, %1321 : vector<8x128xi1>, vector<8x128xf32>
    %c64_i32_764 = arith.constant 64 : i32
    %1327 = tpu.dynamic_rotate %1315 by %c64_i32_764 dim 1 : vector<8x128xf32>, i32 -> vector<8x128xf32>
    %c64_i32_765 = arith.constant 64 : i32
    %1328 = tpu.dynamic_rotate %1326 by %c64_i32_765 dim 1 : vector<8x128xf32>, i32 -> vector<8x128xf32>
    %c0_766 = arith.constant 0 : index
    %c0_767 = arith.constant 0 : index
    %1329 = vector.load %arg11[%c0_766, %c0_767] : memref<8x128xf32, #tpu.memory_space<vmem>>, vector<8x128xf32>
    %1330 = arith.mulf %1327, %1329 : vector<8x128xf32>
    %1331 = arith.mulf %1315, %1326 : vector<8x128xf32>
    %1332 = arith.addf %1330, %1331 : vector<8x128xf32>
    %1333 = math.tanh %1332 : vector<8x128xf32>
    %1334 = arith.mulf %1328, %1333 : vector<8x128xf32>
    %c0_768 = arith.constant 0 : index
    %c0_769 = arith.constant 0 : index
    %1335 = vector.load %arg11[%c0_768, %c0_769] : memref<8x128xf32, #tpu.memory_space<vmem>>, vector<8x128xf32>
    tpu.vector_store %arg11[%c0_768, %c0_769], %1332 {strides = array<i32>} : memref<8x128xf32, #tpu.memory_space<vmem>>, vector<8x128xf32>,
    %c0_770 = arith.constant 0 : index
    %c0_771 = arith.constant 0 : index
    %1336 = vector.load %arg10[%c0_770, %c0_771] : memref<8x128xf32, #tpu.memory_space<vmem>>, vector<8x128xf32>
    tpu.vector_store %arg10[%c0_770, %c0_771], %1334 {strides = array<i32>} : memref<8x128xf32, #tpu.memory_space<vmem>>, vector<8x128xf32>,
    %1337 = arith.index_cast %c1_i32_754 : i32 to index
    %c0_772 = arith.constant 0 : index
    %c0_773 = arith.constant 0 : index
    %1338 = vector.load %arg8[%1337, %c0_772, %c0_773] : memref<8x8x128xf32, #tpu.memory_space<vmem>>, vector<1x8x128xf32>
    %1339 = vector.shape_cast %1338 : vector<1x8x128xf32> to vector<8x128xf32>
    %1340 = vector.shape_cast %1334 : vector<8x128xf32> to vector<1x8x128xf32>
    tpu.vector_store %arg8[%1337, %c0_772, %c0_773], %1340 {strides = array<i32>} : memref<8x8x128xf32, #tpu.memory_space<vmem>>, vector<1x8x128xf32>,
    %c2_i32_774 = arith.constant 2 : i32
    %c0_775 = arith.constant 0 : index
    %c0_776 = arith.constant 0 : index
    %1341 = vector.load %arg10[%c0_775, %c0_776] : memref<8x128xf32, #tpu.memory_space<vmem>>, vector<8x128xf32>
    %cst_777 = arith.constant dense<0.000000e+00> : vector<8x256xf32>
    %1342 = tpu.matmul %1341, %1254, %cst_777 {dimension_numbers = #tpu.dot_dimension_numbers<[1], [0], [0], [1], [0, 0, 1, 1], [], []>} : vector<8x128xf32>, vector<128x256xf32>, vector<8x256xf32> -> vector<8x256xf32>
    %1343 = arith.index_cast %c2_i32_774 : i32 to index
    %c0_778 = arith.constant 0 : index
    %c0_779 = arith.constant 0 : index
    %1344 = vector.load %arg9[%1343, %c0_778, %c0_779] : memref<8x8x256xf32, #tpu.memory_space<vmem>>, vector<1x8x256xf32>
    %1345 = vector.shape_cast %1344 : vector<1x8x256xf32> to vector<8x256xf32>
    %1346 = arith.addf %1342, %1345 : vector<8x256xf32>
    %1347 = vector.extract_strided_slice %1346 {offsets = [0, 0], sizes = [8, 128], strides = [1, 1]} : vector<8x256xf32> to vector<8x128xf32>
    %1348 = arith.negf %1347 : vector<8x128xf32>
    %1349 = math.exp %1348 : vector<8x128xf32>
    %cst_780 = arith.constant 1.000000e+00 : f32
    %1350 = vector.broadcast %cst_780 : f32 to vector<8x128xf32>
    %1351 = arith.addf %1350, %1349 : vector<8x128xf32>
    %1352 = arith.divf %1350, %1351 : vector<8x128xf32>
    %1353 = vector.extract_strided_slice %1346 {offsets = [0, 128], sizes = [8, 128], strides = [1, 1]} : vector<8x256xf32> to vector<8x128xf32>
    %1354 = arith.negf %1353 : vector<8x128xf32>
    %1355 = math.exp %1354 : vector<8x128xf32>
    %cst_781 = arith.constant 1.000000e+00 : f32
    %1356 = vector.broadcast %cst_781 : f32 to vector<8x128xf32>
    %1357 = arith.addf %1356, %1355 : vector<8x128xf32>
    %1358 = arith.divf %1356, %1357 : vector<8x128xf32>
    %cst_782 = arith.constant 2.000000e+00 : f32
    %1359 = vector.broadcast %cst_782 : f32 to vector<8x128xf32>
    %1360 = arith.mulf %1359, %1358 : vector<8x128xf32>
    %cst_783 = arith.constant 1.000000e+00 : f32
    %1361 = vector.broadcast %cst_783 : f32 to vector<8x128xf32>
    %1362 = arith.subf %1360, %1361 : vector<8x128xf32>
    %1363 = arith.select %2, %1362, %1358 : vector<8x128xi1>, vector<8x128xf32>
    %c64_i32_784 = arith.constant 64 : i32
    %1364 = tpu.dynamic_rotate %1352 by %c64_i32_784 dim 1 : vector<8x128xf32>, i32 -> vector<8x128xf32>
    %c64_i32_785 = arith.constant 64 : i32
    %1365 = tpu.dynamic_rotate %1363 by %c64_i32_785 dim 1 : vector<8x128xf32>, i32 -> vector<8x128xf32>
    %c0_786 = arith.constant 0 : index
    %c0_787 = arith.constant 0 : index
    %1366 = vector.load %arg11[%c0_786, %c0_787] : memref<8x128xf32, #tpu.memory_space<vmem>>, vector<8x128xf32>
    %1367 = arith.mulf %1364, %1366 : vector<8x128xf32>
    %1368 = arith.mulf %1352, %1363 : vector<8x128xf32>
    %1369 = arith.addf %1367, %1368 : vector<8x128xf32>
    %1370 = math.tanh %1369 : vector<8x128xf32>
    %1371 = arith.mulf %1365, %1370 : vector<8x128xf32>
    %c0_788 = arith.constant 0 : index
    %c0_789 = arith.constant 0 : index
    %1372 = vector.load %arg11[%c0_788, %c0_789] : memref<8x128xf32, #tpu.memory_space<vmem>>, vector<8x128xf32>
    tpu.vector_store %arg11[%c0_788, %c0_789], %1369 {strides = array<i32>} : memref<8x128xf32, #tpu.memory_space<vmem>>, vector<8x128xf32>,
    %c0_790 = arith.constant 0 : index
    %c0_791 = arith.constant 0 : index
    %1373 = vector.load %arg10[%c0_790, %c0_791] : memref<8x128xf32, #tpu.memory_space<vmem>>, vector<8x128xf32>
    tpu.vector_store %arg10[%c0_790, %c0_791], %1371 {strides = array<i32>} : memref<8x128xf32, #tpu.memory_space<vmem>>, vector<8x128xf32>,
    %1374 = arith.index_cast %c2_i32_774 : i32 to index
    %c0_792 = arith.constant 0 : index
    %c0_793 = arith.constant 0 : index
    %1375 = vector.load %arg8[%1374, %c0_792, %c0_793] : memref<8x8x128xf32, #tpu.memory_space<vmem>>, vector<1x8x128xf32>
    %1376 = vector.shape_cast %1375 : vector<1x8x128xf32> to vector<8x128xf32>
    %1377 = vector.shape_cast %1371 : vector<8x128xf32> to vector<1x8x128xf32>
    tpu.vector_store %arg8[%1374, %c0_792, %c0_793], %1377 {strides = array<i32>} : memref<8x8x128xf32, #tpu.memory_space<vmem>>, vector<1x8x128xf32>,
    %c3_i32_794 = arith.constant 3 : i32
    %c0_795 = arith.constant 0 : index
    %c0_796 = arith.constant 0 : index
    %1378 = vector.load %arg10[%c0_795, %c0_796] : memref<8x128xf32, #tpu.memory_space<vmem>>, vector<8x128xf32>
    %cst_797 = arith.constant dense<0.000000e+00> : vector<8x256xf32>
    %1379 = tpu.matmul %1378, %1254, %cst_797 {dimension_numbers = #tpu.dot_dimension_numbers<[1], [0], [0], [1], [0, 0, 1, 1], [], []>} : vector<8x128xf32>, vector<128x256xf32>, vector<8x256xf32> -> vector<8x256xf32>
    %1380 = arith.index_cast %c3_i32_794 : i32 to index
    %c0_798 = arith.constant 0 : index
    %c0_799 = arith.constant 0 : index
    %1381 = vector.load %arg9[%1380, %c0_798, %c0_799] : memref<8x8x256xf32, #tpu.memory_space<vmem>>, vector<1x8x256xf32>
    %1382 = vector.shape_cast %1381 : vector<1x8x256xf32> to vector<8x256xf32>
    %1383 = arith.addf %1379, %1382 : vector<8x256xf32>
    %1384 = vector.extract_strided_slice %1383 {offsets = [0, 0], sizes = [8, 128], strides = [1, 1]} : vector<8x256xf32> to vector<8x128xf32>
    %1385 = arith.negf %1384 : vector<8x128xf32>
    %1386 = math.exp %1385 : vector<8x128xf32>
    %cst_800 = arith.constant 1.000000e+00 : f32
    %1387 = vector.broadcast %cst_800 : f32 to vector<8x128xf32>
    %1388 = arith.addf %1387, %1386 : vector<8x128xf32>
    %1389 = arith.divf %1387, %1388 : vector<8x128xf32>
    %1390 = vector.extract_strided_slice %1383 {offsets = [0, 128], sizes = [8, 128], strides = [1, 1]} : vector<8x256xf32> to vector<8x128xf32>
    %1391 = arith.negf %1390 : vector<8x128xf32>
    %1392 = math.exp %1391 : vector<8x128xf32>
    %cst_801 = arith.constant 1.000000e+00 : f32
    %1393 = vector.broadcast %cst_801 : f32 to vector<8x128xf32>
    %1394 = arith.addf %1393, %1392 : vector<8x128xf32>
    %1395 = arith.divf %1393, %1394 : vector<8x128xf32>
    %cst_802 = arith.constant 2.000000e+00 : f32
    %1396 = vector.broadcast %cst_802 : f32 to vector<8x128xf32>
    %1397 = arith.mulf %1396, %1395 : vector<8x128xf32>
    %cst_803 = arith.constant 1.000000e+00 : f32
    %1398 = vector.broadcast %cst_803 : f32 to vector<8x128xf32>
    %1399 = arith.subf %1397, %1398 : vector<8x128xf32>
    %1400 = arith.select %2, %1399, %1395 : vector<8x128xi1>, vector<8x128xf32>
    %c64_i32_804 = arith.constant 64 : i32
    %1401 = tpu.dynamic_rotate %1389 by %c64_i32_804 dim 1 : vector<8x128xf32>, i32 -> vector<8x128xf32>
    %c64_i32_805 = arith.constant 64 : i32
    %1402 = tpu.dynamic_rotate %1400 by %c64_i32_805 dim 1 : vector<8x128xf32>, i32 -> vector<8x128xf32>
    %c0_806 = arith.constant 0 : index
    %c0_807 = arith.constant 0 : index
    %1403 = vector.load %arg11[%c0_806, %c0_807] : memref<8x128xf32, #tpu.memory_space<vmem>>, vector<8x128xf32>
    %1404 = arith.mulf %1401, %1403 : vector<8x128xf32>
    %1405 = arith.mulf %1389, %1400 : vector<8x128xf32>
    %1406 = arith.addf %1404, %1405 : vector<8x128xf32>
    %1407 = math.tanh %1406 : vector<8x128xf32>
    %1408 = arith.mulf %1402, %1407 : vector<8x128xf32>
    %c0_808 = arith.constant 0 : index
    %c0_809 = arith.constant 0 : index
    %1409 = vector.load %arg11[%c0_808, %c0_809] : memref<8x128xf32, #tpu.memory_space<vmem>>, vector<8x128xf32>
    tpu.vector_store %arg11[%c0_808, %c0_809], %1406 {strides = array<i32>} : memref<8x128xf32, #tpu.memory_space<vmem>>, vector<8x128xf32>,
    %c0_810 = arith.constant 0 : index
    %c0_811 = arith.constant 0 : index
    %1410 = vector.load %arg10[%c0_810, %c0_811] : memref<8x128xf32, #tpu.memory_space<vmem>>, vector<8x128xf32>
    tpu.vector_store %arg10[%c0_810, %c0_811], %1408 {strides = array<i32>} : memref<8x128xf32, #tpu.memory_space<vmem>>, vector<8x128xf32>,
    %1411 = arith.index_cast %c3_i32_794 : i32 to index
    %c0_812 = arith.constant 0 : index
    %c0_813 = arith.constant 0 : index
    %1412 = vector.load %arg8[%1411, %c0_812, %c0_813] : memref<8x8x128xf32, #tpu.memory_space<vmem>>, vector<1x8x128xf32>
    %1413 = vector.shape_cast %1412 : vector<1x8x128xf32> to vector<8x128xf32>
    %1414 = vector.shape_cast %1408 : vector<8x128xf32> to vector<1x8x128xf32>
    tpu.vector_store %arg8[%1411, %c0_812, %c0_813], %1414 {strides = array<i32>} : memref<8x8x128xf32, #tpu.memory_space<vmem>>, vector<1x8x128xf32>,
    %c4_i32_814 = arith.constant 4 : i32
    %c0_815 = arith.constant 0 : index
    %c0_816 = arith.constant 0 : index
    %1415 = vector.load %arg10[%c0_815, %c0_816] : memref<8x128xf32, #tpu.memory_space<vmem>>, vector<8x128xf32>
    %cst_817 = arith.constant dense<0.000000e+00> : vector<8x256xf32>
    %1416 = tpu.matmul %1415, %1254, %cst_817 {dimension_numbers = #tpu.dot_dimension_numbers<[1], [0], [0], [1], [0, 0, 1, 1], [], []>} : vector<8x128xf32>, vector<128x256xf32>, vector<8x256xf32> -> vector<8x256xf32>
    %1417 = arith.index_cast %c4_i32_814 : i32 to index
    %c0_818 = arith.constant 0 : index
    %c0_819 = arith.constant 0 : index
    %1418 = vector.load %arg9[%1417, %c0_818, %c0_819] : memref<8x8x256xf32, #tpu.memory_space<vmem>>, vector<1x8x256xf32>
    %1419 = vector.shape_cast %1418 : vector<1x8x256xf32> to vector<8x256xf32>
    %1420 = arith.addf %1416, %1419 : vector<8x256xf32>
    %1421 = vector.extract_strided_slice %1420 {offsets = [0, 0], sizes = [8, 128], strides = [1, 1]} : vector<8x256xf32> to vector<8x128xf32>
    %1422 = arith.negf %1421 : vector<8x128xf32>
    %1423 = math.exp %1422 : vector<8x128xf32>
    %cst_820 = arith.constant 1.000000e+00 : f32
    %1424 = vector.broadcast %cst_820 : f32 to vector<8x128xf32>
    %1425 = arith.addf %1424, %1423 : vector<8x128xf32>
    %1426 = arith.divf %1424, %1425 : vector<8x128xf32>
    %1427 = vector.extract_strided_slice %1420 {offsets = [0, 128], sizes = [8, 128], strides = [1, 1]} : vector<8x256xf32> to vector<8x128xf32>
    %1428 = arith.negf %1427 : vector<8x128xf32>
    %1429 = math.exp %1428 : vector<8x128xf32>
    %cst_821 = arith.constant 1.000000e+00 : f32
    %1430 = vector.broadcast %cst_821 : f32 to vector<8x128xf32>
    %1431 = arith.addf %1430, %1429 : vector<8x128xf32>
    %1432 = arith.divf %1430, %1431 : vector<8x128xf32>
    %cst_822 = arith.constant 2.000000e+00 : f32
    %1433 = vector.broadcast %cst_822 : f32 to vector<8x128xf32>
    %1434 = arith.mulf %1433, %1432 : vector<8x128xf32>
    %cst_823 = arith.constant 1.000000e+00 : f32
    %1435 = vector.broadcast %cst_823 : f32 to vector<8x128xf32>
    %1436 = arith.subf %1434, %1435 : vector<8x128xf32>
    %1437 = arith.select %2, %1436, %1432 : vector<8x128xi1>, vector<8x128xf32>
    %c64_i32_824 = arith.constant 64 : i32
    %1438 = tpu.dynamic_rotate %1426 by %c64_i32_824 dim 1 : vector<8x128xf32>, i32 -> vector<8x128xf32>
    %c64_i32_825 = arith.constant 64 : i32
    %1439 = tpu.dynamic_rotate %1437 by %c64_i32_825 dim 1 : vector<8x128xf32>, i32 -> vector<8x128xf32>
    %c0_826 = arith.constant 0 : index
    %c0_827 = arith.constant 0 : index
    %1440 = vector.load %arg11[%c0_826, %c0_827] : memref<8x128xf32, #tpu.memory_space<vmem>>, vector<8x128xf32>
    %1441 = arith.mulf %1438, %1440 : vector<8x128xf32>
    %1442 = arith.mulf %1426, %1437 : vector<8x128xf32>
    %1443 = arith.addf %1441, %1442 : vector<8x128xf32>
    %1444 = math.tanh %1443 : vector<8x128xf32>
    %1445 = arith.mulf %1439, %1444 : vector<8x128xf32>
    %c0_828 = arith.constant 0 : index
    %c0_829 = arith.constant 0 : index
    %1446 = vector.load %arg11[%c0_828, %c0_829] : memref<8x128xf32, #tpu.memory_space<vmem>>, vector<8x128xf32>
    tpu.vector_store %arg11[%c0_828, %c0_829], %1443 {strides = array<i32>} : memref<8x128xf32, #tpu.memory_space<vmem>>, vector<8x128xf32>,
    %c0_830 = arith.constant 0 : index
    %c0_831 = arith.constant 0 : index
    %1447 = vector.load %arg10[%c0_830, %c0_831] : memref<8x128xf32, #tpu.memory_space<vmem>>, vector<8x128xf32>
    tpu.vector_store %arg10[%c0_830, %c0_831], %1445 {strides = array<i32>} : memref<8x128xf32, #tpu.memory_space<vmem>>, vector<8x128xf32>,
    %1448 = arith.index_cast %c4_i32_814 : i32 to index
    %c0_832 = arith.constant 0 : index
    %c0_833 = arith.constant 0 : index
    %1449 = vector.load %arg8[%1448, %c0_832, %c0_833] : memref<8x8x128xf32, #tpu.memory_space<vmem>>, vector<1x8x128xf32>
    %1450 = vector.shape_cast %1449 : vector<1x8x128xf32> to vector<8x128xf32>
    %1451 = vector.shape_cast %1445 : vector<8x128xf32> to vector<1x8x128xf32>
    tpu.vector_store %arg8[%1448, %c0_832, %c0_833], %1451 {strides = array<i32>} : memref<8x8x128xf32, #tpu.memory_space<vmem>>, vector<1x8x128xf32>,
    %c5_i32_834 = arith.constant 5 : i32
    %c0_835 = arith.constant 0 : index
    %c0_836 = arith.constant 0 : index
    %1452 = vector.load %arg10[%c0_835, %c0_836] : memref<8x128xf32, #tpu.memory_space<vmem>>, vector<8x128xf32>
    %cst_837 = arith.constant dense<0.000000e+00> : vector<8x256xf32>
    %1453 = tpu.matmul %1452, %1254, %cst_837 {dimension_numbers = #tpu.dot_dimension_numbers<[1], [0], [0], [1], [0, 0, 1, 1], [], []>} : vector<8x128xf32>, vector<128x256xf32>, vector<8x256xf32> -> vector<8x256xf32>
    %1454 = arith.index_cast %c5_i32_834 : i32 to index
    %c0_838 = arith.constant 0 : index
    %c0_839 = arith.constant 0 : index
    %1455 = vector.load %arg9[%1454, %c0_838, %c0_839] : memref<8x8x256xf32, #tpu.memory_space<vmem>>, vector<1x8x256xf32>
    %1456 = vector.shape_cast %1455 : vector<1x8x256xf32> to vector<8x256xf32>
    %1457 = arith.addf %1453, %1456 : vector<8x256xf32>
    %1458 = vector.extract_strided_slice %1457 {offsets = [0, 0], sizes = [8, 128], strides = [1, 1]} : vector<8x256xf32> to vector<8x128xf32>
    %1459 = arith.negf %1458 : vector<8x128xf32>
    %1460 = math.exp %1459 : vector<8x128xf32>
    %cst_840 = arith.constant 1.000000e+00 : f32
    %1461 = vector.broadcast %cst_840 : f32 to vector<8x128xf32>
    %1462 = arith.addf %1461, %1460 : vector<8x128xf32>
    %1463 = arith.divf %1461, %1462 : vector<8x128xf32>
    %1464 = vector.extract_strided_slice %1457 {offsets = [0, 128], sizes = [8, 128], strides = [1, 1]} : vector<8x256xf32> to vector<8x128xf32>
    %1465 = arith.negf %1464 : vector<8x128xf32>
    %1466 = math.exp %1465 : vector<8x128xf32>
    %cst_841 = arith.constant 1.000000e+00 : f32
    %1467 = vector.broadcast %cst_841 : f32 to vector<8x128xf32>
    %1468 = arith.addf %1467, %1466 : vector<8x128xf32>
    %1469 = arith.divf %1467, %1468 : vector<8x128xf32>
    %cst_842 = arith.constant 2.000000e+00 : f32
    %1470 = vector.broadcast %cst_842 : f32 to vector<8x128xf32>
    %1471 = arith.mulf %1470, %1469 : vector<8x128xf32>
    %cst_843 = arith.constant 1.000000e+00 : f32
    %1472 = vector.broadcast %cst_843 : f32 to vector<8x128xf32>
    %1473 = arith.subf %1471, %1472 : vector<8x128xf32>
    %1474 = arith.select %2, %1473, %1469 : vector<8x128xi1>, vector<8x128xf32>
    %c64_i32_844 = arith.constant 64 : i32
    %1475 = tpu.dynamic_rotate %1463 by %c64_i32_844 dim 1 : vector<8x128xf32>, i32 -> vector<8x128xf32>
    %c64_i32_845 = arith.constant 64 : i32
    %1476 = tpu.dynamic_rotate %1474 by %c64_i32_845 dim 1 : vector<8x128xf32>, i32 -> vector<8x128xf32>
    %c0_846 = arith.constant 0 : index
    %c0_847 = arith.constant 0 : index
    %1477 = vector.load %arg11[%c0_846, %c0_847] : memref<8x128xf32, #tpu.memory_space<vmem>>, vector<8x128xf32>
    %1478 = arith.mulf %1475, %1477 : vector<8x128xf32>
    %1479 = arith.mulf %1463, %1474 : vector<8x128xf32>
    %1480 = arith.addf %1478, %1479 : vector<8x128xf32>
    %1481 = math.tanh %1480 : vector<8x128xf32>
    %1482 = arith.mulf %1476, %1481 : vector<8x128xf32>
    %c0_848 = arith.constant 0 : index
    %c0_849 = arith.constant 0 : index
    %1483 = vector.load %arg11[%c0_848, %c0_849] : memref<8x128xf32, #tpu.memory_space<vmem>>, vector<8x128xf32>
    tpu.vector_store %arg11[%c0_848, %c0_849], %1480 {strides = array<i32>} : memref<8x128xf32, #tpu.memory_space<vmem>>, vector<8x128xf32>,
    %c0_850 = arith.constant 0 : index
    %c0_851 = arith.constant 0 : index
    %1484 = vector.load %arg10[%c0_850, %c0_851] : memref<8x128xf32, #tpu.memory_space<vmem>>, vector<8x128xf32>
    tpu.vector_store %arg10[%c0_850, %c0_851], %1482 {strides = array<i32>} : memref<8x128xf32, #tpu.memory_space<vmem>>, vector<8x128xf32>,
    %1485 = arith.index_cast %c5_i32_834 : i32 to index
    %c0_852 = arith.constant 0 : index
    %c0_853 = arith.constant 0 : index
    %1486 = vector.load %arg8[%1485, %c0_852, %c0_853] : memref<8x8x128xf32, #tpu.memory_space<vmem>>, vector<1x8x128xf32>
    %1487 = vector.shape_cast %1486 : vector<1x8x128xf32> to vector<8x128xf32>
    %1488 = vector.shape_cast %1482 : vector<8x128xf32> to vector<1x8x128xf32>
    tpu.vector_store %arg8[%1485, %c0_852, %c0_853], %1488 {strides = array<i32>} : memref<8x8x128xf32, #tpu.memory_space<vmem>>, vector<1x8x128xf32>,
    %c6_i32_854 = arith.constant 6 : i32
    %c0_855 = arith.constant 0 : index
    %c0_856 = arith.constant 0 : index
    %1489 = vector.load %arg10[%c0_855, %c0_856] : memref<8x128xf32, #tpu.memory_space<vmem>>, vector<8x128xf32>
    %cst_857 = arith.constant dense<0.000000e+00> : vector<8x256xf32>
    %1490 = tpu.matmul %1489, %1254, %cst_857 {dimension_numbers = #tpu.dot_dimension_numbers<[1], [0], [0], [1], [0, 0, 1, 1], [], []>} : vector<8x128xf32>, vector<128x256xf32>, vector<8x256xf32> -> vector<8x256xf32>
    %1491 = arith.index_cast %c6_i32_854 : i32 to index
    %c0_858 = arith.constant 0 : index
    %c0_859 = arith.constant 0 : index
    %1492 = vector.load %arg9[%1491, %c0_858, %c0_859] : memref<8x8x256xf32, #tpu.memory_space<vmem>>, vector<1x8x256xf32>
    %1493 = vector.shape_cast %1492 : vector<1x8x256xf32> to vector<8x256xf32>
    %1494 = arith.addf %1490, %1493 : vector<8x256xf32>
    %1495 = vector.extract_strided_slice %1494 {offsets = [0, 0], sizes = [8, 128], strides = [1, 1]} : vector<8x256xf32> to vector<8x128xf32>
    %1496 = arith.negf %1495 : vector<8x128xf32>
    %1497 = math.exp %1496 : vector<8x128xf32>
    %cst_860 = arith.constant 1.000000e+00 : f32
    %1498 = vector.broadcast %cst_860 : f32 to vector<8x128xf32>
    %1499 = arith.addf %1498, %1497 : vector<8x128xf32>
    %1500 = arith.divf %1498, %1499 : vector<8x128xf32>
    %1501 = vector.extract_strided_slice %1494 {offsets = [0, 128], sizes = [8, 128], strides = [1, 1]} : vector<8x256xf32> to vector<8x128xf32>
    %1502 = arith.negf %1501 : vector<8x128xf32>
    %1503 = math.exp %1502 : vector<8x128xf32>
    %cst_861 = arith.constant 1.000000e+00 : f32
    %1504 = vector.broadcast %cst_861 : f32 to vector<8x128xf32>
    %1505 = arith.addf %1504, %1503 : vector<8x128xf32>
    %1506 = arith.divf %1504, %1505 : vector<8x128xf32>
    %cst_862 = arith.constant 2.000000e+00 : f32
    %1507 = vector.broadcast %cst_862 : f32 to vector<8x128xf32>
    %1508 = arith.mulf %1507, %1506 : vector<8x128xf32>
    %cst_863 = arith.constant 1.000000e+00 : f32
    %1509 = vector.broadcast %cst_863 : f32 to vector<8x128xf32>
    %1510 = arith.subf %1508, %1509 : vector<8x128xf32>
    %1511 = arith.select %2, %1510, %1506 : vector<8x128xi1>, vector<8x128xf32>
    %c64_i32_864 = arith.constant 64 : i32
    %1512 = tpu.dynamic_rotate %1500 by %c64_i32_864 dim 1 : vector<8x128xf32>, i32 -> vector<8x128xf32>
    %c64_i32_865 = arith.constant 64 : i32
    %1513 = tpu.dynamic_rotate %1511 by %c64_i32_865 dim 1 : vector<8x128xf32>, i32 -> vector<8x128xf32>
    %c0_866 = arith.constant 0 : index
    %c0_867 = arith.constant 0 : index
    %1514 = vector.load %arg11[%c0_866, %c0_867] : memref<8x128xf32, #tpu.memory_space<vmem>>, vector<8x128xf32>
    %1515 = arith.mulf %1512, %1514 : vector<8x128xf32>
    %1516 = arith.mulf %1500, %1511 : vector<8x128xf32>
    %1517 = arith.addf %1515, %1516 : vector<8x128xf32>
    %1518 = math.tanh %1517 : vector<8x128xf32>
    %1519 = arith.mulf %1513, %1518 : vector<8x128xf32>
    %c0_868 = arith.constant 0 : index
    %c0_869 = arith.constant 0 : index
    %1520 = vector.load %arg11[%c0_868, %c0_869] : memref<8x128xf32, #tpu.memory_space<vmem>>, vector<8x128xf32>
    tpu.vector_store %arg11[%c0_868, %c0_869], %1517 {strides = array<i32>} : memref<8x128xf32, #tpu.memory_space<vmem>>, vector<8x128xf32>,
    %c0_870 = arith.constant 0 : index
    %c0_871 = arith.constant 0 : index
    %1521 = vector.load %arg10[%c0_870, %c0_871] : memref<8x128xf32, #tpu.memory_space<vmem>>, vector<8x128xf32>
    tpu.vector_store %arg10[%c0_870, %c0_871], %1519 {strides = array<i32>} : memref<8x128xf32, #tpu.memory_space<vmem>>, vector<8x128xf32>,
    %1522 = arith.index_cast %c6_i32_854 : i32 to index
    %c0_872 = arith.constant 0 : index
    %c0_873 = arith.constant 0 : index
    %1523 = vector.load %arg8[%1522, %c0_872, %c0_873] : memref<8x8x128xf32, #tpu.memory_space<vmem>>, vector<1x8x128xf32>
    %1524 = vector.shape_cast %1523 : vector<1x8x128xf32> to vector<8x128xf32>
    %1525 = vector.shape_cast %1519 : vector<8x128xf32> to vector<1x8x128xf32>
    tpu.vector_store %arg8[%1522, %c0_872, %c0_873], %1525 {strides = array<i32>} : memref<8x8x128xf32, #tpu.memory_space<vmem>>, vector<1x8x128xf32>,
    %c7_i32_874 = arith.constant 7 : i32
    %c0_875 = arith.constant 0 : index
    %c0_876 = arith.constant 0 : index
    %1526 = vector.load %arg10[%c0_875, %c0_876] : memref<8x128xf32, #tpu.memory_space<vmem>>, vector<8x128xf32>
    %cst_877 = arith.constant dense<0.000000e+00> : vector<8x256xf32>
    %1527 = tpu.matmul %1526, %1254, %cst_877 {dimension_numbers = #tpu.dot_dimension_numbers<[1], [0], [0], [1], [0, 0, 1, 1], [], []>} : vector<8x128xf32>, vector<128x256xf32>, vector<8x256xf32> -> vector<8x256xf32>
    %1528 = arith.index_cast %c7_i32_874 : i32 to index
    %c0_878 = arith.constant 0 : index
    %c0_879 = arith.constant 0 : index
    %1529 = vector.load %arg9[%1528, %c0_878, %c0_879] : memref<8x8x256xf32, #tpu.memory_space<vmem>>, vector<1x8x256xf32>
    %1530 = vector.shape_cast %1529 : vector<1x8x256xf32> to vector<8x256xf32>
    %1531 = arith.addf %1527, %1530 : vector<8x256xf32>
    %1532 = vector.extract_strided_slice %1531 {offsets = [0, 0], sizes = [8, 128], strides = [1, 1]} : vector<8x256xf32> to vector<8x128xf32>
    %1533 = arith.negf %1532 : vector<8x128xf32>
    %1534 = math.exp %1533 : vector<8x128xf32>
    %cst_880 = arith.constant 1.000000e+00 : f32
    %1535 = vector.broadcast %cst_880 : f32 to vector<8x128xf32>
    %1536 = arith.addf %1535, %1534 : vector<8x128xf32>
    %1537 = arith.divf %1535, %1536 : vector<8x128xf32>
    %1538 = vector.extract_strided_slice %1531 {offsets = [0, 128], sizes = [8, 128], strides = [1, 1]} : vector<8x256xf32> to vector<8x128xf32>
    %1539 = arith.negf %1538 : vector<8x128xf32>
    %1540 = math.exp %1539 : vector<8x128xf32>
    %cst_881 = arith.constant 1.000000e+00 : f32
    %1541 = vector.broadcast %cst_881 : f32 to vector<8x128xf32>
    %1542 = arith.addf %1541, %1540 : vector<8x128xf32>
    %1543 = arith.divf %1541, %1542 : vector<8x128xf32>
    %cst_882 = arith.constant 2.000000e+00 : f32
    %1544 = vector.broadcast %cst_882 : f32 to vector<8x128xf32>
    %1545 = arith.mulf %1544, %1543 : vector<8x128xf32>
    %cst_883 = arith.constant 1.000000e+00 : f32
    %1546 = vector.broadcast %cst_883 : f32 to vector<8x128xf32>
    %1547 = arith.subf %1545, %1546 : vector<8x128xf32>
    %1548 = arith.select %2, %1547, %1543 : vector<8x128xi1>, vector<8x128xf32>
    %c64_i32_884 = arith.constant 64 : i32
    %1549 = tpu.dynamic_rotate %1537 by %c64_i32_884 dim 1 : vector<8x128xf32>, i32 -> vector<8x128xf32>
    %c64_i32_885 = arith.constant 64 : i32
    %1550 = tpu.dynamic_rotate %1548 by %c64_i32_885 dim 1 : vector<8x128xf32>, i32 -> vector<8x128xf32>
    %c0_886 = arith.constant 0 : index
    %c0_887 = arith.constant 0 : index
    %1551 = vector.load %arg11[%c0_886, %c0_887] : memref<8x128xf32, #tpu.memory_space<vmem>>, vector<8x128xf32>
    %1552 = arith.mulf %1549, %1551 : vector<8x128xf32>
    %1553 = arith.mulf %1537, %1548 : vector<8x128xf32>
    %1554 = arith.addf %1552, %1553 : vector<8x128xf32>
    %1555 = math.tanh %1554 : vector<8x128xf32>
    %1556 = arith.mulf %1550, %1555 : vector<8x128xf32>
    %c0_888 = arith.constant 0 : index
    %c0_889 = arith.constant 0 : index
    %1557 = vector.load %arg11[%c0_888, %c0_889] : memref<8x128xf32, #tpu.memory_space<vmem>>, vector<8x128xf32>
    tpu.vector_store %arg11[%c0_888, %c0_889], %1554 {strides = array<i32>} : memref<8x128xf32, #tpu.memory_space<vmem>>, vector<8x128xf32>,
    %c0_890 = arith.constant 0 : index
    %c0_891 = arith.constant 0 : index
    %1558 = vector.load %arg10[%c0_890, %c0_891] : memref<8x128xf32, #tpu.memory_space<vmem>>, vector<8x128xf32>
    tpu.vector_store %arg10[%c0_890, %c0_891], %1556 {strides = array<i32>} : memref<8x128xf32, #tpu.memory_space<vmem>>, vector<8x128xf32>,
    %1559 = arith.index_cast %c7_i32_874 : i32 to index
    %c0_892 = arith.constant 0 : index
    %c0_893 = arith.constant 0 : index
    %1560 = vector.load %arg8[%1559, %c0_892, %c0_893] : memref<8x8x128xf32, #tpu.memory_space<vmem>>, vector<1x8x128xf32>
    %1561 = vector.shape_cast %1560 : vector<1x8x128xf32> to vector<8x128xf32>
    %1562 = vector.shape_cast %1556 : vector<8x128xf32> to vector<1x8x128xf32>
    tpu.vector_store %arg8[%1559, %c0_892, %c0_893], %1562 {strides = array<i32>} : memref<8x8x128xf32, #tpu.memory_space<vmem>>, vector<1x8x128xf32>,
    %c8_i32_894 = arith.constant 8 : i32
    %c0_895 = arith.constant 0 : index
    %c0_896 = arith.constant 0 : index
    %c0_897 = arith.constant 0 : index
    %1563 = vector.load %arg8[%c0_895, %c0_896, %c0_897] : memref<8x8x128xf32, #tpu.memory_space<vmem>>, vector<8x8x128xf32>
    %1564 = vector.shape_cast %1563 : vector<8x8x128xf32> to vector<64x128xf32>
    %c0_898 = arith.constant 0 : index
    %c0_899 = arith.constant 0 : index
    %1565 = vector.load %arg5[%c0_898, %c0_899] : memref<128x128xf32, #tpu.memory_space<vmem>>, vector<128x128xf32>
    %cst_900 = arith.constant dense<0.000000e+00> : vector<64x128xf32>
    %1566 = tpu.matmul %1564, %1565, %cst_900 {dimension_numbers = #tpu.dot_dimension_numbers<[1], [0], [0], [1], [0, 0, 1, 1], [], []>} : vector<64x128xf32>, vector<128x128xf32>, vector<64x128xf32> -> vector<64x128xf32>
    %c0_901 = arith.constant 0 : index
    %c0_902 = arith.constant 0 : index
    %1567 = vector.load %arg6[%c0_901, %c0_902] : memref<1x128xf32, #tpu.memory_space<vmem>>, vector<1x128xf32>
    %1568 = vector.broadcast %1567 : vector<1x128xf32> to vector<64x128xf32>
    %1569 = arith.addf %1566, %1568 : vector<64x128xf32>
    %1570 = vector.shape_cast %1569 : vector<64x128xf32> to vector<8x8x128xf32>
    %c0_903 = arith.constant 0 : index
    %c0_904 = arith.constant 0 : index
    %c0_905 = arith.constant 0 : index
    %1571 = vector.load %arg7[%c0_903, %c0_904, %c0_905] : memref<8x8x128xf32, #tpu.memory_space<vmem>>, vector<8x8x128xf32>
    tpu.vector_store %arg7[%c0_903, %c0_904, %c0_905], %1570 {strides = array<i32>} : memref<8x8x128xf32, #tpu.memory_space<vmem>>, vector<8x8x128xf32>,
    return
  }
  func.func @transform_0(%arg0: i32) -> (i32, i32, i32) {
    %c0_i32 = arith.constant 0 : i32
    %c0_i32_0 = arith.constant 0 : i32
    %c0_i32_1 = arith.constant 0 : i32
    return %c0_i32, %arg0, %c0_i32_0 : i32, i32, i32
  }
  func.func @transform_1(%arg0: i32) -> (i32, i32, i32) {
    %c0_i32 = arith.constant 0 : i32
    %c0_i32_0 = arith.constant 0 : i32
    %c0_i32_1 = arith.constant 0 : i32
    %c0_i32_2 = arith.constant 0 : i32
    return %c0_i32, %c0_i32_0, %c0_i32_1 : i32, i32, i32
  }
  func.func @transform_2(%arg0: i32) -> (i32, i32, i32) {
    %c0_i32 = arith.constant 0 : i32
    %c0_i32_0 = arith.constant 0 : i32
    %c0_i32_1 = arith.constant 0 : i32
    %c0_i32_2 = arith.constant 0 : i32
    return %c0_i32, %c0_i32_0, %c0_i32_1 : i32, i32, i32
  }
  func.func @transform_3(%arg0: i32) -> (i32, i32) {
    %c0_i32 = arith.constant 0 : i32
    %c0_i32_0 = arith.constant 0 : i32
    %c0_i32_1 = arith.constant 0 : i32
    return %c0_i32, %c0_i32_0 : i32, i32
  }
  func.func @transform_4(%arg0: i32) -> (i32, i32) {
    %c0_i32 = arith.constant 0 : i32
    %c0_i32_0 = arith.constant 0 : i32
    %c0_i32_1 = arith.constant 0 : i32
    return %c0_i32, %c0_i32_0 : i32, i32
  }
  func.func @transform_5(%arg0: i32) -> (i32, i32) {
    %c0_i32 = arith.constant 0 : i32
    %c0_i32_0 = arith.constant 0 : i32
    %c0_i32_1 = arith.constant 0 : i32
    return %c0_i32, %c0_i32_0 : i32, i32
  }
  func.func @transform_6(%arg0: i32) -> (i32, i32, i32) {
    %c0_i32 = arith.constant 0 : i32
    %c0_i32_0 = arith.constant 0 : i32
    %c0_i32_1 = arith.constant 0 : i32
    return %c0_i32, %arg0, %c0_i32_0 : i32, i32, i32
  }
}

</mosaic_0001>

<llo_original>
// kernel: tpu_custom_call.1
$region0: #{tpu_custom_call.1}
  #allocation0 [shape = 'u32[]', space=smem, size = 0x4, offset = 0x4, fixed_abs, tag = 'smem constant byte address 0x4 - core index']
  #allocation1 [shape = 'u32[144,128]{1,0:T(1,128)}', space=vmem, size = 0x12000, scoped, tag = 'internal scratch']
  #allocation2 [shape = 'f32[8,8,128]{2,1,0:T(8,128)}', space=vmem, size = 0x8000, scoped, tag = 'scratch operand']
  #allocation3 [shape = 'f32[8,8,256]{2,1,0:T(8,128)}', space=vmem, size = 0x10000, scoped, tag = 'scratch operand']
  #allocation4 [shape = 'f32[8,128]{1,0:T(8,128)}', space=vmem, size = 0x1000, scoped, tag = 'scratch operand']
  #allocation5 [shape = 'f32[8,128]{1,0:T(8,128)}', space=vmem, size = 0x1000, scoped, tag = 'scratch operand']
  %s0 = inlined_call_operand.hbm [shape: f32[8,8,128], index: 0, kind: input, shape index: {}]
  %s1 = inlined_call_operand.hbm [shape: f32[5,128,256], index: 1, kind: input, shape index: {}]
  %s2 = inlined_call_operand.hbm [shape: f32[5,128,256], index: 2, kind: input, shape index: {}]
  %s3 = inlined_call_operand.hbm [shape: f32[5,256], index: 3, kind: input, shape index: {}]
  %s4 = inlined_call_operand.hbm [shape: f32[128,128], index: 4, kind: input, shape index: {}]
  %s5 = inlined_call_operand.vmem [shape: f32[1,128], index: 5, kind: input, shape index: {}]
  %s6 = inlined_call_operand.hbm [shape: f32[8,8,128], index: 6, kind: output, shape index: {}]
  %s7 = sld [smem:[#allocation0]]
  $region54: #{tpu_custom_call.1} parent=0
    _
  %s9 = ssub.s32 1, %s7
  %s10 = scalar_select 0, %s9, %s7
  $region1: #{tpu_custom_call.1} parent=0
    #allocation6 [shape = 'u8[32768]{0}', space=vmem, size = 0x8000, scoped, tag = 'input window, operand 0, single buffered']
    #allocation7 [shape = 's32[1]{0}', space=sflag, size = 0x4, scoped, tag = 'scoped memory for tpu_custom_call.1']
    #allocation8 [shape = 's32[1]{0}', space=sflag, size = 0x4, scoped, tag = 'scoped memory for tpu_custom_call.1']
    #allocation9 [shape = 'u8[655360]{0}', space=vmem, size = 0xa0000, scoped, tag = 'input window, operand 1, single buffered']
    #allocation10 [shape = 's32[1]{0}', space=sflag, size = 0x4, scoped, tag = 'scoped memory for tpu_custom_call.1']
    #allocation11 [shape = 'u8[655360]{0}', space=vmem, size = 0xa0000, scoped, tag = 'input window, operand 2, single buffered']
    #allocation12 [shape = 'u8[8192]{0}', space=vmem, size = 0x2000, scoped, tag = 'input window, operand 3, single buffered']
    #allocation13 [shape = 's32[1]{0}', space=sflag, size = 0x4, scoped, tag = 'scoped memory for tpu_custom_call.1']
    #allocation14 [shape = 'u8[65536]{0}', space=vmem, size = 0x10000, scoped, tag = 'input window, operand 4, single buffered']
    #allocation15 [shape = 'u8[32768]{0}', space=vmem, size = 0x8000, scoped, tag = 'output window, operand 0, single buffered']
    %11 = vsyncpa [#allocation7], 0
    %12 = vsyncpa [#allocation10], 0
    %13 = vsyncpa [#allocation13], 0
    %14 = vsyncpa [#allocation8], 0
    // Predicated region
    $region2: #{tpu_custom_call.1} parent=1 // pred_check
      _
    $region3: #{tpu_custom_call.1} parent=1 // pred_check_branch
      %16 = sbr.rel (0) target = $region5
    $region4: #{tpu_custom_call.1} parent=1 // pred_region
      %s18 = ssub.s32 1024, 1024
      %19 = vsyncadd [#allocation7], %s18
      %s20 = sshll.u32 [#allocation6], 4
      %s21 = int_to_ptr.vmem [resolvable:$true] %s20
      %26 = dma.hbm_to_vmem [thread:$0]  %s0, 1024, %s21, [#allocation7], 128, 128, 8
    $region5: #{tpu_custom_call.1} parent=1 // pred_fallthru
      _
    // Predicated region
    $region6: #{tpu_custom_call.1} parent=1 // pred_check
      _
    $region7: #{tpu_custom_call.1} parent=1 // pred_check_branch
      %28 = sbr.rel (0) target = $region9
    $region8: #{tpu_custom_call.1} parent=1 // pred_region
      %s30 = ssub.s32 20480, 20480
      %31 = vsyncadd [#allocation10], %s30
      %s32 = sshll.u32 [#allocation9], 4
      %s33 = int_to_ptr.vmem [resolvable:$true] %s32
      %38 = dma.hbm_to_vmem [thread:$0]  %s1, 20480, %s33, [#allocation10], 256, 256, 16
    $region9: #{tpu_custom_call.1} parent=1 // pred_fallthru
      _
    // Predicated region
    $region10: #{tpu_custom_call.1} parent=1 // pred_check
      _
    $region11: #{tpu_custom_call.1} parent=1 // pred_check_branch
      %40 = sbr.rel (0) target = $region13
    $region12: #{tpu_custom_call.1} parent=1 // pred_region
      %s42 = ssub.s32 20480, 20480
      %43 = vsyncadd [#allocation10], %s42
      %s44 = sshll.u32 [#allocation11], 4
      %s45 = int_to_ptr.vmem [resolvable:$true] %s44
      %50 = dma.hbm_to_vmem [thread:$0]  %s2, 20480, %s45, [#allocation10], 256, 256, 16
    $region13: #{tpu_custom_call.1} parent=1 // pred_fallthru
      _
    // Predicated region
    $region14: #{tpu_custom_call.1} parent=1 // pred_check
      _
    $region15: #{tpu_custom_call.1} parent=1 // pred_check_branch
      %52 = sbr.rel (0) target = $region17
    $region16: #{tpu_custom_call.1} parent=1 // pred_region
      %s54 = ssub.s32 256, 256
      %55 = vsyncadd [#allocation13], %s54
      %s57 = sshll.u32 [#allocation12], 4
      %s58 = int_to_ptr.vmem [resolvable:$true] %s57
      %60 = dma.hbm_to_vmem [thread:$0]  %s3, 256, %s58, [#allocation13]
    $region17: #{tpu_custom_call.1} parent=1 // pred_fallthru
      _
    // Predicated region
    $region18: #{tpu_custom_call.1} parent=1 // pred_check
      _
    $region19: #{tpu_custom_call.1} parent=1 // pred_check_branch
      %62 = sbr.rel (0) target = $region21
    $region20: #{tpu_custom_call.1} parent=1 // pred_region
      %s64 = ssub.s32 2048, 2048
      %65 = vsyncadd [#allocation13], %s64
      %s66 = sshll.u32 [#allocation14], 4
      %s67 = int_to_ptr.vmem [resolvable:$true] %s66
      %72 = dma.hbm_to_vmem [thread:$0]  %s4, 2048, %s67, [#allocation13], 128, 128, 8
    $region21: #{tpu_custom_call.1} parent=1 // pred_fallthru
      _
    // Predicated region
    $region22: #{tpu_custom_call.1} parent=1 // pred_check
      _
    $region23: #{tpu_custom_call.1} parent=1 // pred_check_branch
      %74 = sbr.rel (0) target = $region25
    $region24: #{tpu_custom_call.1} parent=1 // pred_region
      _
    $region25: #{tpu_custom_call.1} parent=1 // pred_fallthru
      _
    // Predicated region
    $region26: #{tpu_custom_call.1} parent=1 // pred_check
      _
    $region27: #{tpu_custom_call.1} parent=1 // pred_check_branch
      %76 = sbr.rel (0) target = $region29
    $region28: #{tpu_custom_call.1} parent=1 // pred_region
      %77 = dma.done [#allocation7], 1024
    $region29: #{tpu_custom_call.1} parent=1 // pred_fallthru
      _
    // Predicated region
    $region30: #{tpu_custom_call.1} parent=1 // pred_check
      _
    $region31: #{tpu_custom_call.1} parent=1 // pred_check_branch
      %79 = sbr.rel (0) target = $region33
    $region32: #{tpu_custom_call.1} parent=1 // pred_region
      %80 = dma.done [#allocation10], 20480
    $region33: #{tpu_custom_call.1} parent=1 // pred_fallthru
      _
    // Predicated region
    $region34: #{tpu_custom_call.1} parent=1 // pred_check
      _
    $region35: #{tpu_custom_call.1} parent=1 // pred_check_branch
      %82 = sbr.rel (0) target = $region37
    $region36: #{tpu_custom_call.1} parent=1 // pred_region
      %83 = dma.done [#allocation10], 20480
    $region37: #{tpu_custom_call.1} parent=1 // pred_fallthru
      _
    // Predicated region
    $region38: #{tpu_custom_call.1} parent=1 // pred_check
      _
    $region39: #{tpu_custom_call.1} parent=1 // pred_check_branch
      %85 = sbr.rel (0) target = $region41
    $region40: #{tpu_custom_call.1} parent=1 // pred_region
      %86 = dma.done [#allocation13], 256
    $region41: #{tpu_custom_call.1} parent=1 // pred_fallthru
      _
    // Predicated region
    $region42: #{tpu_custom_call.1} parent=1 // pred_check
      _
    $region43: #{tpu_custom_call.1} parent=1 // pred_check_branch
      %88 = sbr.rel (0) target = $region45
    $region44: #{tpu_custom_call.1} parent=1 // pred_region
      %89 = dma.done [#allocation13], 2048
    $region45: #{tpu_custom_call.1} parent=1 // pred_fallthru
      _
    %v90 = vlaneseq
    %v91 = vand.u32 %v90, 127
    %vm92 = vcmp.lt.s32.totalorder %v91, 64
    %v93 = vld [vmem:[#allocation9] sm:$0xff]
    %v94 = vld [vmem:[#allocation9 + $0x8] sm:$0xff]
    %v95 = vld [vmem:[#allocation9 + $0x10] sm:$0xff]
    %v96 = vld [vmem:[#allocation9 + $0x18] sm:$0xff]
    %v97 = vld [vmem:[#allocation9 + $0x20] sm:$0xff]
    %v98 = vld [vmem:[#allocation9 + $0x28] sm:$0xff]
    %v99 = vld [vmem:[#allocation9 + $0x30] sm:$0xff]
    %v100 = vld [vmem:[#allocation9 + $0x38] sm:$0xff]
    %v101 = vld [vmem:[#allocation9 + $0x40] sm:$0xff]
    %v102 = vld [vmem:[#allocation9 + $0x48] sm:$0xff]
    %v103 = vld [vmem:[#allocation9 + $0x50] sm:$0xff]
    %v104 = vld [vmem:[#allocation9 + $0x58] sm:$0xff]
    %v105 = vld [vmem:[#allocation9 + $0x60] sm:$0xff]
    %v106 = vld [vmem:[#allocation9 + $0x68] sm:$0xff]
    %v107 = vld [vmem:[#allocation9 + $0x70] sm:$0xff]
    %v108 = vld [vmem:[#allocation9 + $0x78] sm:$0xff]
    %v109 = vld [vmem:[#allocation9 + $0x80] sm:$0xff]
    %v110 = vld [vmem:[#allocation9 + $0x88] sm:$0xff]
    %v111 = vld [vmem:[#allocation9 + $0x90] sm:$0xff]
    %v112 = vld [vmem:[#allocation9 + $0x98] sm:$0xff]
    %v113 = vld [vmem:[#allocation9 + $0xa0] sm:$0xff]
    %v114 = vld [vmem:[#allocation9 + $0xa8] sm:$0xff]
    %v115 = vld [vmem:[#allocation9 + $0xb0] sm:$0xff]
    %v116 = vld [vmem:[#allocation9 + $0xb8] sm:$0xff]
    %v117 = vld [vmem:[#allocation9 + $0xc0] sm:$0xff]
    %v118 = vld [vmem:[#allocation9 + $0xc8] sm:$0xff]
    %v119 = vld [vmem:[#allocation9 + $0xd0] sm:$0xff]
    %v120 = vld [vmem:[#allocation9 + $0xd8] sm:$0xff]
    %v121 = vld [vmem:[#allocation9 + $0xe0] sm:$0xff]
    %v122 = vld [vmem:[#allocation9 + $0xe8] sm:$0xff]
    %v123 = vld [vmem:[#allocation9 + $0xf0] sm:$0xff]
    %v124 = vld [vmem:[#allocation9 + $0xf8] sm:$0xff]
    %v125 = vld [vmem:[#allocation11] sm:$0xff]
    %v126 = vld [vmem:[#allocation11 + $0x8] sm:$0xff]
    %v127 = vld [vmem:[#allocation11 + $0x10] sm:$0xff]
    %v128 = vld [vmem:[#allocation11 + $0x18] sm:$0xff]
    %v129 = vld [vmem:[#allocation11 + $0x20] sm:$0xff]
    %v130 = vld [vmem:[#allocation11 + $0x28] sm:$0xff]
    %v131 = vld [vmem:[#allocation11 + $0x30] sm:$0xff]
    %v132 = vld [vmem:[#allocation11 + $0x38] sm:$0xff]
    %v133 = vld [vmem:[#allocation11 + $0x40] sm:$0xff]
    %v134 = vld [vmem:[#allocation11 + $0x48] sm:$0xff]
    %v135 = vld [vmem:[#allocation11 + $0x50] sm:$0xff]
    %v136 = vld [vmem:[#allocation11 + $0x58] sm:$0xff]
    %v137 = vld [vmem:[#allocation11 + $0x60] sm:$0xff]
    %v138 = vld [vmem:[#allocation11 + $0x68] sm:$0xff]
    %v139 = vld [vmem:[#allocation11 + $0x70] sm:$0xff]
    %v140 = vld [vmem:[#allocation11 + $0x78] sm:$0xff]
    %v141 = vld [vmem:[#allocation11 + $0x80] sm:$0xff]
    %v142 = vld [vmem:[#allocation11 + $0x88] sm:$0xff]
    %v143 = vld [vmem:[#allocation11 + $0x90] sm:$0xff]
    %v144 = vld [vmem:[#allocation11 + $0x98] sm:$0xff]
    %v145 = vld [vmem:[#allocation11 + $0xa0] sm:$0xff]
    %v146 = vld [vmem:[#allocation11 + $0xa8] sm:$0xff]
    %v147 = vld [vmem:[#allocation11 + $0xb0] sm:$0xff]
    %v148 = vld [vmem:[#allocation11 + $0xb8] sm:$0xff]
    %v149 = vld [vmem:[#allocation11 + $0xc0] sm:$0xff]
    %v150 = vld [vmem:[#allocation11 + $0xc8] sm:$0xff]
    %v151 = vld [vmem:[#allocation11 + $0xd0] sm:$0xff]
    %v152 = vld [vmem:[#allocation11 + $0xd8] sm:$0xff]
    %v153 = vld [vmem:[#allocation11 + $0xe0] sm:$0xff]
    %v154 = vld [vmem:[#allocation11 + $0xe8] sm:$0xff]
    %v155 = vld [vmem:[#allocation11 + $0xf0] sm:$0xff]
    %v156 = vld [vmem:[#allocation11 + $0xf8] sm:$0xff]
    %v157 = vld [vmem:[#allocation12] ss:$8 sm:$0x3]
    %v158 = vld [vmem:[#allocation6] sm:$0xff]
    %v159 = vld [vmem:[#allocation6 + $0x8] sm:$0xff]
    %v160 = vld [vmem:[#allocation6 + $0x10] sm:$0xff]
    %v161 = vld [vmem:[#allocation6 + $0x18] sm:$0xff]
    %v162 = vld [vmem:[#allocation6 + $0x20] sm:$0xff]
    %v163 = vld [vmem:[#allocation6 + $0x28] sm:$0xff]
    %v164 = vld [vmem:[#allocation6 + $0x30] sm:$0xff]
    %v165 = vld [vmem:[#allocation6 + $0x38] sm:$0xff]
    %v167 = vlaneseq
    %v168 = vshrl.u32 %v167, 7
    %v169 = vsub.s32 0, %v168
    %v170 = vrot.slane %v157, %v169
    %v171 = vlaneseq
    %v172 = vshrl.u32 %v171, 7
    %v173 = vsub.s32 1, %v172
    %v174 = vrot.slane %v157, %v173
    %177 = vmatprep.subr.mxu0 %v94
    %178 = vmatpush1.msra.mxu0 %v93
    %179 = vmatprep.subr.mxu0 %v96
    %180 = vmatpush1.msra.mxu0 %v95
    %181 = vmatprep.subr.mxu0 %v98
    %182 = vmatpush1.msra.mxu0 %v97
    %183 = vmatprep.subr.mxu0 %v100
    %184 = vmatpush1.msra.mxu0 %v99
    %185 = vmatprep.subr.mxu0 %v102
    %186 = vmatpush1.msra.mxu0 %v101
    %187 = vmatprep.subr.mxu0 %v104
    %188 = vmatpush1.msra.mxu0 %v103
    %189 = vmatprep.subr.mxu0 %v106
    %190 = vmatpush1.msra.mxu0 %v105
    %191 = vmatprep.subr.mxu0 %v108
    %192 = vmatpush1.msra.mxu0 %v107
    %193 = vmatprep.subr.mxu0 %v110
    %194 = vmatpush1.msra.mxu0 %v109
    %195 = vmatprep.subr.mxu0 %v112
    %196 = vmatpush1.msra.mxu0 %v111
    %197 = vmatprep.subr.mxu0 %v114
    %198 = vmatpush1.msra.mxu0 %v113
    %199 = vmatprep.subr.mxu0 %v116
    %200 = vmatpush1.msra.mxu0 %v115
    %201 = vmatprep.subr.mxu0 %v118
    %202 = vmatpush1.msra.mxu0 %v117
    %203 = vmatprep.subr.mxu0 %v120
    %204 = vmatpush1.msra.mxu0 %v119
    %205 = vmatprep.subr.mxu0 %v122
    %206 = vmatpush1.msra.mxu0 %v121
    %207 = vmatprep.subr.mxu0 %v124
    %208 = vmatpush1.msra.mxu0 %v123
    %209 = vmatprep.subr.mxu0 0.0
    %210 = vmatpush1.msra.mxu0 0.0
    %211 = vmatprep.subr.mxu0 0.0
    %212 = vmatpush1.msra.mxu0 0.0
    %213 = vmatprep.subr.mxu0 0.0
    %214 = vmatpush1.msra.mxu0 0.0
    %215 = vmatprep.subr.mxu0 0.0
    %216 = vmatpush1.msra.mxu0 0.0
    %217 = vmatprep.subr.mxu0 0.0
    %218 = vmatpush1.msra.mxu0 0.0
    %219 = vmatprep.subr.mxu0 0.0
    %220 = vmatpush1.msra.mxu0 0.0
    %221 = vmatprep.subr.mxu0 0.0
    %222 = vmatpush1.msra.mxu0 0.0
    %223 = vmatprep.subr.mxu0 0.0
    %224 = vmatpush1.msra.mxu0 0.0
    %225 = vmatprep.subr.mxu0 0.0
    %226 = vmatpush1.msra.mxu0 0.0
    %227 = vmatprep.subr.mxu0 0.0
    %228 = vmatpush1.msra.mxu0 0.0
    %229 = vmatprep.subr.mxu0 0.0
    %230 = vmatpush1.msra.mxu0 0.0
    %231 = vmatprep.subr.mxu0 0.0
    %232 = vmatpush1.msra.mxu0 0.0
    %233 = vmatprep.subr.mxu0 0.0
    %234 = vmatpush1.msra.mxu0 0.0
    %235 = vmatprep.subr.mxu0 0.0
    %236 = vmatpush1.msra.mxu0 0.0
    %237 = vmatprep.subr.mxu0 0.0
    %238 = vmatpush1.msra.mxu0 0.0
    %239 = vmatprep.subr.mxu0 0.0
    %240 = vmatpush1.msra.mxu0 0.0
    %241 = vmatprep.mubr.f32.mxu0 0.0
    %242 = vmatmul.mubr.f32.gmra.mrb[0].mxu0 %v158
    %v243 = vpop.f32.mrb[0].mxu0
    %v244 = vadd.f32 %v170, %v243
    %v245 = vpop.f32.mrb[0].mxu0
    %v246 = vadd.f32 %v174, %v245
    %247 = vmatprep.mubr.f32.mxu0 0.0
    %248 = vmatmul.mubr.f32.gmra.mrb[0].mxu0 %v159
    %v249 = vpop.f32.mrb[0].mxu0
    %v250 = vadd.f32 %v170, %v249
    %v251 = vpop.f32.mrb[0].mxu0
    %v252 = vadd.f32 %v174, %v251
    %253 = vmatprep.mubr.f32.mxu0 0.0
    %254 = vmatmul.mubr.f32.gmra.mrb[0].mxu0 %v160
    %v255 = vpop.f32.mrb[0].mxu0
    %v256 = vadd.f32 %v170, %v255
    %v257 = vpop.f32.mrb[0].mxu0
    %v258 = vadd.f32 %v174, %v257
    %259 = vmatprep.mubr.f32.mxu0 0.0
    %260 = vmatmul.mubr.f32.gmra.mrb[0].mxu0 %v161
    %v261 = vpop.f32.mrb[0].mxu0
    %v262 = vadd.f32 %v170, %v261
    %v263 = vpop.f32.mrb[0].mxu0
    %v264 = vadd.f32 %v174, %v263
    %265 = vmatprep.mubr.f32.mxu0 0.0
    %266 = vmatmul.mubr.f32.gmra.mrb[0].mxu0 %v162
    %v267 = vpop.f32.mrb[0].mxu0
    %v268 = vadd.f32 %v170, %v267
    %v269 = vpop.f32.mrb[0].mxu0
    %v270 = vadd.f32 %v174, %v269
    %271 = vmatprep.mubr.f32.mxu0 0.0
    %272 = vmatmul.mubr.f32.gmra.mrb[0].mxu0 %v163
    %v273 = vpop.f32.mrb[0].mxu0
    %v274 = vadd.f32 %v170, %v273
    %v275 = vpop.f32.mrb[0].mxu0
    %v276 = vadd.f32 %v174, %v275
    %277 = vmatprep.mubr.f32.mxu0 0.0
    %278 = vmatmul.mubr.f32.gmra.mrb[0].mxu0 %v164
    %v279 = vpop.f32.mrb[0].mxu0
    %v280 = vadd.f32 %v170, %v279
    %v281 = vpop.f32.mrb[0].mxu0
    %v282 = vadd.f32 %v174, %v281
    %283 = vmatprep.mubr.f32.mxu0 0.0
    %284 = vmatmul.mubr.f32.gmra.mrb[0].mxu0 %v165
    %v285 = vpop.f32.mrb[0].mxu0
    %v286 = vadd.f32 %v170, %v285
    %v287 = vpop.f32.mrb[0].mxu0
    %v288 = vadd.f32 %v174, %v287
    %289 = vdwg.mxu0
    %290 = vst [vmem:[#allocation3] sm:$0xff] %v244
    %291 = vst [vmem:[#allocation3 + $0x8] sm:$0xff] %v246
    %292 = vst [vmem:[#allocation3 + $0x10] sm:$0xff] %v250
    %293 = vst [vmem:[#allocation3 + $0x18] sm:$0xff] %v252
    %294 = vst [vmem:[#allocation3 + $0x20] sm:$0xff] %v256
    %295 = vst [vmem:[#allocation3 + $0x28] sm:$0xff] %v258
    %296 = vst [vmem:[#allocation3 + $0x30] sm:$0xff] %v262
    %297 = vst [vmem:[#allocation3 + $0x38] sm:$0xff] %v264
    %298 = vst [vmem:[#allocation3 + $0x40] sm:$0xff] %v268
    %299 = vst [vmem:[#allocation3 + $0x48] sm:$0xff] %v270
    %300 = vst [vmem:[#allocation3 + $0x50] sm:$0xff] %v274
    %301 = vst [vmem:[#allocation3 + $0x58] sm:$0xff] %v276
    %302 = vst [vmem:[#allocation3 + $0x60] sm:$0xff] %v280
    %303 = vst [vmem:[#allocation3 + $0x68] sm:$0xff] %v282
    %304 = vst [vmem:[#allocation3 + $0x70] sm:$0xff] %v286
    %305 = vst [vmem:[#allocation3 + $0x78] sm:$0xff] %v288
    %306 = vst [vmem:[#allocation4] sm:$0xff] 0.0
    %307 = vst [vmem:[#allocation5] sm:$0xff] 0.0
    %v308 = vld [vmem:[#allocation4] sm:$0xff]
    %v309 = vld [vmem:[#allocation3] sm:$0xff]
    %v310 = vld [vmem:[#allocation3 + $0x8] sm:$0xff]
    %311 = vmatprep.subr.mxu0 %v126
    %312 = vmatpush1.msra.mxu0 %v125
    %313 = vmatprep.subr.mxu0 %v128
    %314 = vmatpush1.msra.mxu0 %v127
    %315 = vmatprep.subr.mxu0 %v130
    %316 = vmatpush1.msra.mxu0 %v129
    %317 = vmatprep.subr.mxu0 %v132
    %318 = vmatpush1.msra.mxu0 %v131
    %319 = vmatprep.subr.mxu0 %v134
    %320 = vmatpush1.msra.mxu0 %v133
    %321 = vmatprep.subr.mxu0 %v136
    %322 = vmatpush1.msra.mxu0 %v135
    %323 = vmatprep.subr.mxu0 %v138
    %324 = vmatpush1.msra.mxu0 %v137
    %325 = vmatprep.subr.mxu0 %v140
    %326 = vmatpush1.msra.mxu0 %v139
    %327 = vmatprep.subr.mxu0 %v142
    %328 = vmatpush1.msra.mxu0 %v141
    %329 = vmatprep.subr.mxu0 %v144
    %330 = vmatpush1.msra.mxu0 %v143
    %331 = vmatprep.subr.mxu0 %v146
    %332 = vmatpush1.msra.mxu0 %v145
    %333 = vmatprep.subr.mxu0 %v148
    %334 = vmatpush1.msra.mxu0 %v147
    %335 = vmatprep.subr.mxu0 %v150
    %336 = vmatpush1.msra.mxu0 %v149
    %337 = vmatprep.subr.mxu0 %v152
    %338 = vmatpush1.msra.mxu0 %v151
    %339 = vmatprep.subr.mxu0 %v154
    %340 = vmatpush1.msra.mxu0 %v153
    %341 = vmatprep.subr.mxu0 %v156
    %342 = vmatpush1.msra.mxu0 %v155
    %343 = vmatprep.subr.mxu0 0.0
    %344 = vmatpush1.msra.mxu0 0.0
    %345 = vmatprep.subr.mxu0 0.0
    %346 = vmatpush1.msra.mxu0 0.0
    %347 = vmatprep.subr.mxu0 0.0
    %348 = vmatpush1.msra.mxu0 0.0
    %349 = vmatprep.subr.mxu0 0.0
    %350 = vmatpush1.msra.mxu0 0.0
    %351 = vmatprep.subr.mxu0 0.0
    %352 = vmatpush1.msra.mxu0 0.0
    %353 = vmatprep.subr.mxu0 0.0
    %354 = vmatpush1.msra.mxu0 0.0
    %355 = vmatprep.subr.mxu0 0.0
    %356 = vmatpush1.msra.mxu0 0.0
    %357 = vmatprep.subr.mxu0 0.0
    %358 = vmatpush1.msra.mxu0 0.0
    %359 = vmatprep.subr.mxu0 0.0
    %360 = vmatpush1.msra.mxu0 0.0
    %361 = vmatprep.subr.mxu0 0.0
    %362 = vmatpush1.msra.mxu0 0.0
    %363 = vmatprep.subr.mxu0 0.0
    %364 = vmatpush1.msra.mxu0 0.0
    %365 = vmatprep.subr.mxu0 0.0
    %366 = vmatpush1.msra.mxu0 0.0
    %367 = vmatprep.subr.mxu0 0.0
    %368 = vmatpush1.msra.mxu0 0.0
    %369 = vmatprep.subr.mxu0 0.0
    %370 = vmatpush1.msra.mxu0 0.0
    %371 = vmatprep.subr.mxu0 0.0
    %372 = vmatpush1.msra.mxu0 0.0
    %373 = vmatprep.subr.mxu0 0.0
    %374 = vmatpush1.msra.mxu0 0.0
    %375 = vmatprep.mubr.f32.mxu0 0.0
    %376 = vmatmul.mubr.f32.gmra.mrb[0].mxu0 %v308
    %v377 = vpop.f32.mrb[0].mxu0
    %v378 = vadd.f32 %v309, %v377
    %v379 = vpop.f32.mrb[0].mxu0
    %v380 = vadd.f32 %v310, %v379
    %381 = vdwg.mxu0
    %v382 = vxor.u32 %v378, 2147483648
    %v383 = vmul.f32 %v382, 1.442695
    %v384 = vpow.pop %v383
    %v385 = vadd.f32 %v384, 1.0
    %v386 = vrcp.pop %v385
    %v387 = vmul.f32 1.0, %v386
    %v388 = vxor.u32 %v380, 2147483648
    %v389 = vmul.f32 %v388, 1.442695
    %v390 = vpow.pop %v389
    %v391 = vadd.f32 %v390, 1.0
    %v392 = vrcp.pop %v391
    %v393 = vmul.f32 1.0, %v392
    %v394 = vmul.f32 %v393, 2.0
    %v395 = vsub.f32 %v394, 1.0
    %v396 = vsel %vm92, %v395, %v393
    %397 = vrot.lane.b32.xlu0 %v387, 64
    %v398 = vpop.permute.xlu0 %397
    %399 = vrot.lane.b32.xlu0 %v396, 64
    %v400 = vpop.permute.xlu0 %399
    %v401 = vld [vmem:[#allocation5] sm:$0xff]
    %v402 = vmul.f32 %v398, %v401
    %v403 = vmul.f32 %v387, %v396
    %v404 = vadd.f32 %v402, %v403
    %v405 = vtanh.pop %v404
    %v406 = vmul.f32 %v400, %v405
    %407 = vst [vmem:[#allocation5] sm:$0xff] %v404
    %408 = vst [vmem:[#allocation4] sm:$0xff] %v406
    %409 = vst [vmem:[#allocation2] sm:$0xff] %v406
    %v410 = vld [vmem:[#allocation4] sm:$0xff]
    %s411 = scalar_lea.vmem [#allocation3], 16
    %v412 = vld [vmem:[%s411] sm:$0xff]
    %v413 = vld [vmem:[%s411 + $0x8] sm:$0xff]
    %414 = vmatprep.subr.mxu0 %v126
    %415 = vmatpush1.msra.mxu0 %v125
    %416 = vmatprep.subr.mxu0 %v128
    %417 = vmatpush1.msra.mxu0 %v127
    %418 = vmatprep.subr.mxu0 %v130
    %419 = vmatpush1.msra.mxu0 %v129
    %420 = vmatprep.subr.mxu0 %v132
    %421 = vmatpush1.msra.mxu0 %v131
    %422 = vmatprep.subr.mxu0 %v134
    %423 = vmatpush1.msra.mxu0 %v133
    %424 = vmatprep.subr.mxu0 %v136
    %425 = vmatpush1.msra.mxu0 %v135
    %426 = vmatprep.subr.mxu0 %v138
    %427 = vmatpush1.msra.mxu0 %v137
    %428 = vmatprep.subr.mxu0 %v140
    %429 = vmatpush1.msra.mxu0 %v139
    %430 = vmatprep.subr.mxu0 %v142
    %431 = vmatpush1.msra.mxu0 %v141
    %432 = vmatprep.subr.mxu0 %v144
    %433 = vmatpush1.msra.mxu0 %v143
    %434 = vmatprep.subr.mxu0 %v146
    %435 = vmatpush1.msra.mxu0 %v145
    %436 = vmatprep.subr.mxu0 %v148
    %437 = vmatpush1.msra.mxu0 %v147
    %438 = vmatprep.subr.mxu0 %v150
    %439 = vmatpush1.msra.mxu0 %v149
    %440 = vmatprep.subr.mxu0 %v152
    %441 = vmatpush1.msra.mxu0 %v151
    %442 = vmatprep.subr.mxu0 %v154
    %443 = vmatpush1.msra.mxu0 %v153
    %444 = vmatprep.subr.mxu0 %v156
    %445 = vmatpush1.msra.mxu0 %v155
    %446 = vmatprep.subr.mxu0 0.0
    %447 = vmatpush1.msra.mxu0 0.0
    %448 = vmatprep.subr.mxu0 0.0
    %449 = vmatpush1.msra.mxu0 0.0
    %450 = vmatprep.subr.mxu0 0.0
    %451 = vmatpush1.msra.mxu0 0.0
    %452 = vmatprep.subr.mxu0 0.0
    %453 = vmatpush1.msra.mxu0 0.0
    %454 = vmatprep.subr.mxu0 0.0
    %455 = vmatpush1.msra.mxu0 0.0
    %456 = vmatprep.subr.mxu0 0.0
    %457 = vmatpush1.msra.mxu0 0.0
    %458 = vmatprep.subr.mxu0 0.0
    %459 = vmatpush1.msra.mxu0 0.0
    %460 = vmatprep.subr.mxu0 0.0
    %461 = vmatpush1.msra.mxu0 0.0
    %462 = vmatprep.subr.mxu0 0.0
    %463 = vmatpush1.msra.mxu0 0.0
    %464 = vmatprep.subr.mxu0 0.0
    %465 = vmatpush1.msra.mxu0 0.0
    %466 = vmatprep.subr.mxu0 0.0
    %467 = vmatpush1.msra.mxu0 0.0
    %468 = vmatprep.subr.mxu0 0.0
    %469 = vmatpush1.msra.mxu0 0.0
    %470 = vmatprep.subr.mxu0 0.0
    %471 = vmatpush1.msra.mxu0 0.0
    %472 = vmatprep.subr.mxu0 0.0
    %473 = vmatpush1.msra.mxu0 0.0
    %474 = vmatprep.subr.mxu0 0.0
    %475 = vmatpush1.msra.mxu0 0.0
    %476 = vmatprep.subr.mxu0 0.0
    %477 = vmatpush1.msra.mxu0 0.0
    %478 = vmatprep.mubr.f32.mxu0 0.0
    %479 = vmatmul.mubr.f32.gmra.mrb[0].mxu0 %v410
    %v480 = vpop.f32.mrb[0].mxu0
    %v481 = vadd.f32 %v412, %v480
    %v482 = vpop.f32.mrb[0].mxu0
    %v483 = vadd.f32 %v413, %v482
    %484 = vdwg.mxu0
    %v485 = vxor.u32 %v481, 2147483648
    %v486 = vmul.f32 %v485, 1.442695
    %v487 = vpow.pop %v486
    %v488 = vadd.f32 %v487, 1.0
    %v489 = vrcp.pop %v488
    %v490 = vmul.f32 1.0, %v489
    %v491 = vxor.u32 %v483, 2147483648
    %v492 = vmul.f32 %v491, 1.442695
    %v493 = vpow.pop %v492
    %v494 = vadd.f32 %v493, 1.0
    %v495 = vrcp.pop %v494
    %v496 = vmul.f32 1.0, %v495
    %v497 = vmul.f32 %v496, 2.0
    %v498 = vsub.f32 %v497, 1.0
    %v499 = vsel %vm92, %v498, %v496
    %500 = vrot.lane.b32.xlu0 %v490, 64
    %v501 = vpop.permute.xlu0 %500
    %502 = vrot.lane.b32.xlu0 %v499, 64
    %v503 = vpop.permute.xlu0 %502
    %v504 = vld [vmem:[#allocation5] sm:$0xff]
    %v505 = vmul.f32 %v501, %v504
    %v506 = vmul.f32 %v490, %v499
    %v507 = vadd.f32 %v505, %v506
    %v508 = vtanh.pop %v507
    %v509 = vmul.f32 %v503, %v508
    %510 = vst [vmem:[#allocation5] sm:$0xff] %v507
    %511 = vst [vmem:[#allocation4] sm:$0xff] %v509
    %s512 = scalar_lea.vmem [#allocation2], 8
    %513 = vst [vmem:[%s512] sm:$0xff] %v509
    %v514 = vld [vmem:[#allocation4] sm:$0xff]
    %s515 = scalar_lea.vmem [#allocation3], 32
    %v516 = vld [vmem:[%s515] sm:$0xff]
    %v517 = vld [vmem:[%s515 + $0x8] sm:$0xff]
    %518 = vmatprep.subr.mxu0 %v126
    %519 = vmatpush1.msra.mxu0 %v125
    %520 = vmatprep.subr.mxu0 %v128
    %521 = vmatpush1.msra.mxu0 %v127
    %522 = vmatprep.subr.mxu0 %v130
    %523 = vmatpush1.msra.mxu0 %v129
    %524 = vmatprep.subr.mxu0 %v132
    %525 = vmatpush1.msra.mxu0 %v131
    %526 = vmatprep.subr.mxu0 %v134
    %527 = vmatpush1.msra.mxu0 %v133
    %528 = vmatprep.subr.mxu0 %v136
    %529 = vmatpush1.msra.mxu0 %v135
    %530 = vmatprep.subr.mxu0 %v138
    %531 = vmatpush1.msra.mxu0 %v137
    %532 = vmatprep.subr.mxu0 %v140
    %533 = vmatpush1.msra.mxu0 %v139
    %534 = vmatprep.subr.mxu0 %v142
    %535 = vmatpush1.msra.mxu0 %v141
    %536 = vmatprep.subr.mxu0 %v144
    %537 = vmatpush1.msra.mxu0 %v143
    %538 = vmatprep.subr.mxu0 %v146
    %539 = vmatpush1.msra.mxu0 %v145
    %540 = vmatprep.subr.mxu0 %v148
    %541 = vmatpush1.msra.mxu0 %v147
    %542 = vmatprep.subr.mxu0 %v150
    %543 = vmatpush1.msra.mxu0 %v149
    %544 = vmatprep.subr.mxu0 %v152
    %545 = vmatpush1.msra.mxu0 %v151
    %546 = vmatprep.subr.mxu0 %v154
    %547 = vmatpush1.msra.mxu0 %v153
    %548 = vmatprep.subr.mxu0 %v156
    %549 = vmatpush1.msra.mxu0 %v155
    %550 = vmatprep.subr.mxu0 0.0
    %551 = vmatpush1.msra.mxu0 0.0
    %552 = vmatprep.subr.mxu0 0.0
    %553 = vmatpush1.msra.mxu0 0.0
    %554 = vmatprep.subr.mxu0 0.0
    %555 = vmatpush1.msra.mxu0 0.0
    %556 = vmatprep.subr.mxu0 0.0
    %557 = vmatpush1.msra.mxu0 0.0
    %558 = vmatprep.subr.mxu0 0.0
    %559 = vmatpush1.msra.mxu0 0.0
    %560 = vmatprep.subr.mxu0 0.0
    %561 = vmatpush1.msra.mxu0 0.0
    %562 = vmatprep.subr.mxu0 0.0
    %563 = vmatpush1.msra.mxu0 0.0
    %564 = vmatprep.subr.mxu0 0.0
    %565 = vmatpush1.msra.mxu0 0.0
    %566 = vmatprep.subr.mxu0 0.0
    %567 = vmatpush1.msra.mxu0 0.0
    %568 = vmatprep.subr.mxu0 0.0
    %569 = vmatpush1.msra.mxu0 0.0
    %570 = vmatprep.subr.mxu0 0.0
    %571 = vmatpush1.msra.mxu0 0.0
    %572 = vmatprep.subr.mxu0 0.0
    %573 = vmatpush1.msra.mxu0 0.0
    %574 = vmatprep.subr.mxu0 0.0
    %575 = vmatpush1.msra.mxu0 0.0
    %576 = vmatprep.subr.mxu0 0.0
    %577 = vmatpush1.msra.mxu0 0.0
    %578 = vmatprep.subr.mxu0 0.0
    %579 = vmatpush1.msra.mxu0 0.0
    %580 = vmatprep.subr.mxu0 0.0
    %581 = vmatpush1.msra.mxu0 0.0
    %582 = vmatprep.mubr.f32.mxu0 0.0
    %583 = vmatmul.mubr.f32.gmra.mrb[0].mxu0 %v514
    %v584 = vpop.f32.mrb[0].mxu0
    %v585 = vadd.f32 %v516, %v584
    %v586 = vpop.f32.mrb[0].mxu0
    %v587 = vadd.f32 %v517, %v586
    %588 = vdwg.mxu0
    %v589 = vxor.u32 %v585, 2147483648
    %v590 = vmul.f32 %v589, 1.442695
    %v591 = vpow.pop %v590
    %v592 = vadd.f32 %v591, 1.0
    %v593 = vrcp.pop %v592
    %v594 = vmul.f32 1.0, %v593
    %v595 = vxor.u32 %v587, 2147483648
    %v596 = vmul.f32 %v595, 1.442695
    %v597 = vpow.pop %v596
    %v598 = vadd.f32 %v597, 1.0
    %v599 = vrcp.pop %v598
    %v600 = vmul.f32 1.0, %v599
    %v601 = vmul.f32 %v600, 2.0
    %v602 = vsub.f32 %v601, 1.0
    %v603 = vsel %vm92, %v602, %v600
    %604 = vrot.lane.b32.xlu0 %v594, 64
    %v605 = vpop.permute.xlu0 %604
    %606 = vrot.lane.b32.xlu0 %v603, 64
    %v607 = vpop.permute.xlu0 %606
    %v608 = vld [vmem:[#allocation5] sm:$0xff]
    %v609 = vmul.f32 %v605, %v608
    %v610 = vmul.f32 %v594, %v603
    %v611 = vadd.f32 %v609, %v610
    %v612 = vtanh.pop %v611
    %v613 = vmul.f32 %v607, %v612
    %614 = vst [vmem:[#allocation5] sm:$0xff] %v611
    %615 = vst [vmem:[#allocation4] sm:$0xff] %v613
    %s616 = scalar_lea.vmem [#allocation2], 16
    %617 = vst [vmem:[%s616] sm:$0xff] %v613
    %v618 = vld [vmem:[#allocation4] sm:$0xff]
    %s619 = scalar_lea.vmem [#allocation3], 48
    %v620 = vld [vmem:[%s619] sm:$0xff]
    %v621 = vld [vmem:[%s619 + $0x8] sm:$0xff]
    %622 = vmatprep.subr.mxu0 %v126
    %623 = vmatpush1.msra.mxu0 %v125
    %624 = vmatprep.subr.mxu0 %v128
    %625 = vmatpush1.msra.mxu0 %v127
    %626 = vmatprep.subr.mxu0 %v130
    %627 = vmatpush1.msra.mxu0 %v129
    %628 = vmatprep.subr.mxu0 %v132
    %629 = vmatpush1.msra.mxu0 %v131
    %630 = vmatprep.subr.mxu0 %v134
    %631 = vmatpush1.msra.mxu0 %v133
    %632 = vmatprep.subr.mxu0 %v136
    %633 = vmatpush1.msra.mxu0 %v135
    %634 = vmatprep.subr.mxu0 %v138
    %635 = vmatpush1.msra.mxu0 %v137
    %636 = vmatprep.subr.mxu0 %v140
    %637 = vmatpush1.msra.mxu0 %v139
    %638 = vmatprep.subr.mxu0 %v142
    %639 = vmatpush1.msra.mxu0 %v141
    %640 = vmatprep.subr.mxu0 %v144
    %641 = vmatpush1.msra.mxu0 %v143
    %642 = vmatprep.subr.mxu0 %v146
    %643 = vmatpush1.msra.mxu0 %v145
    %644 = vmatprep.subr.mxu0 %v148
    %645 = vmatpush1.msra.mxu0 %v147
    %646 = vmatprep.subr.mxu0 %v150
    %647 = vmatpush1.msra.mxu0 %v149
    %648 = vmatprep.subr.mxu0 %v152
    %649 = vmatpush1.msra.mxu0 %v151
    %650 = vmatprep.subr.mxu0 %v154
    %651 = vmatpush1.msra.mxu0 %v153
    %652 = vmatprep.subr.mxu0 %v156
    %653 = vmatpush1.msra.mxu0 %v155
    %654 = vmatprep.subr.mxu0 0.0
    %655 = vmatpush1.msra.mxu0 0.0
    %656 = vmatprep.subr.mxu0 0.0
    %657 = vmatpush1.msra.mxu0 0.0
    %658 = vmatprep.subr.mxu0 0.0
    %659 = vmatpush1.msra.mxu0 0.0
    %660 = vmatprep.subr.mxu0 0.0
    %661 = vmatpush1.msra.mxu0 0.0
    %662 = vmatprep.subr.mxu0 0.0
    %663 = vmatpush1.msra.mxu0 0.0
    %664 = vmatprep.subr.mxu0 0.0
    %665 = vmatpush1.msra.mxu0 0.0
    %666 = vmatprep.subr.mxu0 0.0
    %667 = vmatpush1.msra.mxu0 0.0
    %668 = vmatprep.subr.mxu0 0.0
    %669 = vmatpush1.msra.mxu0 0.0
    %670 = vmatprep.subr.mxu0 0.0
    %671 = vmatpush1.msra.mxu0 0.0
    %672 = vmatprep.subr.mxu0 0.0
    %673 = vmatpush1.msra.mxu0 0.0
    %674 = vmatprep.subr.mxu0 0.0
    %675 = vmatpush1.msra.mxu0 0.0
    %676 = vmatprep.subr.mxu0 0.0
    %677 = vmatpush1.msra.mxu0 0.0
    %678 = vmatprep.subr.mxu0 0.0
    %679 = vmatpush1.msra.mxu0 0.0
    %680 = vmatprep.subr.mxu0 0.0
    %681 = vmatpush1.msra.mxu0 0.0
    %682 = vmatprep.subr.mxu0 0.0
    %683 = vmatpush1.msra.mxu0 0.0
    %684 = vmatprep.subr.mxu0 0.0
    %685 = vmatpush1.msra.mxu0 0.0
    %686 = vmatprep.mubr.f32.mxu0 0.0
    %687 = vmatmul.mubr.f32.gmra.mrb[0].mxu0 %v618
    %v688 = vpop.f32.mrb[0].mxu0
    %v689 = vadd.f32 %v620, %v688
    %v690 = vpop.f32.mrb[0].mxu0
    %v691 = vadd.f32 %v621, %v690
    %692 = vdwg.mxu0
    %v693 = vxor.u32 %v689, 2147483648
    %v694 = vmul.f32 %v693, 1.442695
    %v695 = vpow.pop %v694
    %v696 = vadd.f32 %v695, 1.0
    %v697 = vrcp.pop %v696
    %v698 = vmul.f32 1.0, %v697
    %v699 = vxor.u32 %v691, 2147483648
    %v700 = vmul.f32 %v699, 1.442695
    %v701 = vpow.pop %v700
    %v702 = vadd.f32 %v701, 1.0
    %v703 = vrcp.pop %v702
    %v704 = vmul.f32 1.0, %v703
    %v705 = vmul.f32 %v704, 2.0
    %v706 = vsub.f32 %v705, 1.0
    %v707 = vsel %vm92, %v706, %v704
    %708 = vrot.lane.b32.xlu0 %v698, 64
    %v709 = vpop.permute.xlu0 %708
    %710 = vrot.lane.b32.xlu0 %v707, 64
    %v711 = vpop.permute.xlu0 %710
    %v712 = vld [vmem:[#allocation5] sm:$0xff]
    %v713 = vmul.f32 %v709, %v712
    %v714 = vmul.f32 %v698, %v707
    %v715 = vadd.f32 %v713, %v714
    %v716 = vtanh.pop %v715
    %v717 = vmul.f32 %v711, %v716
    %718 = vst [vmem:[#allocation5] sm:$0xff] %v715
    %719 = vst [vmem:[#allocation4] sm:$0xff] %v717
    %s720 = scalar_lea.vmem [#allocation2], 24
    %721 = vst [vmem:[%s720] sm:$0xff] %v717
    %v722 = vld [vmem:[#allocation4] sm:$0xff]
    %s723 = scalar_lea.vmem [#allocation3], 64
    %v724 = vld [vmem:[%s723] sm:$0xff]
    %v725 = vld [vmem:[%s723 + $0x8] sm:$0xff]
    %726 = vmatprep.subr.mxu0 %v126
    %727 = vmatpush1.msra.mxu0 %v125
    %728 = vmatprep.subr.mxu0 %v128
    %729 = vmatpush1.msra.mxu0 %v127
    %730 = vmatprep.subr.mxu0 %v130
    %731 = vmatpush1.msra.mxu0 %v129
    %732 = vmatprep.subr.mxu0 %v132
    %733 = vmatpush1.msra.mxu0 %v131
    %734 = vmatprep.subr.mxu0 %v134
    %735 = vmatpush1.msra.mxu0 %v133
    %736 = vmatprep.subr.mxu0 %v136
    %737 = vmatpush1.msra.mxu0 %v135
    %738 = vmatprep.subr.mxu0 %v138
    %739 = vmatpush1.msra.mxu0 %v137
    %740 = vmatprep.subr.mxu0 %v140
    %741 = vmatpush1.msra.mxu0 %v139
    %742 = vmatprep.subr.mxu0 %v142
    %743 = vmatpush1.msra.mxu0 %v141
    %744 = vmatprep.subr.mxu0 %v144
    %745 = vmatpush1.msra.mxu0 %v143
    %746 = vmatprep.subr.mxu0 %v146
    %747 = vmatpush1.msra.mxu0 %v145
    %748 = vmatprep.subr.mxu0 %v148
    %749 = vmatpush1.msra.mxu0 %v147
    %750 = vmatprep.subr.mxu0 %v150
    %751 = vmatpush1.msra.mxu0 %v149
    %752 = vmatprep.subr.mxu0 %v152
    %753 = vmatpush1.msra.mxu0 %v151
    %754 = vmatprep.subr.mxu0 %v154
    %755 = vmatpush1.msra.mxu0 %v153
    %756 = vmatprep.subr.mxu0 %v156
    %757 = vmatpush1.msra.mxu0 %v155
    %758 = vmatprep.subr.mxu0 0.0
    %759 = vmatpush1.msra.mxu0 0.0
    %760 = vmatprep.subr.mxu0 0.0
    %761 = vmatpush1.msra.mxu0 0.0
    %762 = vmatprep.subr.mxu0 0.0
    %763 = vmatpush1.msra.mxu0 0.0
    %764 = vmatprep.subr.mxu0 0.0
    %765 = vmatpush1.msra.mxu0 0.0
    %766 = vmatprep.subr.mxu0 0.0
    %767 = vmatpush1.msra.mxu0 0.0
    %768 = vmatprep.subr.mxu0 0.0
    %769 = vmatpush1.msra.mxu0 0.0
    %770 = vmatprep.subr.mxu0 0.0
    %771 = vmatpush1.msra.mxu0 0.0
    %772 = vmatprep.subr.mxu0 0.0
    %773 = vmatpush1.msra.mxu0 0.0
    %774 = vmatprep.subr.mxu0 0.0
    %775 = vmatpush1.msra.mxu0 0.0
    %776 = vmatprep.subr.mxu0 0.0
    %777 = vmatpush1.msra.mxu0 0.0
    %778 = vmatprep.subr.mxu0 0.0
    %779 = vmatpush1.msra.mxu0 0.0
    %780 = vmatprep.subr.mxu0 0.0
    %781 = vmatpush1.msra.mxu0 0.0
    %782 = vmatprep.subr.mxu0 0.0
    %783 = vmatpush1.msra.mxu0 0.0
    %784 = vmatprep.subr.mxu0 0.0
    %785 = vmatpush1.msra.mxu0 0.0
    %786 = vmatprep.subr.mxu0 0.0
    %787 = vmatpush1.msra.mxu0 0.0
    %788 = vmatprep.subr.mxu0 0.0
    %789 = vmatpush1.msra.mxu0 0.0
    %790 = vmatprep.mubr.f32.mxu0 0.0
    %791 = vmatmul.mubr.f32.gmra.mrb[0].mxu0 %v722
    %v792 = vpop.f32.mrb[0].mxu0
    %v793 = vadd.f32 %v724, %v792
    %v794 = vpop.f32.mrb[0].mxu0
    %v795 = vadd.f32 %v725, %v794
    %796 = vdwg.mxu0
    %v797 = vxor.u32 %v793, 2147483648
    %v798 = vmul.f32 %v797, 1.442695
    %v799 = vpow.pop %v798
    %v800 = vadd.f32 %v799, 1.0
    %v801 = vrcp.pop %v800
    %v802 = vmul.f32 1.0, %v801
    %v803 = vxor.u32 %v795, 2147483648
    %v804 = vmul.f32 %v803, 1.442695
    %v805 = vpow.pop %v804
    %v806 = vadd.f32 %v805, 1.0
    %v807 = vrcp.pop %v806
    %v808 = vmul.f32 1.0, %v807
    %v809 = vmul.f32 %v808, 2.0
    %v810 = vsub.f32 %v809, 1.0
    %v811 = vsel %vm92, %v810, %v808
    %812 = vrot.lane.b32.xlu0 %v802, 64
    %v813 = vpop.permute.xlu0 %812
    %814 = vrot.lane.b32.xlu0 %v811, 64
    %v815 = vpop.permute.xlu0 %814
    %v816 = vld [vmem:[#allocation5] sm:$0xff]
    %v817 = vmul.f32 %v813, %v816
    %v818 = vmul.f32 %v802, %v811
    %v819 = vadd.f32 %v817, %v818
    %v820 = vtanh.pop %v819
    %v821 = vmul.f32 %v815, %v820
    %822 = vst [vmem:[#allocation5] sm:$0xff] %v819
    %823 = vst [vmem:[#allocation4] sm:$0xff] %v821
    %s824 = scalar_lea.vmem [#allocation2], 32
    %825 = vst [vmem:[%s824] sm:$0xff] %v821
    %v826 = vld [vmem:[#allocation4] sm:$0xff]
    %s827 = scalar_lea.vmem [#allocation3], 80
    %v828 = vld [vmem:[%s827] sm:$0xff]
    %v829 = vld [vmem:[%s827 + $0x8] sm:$0xff]
    %830 = vmatprep.subr.mxu0 %v126
    %831 = vmatpush1.msra.mxu0 %v125
    %832 = vmatprep.subr.mxu0 %v128
    %833 = vmatpush1.msra.mxu0 %v127
    %834 = vmatprep.subr.mxu0 %v130
    %835 = vmatpush1.msra.mxu0 %v129
    %836 = vmatprep.subr.mxu0 %v132
    %837 = vmatpush1.msra.mxu0 %v131
    %838 = vmatprep.subr.mxu0 %v134
    %839 = vmatpush1.msra.mxu0 %v133
    %840 = vmatprep.subr.mxu0 %v136
    %841 = vmatpush1.msra.mxu0 %v135
    %842 = vmatprep.subr.mxu0 %v138
    %843 = vmatpush1.msra.mxu0 %v137
    %844 = vmatprep.subr.mxu0 %v140
    %845 = vmatpush1.msra.mxu0 %v139
    %846 = vmatprep.subr.mxu0 %v142
    %847 = vmatpush1.msra.mxu0 %v141
    %848 = vmatprep.subr.mxu0 %v144
    %849 = vmatpush1.msra.mxu0 %v143
    %850 = vmatprep.subr.mxu0 %v146
    %851 = vmatpush1.msra.mxu0 %v145
    %852 = vmatprep.subr.mxu0 %v148
    %853 = vmatpush1.msra.mxu0 %v147
    %854 = vmatprep.subr.mxu0 %v150
    %855 = vmatpush1.msra.mxu0 %v149
    %856 = vmatprep.subr.mxu0 %v152
    %857 = vmatpush1.msra.mxu0 %v151
    %858 = vmatprep.subr.mxu0 %v154
    %859 = vmatpush1.msra.mxu0 %v153
    %860 = vmatprep.subr.mxu0 %v156
    %861 = vmatpush1.msra.mxu0 %v155
    %862 = vmatprep.subr.mxu0 0.0
    %863 = vmatpush1.msra.mxu0 0.0
    %864 = vmatprep.subr.mxu0 0.0
    %865 = vmatpush1.msra.mxu0 0.0
    %866 = vmatprep.subr.mxu0 0.0
    %867 = vmatpush1.msra.mxu0 0.0
    %868 = vmatprep.subr.mxu0 0.0
    %869 = vmatpush1.msra.mxu0 0.0
    %870 = vmatprep.subr.mxu0 0.0
    %871 = vmatpush1.msra.mxu0 0.0
    %872 = vmatprep.subr.mxu0 0.0
    %873 = vmatpush1.msra.mxu0 0.0
    %874 = vmatprep.subr.mxu0 0.0
    %875 = vmatpush1.msra.mxu0 0.0
    %876 = vmatprep.subr.mxu0 0.0
    %877 = vmatpush1.msra.mxu0 0.0
    %878 = vmatprep.subr.mxu0 0.0
    %879 = vmatpush1.msra.mxu0 0.0
    %880 = vmatprep.subr.mxu0 0.0
    %881 = vmatpush1.msra.mxu0 0.0
    %882 = vmatprep.subr.mxu0 0.0
    %883 = vmatpush1.msra.mxu0 0.0
    %884 = vmatprep.subr.mxu0 0.0
    %885 = vmatpush1.msra.mxu0 0.0
    %886 = vmatprep.subr.mxu0 0.0
    %887 = vmatpush1.msra.mxu0 0.0
    %888 = vmatprep.subr.mxu0 0.0
    %889 = vmatpush1.msra.mxu0 0.0
    %890 = vmatprep.subr.mxu0 0.0
    %891 = vmatpush1.msra.mxu0 0.0
    %892 = vmatprep.subr.mxu0 0.0
    %893 = vmatpush1.msra.mxu0 0.0
    %894 = vmatprep.mubr.f32.mxu0 0.0
    %895 = vmatmul.mubr.f32.gmra.mrb[0].mxu0 %v826
    %v896 = vpop.f32.mrb[0].mxu0
    %v897 = vadd.f32 %v828, %v896
    %v898 = vpop.f32.mrb[0].mxu0
    %v899 = vadd.f32 %v829, %v898
    %900 = vdwg.mxu0
    %v901 = vxor.u32 %v897, 2147483648
    %v902 = vmul.f32 %v901, 1.442695
    %v903 = vpow.pop %v902
    %v904 = vadd.f32 %v903, 1.0
    %v905 = vrcp.pop %v904
    %v906 = vmul.f32 1.0, %v905
    %v907 = vxor.u32 %v899, 2147483648
    %v908 = vmul.f32 %v907, 1.442695
    %v909 = vpow.pop %v908
    %v910 = vadd.f32 %v909, 1.0
    %v911 = vrcp.pop %v910
    %v912 = vmul.f32 1.0, %v911
    %v913 = vmul.f32 %v912, 2.0
    %v914 = vsub.f32 %v913, 1.0
    %v915 = vsel %vm92, %v914, %v912
    %916 = vrot.lane.b32.xlu0 %v906, 64
    %v917 = vpop.permute.xlu0 %916
    %918 = vrot.lane.b32.xlu0 %v915, 64
    %v919 = vpop.permute.xlu0 %918
    %v920 = vld [vmem:[#allocation5] sm:$0xff]
    %v921 = vmul.f32 %v917, %v920
    %v922 = vmul.f32 %v906, %v915
    %v923 = vadd.f32 %v921, %v922
    %v924 = vtanh.pop %v923
    %v925 = vmul.f32 %v919, %v924
    %926 = vst [vmem:[#allocation5] sm:$0xff] %v923
    %927 = vst [vmem:[#allocation4] sm:$0xff] %v925
    %s928 = scalar_lea.vmem [#allocation2], 40
    %929 = vst [vmem:[%s928] sm:$0xff] %v925
    %v930 = vld [vmem:[#allocation4] sm:$0xff]
    %s931 = scalar_lea.vmem [#allocation3], 96
    %v932 = vld [vmem:[%s931] sm:$0xff]
    %v933 = vld [vmem:[%s931 + $0x8] sm:$0xff]
    %934 = vmatprep.subr.mxu0 %v126
    %935 = vmatpush1.msra.mxu0 %v125
    %936 = vmatprep.subr.mxu0 %v128
    %937 = vmatpush1.msra.mxu0 %v127
    %938 = vmatprep.subr.mxu0 %v130
    %939 = vmatpush1.msra.mxu0 %v129
    %940 = vmatprep.subr.mxu0 %v132
    %941 = vmatpush1.msra.mxu0 %v131
    %942 = vmatprep.subr.mxu0 %v134
    %943 = vmatpush1.msra.mxu0 %v133
    %944 = vmatprep.subr.mxu0 %v136
    %945 = vmatpush1.msra.mxu0 %v135
    %946 = vmatprep.subr.mxu0 %v138
    %947 = vmatpush1.msra.mxu0 %v137
    %948 = vmatprep.subr.mxu0 %v140
    %949 = vmatpush1.msra.mxu0 %v139
    %950 = vmatprep.subr.mxu0 %v142
    %951 = vmatpush1.msra.mxu0 %v141
    %952 = vmatprep.subr.mxu0 %v144
    %953 = vmatpush1.msra.mxu0 %v143
    %954 = vmatprep.subr.mxu0 %v146
    %955 = vmatpush1.msra.mxu0 %v145
    %956 = vmatprep.subr.mxu0 %v148
    %957 = vmatpush1.msra.mxu0 %v147
    %958 = vmatprep.subr.mxu0 %v150
    %959 = vmatpush1.msra.mxu0 %v149
    %960 = vmatprep.subr.mxu0 %v152
    %961 = vmatpush1.msra.mxu0 %v151
    %962 = vmatprep.subr.mxu0 %v154
    %963 = vmatpush1.msra.mxu0 %v153
    %964 = vmatprep.subr.mxu0 %v156
    %965 = vmatpush1.msra.mxu0 %v155
    %966 = vmatprep.subr.mxu0 0.0
    %967 = vmatpush1.msra.mxu0 0.0
    %968 = vmatprep.subr.mxu0 0.0
    %969 = vmatpush1.msra.mxu0 0.0
    %970 = vmatprep.subr.mxu0 0.0
    %971 = vmatpush1.msra.mxu0 0.0
    %972 = vmatprep.subr.mxu0 0.0
    %973 = vmatpush1.msra.mxu0 0.0
    %974 = vmatprep.subr.mxu0 0.0
    %975 = vmatpush1.msra.mxu0 0.0
    %976 = vmatprep.subr.mxu0 0.0
    %977 = vmatpush1.msra.mxu0 0.0
    %978 = vmatprep.subr.mxu0 0.0
    %979 = vmatpush1.msra.mxu0 0.0
    %980 = vmatprep.subr.mxu0 0.0
    %981 = vmatpush1.msra.mxu0 0.0
    %982 = vmatprep.subr.mxu0 0.0
    %983 = vmatpush1.msra.mxu0 0.0
    %984 = vmatprep.subr.mxu0 0.0
    %985 = vmatpush1.msra.mxu0 0.0
    %986 = vmatprep.subr.mxu0 0.0
    %987 = vmatpush1.msra.mxu0 0.0
    %988 = vmatprep.subr.mxu0 0.0
    %989 = vmatpush1.msra.mxu0 0.0
    %990 = vmatprep.subr.mxu0 0.0
    %991 = vmatpush1.msra.mxu0 0.0
    %992 = vmatprep.subr.mxu0 0.0
    %993 = vmatpush1.msra.mxu0 0.0
    %994 = vmatprep.subr.mxu0 0.0
    %995 = vmatpush1.msra.mxu0 0.0
    %996 = vmatprep.subr.mxu0 0.0
    %997 = vmatpush1.msra.mxu0 0.0
    %998 = vmatprep.mubr.f32.mxu0 0.0
    %999 = vmatmul.mubr.f32.gmra.mrb[0].mxu0 %v930
    %v1000 = vpop.f32.mrb[0].mxu0
    %v1001 = vadd.f32 %v932, %v1000
    %v1002 = vpop.f32.mrb[0].mxu0
    %v1003 = vadd.f32 %v933, %v1002
    %1004 = vdwg.mxu0
    %v1005 = vxor.u32 %v1001, 2147483648
    %v1006 = vmul.f32 %v1005, 1.442695
    %v1007 = vpow.pop %v1006
    %v1008 = vadd.f32 %v1007, 1.0
    %v1009 = vrcp.pop %v1008
    %v1010 = vmul.f32 1.0, %v1009
    %v1011 = vxor.u32 %v1003, 2147483648
    %v1012 = vmul.f32 %v1011, 1.442695
    %v1013 = vpow.pop %v1012
    %v1014 = vadd.f32 %v1013, 1.0
    %v1015 = vrcp.pop %v1014
    %v1016 = vmul.f32 1.0, %v1015
    %v1017 = vmul.f32 %v1016, 2.0
    %v1018 = vsub.f32 %v1017, 1.0
    %v1019 = vsel %vm92, %v1018, %v1016
    %1020 = vrot.lane.b32.xlu0 %v1010, 64
    %v1021 = vpop.permute.xlu0 %1020
    %1022 = vrot.lane.b32.xlu0 %v1019, 64
    %v1023 = vpop.permute.xlu0 %1022
    %v1024 = vld [vmem:[#allocation5] sm:$0xff]
    %v1025 = vmul.f32 %v1021, %v1024
    %v1026 = vmul.f32 %v1010, %v1019
    %v1027 = vadd.f32 %v1025, %v1026
    %v1028 = vtanh.pop %v1027
    %v1029 = vmul.f32 %v1023, %v1028
    %1030 = vst [vmem:[#allocation5] sm:$0xff] %v1027
    %1031 = vst [vmem:[#allocation4] sm:$0xff] %v1029
    %s1032 = scalar_lea.vmem [#allocation2], 48
    %1033 = vst [vmem:[%s1032] sm:$0xff] %v1029
    %v1034 = vld [vmem:[#allocation4] sm:$0xff]
    %s1035 = scalar_lea.vmem [#allocation3], 112
    %v1036 = vld [vmem:[%s1035] sm:$0xff]
    %v1037 = vld [vmem:[%s1035 + $0x8] sm:$0xff]
    %1038 = vmatprep.subr.mxu0 %v126
    %1039 = vmatpush1.msra.mxu0 %v125
    %1040 = vmatprep.subr.mxu0 %v128
    %1041 = vmatpush1.msra.mxu0 %v127
    %1042 = vmatprep.subr.mxu0 %v130
    %1043 = vmatpush1.msra.mxu0 %v129
    %1044 = vmatprep.subr.mxu0 %v132
    %1045 = vmatpush1.msra.mxu0 %v131
    %1046 = vmatprep.subr.mxu0 %v134
    %1047 = vmatpush1.msra.mxu0 %v133
    %1048 = vmatprep.subr.mxu0 %v136
    %1049 = vmatpush1.msra.mxu0 %v135
    %1050 = vmatprep.subr.mxu0 %v138
    %1051 = vmatpush1.msra.mxu0 %v137
    %1052 = vmatprep.subr.mxu0 %v140
    %1053 = vmatpush1.msra.mxu0 %v139
    %1054 = vmatprep.subr.mxu0 %v142
    %1055 = vmatpush1.msra.mxu0 %v141
    %1056 = vmatprep.subr.mxu0 %v144
    %1057 = vmatpush1.msra.mxu0 %v143
    %1058 = vmatprep.subr.mxu0 %v146
    %1059 = vmatpush1.msra.mxu0 %v145
    %1060 = vmatprep.subr.mxu0 %v148
    %1061 = vmatpush1.msra.mxu0 %v147
    %1062 = vmatprep.subr.mxu0 %v150
    %1063 = vmatpush1.msra.mxu0 %v149
    %1064 = vmatprep.subr.mxu0 %v152
    %1065 = vmatpush1.msra.mxu0 %v151
    %1066 = vmatprep.subr.mxu0 %v154
    %1067 = vmatpush1.msra.mxu0 %v153
    %1068 = vmatprep.subr.mxu0 %v156
    %1069 = vmatpush1.msra.mxu0 %v155
    %1070 = vmatprep.subr.mxu0 0.0
    %1071 = vmatpush1.msra.mxu0 0.0
    %1072 = vmatprep.subr.mxu0 0.0
    %1073 = vmatpush1.msra.mxu0 0.0
    %1074 = vmatprep.subr.mxu0 0.0
    %1075 = vmatpush1.msra.mxu0 0.0
    %1076 = vmatprep.subr.mxu0 0.0
    %1077 = vmatpush1.msra.mxu0 0.0
    %1078 = vmatprep.subr.mxu0 0.0
    %1079 = vmatpush1.msra.mxu0 0.0
    %1080 = vmatprep.subr.mxu0 0.0
    %1081 = vmatpush1.msra.mxu0 0.0
    %1082 = vmatprep.subr.mxu0 0.0
    %1083 = vmatpush1.msra.mxu0 0.0
    %1084 = vmatprep.subr.mxu0 0.0
    %1085 = vmatpush1.msra.mxu0 0.0
    %1086 = vmatprep.subr.mxu0 0.0
    %1087 = vmatpush1.msra.mxu0 0.0
    %1088 = vmatprep.subr.mxu0 0.0
    %1089 = vmatpush1.msra.mxu0 0.0
    %1090 = vmatprep.subr.mxu0 0.0
    %1091 = vmatpush1.msra.mxu0 0.0
    %1092 = vmatprep.subr.mxu0 0.0
    %1093 = vmatpush1.msra.mxu0 0.0
    %1094 = vmatprep.subr.mxu0 0.0
    %1095 = vmatpush1.msra.mxu0 0.0
    %1096 = vmatprep.subr.mxu0 0.0
    %1097 = vmatpush1.msra.mxu0 0.0
    %1098 = vmatprep.subr.mxu0 0.0
    %1099 = vmatpush1.msra.mxu0 0.0
    %1100 = vmatprep.subr.mxu0 0.0
    %1101 = vmatpush1.msra.mxu0 0.0
    %1102 = vmatprep.mubr.f32.mxu0 0.0
    %1103 = vmatmul.mubr.f32.gmra.mrb[0].mxu0 %v1034
    %v1104 = vpop.f32.mrb[0].mxu0
    %v1105 = vadd.f32 %v1036, %v1104
    %v1106 = vpop.f32.mrb[0].mxu0
    %v1107 = vadd.f32 %v1037, %v1106
    %1108 = vdwg.mxu0
    %v1109 = vxor.u32 %v1105, 2147483648
    %v1110 = vmul.f32 %v1109, 1.442695
    %v1111 = vpow.pop %v1110
    %v1112 = vadd.f32 %v1111, 1.0
    %v1113 = vrcp.pop %v1112
    %v1114 = vmul.f32 1.0, %v1113
    %v1115 = vxor.u32 %v1107, 2147483648
    %v1116 = vmul.f32 %v1115, 1.442695
    %v1117 = vpow.pop %v1116
    %v1118 = vadd.f32 %v1117, 1.0
    %v1119 = vrcp.pop %v1118
    %v1120 = vmul.f32 1.0, %v1119
    %v1121 = vmul.f32 %v1120, 2.0
    %v1122 = vsub.f32 %v1121, 1.0
    %v1123 = vsel %vm92, %v1122, %v1120
    %1124 = vrot.lane.b32.xlu0 %v1114, 64
    %v1125 = vpop.permute.xlu0 %1124
    %1126 = vrot.lane.b32.xlu0 %v1123, 64
    %v1127 = vpop.permute.xlu0 %1126
    %v1128 = vld [vmem:[#allocation5] sm:$0xff]
    %v1129 = vmul.f32 %v1125, %v1128
    %v1130 = vmul.f32 %v1114, %v1123
    %v1131 = vadd.f32 %v1129, %v1130
    %v1132 = vtanh.pop %v1131
    %v1133 = vmul.f32 %v1127, %v1132
    %1134 = vst [vmem:[#allocation5] sm:$0xff] %v1131
    %1135 = vst [vmem:[#allocation4] sm:$0xff] %v1133
    %s1136 = scalar_lea.vmem [#allocation2], 56
    %1137 = vst [vmem:[%s1136] sm:$0xff] %v1133
    %s1138 = scalar_lea.vmem [#allocation9], 256
    %v1139 = vld [vmem:[%s1138] sm:$0xff]
    %v1140 = vld [vmem:[%s1138 + $0x8] sm:$0xff]
    %v1141 = vld [vmem:[%s1138 + $0x10] sm:$0xff]
    %v1142 = vld [vmem:[%s1138 + $0x18] sm:$0xff]
    %v1143 = vld [vmem:[%s1138 + $0x20] sm:$0xff]
    %v1144 = vld [vmem:[%s1138 + $0x28] sm:$0xff]
    %v1145 = vld [vmem:[%s1138 + $0x30] sm:$0xff]
    %v1146 = vld [vmem:[%s1138 + $0x38] sm:$0xff]
    %v1147 = vld [vmem:[%s1138 + $0x40] sm:$0xff]
    %v1148 = vld [vmem:[%s1138 + $0x48] sm:$0xff]
    %v1149 = vld [vmem:[%s1138 + $0x50] sm:$0xff]
    %v1150 = vld [vmem:[%s1138 + $0x58] sm:$0xff]
    %v1151 = vld [vmem:[%s1138 + $0x60] sm:$0xff]
    %v1152 = vld [vmem:[%s1138 + $0x68] sm:$0xff]
    %v1153 = vld [vmem:[%s1138 + $0x70] sm:$0xff]
    %v1154 = vld [vmem:[%s1138 + $0x78] sm:$0xff]
    %v1155 = vld [vmem:[%s1138 + $0x80] sm:$0xff]
    %v1156 = vld [vmem:[%s1138 + $0x88] sm:$0xff]
    %v1157 = vld [vmem:[%s1138 + $0x90] sm:$0xff]
    %v1158 = vld [vmem:[%s1138 + $0x98] sm:$0xff]
    %v1159 = vld [vmem:[%s1138 + $0xa0] sm:$0xff]
    %v1160 = vld [vmem:[%s1138 + $0xa8] sm:$0xff]
    %v1161 = vld [vmem:[%s1138 + $0xb0] sm:$0xff]
    %v1162 = vld [vmem:[%s1138 + $0xb8] sm:$0xff]
    %v1163 = vld [vmem:[%s1138 + $0xc0] sm:$0xff]
    %v1164 = vld [vmem:[%s1138 + $0xc8] sm:$0xff]
    %v1165 = vld [vmem:[%s1138 + $0xd0] sm:$0xff]
    %v1166 = vld [vmem:[%s1138 + $0xd8] sm:$0xff]
    %v1167 = vld [vmem:[%s1138 + $0xe0] sm:$0xff]
    %v1168 = vld [vmem:[%s1138 + $0xe8] sm:$0xff]
    %v1169 = vld [vmem:[%s1138 + $0xf0] sm:$0xff]
    %v1170 = vld [vmem:[%s1138 + $0xf8] sm:$0xff]
    %s1171 = scalar_lea.vmem [#allocation11], 256
    %v1172 = vld [vmem:[%s1171] sm:$0xff]
    %v1173 = vld [vmem:[%s1171 + $0x8] sm:$0xff]
    %v1174 = vld [vmem:[%s1171 + $0x10] sm:$0xff]
    %v1175 = vld [vmem:[%s1171 + $0x18] sm:$0xff]
    %v1176 = vld [vmem:[%s1171 + $0x20] sm:$0xff]
    %v1177 = vld [vmem:[%s1171 + $0x28] sm:$0xff]
    %v1178 = vld [vmem:[%s1171 + $0x30] sm:$0xff]
    %v1179 = vld [vmem:[%s1171 + $0x38] sm:$0xff]
    %v1180 = vld [vmem:[%s1171 + $0x40] sm:$0xff]
    %v1181 = vld [vmem:[%s1171 + $0x48] sm:$0xff]
    %v1182 = vld [vmem:[%s1171 + $0x50] sm:$0xff]
    %v1183 = vld [vmem:[%s1171 + $0x58] sm:$0xff]
    %v1184 = vld [vmem:[%s1171 + $0x60] sm:$0xff]
    %v1185 = vld [vmem:[%s1171 + $0x68] sm:$0xff]
    %v1186 = vld [vmem:[%s1171 + $0x70] sm:$0xff]
    %v1187 = vld [vmem:[%s1171 + $0x78] sm:$0xff]
    %v1188 = vld [vmem:[%s1171 + $0x80] sm:$0xff]
    %v1189 = vld [vmem:[%s1171 + $0x88] sm:$0xff]
    %v1190 = vld [vmem:[%s1171 + $0x90] sm:$0xff]
    %v1191 = vld [vmem:[%s1171 + $0x98] sm:$0xff]
    %v1192 = vld [vmem:[%s1171 + $0xa0] sm:$0xff]
    %v1193 = vld [vmem:[%s1171 + $0xa8] sm:$0xff]
    %v1194 = vld [vmem:[%s1171 + $0xb0] sm:$0xff]
    %v1195 = vld [vmem:[%s1171 + $0xb8] sm:$0xff]
    %v1196 = vld [vmem:[%s1171 + $0xc0] sm:$0xff]
    %v1197 = vld [vmem:[%s1171 + $0xc8] sm:$0xff]
    %v1198 = vld [vmem:[%s1171 + $0xd0] sm:$0xff]
    %v1199 = vld [vmem:[%s1171 + $0xd8] sm:$0xff]
    %v1200 = vld [vmem:[%s1171 + $0xe0] sm:$0xff]
    %v1201 = vld [vmem:[%s1171 + $0xe8] sm:$0xff]
    %v1202 = vld [vmem:[%s1171 + $0xf0] sm:$0xff]
    %v1203 = vld [vmem:[%s1171 + $0xf8] sm:$0xff]
    %s1204 = scalar_lea.vmem [#allocation12], 1
    %v1205 = vld [vmem:[%s1204] ss:$8 sm:$0x3]
    %v1206 = vld [vmem:[#allocation2] sm:$0xff]
    %v1207 = vld [vmem:[#allocation2 + $0x8] sm:$0xff]
    %v1208 = vld [vmem:[#allocation2 + $0x10] sm:$0xff]
    %v1209 = vld [vmem:[#allocation2 + $0x18] sm:$0xff]
    %v1210 = vld [vmem:[#allocation2 + $0x20] sm:$0xff]
    %v1211 = vld [vmem:[#allocation2 + $0x28] sm:$0xff]
    %v1212 = vld [vmem:[#allocation2 + $0x30] sm:$0xff]
    %v1213 = vld [vmem:[#allocation2 + $0x38] sm:$0xff]
    %v1215 = vlaneseq
    %v1216 = vshrl.u32 %v1215, 7
    %v1217 = vsub.s32 0, %v1216
    %v1218 = vrot.slane %v1205, %v1217
    %v1219 = vlaneseq
    %v1220 = vshrl.u32 %v1219, 7
    %v1221 = vsub.s32 1, %v1220
    %v1222 = vrot.slane %v1205, %v1221
    %1225 = vmatprep.subr.mxu0 %v1140
    %1226 = vmatpush1.msra.mxu0 %v1139
    %1227 = vmatprep.subr.mxu0 %v1142
    %1228 = vmatpush1.msra.mxu0 %v1141
    %1229 = vmatprep.subr.mxu0 %v1144
    %1230 = vmatpush1.msra.mxu0 %v1143
    %1231 = vmatprep.subr.mxu0 %v1146
    %1232 = vmatpush1.msra.mxu0 %v1145
    %1233 = vmatprep.subr.mxu0 %v1148
    %1234 = vmatpush1.msra.mxu0 %v1147
    %1235 = vmatprep.subr.mxu0 %v1150
    %1236 = vmatpush1.msra.mxu0 %v1149
    %1237 = vmatprep.subr.mxu0 %v1152
    %1238 = vmatpush1.msra.mxu0 %v1151
    %1239 = vmatprep.subr.mxu0 %v1154
    %1240 = vmatpush1.msra.mxu0 %v1153
    %1241 = vmatprep.subr.mxu0 %v1156
    %1242 = vmatpush1.msra.mxu0 %v1155
    %1243 = vmatprep.subr.mxu0 %v1158
    %1244 = vmatpush1.msra.mxu0 %v1157
    %1245 = vmatprep.subr.mxu0 %v1160
    %1246 = vmatpush1.msra.mxu0 %v1159
    %1247 = vmatprep.subr.mxu0 %v1162
    %1248 = vmatpush1.msra.mxu0 %v1161
    %1249 = vmatprep.subr.mxu0 %v1164
    %1250 = vmatpush1.msra.mxu0 %v1163
    %1251 = vmatprep.subr.mxu0 %v1166
    %1252 = vmatpush1.msra.mxu0 %v1165
    %1253 = vmatprep.subr.mxu0 %v1168
    %1254 = vmatpush1.msra.mxu0 %v1167
    %1255 = vmatprep.subr.mxu0 %v1170
    %1256 = vmatpush1.msra.mxu0 %v1169
    %1257 = vmatprep.subr.mxu0 0.0
    %1258 = vmatpush1.msra.mxu0 0.0
    %1259 = vmatprep.subr.mxu0 0.0
    %1260 = vmatpush1.msra.mxu0 0.0
    %1261 = vmatprep.subr.mxu0 0.0
    %1262 = vmatpush1.msra.mxu0 0.0
    %1263 = vmatprep.subr.mxu0 0.0
    %1264 = vmatpush1.msra.mxu0 0.0
    %1265 = vmatprep.subr.mxu0 0.0
    %1266 = vmatpush1.msra.mxu0 0.0
    %1267 = vmatprep.subr.mxu0 0.0
    %1268 = vmatpush1.msra.mxu0 0.0
    %1269 = vmatprep.subr.mxu0 0.0
    %1270 = vmatpush1.msra.mxu0 0.0
    %1271 = vmatprep.subr.mxu0 0.0
    %1272 = vmatpush1.msra.mxu0 0.0
    %1273 = vmatprep.subr.mxu0 0.0
    %1274 = vmatpush1.msra.mxu0 0.0
    %1275 = vmatprep.subr.mxu0 0.0
    %1276 = vmatpush1.msra.mxu0 0.0
    %1277 = vmatprep.subr.mxu0 0.0
    %1278 = vmatpush1.msra.mxu0 0.0
    %1279 = vmatprep.subr.mxu0 0.0
    %1280 = vmatpush1.msra.mxu0 0.0
    %1281 = vmatprep.subr.mxu0 0.0
    %1282 = vmatpush1.msra.mxu0 0.0
    %1283 = vmatprep.subr.mxu0 0.0
    %1284 = vmatpush1.msra.mxu0 0.0
    %1285 = vmatprep.subr.mxu0 0.0
    %1286 = vmatpush1.msra.mxu0 0.0
    %1287 = vmatprep.subr.mxu0 0.0
    %1288 = vmatpush1.msra.mxu0 0.0
    %1289 = vmatprep.mubr.f32.mxu0 0.0
    %1290 = vmatmul.mubr.f32.gmra.mrb[0].mxu0 %v1206
    %v1291 = vpop.f32.mrb[0].mxu0
    %v1292 = vadd.f32 %v1218, %v1291
    %v1293 = vpop.f32.mrb[0].mxu0
    %v1294 = vadd.f32 %v1222, %v1293
    %1295 = vmatprep.mubr.f32.mxu0 0.0
    %1296 = vmatmul.mubr.f32.gmra.mrb[0].mxu0 %v1207
    %v1297 = vpop.f32.mrb[0].mxu0
    %v1298 = vadd.f32 %v1218, %v1297
    %v1299 = vpop.f32.mrb[0].mxu0
    %v1300 = vadd.f32 %v1222, %v1299
    %1301 = vmatprep.mubr.f32.mxu0 0.0
    %1302 = vmatmul.mubr.f32.gmra.mrb[0].mxu0 %v1208
    %v1303 = vpop.f32.mrb[0].mxu0
    %v1304 = vadd.f32 %v1218, %v1303
    %v1305 = vpop.f32.mrb[0].mxu0
    %v1306 = vadd.f32 %v1222, %v1305
    %1307 = vmatprep.mubr.f32.mxu0 0.0
    %1308 = vmatmul.mubr.f32.gmra.mrb[0].mxu0 %v1209
    %v1309 = vpop.f32.mrb[0].mxu0
    %v1310 = vadd.f32 %v1218, %v1309
    %v1311 = vpop.f32.mrb[0].mxu0
    %v1312 = vadd.f32 %v1222, %v1311
    %1313 = vmatprep.mubr.f32.mxu0 0.0
    %1314 = vmatmul.mubr.f32.gmra.mrb[0].mxu0 %v1210
    %v1315 = vpop.f32.mrb[0].mxu0
    %v1316 = vadd.f32 %v1218, %v1315
    %v1317 = vpop.f32.mrb[0].mxu0
    %v1318 = vadd.f32 %v1222, %v1317
    %1319 = vmatprep.mubr.f32.mxu0 0.0
    %1320 = vmatmul.mubr.f32.gmra.mrb[0].mxu0 %v1211
    %v1321 = vpop.f32.mrb[0].mxu0
    %v1322 = vadd.f32 %v1218, %v1321
    %v1323 = vpop.f32.mrb[0].mxu0
    %v1324 = vadd.f32 %v1222, %v1323
    %1325 = vmatprep.mubr.f32.mxu0 0.0
    %1326 = vmatmul.mubr.f32.gmra.mrb[0].mxu0 %v1212
    %v1327 = vpop.f32.mrb[0].mxu0
    %v1328 = vadd.f32 %v1218, %v1327
    %v1329 = vpop.f32.mrb[0].mxu0
    %v1330 = vadd.f32 %v1222, %v1329
    %1331 = vmatprep.mubr.f32.mxu0 0.0
    %1332 = vmatmul.mubr.f32.gmra.mrb[0].mxu0 %v1213
    %v1333 = vpop.f32.mrb[0].mxu0
    %v1334 = vadd.f32 %v1218, %v1333
    %v1335 = vpop.f32.mrb[0].mxu0
    %v1336 = vadd.f32 %v1222, %v1335
    %1337 = vdwg.mxu0
    %1338 = vst [vmem:[#allocation3] sm:$0xff] %v1292
    %1339 = vst [vmem:[#allocation3 + $0x8] sm:$0xff] %v1294
    %1340 = vst [vmem:[#allocation3 + $0x10] sm:$0xff] %v1298
    %1341 = vst [vmem:[#allocation3 + $0x18] sm:$0xff] %v1300
    %1342 = vst [vmem:[#allocation3 + $0x20] sm:$0xff] %v1304
    %1343 = vst [vmem:[#allocation3 + $0x28] sm:$0xff] %v1306
    %1344 = vst [vmem:[#allocation3 + $0x30] sm:$0xff] %v1310
    %1345 = vst [vmem:[#allocation3 + $0x38] sm:$0xff] %v1312
    %1346 = vst [vmem:[#allocation3 + $0x40] sm:$0xff] %v1316
    %1347 = vst [vmem:[#allocation3 + $0x48] sm:$0xff] %v1318
    %1348 = vst [vmem:[#allocation3 + $0x50] sm:$0xff] %v1322
    %1349 = vst [vmem:[#allocation3 + $0x58] sm:$0xff] %v1324
    %1350 = vst [vmem:[#allocation3 + $0x60] sm:$0xff] %v1328
    %1351 = vst [vmem:[#allocation3 + $0x68] sm:$0xff] %v1330
    %1352 = vst [vmem:[#allocation3 + $0x70] sm:$0xff] %v1334
    %1353 = vst [vmem:[#allocation3 + $0x78] sm:$0xff] %v1336
    %1354 = vst [vmem:[#allocation4] sm:$0xff] 0.0
    %1355 = vst [vmem:[#allocation5] sm:$0xff] 0.0
    %v1356 = vld [vmem:[#allocation4] sm:$0xff]
    %v1357 = vld [vmem:[#allocation3] sm:$0xff]
    %v1358 = vld [vmem:[#allocation3 + $0x8] sm:$0xff]
    %1359 = vmatprep.subr.mxu0 %v1173
    %1360 = vmatpush1.msra.mxu0 %v1172
    %1361 = vmatprep.subr.mxu0 %v1175
    %1362 = vmatpush1.msra.mxu0 %v1174
    %1363 = vmatprep.subr.mxu0 %v1177
    %1364 = vmatpush1.msra.mxu0 %v1176
    %1365 = vmatprep.subr.mxu0 %v1179
    %1366 = vmatpush1.msra.mxu0 %v1178
    %1367 = vmatprep.subr.mxu0 %v1181
    %1368 = vmatpush1.msra.mxu0 %v1180
    %1369 = vmatprep.subr.mxu0 %v1183
    %1370 = vmatpush1.msra.mxu0 %v1182
    %1371 = vmatprep.subr.mxu0 %v1185
    %1372 = vmatpush1.msra.mxu0 %v1184
    %1373 = vmatprep.subr.mxu0 %v1187
    %1374 = vmatpush1.msra.mxu0 %v1186
    %1375 = vmatprep.subr.mxu0 %v1189
    %1376 = vmatpush1.msra.mxu0 %v1188
    %1377 = vmatprep.subr.mxu0 %v1191
    %1378 = vmatpush1.msra.mxu0 %v1190
    %1379 = vmatprep.subr.mxu0 %v1193
    %1380 = vmatpush1.msra.mxu0 %v1192
    %1381 = vmatprep.subr.mxu0 %v1195
    %1382 = vmatpush1.msra.mxu0 %v1194
    %1383 = vmatprep.subr.mxu0 %v1197
    %1384 = vmatpush1.msra.mxu0 %v1196
    %1385 = vmatprep.subr.mxu0 %v1199
    %1386 = vmatpush1.msra.mxu0 %v1198
    %1387 = vmatprep.subr.mxu0 %v1201
    %1388 = vmatpush1.msra.mxu0 %v1200
    %1389 = vmatprep.subr.mxu0 %v1203
    %1390 = vmatpush1.msra.mxu0 %v1202
    %1391 = vmatprep.subr.mxu0 0.0
    %1392 = vmatpush1.msra.mxu0 0.0
    %1393 = vmatprep.subr.mxu0 0.0
    %1394 = vmatpush1.msra.mxu0 0.0
    %1395 = vmatprep.subr.mxu0 0.0
    %1396 = vmatpush1.msra.mxu0 0.0
    %1397 = vmatprep.subr.mxu0 0.0
    %1398 = vmatpush1.msra.mxu0 0.0
    %1399 = vmatprep.subr.mxu0 0.0
    %1400 = vmatpush1.msra.mxu0 0.0
    %1401 = vmatprep.subr.mxu0 0.0
    %1402 = vmatpush1.msra.mxu0 0.0
    %1403 = vmatprep.subr.mxu0 0.0
    %1404 = vmatpush1.msra.mxu0 0.0
    %1405 = vmatprep.subr.mxu0 0.0
    %1406 = vmatpush1.msra.mxu0 0.0
    %1407 = vmatprep.subr.mxu0 0.0
    %1408 = vmatpush1.msra.mxu0 0.0
    %1409 = vmatprep.subr.mxu0 0.0
    %1410 = vmatpush1.msra.mxu0 0.0
    %1411 = vmatprep.subr.mxu0 0.0
    %1412 = vmatpush1.msra.mxu0 0.0
    %1413 = vmatprep.subr.mxu0 0.0
    %1414 = vmatpush1.msra.mxu0 0.0
    %1415 = vmatprep.subr.mxu0 0.0
    %1416 = vmatpush1.msra.mxu0 0.0
    %1417 = vmatprep.subr.mxu0 0.0
    %1418 = vmatpush1.msra.mxu0 0.0
    %1419 = vmatprep.subr.mxu0 0.0
    %1420 = vmatpush1.msra.mxu0 0.0
    %1421 = vmatprep.subr.mxu0 0.0
    %1422 = vmatpush1.msra.mxu0 0.0
    %1423 = vmatprep.mubr.f32.mxu0 0.0
    %1424 = vmatmul.mubr.f32.gmra.mrb[0].mxu0 %v1356
    %v1425 = vpop.f32.mrb[0].mxu0
    %v1426 = vadd.f32 %v1357, %v1425
    %v1427 = vpop.f32.mrb[0].mxu0
    %v1428 = vadd.f32 %v1358, %v1427
    %1429 = vdwg.mxu0
    %v1430 = vxor.u32 %v1426, 2147483648
    %v1431 = vmul.f32 %v1430, 1.442695
    %v1432 = vpow.pop %v1431
    %v1433 = vadd.f32 %v1432, 1.0
    %v1434 = vrcp.pop %v1433
    %v1435 = vmul.f32 1.0, %v1434
    %v1436 = vxor.u32 %v1428, 2147483648
    %v1437 = vmul.f32 %v1436, 1.442695
    %v1438 = vpow.pop %v1437
    %v1439 = vadd.f32 %v1438, 1.0
    %v1440 = vrcp.pop %v1439
    %v1441 = vmul.f32 1.0, %v1440
    %v1442 = vmul.f32 %v1441, 2.0
    %v1443 = vsub.f32 %v1442, 1.0
    %v1444 = vsel %vm92, %v1443, %v1441
    %1445 = vrot.lane.b32.xlu0 %v1435, 64
    %v1446 = vpop.permute.xlu0 %1445
    %1447 = vrot.lane.b32.xlu0 %v1444, 64
    %v1448 = vpop.permute.xlu0 %1447
    %v1449 = vld [vmem:[#allocation5] sm:$0xff]
    %v1450 = vmul.f32 %v1446, %v1449
    %v1451 = vmul.f32 %v1435, %v1444
    %v1452 = vadd.f32 %v1450, %v1451
    %v1453 = vtanh.pop %v1452
    %v1454 = vmul.f32 %v1448, %v1453
    %1455 = vst [vmem:[#allocation5] sm:$0xff] %v1452
    %1456 = vst [vmem:[#allocation4] sm:$0xff] %v1454
    %1457 = vst [vmem:[#allocation2] sm:$0xff] %v1454
    %v1458 = vld [vmem:[#allocation4] sm:$0xff]
    %v1459 = vld [vmem:[%s411] sm:$0xff]
    %v1460 = vld [vmem:[%s411 + $0x8] sm:$0xff]
    %1461 = vmatprep.subr.mxu0 %v1173
    %1462 = vmatpush1.msra.mxu0 %v1172
    %1463 = vmatprep.subr.mxu0 %v1175
    %1464 = vmatpush1.msra.mxu0 %v1174
    %1465 = vmatprep.subr.mxu0 %v1177
    %1466 = vmatpush1.msra.mxu0 %v1176
    %1467 = vmatprep.subr.mxu0 %v1179
    %1468 = vmatpush1.msra.mxu0 %v1178
    %1469 = vmatprep.subr.mxu0 %v1181
    %1470 = vmatpush1.msra.mxu0 %v1180
    %1471 = vmatprep.subr.mxu0 %v1183
    %1472 = vmatpush1.msra.mxu0 %v1182
    %1473 = vmatprep.subr.mxu0 %v1185
    %1474 = vmatpush1.msra.mxu0 %v1184
    %1475 = vmatprep.subr.mxu0 %v1187
    %1476 = vmatpush1.msra.mxu0 %v1186
    %1477 = vmatprep.subr.mxu0 %v1189
    %1478 = vmatpush1.msra.mxu0 %v1188
    %1479 = vmatprep.subr.mxu0 %v1191
    %1480 = vmatpush1.msra.mxu0 %v1190
    %1481 = vmatprep.subr.mxu0 %v1193
    %1482 = vmatpush1.msra.mxu0 %v1192
    %1483 = vmatprep.subr.mxu0 %v1195
    %1484 = vmatpush1.msra.mxu0 %v1194
    %1485 = vmatprep.subr.mxu0 %v1197
    %1486 = vmatpush1.msra.mxu0 %v1196
    %1487 = vmatprep.subr.mxu0 %v1199
    %1488 = vmatpush1.msra.mxu0 %v1198
    %1489 = vmatprep.subr.mxu0 %v1201
    %1490 = vmatpush1.msra.mxu0 %v1200
    %1491 = vmatprep.subr.mxu0 %v1203
    %1492 = vmatpush1.msra.mxu0 %v1202
    %1493 = vmatprep.subr.mxu0 0.0
    %1494 = vmatpush1.msra.mxu0 0.0
    %1495 = vmatprep.subr.mxu0 0.0
    %1496 = vmatpush1.msra.mxu0 0.0
    %1497 = vmatprep.subr.mxu0 0.0
    %1498 = vmatpush1.msra.mxu0 0.0
    %1499 = vmatprep.subr.mxu0 0.0
    %1500 = vmatpush1.msra.mxu0 0.0
    %1501 = vmatprep.subr.mxu0 0.0
    %1502 = vmatpush1.msra.mxu0 0.0
    %1503 = vmatprep.subr.mxu0 0.0
    %1504 = vmatpush1.msra.mxu0 0.0
    %1505 = vmatprep.subr.mxu0 0.0
    %1506 = vmatpush1.msra.mxu0 0.0
    %1507 = vmatprep.subr.mxu0 0.0
    %1508 = vmatpush1.msra.mxu0 0.0
    %1509 = vmatprep.subr.mxu0 0.0
    %1510 = vmatpush1.msra.mxu0 0.0
    %1511 = vmatprep.subr.mxu0 0.0
    %1512 = vmatpush1.msra.mxu0 0.0
    %1513 = vmatprep.subr.mxu0 0.0
    %1514 = vmatpush1.msra.mxu0 0.0
    %1515 = vmatprep.subr.mxu0 0.0
    %1516 = vmatpush1.msra.mxu0 0.0
    %1517 = vmatprep.subr.mxu0 0.0
    %1518 = vmatpush1.msra.mxu0 0.0
    %1519 = vmatprep.subr.mxu0 0.0
    %1520 = vmatpush1.msra.mxu0 0.0
    %1521 = vmatprep.subr.mxu0 0.0
    %1522 = vmatpush1.msra.mxu0 0.0
    %1523 = vmatprep.subr.mxu0 0.0
    %1524 = vmatpush1.msra.mxu0 0.0
    %1525 = vmatprep.mubr.f32.mxu0 0.0
    %1526 = vmatmul.mubr.f32.gmra.mrb[0].mxu0 %v1458
    %v1527 = vpop.f32.mrb[0].mxu0
    %v1528 = vadd.f32 %v1459, %v1527
    %v1529 = vpop.f32.mrb[0].mxu0
    %v1530 = vadd.f32 %v1460, %v1529
    %1531 = vdwg.mxu0
    %v1532 = vxor.u32 %v1528, 2147483648
    %v1533 = vmul.f32 %v1532, 1.442695
    %v1534 = vpow.pop %v1533
    %v1535 = vadd.f32 %v1534, 1.0
    %v1536 = vrcp.pop %v1535
    %v1537 = vmul.f32 1.0, %v1536
    %v1538 = vxor.u32 %v1530, 2147483648
    %v1539 = vmul.f32 %v1538, 1.442695
    %v1540 = vpow.pop %v1539
    %v1541 = vadd.f32 %v1540, 1.0
    %v1542 = vrcp.pop %v1541
    %v1543 = vmul.f32 1.0, %v1542
    %v1544 = vmul.f32 %v1543, 2.0
    %v1545 = vsub.f32 %v1544, 1.0
    %v1546 = vsel %vm92, %v1545, %v1543
    %1547 = vrot.lane.b32.xlu0 %v1537, 64
    %v1548 = vpop.permute.xlu0 %1547
    %1549 = vrot.lane.b32.xlu0 %v1546, 64
    %v1550 = vpop.permute.xlu0 %1549
    %v1551 = vld [vmem:[#allocation5] sm:$0xff]
    %v1552 = vmul.f32 %v1548, %v1551
    %v1553 = vmul.f32 %v1537, %v1546
    %v1554 = vadd.f32 %v1552, %v1553
    %v1555 = vtanh.pop %v1554
    %v1556 = vmul.f32 %v1550, %v1555
    %1557 = vst [vmem:[#allocation5] sm:$0xff] %v1554
    %1558 = vst [vmem:[#allocation4] sm:$0xff] %v1556
    %1559 = vst [vmem:[%s512] sm:$0xff] %v1556
    %v1560 = vld [vmem:[#allocation4] sm:$0xff]
    %v1561 = vld [vmem:[%s515] sm:$0xff]
    %v1562 = vld [vmem:[%s515 + $0x8] sm:$0xff]
    %1563 = vmatprep.subr.mxu0 %v1173
    %1564 = vmatpush1.msra.mxu0 %v1172
    %1565 = vmatprep.subr.mxu0 %v1175
    %1566 = vmatpush1.msra.mxu0 %v1174
    %1567 = vmatprep.subr.mxu0 %v1177
    %1568 = vmatpush1.msra.mxu0 %v1176
    %1569 = vmatprep.subr.mxu0 %v1179
    %1570 = vmatpush1.msra.mxu0 %v1178
    %1571 = vmatprep.subr.mxu0 %v1181
    %1572 = vmatpush1.msra.mxu0 %v1180
    %1573 = vmatprep.subr.mxu0 %v1183
    %1574 = vmatpush1.msra.mxu0 %v1182
    %1575 = vmatprep.subr.mxu0 %v1185
    %1576 = vmatpush1.msra.mxu0 %v1184
    %1577 = vmatprep.subr.mxu0 %v1187
    %1578 = vmatpush1.msra.mxu0 %v1186
    %1579 = vmatprep.subr.mxu0 %v1189
    %1580 = vmatpush1.msra.mxu0 %v1188
    %1581 = vmatprep.subr.mxu0 %v1191
    %1582 = vmatpush1.msra.mxu0 %v1190
    %1583 = vmatprep.subr.mxu0 %v1193
    %1584 = vmatpush1.msra.mxu0 %v1192
    %1585 = vmatprep.subr.mxu0 %v1195
    %1586 = vmatpush1.msra.mxu0 %v1194
    %1587 = vmatprep.subr.mxu0 %v1197
    %1588 = vmatpush1.msra.mxu0 %v1196
    %1589 = vmatprep.subr.mxu0 %v1199
    %1590 = vmatpush1.msra.mxu0 %v1198
    %1591 = vmatprep.subr.mxu0 %v1201
    %1592 = vmatpush1.msra.mxu0 %v1200
    %1593 = vmatprep.subr.mxu0 %v1203
    %1594 = vmatpush1.msra.mxu0 %v1202
    %1595 = vmatprep.subr.mxu0 0.0
    %1596 = vmatpush1.msra.mxu0 0.0
    %1597 = vmatprep.subr.mxu0 0.0
    %1598 = vmatpush1.msra.mxu0 0.0
    %1599 = vmatprep.subr.mxu0 0.0
    %1600 = vmatpush1.msra.mxu0 0.0
    %1601 = vmatprep.subr.mxu0 0.0
    %1602 = vmatpush1.msra.mxu0 0.0
    %1603 = vmatprep.subr.mxu0 0.0
    %1604 = vmatpush1.msra.mxu0 0.0
    %1605 = vmatprep.subr.mxu0 0.0
    %1606 = vmatpush1.msra.mxu0 0.0
    %1607 = vmatprep.subr.mxu0 0.0
    %1608 = vmatpush1.msra.mxu0 0.0
    %1609 = vmatprep.subr.mxu0 0.0
    %1610 = vmatpush1.msra.mxu0 0.0
    %1611 = vmatprep.subr.mxu0 0.0
    %1612 = vmatpush1.msra.mxu0 0.0
    %1613 = vmatprep.subr.mxu0 0.0
    %1614 = vmatpush1.msra.mxu0 0.0
    %1615 = vmatprep.subr.mxu0 0.0
    %1616 = vmatpush1.msra.mxu0 0.0
    %1617 = vmatprep.subr.mxu0 0.0
    %1618 = vmatpush1.msra.mxu0 0.0
    %1619 = vmatprep.subr.mxu0 0.0
    %1620 = vmatpush1.msra.mxu0 0.0
    %1621 = vmatprep.subr.mxu0 0.0
    %1622 = vmatpush1.msra.mxu0 0.0
    %1623 = vmatprep.subr.mxu0 0.0
    %1624 = vmatpush1.msra.mxu0 0.0
    %1625 = vmatprep.subr.mxu0 0.0
    %1626 = vmatpush1.msra.mxu0 0.0
    %1627 = vmatprep.mubr.f32.mxu0 0.0
    %1628 = vmatmul.mubr.f32.gmra.mrb[0].mxu0 %v1560
    %v1629 = vpop.f32.mrb[0].mxu0
    %v1630 = vadd.f32 %v1561, %v1629
    %v1631 = vpop.f32.mrb[0].mxu0
    %v1632 = vadd.f32 %v1562, %v1631
    %1633 = vdwg.mxu0
    %v1634 = vxor.u32 %v1630, 2147483648
    %v1635 = vmul.f32 %v1634, 1.442695
    %v1636 = vpow.pop %v1635
    %v1637 = vadd.f32 %v1636, 1.0
    %v1638 = vrcp.pop %v1637
    %v1639 = vmul.f32 1.0, %v1638
    %v1640 = vxor.u32 %v1632, 2147483648
    %v1641 = vmul.f32 %v1640, 1.442695
    %v1642 = vpow.pop %v1641
    %v1643 = vadd.f32 %v1642, 1.0
    %v1644 = vrcp.pop %v1643
    %v1645 = vmul.f32 1.0, %v1644
    %v1646 = vmul.f32 %v1645, 2.0
    %v1647 = vsub.f32 %v1646, 1.0
    %v1648 = vsel %vm92, %v1647, %v1645
    %1649 = vrot.lane.b32.xlu0 %v1639, 64
    %v1650 = vpop.permute.xlu0 %1649
    %1651 = vrot.lane.b32.xlu0 %v1648, 64
    %v1652 = vpop.permute.xlu0 %1651
    %v1653 = vld [vmem:[#allocation5] sm:$0xff]
    %v1654 = vmul.f32 %v1650, %v1653
    %v1655 = vmul.f32 %v1639, %v1648
    %v1656 = vadd.f32 %v1654, %v1655
    %v1657 = vtanh.pop %v1656
    %v1658 = vmul.f32 %v1652, %v1657
    %1659 = vst [vmem:[#allocation5] sm:$0xff] %v1656
    %1660 = vst [vmem:[#allocation4] sm:$0xff] %v1658
    %1661 = vst [vmem:[%s616] sm:$0xff] %v1658
    %v1662 = vld [vmem:[#allocation4] sm:$0xff]
    %v1663 = vld [vmem:[%s619] sm:$0xff]
    %v1664 = vld [vmem:[%s619 + $0x8] sm:$0xff]
    %1665 = vmatprep.subr.mxu0 %v1173
    %1666 = vmatpush1.msra.mxu0 %v1172
    %1667 = vmatprep.subr.mxu0 %v1175
    %1668 = vmatpush1.msra.mxu0 %v1174
    %1669 = vmatprep.subr.mxu0 %v1177
    %1670 = vmatpush1.msra.mxu0 %v1176
    %1671 = vmatprep.subr.mxu0 %v1179
    %1672 = vmatpush1.msra.mxu0 %v1178
    %1673 = vmatprep.subr.mxu0 %v1181
    %1674 = vmatpush1.msra.mxu0 %v1180
    %1675 = vmatprep.subr.mxu0 %v1183
    %1676 = vmatpush1.msra.mxu0 %v1182
    %1677 = vmatprep.subr.mxu0 %v1185
    %1678 = vmatpush1.msra.mxu0 %v1184
    %1679 = vmatprep.subr.mxu0 %v1187
    %1680 = vmatpush1.msra.mxu0 %v1186
    %1681 = vmatprep.subr.mxu0 %v1189
    %1682 = vmatpush1.msra.mxu0 %v1188
    %1683 = vmatprep.subr.mxu0 %v1191
    %1684 = vmatpush1.msra.mxu0 %v1190
    %1685 = vmatprep.subr.mxu0 %v1193
    %1686 = vmatpush1.msra.mxu0 %v1192
    %1687 = vmatprep.subr.mxu0 %v1195
    %1688 = vmatpush1.msra.mxu0 %v1194
    %1689 = vmatprep.subr.mxu0 %v1197
    %1690 = vmatpush1.msra.mxu0 %v1196
    %1691 = vmatprep.subr.mxu0 %v1199
    %1692 = vmatpush1.msra.mxu0 %v1198
    %1693 = vmatprep.subr.mxu0 %v1201
    %1694 = vmatpush1.msra.mxu0 %v1200
    %1695 = vmatprep.subr.mxu0 %v1203
    %1696 = vmatpush1.msra.mxu0 %v1202
    %1697 = vmatprep.subr.mxu0 0.0
    %1698 = vmatpush1.msra.mxu0 0.0
    %1699 = vmatprep.subr.mxu0 0.0
    %1700 = vmatpush1.msra.mxu0 0.0
    %1701 = vmatprep.subr.mxu0 0.0
    %1702 = vmatpush1.msra.mxu0 0.0
    %1703 = vmatprep.subr.mxu0 0.0
    %1704 = vmatpush1.msra.mxu0 0.0
    %1705 = vmatprep.subr.mxu0 0.0
    %1706 = vmatpush1.msra.mxu0 0.0
    %1707 = vmatprep.subr.mxu0 0.0
    %1708 = vmatpush1.msra.mxu0 0.0
    %1709 = vmatprep.subr.mxu0 0.0
    %1710 = vmatpush1.msra.mxu0 0.0
    %1711 = vmatprep.subr.mxu0 0.0
    %1712 = vmatpush1.msra.mxu0 0.0
    %1713 = vmatprep.subr.mxu0 0.0
    %1714 = vmatpush1.msra.mxu0 0.0
    %1715 = vmatprep.subr.mxu0 0.0
    %1716 = vmatpush1.msra.mxu0 0.0
    %1717 = vmatprep.subr.mxu0 0.0
    %1718 = vmatpush1.msra.mxu0 0.0
    %1719 = vmatprep.subr.mxu0 0.0
    %1720 = vmatpush1.msra.mxu0 0.0
    %1721 = vmatprep.subr.mxu0 0.0
    %1722 = vmatpush1.msra.mxu0 0.0
    %1723 = vmatprep.subr.mxu0 0.0
    %1724 = vmatpush1.msra.mxu0 0.0
    %1725 = vmatprep.subr.mxu0 0.0
    %1726 = vmatpush1.msra.mxu0 0.0
    %1727 = vmatprep.subr.mxu0 0.0
    %1728 = vmatpush1.msra.mxu0 0.0
    %1729 = vmatprep.mubr.f32.mxu0 0.0
    %1730 = vmatmul.mubr.f32.gmra.mrb[0].mxu0 %v1662
    %v1731 = vpop.f32.mrb[0].mxu0
    %v1732 = vadd.f32 %v1663, %v1731
    %v1733 = vpop.f32.mrb[0].mxu0
    %v1734 = vadd.f32 %v1664, %v1733
    %1735 = vdwg.mxu0
    %v1736 = vxor.u32 %v1732, 2147483648
    %v1737 = vmul.f32 %v1736, 1.442695
    %v1738 = vpow.pop %v1737
    %v1739 = vadd.f32 %v1738, 1.0
    %v1740 = vrcp.pop %v1739
    %v1741 = vmul.f32 1.0, %v1740
    %v1742 = vxor.u32 %v1734, 2147483648
    %v1743 = vmul.f32 %v1742, 1.442695
    %v1744 = vpow.pop %v1743
    %v1745 = vadd.f32 %v1744, 1.0
    %v1746 = vrcp.pop %v1745
    %v1747 = vmul.f32 1.0, %v1746
    %v1748 = vmul.f32 %v1747, 2.0
    %v1749 = vsub.f32 %v1748, 1.0
    %v1750 = vsel %vm92, %v1749, %v1747
    %1751 = vrot.lane.b32.xlu0 %v1741, 64
    %v1752 = vpop.permute.xlu0 %1751
    %1753 = vrot.lane.b32.xlu0 %v1750, 64
    %v1754 = vpop.permute.xlu0 %1753
    %v1755 = vld [vmem:[#allocation5] sm:$0xff]
    %v1756 = vmul.f32 %v1752, %v1755
    %v1757 = vmul.f32 %v1741, %v1750
    %v1758 = vadd.f32 %v1756, %v1757
    %v1759 = vtanh.pop %v1758
    %v1760 = vmul.f32 %v1754, %v1759
    %1761 = vst [vmem:[#allocation5] sm:$0xff] %v1758
    %1762 = vst [vmem:[#allocation4] sm:$0xff] %v1760
    %1763 = vst [vmem:[%s720] sm:$0xff] %v1760
    %v1764 = vld [vmem:[#allocation4] sm:$0xff]
    %v1765 = vld [vmem:[%s723] sm:$0xff]
    %v1766 = vld [vmem:[%s723 + $0x8] sm:$0xff]
    %1767 = vmatprep.subr.mxu0 %v1173
    %1768 = vmatpush1.msra.mxu0 %v1172
    %1769 = vmatprep.subr.mxu0 %v1175
    %1770 = vmatpush1.msra.mxu0 %v1174
    %1771 = vmatprep.subr.mxu0 %v1177
    %1772 = vmatpush1.msra.mxu0 %v1176
    %1773 = vmatprep.subr.mxu0 %v1179
    %1774 = vmatpush1.msra.mxu0 %v1178
    %1775 = vmatprep.subr.mxu0 %v1181
    %1776 = vmatpush1.msra.mxu0 %v1180
    %1777 = vmatprep.subr.mxu0 %v1183
    %1778 = vmatpush1.msra.mxu0 %v1182
    %1779 = vmatprep.subr.mxu0 %v1185
    %1780 = vmatpush1.msra.mxu0 %v1184
    %1781 = vmatprep.subr.mxu0 %v1187
    %1782 = vmatpush1.msra.mxu0 %v1186
    %1783 = vmatprep.subr.mxu0 %v1189
    %1784 = vmatpush1.msra.mxu0 %v1188
    %1785 = vmatprep.subr.mxu0 %v1191
    %1786 = vmatpush1.msra.mxu0 %v1190
    %1787 = vmatprep.subr.mxu0 %v1193
    %1788 = vmatpush1.msra.mxu0 %v1192
    %1789 = vmatprep.subr.mxu0 %v1195
    %1790 = vmatpush1.msra.mxu0 %v1194
    %1791 = vmatprep.subr.mxu0 %v1197
    %1792 = vmatpush1.msra.mxu0 %v1196
    %1793 = vmatprep.subr.mxu0 %v1199
    %1794 = vmatpush1.msra.mxu0 %v1198
    %1795 = vmatprep.subr.mxu0 %v1201
    %1796 = vmatpush1.msra.mxu0 %v1200
    %1797 = vmatprep.subr.mxu0 %v1203
    %1798 = vmatpush1.msra.mxu0 %v1202
    %1799 = vmatprep.subr.mxu0 0.0
    %1800 = vmatpush1.msra.mxu0 0.0
    %1801 = vmatprep.subr.mxu0 0.0
    %1802 = vmatpush1.msra.mxu0 0.0
    %1803 = vmatprep.subr.mxu0 0.0
    %1804 = vmatpush1.msra.mxu0 0.0
    %1805 = vmatprep.subr.mxu0 0.0
    %1806 = vmatpush1.msra.mxu0 0.0
    %1807 = vmatprep.subr.mxu0 0.0
    %1808 = vmatpush1.msra.mxu0 0.0
    %1809 = vmatprep.subr.mxu0 0.0
    %1810 = vmatpush1.msra.mxu0 0.0
    %1811 = vmatprep.subr.mxu0 0.0
    %1812 = vmatpush1.msra.mxu0 0.0
    %1813 = vmatprep.subr.mxu0 0.0
    %1814 = vmatpush1.msra.mxu0 0.0
    %1815 = vmatprep.subr.mxu0 0.0
    %1816 = vmatpush1.msra.mxu0 0.0
    %1817 = vmatprep.subr.mxu0 0.0
    %1818 = vmatpush1.msra.mxu0 0.0
    %1819 = vmatprep.subr.mxu0 0.0
    %1820 = vmatpush1.msra.mxu0 0.0
    %1821 = vmatprep.subr.mxu0 0.0
    %1822 = vmatpush1.msra.mxu0 0.0
    %1823 = vmatprep.subr.mxu0 0.0
    %1824 = vmatpush1.msra.mxu0 0.0
    %1825 = vmatprep.subr.mxu0 0.0
    %1826 = vmatpush1.msra.mxu0 0.0
    %1827 = vmatprep.subr.mxu0 0.0
    %1828 = vmatpush1.msra.mxu0 0.0
    %1829 = vmatprep.subr.mxu0 0.0
    %1830 = vmatpush1.msra.mxu0 0.0
    %1831 = vmatprep.mubr.f32.mxu0 0.0
    %1832 = vmatmul.mubr.f32.gmra.mrb[0].mxu0 %v1764
    %v1833 = vpop.f32.mrb[0].mxu0
    %v1834 = vadd.f32 %v1765, %v1833
    %v1835 = vpop.f32.mrb[0].mxu0
    %v1836 = vadd.f32 %v1766, %v1835
    %1837 = vdwg.mxu0
    %v1838 = vxor.u32 %v1834, 2147483648
    %v1839 = vmul.f32 %v1838, 1.442695
    %v1840 = vpow.pop %v1839
    %v1841 = vadd.f32 %v1840, 1.0
    %v1842 = vrcp.pop %v1841
    %v1843 = vmul.f32 1.0, %v1842
    %v1844 = vxor.u32 %v1836, 2147483648
    %v1845 = vmul.f32 %v1844, 1.442695
    %v1846 = vpow.pop %v1845
    %v1847 = vadd.f32 %v1846, 1.0
    %v1848 = vrcp.pop %v1847
    %v1849 = vmul.f32 1.0, %v1848
    %v1850 = vmul.f32 %v1849, 2.0
    %v1851 = vsub.f32 %v1850, 1.0
    %v1852 = vsel %vm92, %v1851, %v1849
    %1853 = vrot.lane.b32.xlu0 %v1843, 64
    %v1854 = vpop.permute.xlu0 %1853
    %1855 = vrot.lane.b32.xlu0 %v1852, 64
    %v1856 = vpop.permute.xlu0 %1855
    %v1857 = vld [vmem:[#allocation5] sm:$0xff]
    %v1858 = vmul.f32 %v1854, %v1857
    %v1859 = vmul.f32 %v1843, %v1852
    %v1860 = vadd.f32 %v1858, %v1859
    %v1861 = vtanh.pop %v1860
    %v1862 = vmul.f32 %v1856, %v1861
    %1863 = vst [vmem:[#allocation5] sm:$0xff] %v1860
    %1864 = vst [vmem:[#allocation4] sm:$0xff] %v1862
    %1865 = vst [vmem:[%s824] sm:$0xff] %v1862
    %v1866 = vld [vmem:[#allocation4] sm:$0xff]
    %v1867 = vld [vmem:[%s827] sm:$0xff]
    %v1868 = vld [vmem:[%s827 + $0x8] sm:$0xff]
    %1869 = vmatprep.subr.mxu0 %v1173
    %1870 = vmatpush1.msra.mxu0 %v1172
    %1871 = vmatprep.subr.mxu0 %v1175
    %1872 = vmatpush1.msra.mxu0 %v1174
    %1873 = vmatprep.subr.mxu0 %v1177
    %1874 = vmatpush1.msra.mxu0 %v1176
    %1875 = vmatprep.subr.mxu0 %v1179
    %1876 = vmatpush1.msra.mxu0 %v1178
    %1877 = vmatprep.subr.mxu0 %v1181
    %1878 = vmatpush1.msra.mxu0 %v1180
    %1879 = vmatprep.subr.mxu0 %v1183
    %1880 = vmatpush1.msra.mxu0 %v1182
    %1881 = vmatprep.subr.mxu0 %v1185
    %1882 = vmatpush1.msra.mxu0 %v1184
    %1883 = vmatprep.subr.mxu0 %v1187
    %1884 = vmatpush1.msra.mxu0 %v1186
    %1885 = vmatprep.subr.mxu0 %v1189
    %1886 = vmatpush1.msra.mxu0 %v1188
    %1887 = vmatprep.subr.mxu0 %v1191
    %1888 = vmatpush1.msra.mxu0 %v1190
    %1889 = vmatprep.subr.mxu0 %v1193
    %1890 = vmatpush1.msra.mxu0 %v1192
    %1891 = vmatprep.subr.mxu0 %v1195
    %1892 = vmatpush1.msra.mxu0 %v1194
    %1893 = vmatprep.subr.mxu0 %v1197
    %1894 = vmatpush1.msra.mxu0 %v1196
    %1895 = vmatprep.subr.mxu0 %v1199
    %1896 = vmatpush1.msra.mxu0 %v1198
    %1897 = vmatprep.subr.mxu0 %v1201
    %1898 = vmatpush1.msra.mxu0 %v1200
    %1899 = vmatprep.subr.mxu0 %v1203
    %1900 = vmatpush1.msra.mxu0 %v1202
    %1901 = vmatprep.subr.mxu0 0.0
    %1902 = vmatpush1.msra.mxu0 0.0
    %1903 = vmatprep.subr.mxu0 0.0
    %1904 = vmatpush1.msra.mxu0 0.0
    %1905 = vmatprep.subr.mxu0 0.0
    %1906 = vmatpush1.msra.mxu0 0.0
    %1907 = vmatprep.subr.mxu0 0.0
    %1908 = vmatpush1.msra.mxu0 0.0
    %1909 = vmatprep.subr.mxu0 0.0
    %1910 = vmatpush1.msra.mxu0 0.0
    %1911 = vmatprep.subr.mxu0 0.0
    %1912 = vmatpush1.msra.mxu0 0.0
    %1913 = vmatprep.subr.mxu0 0.0
    %1914 = vmatpush1.msra.mxu0 0.0
    %1915 = vmatprep.subr.mxu0 0.0
    %1916 = vmatpush1.msra.mxu0 0.0
    %1917 = vmatprep.subr.mxu0 0.0
    %1918 = vmatpush1.msra.mxu0 0.0
    %1919 = vmatprep.subr.mxu0 0.0
    %1920 = vmatpush1.msra.mxu0 0.0
    %1921 = vmatprep.subr.mxu0 0.0
    %1922 = vmatpush1.msra.mxu0 0.0
    %1923 = vmatprep.subr.mxu0 0.0
    %1924 = vmatpush1.msra.mxu0 0.0
    %1925 = vmatprep.subr.mxu0 0.0
    %1926 = vmatpush1.msra.mxu0 0.0
    %1927 = vmatprep.subr.mxu0 0.0
    %1928 = vmatpush1.msra.mxu0 0.0
    %1929 = vmatprep.subr.mxu0 0.0
    %1930 = vmatpush1.msra.mxu0 0.0
    %1931 = vmatprep.subr.mxu0 0.0
    %1932 = vmatpush1.msra.mxu0 0.0
    %1933 = vmatprep.mubr.f32.mxu0 0.0
    %1934 = vmatmul.mubr.f32.gmra.mrb[0].mxu0 %v1866
    %v1935 = vpop.f32.mrb[0].mxu0
    %v1936 = vadd.f32 %v1867, %v1935
    %v1937 = vpop.f32.mrb[0].mxu0
    %v1938 = vadd.f32 %v1868, %v1937
    %1939 = vdwg.mxu0
    %v1940 = vxor.u32 %v1936, 2147483648
    %v1941 = vmul.f32 %v1940, 1.442695
    %v1942 = vpow.pop %v1941
    %v1943 = vadd.f32 %v1942, 1.0
    %v1944 = vrcp.pop %v1943
    %v1945 = vmul.f32 1.0, %v1944
    %v1946 = vxor.u32 %v1938, 2147483648
    %v1947 = vmul.f32 %v1946, 1.442695
    %v1948 = vpow.pop %v1947
    %v1949 = vadd.f32 %v1948, 1.0
    %v1950 = vrcp.pop %v1949
    %v1951 = vmul.f32 1.0, %v1950
    %v1952 = vmul.f32 %v1951, 2.0
    %v1953 = vsub.f32 %v1952, 1.0
    %v1954 = vsel %vm92, %v1953, %v1951
    %1955 = vrot.lane.b32.xlu0 %v1945, 64
    %v1956 = vpop.permute.xlu0 %1955
    %1957 = vrot.lane.b32.xlu0 %v1954, 64
    %v1958 = vpop.permute.xlu0 %1957
    %v1959 = vld [vmem:[#allocation5] sm:$0xff]
    %v1960 = vmul.f32 %v1956, %v1959
    %v1961 = vmul.f32 %v1945, %v1954
    %v1962 = vadd.f32 %v1960, %v1961
    %v1963 = vtanh.pop %v1962
    %v1964 = vmul.f32 %v1958, %v1963
    %1965 = vst [vmem:[#allocation5] sm:$0xff] %v1962
    %1966 = vst [vmem:[#allocation4] sm:$0xff] %v1964
    %1967 = vst [vmem:[%s928] sm:$0xff] %v1964
    %v1968 = vld [vmem:[#allocation4] sm:$0xff]
    %v1969 = vld [vmem:[%s931] sm:$0xff]
    %v1970 = vld [vmem:[%s931 + $0x8] sm:$0xff]
    %1971 = vmatprep.subr.mxu0 %v1173
    %1972 = vmatpush1.msra.mxu0 %v1172
    %1973 = vmatprep.subr.mxu0 %v1175
    %1974 = vmatpush1.msra.mxu0 %v1174
    %1975 = vmatprep.subr.mxu0 %v1177
    %1976 = vmatpush1.msra.mxu0 %v1176
    %1977 = vmatprep.subr.mxu0 %v1179
    %1978 = vmatpush1.msra.mxu0 %v1178
    %1979 = vmatprep.subr.mxu0 %v1181
    %1980 = vmatpush1.msra.mxu0 %v1180
    %1981 = vmatprep.subr.mxu0 %v1183
    %1982 = vmatpush1.msra.mxu0 %v1182
    %1983 = vmatprep.subr.mxu0 %v1185
    %1984 = vmatpush1.msra.mxu0 %v1184
    %1985 = vmatprep.subr.mxu0 %v1187
    %1986 = vmatpush1.msra.mxu0 %v1186
    %1987 = vmatprep.subr.mxu0 %v1189
    %1988 = vmatpush1.msra.mxu0 %v1188
    %1989 = vmatprep.subr.mxu0 %v1191
    %1990 = vmatpush1.msra.mxu0 %v1190
    %1991 = vmatprep.subr.mxu0 %v1193
    %1992 = vmatpush1.msra.mxu0 %v1192
    %1993 = vmatprep.subr.mxu0 %v1195
    %1994 = vmatpush1.msra.mxu0 %v1194
    %1995 = vmatprep.subr.mxu0 %v1197
    %1996 = vmatpush1.msra.mxu0 %v1196
    %1997 = vmatprep.subr.mxu0 %v1199
    %1998 = vmatpush1.msra.mxu0 %v1198
    %1999 = vmatprep.subr.mxu0 %v1201
    %2000 = vmatpush1.msra.mxu0 %v1200
    %2001 = vmatprep.subr.mxu0 %v1203
    %2002 = vmatpush1.msra.mxu0 %v1202
    %2003 = vmatprep.subr.mxu0 0.0
    %2004 = vmatpush1.msra.mxu0 0.0
    %2005 = vmatprep.subr.mxu0 0.0
    %2006 = vmatpush1.msra.mxu0 0.0
    %2007 = vmatprep.subr.mxu0 0.0
    %2008 = vmatpush1.msra.mxu0 0.0
    %2009 = vmatprep.subr.mxu0 0.0
    %2010 = vmatpush1.msra.mxu0 0.0
    %2011 = vmatprep.subr.mxu0 0.0
    %2012 = vmatpush1.msra.mxu0 0.0
    %2013 = vmatprep.subr.mxu0 0.0
    %2014 = vmatpush1.msra.mxu0 0.0
    %2015 = vmatprep.subr.mxu0 0.0
    %2016 = vmatpush1.msra.mxu0 0.0
    %2017 = vmatprep.subr.mxu0 0.0
    %2018 = vmatpush1.msra.mxu0 0.0
    %2019 = vmatprep.subr.mxu0 0.0
    %2020 = vmatpush1.msra.mxu0 0.0
    %2021 = vmatprep.subr.mxu0 0.0
    %2022 = vmatpush1.msra.mxu0 0.0
    %2023 = vmatprep.subr.mxu0 0.0
    %2024 = vmatpush1.msra.mxu0 0.0
    %2025 = vmatprep.subr.mxu0 0.0
    %2026 = vmatpush1.msra.mxu0 0.0
    %2027 = vmatprep.subr.mxu0 0.0
    %2028 = vmatpush1.msra.mxu0 0.0
    %2029 = vmatprep.subr.mxu0 0.0
    %2030 = vmatpush1.msra.mxu0 0.0
    %2031 = vmatprep.subr.mxu0 0.0
    %2032 = vmatpush1.msra.mxu0 0.0
    %2033 = vmatprep.subr.mxu0 0.0
    %2034 = vmatpush1.msra.mxu0 0.0
    %2035 = vmatprep.mubr.f32.mxu0 0.0
    %2036 = vmatmul.mubr.f32.gmra.mrb[0].mxu0 %v1968
    %v2037 = vpop.f32.mrb[0].mxu0
    %v2038 = vadd.f32 %v1969, %v2037
    %v2039 = vpop.f32.mrb[0].mxu0
    %v2040 = vadd.f32 %v1970, %v2039
    %2041 = vdwg.mxu0
    %v2042 = vxor.u32 %v2038, 2147483648
    %v2043 = vmul.f32 %v2042, 1.442695
    %v2044 = vpow.pop %v2043
    %v2045 = vadd.f32 %v2044, 1.0
    %v2046 = vrcp.pop %v2045
    %v2047 = vmul.f32 1.0, %v2046
    %v2048 = vxor.u32 %v2040, 2147483648
    %v2049 = vmul.f32 %v2048, 1.442695
    %v2050 = vpow.pop %v2049
    %v2051 = vadd.f32 %v2050, 1.0
    %v2052 = vrcp.pop %v2051
    %v2053 = vmul.f32 1.0, %v2052
    %v2054 = vmul.f32 %v2053, 2.0
    %v2055 = vsub.f32 %v2054, 1.0
    %v2056 = vsel %vm92, %v2055, %v2053
    %2057 = vrot.lane.b32.xlu0 %v2047, 64
    %v2058 = vpop.permute.xlu0 %2057
    %2059 = vrot.lane.b32.xlu0 %v2056, 64
    %v2060 = vpop.permute.xlu0 %2059
    %v2061 = vld [vmem:[#allocation5] sm:$0xff]
    %v2062 = vmul.f32 %v2058, %v2061
    %v2063 = vmul.f32 %v2047, %v2056
    %v2064 = vadd.f32 %v2062, %v2063
    %v2065 = vtanh.pop %v2064
    %v2066 = vmul.f32 %v2060, %v2065
    %2067 = vst [vmem:[#allocation5] sm:$0xff] %v2064
    %2068 = vst [vmem:[#allocation4] sm:$0xff] %v2066
    %2069 = vst [vmem:[%s1032] sm:$0xff] %v2066
    %v2070 = vld [vmem:[#allocation4] sm:$0xff]
    %v2071 = vld [vmem:[%s1035] sm:$0xff]
    %v2072 = vld [vmem:[%s1035 + $0x8] sm:$0xff]
    %2073 = vmatprep.subr.mxu0 %v1173
    %2074 = vmatpush1.msra.mxu0 %v1172
    %2075 = vmatprep.subr.mxu0 %v1175
    %2076 = vmatpush1.msra.mxu0 %v1174
    %2077 = vmatprep.subr.mxu0 %v1177
    %2078 = vmatpush1.msra.mxu0 %v1176
    %2079 = vmatprep.subr.mxu0 %v1179
    %2080 = vmatpush1.msra.mxu0 %v1178
    %2081 = vmatprep.subr.mxu0 %v1181
    %2082 = vmatpush1.msra.mxu0 %v1180
    %2083 = vmatprep.subr.mxu0 %v1183
    %2084 = vmatpush1.msra.mxu0 %v1182
    %2085 = vmatprep.subr.mxu0 %v1185
    %2086 = vmatpush1.msra.mxu0 %v1184
    %2087 = vmatprep.subr.mxu0 %v1187
    %2088 = vmatpush1.msra.mxu0 %v1186
    %2089 = vmatprep.subr.mxu0 %v1189
    %2090 = vmatpush1.msra.mxu0 %v1188
    %2091 = vmatprep.subr.mxu0 %v1191
    %2092 = vmatpush1.msra.mxu0 %v1190
    %2093 = vmatprep.subr.mxu0 %v1193
    %2094 = vmatpush1.msra.mxu0 %v1192
    %2095 = vmatprep.subr.mxu0 %v1195
    %2096 = vmatpush1.msra.mxu0 %v1194
    %2097 = vmatprep.subr.mxu0 %v1197
    %2098 = vmatpush1.msra.mxu0 %v1196
    %2099 = vmatprep.subr.mxu0 %v1199
    %2100 = vmatpush1.msra.mxu0 %v1198
    %2101 = vmatprep.subr.mxu0 %v1201
    %2102 = vmatpush1.msra.mxu0 %v1200
    %2103 = vmatprep.subr.mxu0 %v1203
    %2104 = vmatpush1.msra.mxu0 %v1202
    %2105 = vmatprep.subr.mxu0 0.0
    %2106 = vmatpush1.msra.mxu0 0.0
    %2107 = vmatprep.subr.mxu0 0.0
    %2108 = vmatpush1.msra.mxu0 0.0
    %2109 = vmatprep.subr.mxu0 0.0
    %2110 = vmatpush1.msra.mxu0 0.0
    %2111 = vmatprep.subr.mxu0 0.0
    %2112 = vmatpush1.msra.mxu0 0.0
    %2113 = vmatprep.subr.mxu0 0.0
    %2114 = vmatpush1.msra.mxu0 0.0
    %2115 = vmatprep.subr.mxu0 0.0
    %2116 = vmatpush1.msra.mxu0 0.0
    %2117 = vmatprep.subr.mxu0 0.0
    %2118 = vmatpush1.msra.mxu0 0.0
    %2119 = vmatprep.subr.mxu0 0.0
    %2120 = vmatpush1.msra.mxu0 0.0
    %2121 = vmatprep.subr.mxu0 0.0
    %2122 = vmatpush1.msra.mxu0 0.0
    %2123 = vmatprep.subr.mxu0 0.0
    %2124 = vmatpush1.msra.mxu0 0.0
    %2125 = vmatprep.subr.mxu0 0.0
    %2126 = vmatpush1.msra.mxu0 0.0
    %2127 = vmatprep.subr.mxu0 0.0
    %2128 = vmatpush1.msra.mxu0 0.0
    %2129 = vmatprep.subr.mxu0 0.0
    %2130 = vmatpush1.msra.mxu0 0.0
    %2131 = vmatprep.subr.mxu0 0.0
    %2132 = vmatpush1.msra.mxu0 0.0
    %2133 = vmatprep.subr.mxu0 0.0
    %2134 = vmatpush1.msra.mxu0 0.0
    %2135 = vmatprep.subr.mxu0 0.0
    %2136 = vmatpush1.msra.mxu0 0.0
    %2137 = vmatprep.mubr.f32.mxu0 0.0
    %2138 = vmatmul.mubr.f32.gmra.mrb[0].mxu0 %v2070
    %v2139 = vpop.f32.mrb[0].mxu0
    %v2140 = vadd.f32 %v2071, %v2139
    %v2141 = vpop.f32.mrb[0].mxu0
    %v2142 = vadd.f32 %v2072, %v2141
    %2143 = vdwg.mxu0
    %v2144 = vxor.u32 %v2140, 2147483648
    %v2145 = vmul.f32 %v2144, 1.442695
    %v2146 = vpow.pop %v2145
    %v2147 = vadd.f32 %v2146, 1.0
    %v2148 = vrcp.pop %v2147
    %v2149 = vmul.f32 1.0, %v2148
    %v2150 = vxor.u32 %v2142, 2147483648
    %v2151 = vmul.f32 %v2150, 1.442695
    %v2152 = vpow.pop %v2151
    %v2153 = vadd.f32 %v2152, 1.0
    %v2154 = vrcp.pop %v2153
    %v2155 = vmul.f32 1.0, %v2154
    %v2156 = vmul.f32 %v2155, 2.0
    %v2157 = vsub.f32 %v2156, 1.0
    %v2158 = vsel %vm92, %v2157, %v2155
    %2159 = vrot.lane.b32.xlu0 %v2149, 64
    %v2160 = vpop.permute.xlu0 %2159
    %2161 = vrot.lane.b32.xlu0 %v2158, 64
    %v2162 = vpop.permute.xlu0 %2161
    %v2163 = vld [vmem:[#allocation5] sm:$0xff]
    %v2164 = vmul.f32 %v2160, %v2163
    %v2165 = vmul.f32 %v2149, %v2158
    %v2166 = vadd.f32 %v2164, %v2165
    %v2167 = vtanh.pop %v2166
    %v2168 = vmul.f32 %v2162, %v2167
    %2169 = vst [vmem:[#allocation5] sm:$0xff] %v2166
    %2170 = vst [vmem:[#allocation4] sm:$0xff] %v2168
    %2171 = vst [vmem:[%s1136] sm:$0xff] %v2168
    %s2172 = scalar_lea.vmem [#allocation9], 512
    %v2173 = vld [vmem:[%s2172] sm:$0xff]
    %v2174 = vld [vmem:[%s2172 + $0x8] sm:$0xff]
    %v2175 = vld [vmem:[%s2172 + $0x10] sm:$0xff]
    %v2176 = vld [vmem:[%s2172 + $0x18] sm:$0xff]
    %v2177 = vld [vmem:[%s2172 + $0x20] sm:$0xff]
    %v2178 = vld [vmem:[%s2172 + $0x28] sm:$0xff]
    %v2179 = vld [vmem:[%s2172 + $0x30] sm:$0xff]
    %v2180 = vld [vmem:[%s2172 + $0x38] sm:$0xff]
    %v2181 = vld [vmem:[%s2172 + $0x40] sm:$0xff]
    %v2182 = vld [vmem:[%s2172 + $0x48] sm:$0xff]
    %v2183 = vld [vmem:[%s2172 + $0x50] sm:$0xff]
    %v2184 = vld [vmem:[%s2172 + $0x58] sm:$0xff]
    %v2185 = vld [vmem:[%s2172 + $0x60] sm:$0xff]
    %v2186 = vld [vmem:[%s2172 + $0x68] sm:$0xff]
    %v2187 = vld [vmem:[%s2172 + $0x70] sm:$0xff]
    %v2188 = vld [vmem:[%s2172 + $0x78] sm:$0xff]
    %v2189 = vld [vmem:[%s2172 + $0x80] sm:$0xff]
    %v2190 = vld [vmem:[%s2172 + $0x88] sm:$0xff]
    %v2191 = vld [vmem:[%s2172 + $0x90] sm:$0xff]
    %v2192 = vld [vmem:[%s2172 + $0x98] sm:$0xff]
    %v2193 = vld [vmem:[%s2172 + $0xa0] sm:$0xff]
    %v2194 = vld [vmem:[%s2172 + $0xa8] sm:$0xff]
    %v2195 = vld [vmem:[%s2172 + $0xb0] sm:$0xff]
    %v2196 = vld [vmem:[%s2172 + $0xb8] sm:$0xff]
    %v2197 = vld [vmem:[%s2172 + $0xc0] sm:$0xff]
    %v2198 = vld [vmem:[%s2172 + $0xc8] sm:$0xff]
    %v2199 = vld [vmem:[%s2172 + $0xd0] sm:$0xff]
    %v2200 = vld [vmem:[%s2172 + $0xd8] sm:$0xff]
    %v2201 = vld [vmem:[%s2172 + $0xe0] sm:$0xff]
    %v2202 = vld [vmem:[%s2172 + $0xe8] sm:$0xff]
    %v2203 = vld [vmem:[%s2172 + $0xf0] sm:$0xff]
    %v2204 = vld [vmem:[%s2172 + $0xf8] sm:$0xff]
    %s2205 = scalar_lea.vmem [#allocation11], 512
    %v2206 = vld [vmem:[%s2205] sm:$0xff]
    %v2207 = vld [vmem:[%s2205 + $0x8] sm:$0xff]
    %v2208 = vld [vmem:[%s2205 + $0x10] sm:$0xff]
    %v2209 = vld [vmem:[%s2205 + $0x18] sm:$0xff]
    %v2210 = vld [vmem:[%s2205 + $0x20] sm:$0xff]
    %v2211 = vld [vmem:[%s2205 + $0x28] sm:$0xff]
    %v2212 = vld [vmem:[%s2205 + $0x30] sm:$0xff]
    %v2213 = vld [vmem:[%s2205 + $0x38] sm:$0xff]
    %v2214 = vld [vmem:[%s2205 + $0x40] sm:$0xff]
    %v2215 = vld [vmem:[%s2205 + $0x48] sm:$0xff]
    %v2216 = vld [vmem:[%s2205 + $0x50] sm:$0xff]
    %v2217 = vld [vmem:[%s2205 + $0x58] sm:$0xff]
    %v2218 = vld [vmem:[%s2205 + $0x60] sm:$0xff]
    %v2219 = vld [vmem:[%s2205 + $0x68] sm:$0xff]
    %v2220 = vld [vmem:[%s2205 + $0x70] sm:$0xff]
    %v2221 = vld [vmem:[%s2205 + $0x78] sm:$0xff]
    %v2222 = vld [vmem:[%s2205 + $0x80] sm:$0xff]
    %v2223 = vld [vmem:[%s2205 + $0x88] sm:$0xff]
    %v2224 = vld [vmem:[%s2205 + $0x90] sm:$0xff]
    %v2225 = vld [vmem:[%s2205 + $0x98] sm:$0xff]
    %v2226 = vld [vmem:[%s2205 + $0xa0] sm:$0xff]
    %v2227 = vld [vmem:[%s2205 + $0xa8] sm:$0xff]
    %v2228 = vld [vmem:[%s2205 + $0xb0] sm:$0xff]
    %v2229 = vld [vmem:[%s2205 + $0xb8] sm:$0xff]
    %v2230 = vld [vmem:[%s2205 + $0xc0] sm:$0xff]
    %v2231 = vld [vmem:[%s2205 + $0xc8] sm:$0xff]
    %v2232 = vld [vmem:[%s2205 + $0xd0] sm:$0xff]
    %v2233 = vld [vmem:[%s2205 + $0xd8] sm:$0xff]
    %v2234 = vld [vmem:[%s2205 + $0xe0] sm:$0xff]
    %v2235 = vld [vmem:[%s2205 + $0xe8] sm:$0xff]
    %v2236 = vld [vmem:[%s2205 + $0xf0] sm:$0xff]
    %v2237 = vld [vmem:[%s2205 + $0xf8] sm:$0xff]
    %s2238 = scalar_lea.vmem [#allocation12], 2
    %v2239 = vld [vmem:[%s2238] ss:$8 sm:$0x3]
    %v2240 = vld [vmem:[#allocation2] sm:$0xff]
    %v2241 = vld [vmem:[#allocation2 + $0x8] sm:$0xff]
    %v2242 = vld [vmem:[#allocation2 + $0x10] sm:$0xff]
    %v2243 = vld [vmem:[#allocation2 + $0x18] sm:$0xff]
    %v2244 = vld [vmem:[#allocation2 + $0x20] sm:$0xff]
    %v2245 = vld [vmem:[#allocation2 + $0x28] sm:$0xff]
    %v2246 = vld [vmem:[#allocation2 + $0x30] sm:$0xff]
    %v2247 = vld [vmem:[#allocation2 + $0x38] sm:$0xff]
    %v2249 = vlaneseq
    %v2250 = vshrl.u32 %v2249, 7
    %v2251 = vsub.s32 0, %v2250
    %v2252 = vrot.slane %v2239, %v2251
    %v2253 = vlaneseq
    %v2254 = vshrl.u32 %v2253, 7
    %v2255 = vsub.s32 1, %v2254
    %v2256 = vrot.slane %v2239, %v2255
    %2259 = vmatprep.subr.mxu0 %v2174
    %2260 = vmatpush1.msra.mxu0 %v2173
    %2261 = vmatprep.subr.mxu0 %v2176
    %2262 = vmatpush1.msra.mxu0 %v2175
    %2263 = vmatprep.subr.mxu0 %v2178
    %2264 = vmatpush1.msra.mxu0 %v2177
    %2265 = vmatprep.subr.mxu0 %v2180
    %2266 = vmatpush1.msra.mxu0 %v2179
    %2267 = vmatprep.subr.mxu0 %v2182
    %2268 = vmatpush1.msra.mxu0 %v2181
    %2269 = vmatprep.subr.mxu0 %v2184
    %2270 = vmatpush1.msra.mxu0 %v2183
    %2271 = vmatprep.subr.mxu0 %v2186
    %2272 = vmatpush1.msra.mxu0 %v2185
    %2273 = vmatprep.subr.mxu0 %v2188
    %2274 = vmatpush1.msra.mxu0 %v2187
    %2275 = vmatprep.subr.mxu0 %v2190
    %2276 = vmatpush1.msra.mxu0 %v2189
    %2277 = vmatprep.subr.mxu0 %v2192
    %2278 = vmatpush1.msra.mxu0 %v2191
    %2279 = vmatprep.subr.mxu0 %v2194
    %2280 = vmatpush1.msra.mxu0 %v2193
    %2281 = vmatprep.subr.mxu0 %v2196
    %2282 = vmatpush1.msra.mxu0 %v2195
    %2283 = vmatprep.subr.mxu0 %v2198
    %2284 = vmatpush1.msra.mxu0 %v2197
    %2285 = vmatprep.subr.mxu0 %v2200
    %2286 = vmatpush1.msra.mxu0 %v2199
    %2287 = vmatprep.subr.mxu0 %v2202
    %2288 = vmatpush1.msra.mxu0 %v2201
    %2289 = vmatprep.subr.mxu0 %v2204
    %2290 = vmatpush1.msra.mxu0 %v2203
    %2291 = vmatprep.subr.mxu0 0.0
    %2292 = vmatpush1.msra.mxu0 0.0
    %2293 = vmatprep.subr.mxu0 0.0
    %2294 = vmatpush1.msra.mxu0 0.0
    %2295 = vmatprep.subr.mxu0 0.0
    %2296 = vmatpush1.msra.mxu0 0.0
    %2297 = vmatprep.subr.mxu0 0.0
    %2298 = vmatpush1.msra.mxu0 0.0
    %2299 = vmatprep.subr.mxu0 0.0
    %2300 = vmatpush1.msra.mxu0 0.0
    %2301 = vmatprep.subr.mxu0 0.0
    %2302 = vmatpush1.msra.mxu0 0.0
    %2303 = vmatprep.subr.mxu0 0.0
    %2304 = vmatpush1.msra.mxu0 0.0
    %2305 = vmatprep.subr.mxu0 0.0
    %2306 = vmatpush1.msra.mxu0 0.0
    %2307 = vmatprep.subr.mxu0 0.0
    %2308 = vmatpush1.msra.mxu0 0.0
    %2309 = vmatprep.subr.mxu0 0.0
    %2310 = vmatpush1.msra.mxu0 0.0
    %2311 = vmatprep.subr.mxu0 0.0
    %2312 = vmatpush1.msra.mxu0 0.0
    %2313 = vmatprep.subr.mxu0 0.0
    %2314 = vmatpush1.msra.mxu0 0.0
    %2315 = vmatprep.subr.mxu0 0.0
    %2316 = vmatpush1.msra.mxu0 0.0
    %2317 = vmatprep.subr.mxu0 0.0
    %2318 = vmatpush1.msra.mxu0 0.0
    %2319 = vmatprep.subr.mxu0 0.0
    %2320 = vmatpush1.msra.mxu0 0.0
    %2321 = vmatprep.subr.mxu0 0.0
    %2322 = vmatpush1.msra.mxu0 0.0
    %2323 = vmatprep.mubr.f32.mxu0 0.0
    %2324 = vmatmul.mubr.f32.gmra.mrb[0].mxu0 %v2240
    %v2325 = vpop.f32.mrb[0].mxu0
    %v2326 = vadd.f32 %v2252, %v2325
    %v2327 = vpop.f32.mrb[0].mxu0
    %v2328 = vadd.f32 %v2256, %v2327
    %2329 = vmatprep.mubr.f32.mxu0 0.0
    %2330 = vmatmul.mubr.f32.gmra.mrb[0].mxu0 %v2241
    %v2331 = vpop.f32.mrb[0].mxu0
    %v2332 = vadd.f32 %v2252, %v2331
    %v2333 = vpop.f32.mrb[0].mxu0
    %v2334 = vadd.f32 %v2256, %v2333
    %2335 = vmatprep.mubr.f32.mxu0 0.0
    %2336 = vmatmul.mubr.f32.gmra.mrb[0].mxu0 %v2242
    %v2337 = vpop.f32.mrb[0].mxu0
    %v2338 = vadd.f32 %v2252, %v2337
    %v2339 = vpop.f32.mrb[0].mxu0
    %v2340 = vadd.f32 %v2256, %v2339
    %2341 = vmatprep.mubr.f32.mxu0 0.0
    %2342 = vmatmul.mubr.f32.gmra.mrb[0].mxu0 %v2243
    %v2343 = vpop.f32.mrb[0].mxu0
    %v2344 = vadd.f32 %v2252, %v2343
    %v2345 = vpop.f32.mrb[0].mxu0
    %v2346 = vadd.f32 %v2256, %v2345
    %2347 = vmatprep.mubr.f32.mxu0 0.0
    %2348 = vmatmul.mubr.f32.gmra.mrb[0].mxu0 %v2244
    %v2349 = vpop.f32.mrb[0].mxu0
    %v2350 = vadd.f32 %v2252, %v2349
    %v2351 = vpop.f32.mrb[0].mxu0
    %v2352 = vadd.f32 %v2256, %v2351
    %2353 = vmatprep.mubr.f32.mxu0 0.0
    %2354 = vmatmul.mubr.f32.gmra.mrb[0].mxu0 %v2245
    %v2355 = vpop.f32.mrb[0].mxu0
    %v2356 = vadd.f32 %v2252, %v2355
    %v2357 = vpop.f32.mrb[0].mxu0
    %v2358 = vadd.f32 %v2256, %v2357
    %2359 = vmatprep.mubr.f32.mxu0 0.0
    %2360 = vmatmul.mubr.f32.gmra.mrb[0].mxu0 %v2246
    %v2361 = vpop.f32.mrb[0].mxu0
    %v2362 = vadd.f32 %v2252, %v2361
    %v2363 = vpop.f32.mrb[0].mxu0
    %v2364 = vadd.f32 %v2256, %v2363
    %2365 = vmatprep.mubr.f32.mxu0 0.0
    %2366 = vmatmul.mubr.f32.gmra.mrb[0].mxu0 %v2247
    %v2367 = vpop.f32.mrb[0].mxu0
    %v2368 = vadd.f32 %v2252, %v2367
    %v2369 = vpop.f32.mrb[0].mxu0
    %v2370 = vadd.f32 %v2256, %v2369
    %2371 = vdwg.mxu0
    %2372 = vst [vmem:[#allocation3] sm:$0xff] %v2326
    %2373 = vst [vmem:[#allocation3 + $0x8] sm:$0xff] %v2328
    %2374 = vst [vmem:[#allocation3 + $0x10] sm:$0xff] %v2332
    %2375 = vst [vmem:[#allocation3 + $0x18] sm:$0xff] %v2334
    %2376 = vst [vmem:[#allocation3 + $0x20] sm:$0xff] %v2338
    %2377 = vst [vmem:[#allocation3 + $0x28] sm:$0xff] %v2340
    %2378 = vst [vmem:[#allocation3 + $0x30] sm:$0xff] %v2344
    %2379 = vst [vmem:[#allocation3 + $0x38] sm:$0xff] %v2346
    %2380 = vst [vmem:[#allocation3 + $0x40] sm:$0xff] %v2350
    %2381 = vst [vmem:[#allocation3 + $0x48] sm:$0xff] %v2352
    %2382 = vst [vmem:[#allocation3 + $0x50] sm:$0xff] %v2356
    %2383 = vst [vmem:[#allocation3 + $0x58] sm:$0xff] %v2358
    %2384 = vst [vmem:[#allocation3 + $0x60] sm:$0xff] %v2362
    %2385 = vst [vmem:[#allocation3 + $0x68] sm:$0xff] %v2364
    %2386 = vst [vmem:[#allocation3 + $0x70] sm:$0xff] %v2368
    %2387 = vst [vmem:[#allocation3 + $0x78] sm:$0xff] %v2370
    %2388 = vst [vmem:[#allocation4] sm:$0xff] 0.0
    %2389 = vst [vmem:[#allocation5] sm:$0xff] 0.0
    %v2390 = vld [vmem:[#allocation4] sm:$0xff]
    %v2391 = vld [vmem:[#allocation3] sm:$0xff]
    %v2392 = vld [vmem:[#allocation3 + $0x8] sm:$0xff]
    %2393 = vmatprep.subr.mxu0 %v2207
    %2394 = vmatpush1.msra.mxu0 %v2206
    %2395 = vmatprep.subr.mxu0 %v2209
    %2396 = vmatpush1.msra.mxu0 %v2208
    %2397 = vmatprep.subr.mxu0 %v2211
    %2398 = vmatpush1.msra.mxu0 %v2210
    %2399 = vmatprep.subr.mxu0 %v2213
    %2400 = vmatpush1.msra.mxu0 %v2212
    %2401 = vmatprep.subr.mxu0 %v2215
    %2402 = vmatpush1.msra.mxu0 %v2214
    %2403 = vmatprep.subr.mxu0 %v2217
    %2404 = vmatpush1.msra.mxu0 %v2216
    %2405 = vmatprep.subr.mxu0 %v2219
    %2406 = vmatpush1.msra.mxu0 %v2218
    %2407 = vmatprep.subr.mxu0 %v2221
    %2408 = vmatpush1.msra.mxu0 %v2220
    %2409 = vmatprep.subr.mxu0 %v2223
    %2410 = vmatpush1.msra.mxu0 %v2222
    %2411 = vmatprep.subr.mxu0 %v2225
    %2412 = vmatpush1.msra.mxu0 %v2224
    %2413 = vmatprep.subr.mxu0 %v2227
    %2414 = vmatpush1.msra.mxu0 %v2226
    %2415 = vmatprep.subr.mxu0 %v2229
    %2416 = vmatpush1.msra.mxu0 %v2228
    %2417 = vmatprep.subr.mxu0 %v2231
    %2418 = vmatpush1.msra.mxu0 %v2230
    %2419 = vmatprep.subr.mxu0 %v2233
    %2420 = vmatpush1.msra.mxu0 %v2232
    %2421 = vmatprep.subr.mxu0 %v2235
    %2422 = vmatpush1.msra.mxu0 %v2234
    %2423 = vmatprep.subr.mxu0 %v2237
    %2424 = vmatpush1.msra.mxu0 %v2236
    %2425 = vmatprep.subr.mxu0 0.0
    %2426 = vmatpush1.msra.mxu0 0.0
    %2427 = vmatprep.subr.mxu0 0.0
    %2428 = vmatpush1.msra.mxu0 0.0
    %2429 = vmatprep.subr.mxu0 0.0
    %2430 = vmatpush1.msra.mxu0 0.0
    %2431 = vmatprep.subr.mxu0 0.0
    %2432 = vmatpush1.msra.mxu0 0.0
    %2433 = vmatprep.subr.mxu0 0.0
    %2434 = vmatpush1.msra.mxu0 0.0
    %2435 = vmatprep.subr.mxu0 0.0
    %2436 = vmatpush1.msra.mxu0 0.0
    %2437 = vmatprep.subr.mxu0 0.0
    %2438 = vmatpush1.msra.mxu0 0.0
    %2439 = vmatprep.subr.mxu0 0.0
    %2440 = vmatpush1.msra.mxu0 0.0
    %2441 = vmatprep.subr.mxu0 0.0
    %2442 = vmatpush1.msra.mxu0 0.0
    %2443 = vmatprep.subr.mxu0 0.0
    %2444 = vmatpush1.msra.mxu0 0.0
    %2445 = vmatprep.subr.mxu0 0.0
    %2446 = vmatpush1.msra.mxu0 0.0
    %2447 = vmatprep.subr.mxu0 0.0
    %2448 = vmatpush1.msra.mxu0 0.0
    %2449 = vmatprep.subr.mxu0 0.0
    %2450 = vmatpush1.msra.mxu0 0.0
    %2451 = vmatprep.subr.mxu0 0.0
    %2452 = vmatpush1.msra.mxu0 0.0
    %2453 = vmatprep.subr.mxu0 0.0
    %2454 = vmatpush1.msra.mxu0 0.0
    %2455 = vmatprep.subr.mxu0 0.0
    %2456 = vmatpush1.msra.mxu0 0.0
    %2457 = vmatprep.mubr.f32.mxu0 0.0
    %2458 = vmatmul.mubr.f32.gmra.mrb[0].mxu0 %v2390
    %v2459 = vpop.f32.mrb[0].mxu0
    %v2460 = vadd.f32 %v2391, %v2459
    %v2461 = vpop.f32.mrb[0].mxu0
    %v2462 = vadd.f32 %v2392, %v2461
    %2463 = vdwg.mxu0
    %v2464 = vxor.u32 %v2460, 2147483648
    %v2465 = vmul.f32 %v2464, 1.442695
    %v2466 = vpow.pop %v2465
    %v2467 = vadd.f32 %v2466, 1.0
    %v2468 = vrcp.pop %v2467
    %v2469 = vmul.f32 1.0, %v2468
    %v2470 = vxor.u32 %v2462, 2147483648
    %v2471 = vmul.f32 %v2470, 1.442695
    %v2472 = vpow.pop %v2471
    %v2473 = vadd.f32 %v2472, 1.0
    %v2474 = vrcp.pop %v2473
    %v2475 = vmul.f32 1.0, %v2474
    %v2476 = vmul.f32 %v2475, 2.0
    %v2477 = vsub.f32 %v2476, 1.0
    %v2478 = vsel %vm92, %v2477, %v2475
    %2479 = vrot.lane.b32.xlu0 %v2469, 64
    %v2480 = vpop.permute.xlu0 %2479
    %2481 = vrot.lane.b32.xlu0 %v2478, 64
    %v2482 = vpop.permute.xlu0 %2481
    %v2483 = vld [vmem:[#allocation5] sm:$0xff]
    %v2484 = vmul.f32 %v2480, %v2483
    %v2485 = vmul.f32 %v2469, %v2478
    %v2486 = vadd.f32 %v2484, %v2485
    %v2487 = vtanh.pop %v2486
    %v2488 = vmul.f32 %v2482, %v2487
    %2489 = vst [vmem:[#allocation5] sm:$0xff] %v2486
    %2490 = vst [vmem:[#allocation4] sm:$0xff] %v2488
    %2491 = vst [vmem:[#allocation2] sm:$0xff] %v2488
    %v2492 = vld [vmem:[#allocation4] sm:$0xff]
    %v2493 = vld [vmem:[%s411] sm:$0xff]
    %v2494 = vld [vmem:[%s411 + $0x8] sm:$0xff]
    %2495 = vmatprep.subr.mxu0 %v2207
    %2496 = vmatpush1.msra.mxu0 %v2206
    %2497 = vmatprep.subr.mxu0 %v2209
    %2498 = vmatpush1.msra.mxu0 %v2208
    %2499 = vmatprep.subr.mxu0 %v2211
    %2500 = vmatpush1.msra.mxu0 %v2210
    %2501 = vmatprep.subr.mxu0 %v2213
    %2502 = vmatpush1.msra.mxu0 %v2212
    %2503 = vmatprep.subr.mxu0 %v2215
    %2504 = vmatpush1.msra.mxu0 %v2214
    %2505 = vmatprep.subr.mxu0 %v2217
    %2506 = vmatpush1.msra.mxu0 %v2216
    %2507 = vmatprep.subr.mxu0 %v2219
    %2508 = vmatpush1.msra.mxu0 %v2218
    %2509 = vmatprep.subr.mxu0 %v2221
    %2510 = vmatpush1.msra.mxu0 %v2220
    %2511 = vmatprep.subr.mxu0 %v2223
    %2512 = vmatpush1.msra.mxu0 %v2222
    %2513 = vmatprep.subr.mxu0 %v2225
    %2514 = vmatpush1.msra.mxu0 %v2224
    %2515 = vmatprep.subr.mxu0 %v2227
    %2516 = vmatpush1.msra.mxu0 %v2226
    %2517 = vmatprep.subr.mxu0 %v2229
    %2518 = vmatpush1.msra.mxu0 %v2228
    %2519 = vmatprep.subr.mxu0 %v2231
    %2520 = vmatpush1.msra.mxu0 %v2230
    %2521 = vmatprep.subr.mxu0 %v2233
    %2522 = vmatpush1.msra.mxu0 %v2232
    %2523 = vmatprep.subr.mxu0 %v2235
    %2524 = vmatpush1.msra.mxu0 %v2234
    %2525 = vmatprep.subr.mxu0 %v2237
    %2526 = vmatpush1.msra.mxu0 %v2236
    %2527 = vmatprep.subr.mxu0 0.0
    %2528 = vmatpush1.msra.mxu0 0.0
    %2529 = vmatprep.subr.mxu0 0.0
    %2530 = vmatpush1.msra.mxu0 0.0
    %2531 = vmatprep.subr.mxu0 0.0
    %2532 = vmatpush1.msra.mxu0 0.0
    %2533 = vmatprep.subr.mxu0 0.0
    %2534 = vmatpush1.msra.mxu0 0.0
    %2535 = vmatprep.subr.mxu0 0.0
    %2536 = vmatpush1.msra.mxu0 0.0
    %2537 = vmatprep.subr.mxu0 0.0
    %2538 = vmatpush1.msra.mxu0 0.0
    %2539 = vmatprep.subr.mxu0 0.0
    %2540 = vmatpush1.msra.mxu0 0.0
    %2541 = vmatprep.subr.mxu0 0.0
    %2542 = vmatpush1.msra.mxu0 0.0
    %2543 = vmatprep.subr.mxu0 0.0
    %2544 = vmatpush1.msra.mxu0 0.0
    %2545 = vmatprep.subr.mxu0 0.0
    %2546 = vmatpush1.msra.mxu0 0.0
    %2547 = vmatprep.subr.mxu0 0.0
    %2548 = vmatpush1.msra.mxu0 0.0
    %2549 = vmatprep.subr.mxu0 0.0
    %2550 = vmatpush1.msra.mxu0 0.0
    %2551 = vmatprep.subr.mxu0 0.0
    %2552 = vmatpush1.msra.mxu0 0.0
    %2553 = vmatprep.subr.mxu0 0.0
    %2554 = vmatpush1.msra.mxu0 0.0
    %2555 = vmatprep.subr.mxu0 0.0
    %2556 = vmatpush1.msra.mxu0 0.0
    %2557 = vmatprep.subr.mxu0 0.0
    %2558 = vmatpush1.msra.mxu0 0.0
    %2559 = vmatprep.mubr.f32.mxu0 0.0
    %2560 = vmatmul.mubr.f32.gmra.mrb[0].mxu0 %v2492
    %v2561 = vpop.f32.mrb[0].mxu0
    %v2562 = vadd.f32 %v2493, %v2561
    %v2563 = vpop.f32.mrb[0].mxu0
    %v2564 = vadd.f32 %v2494, %v2563
    %2565 = vdwg.mxu0
    %v2566 = vxor.u32 %v2562, 2147483648
    %v2567 = vmul.f32 %v2566, 1.442695
    %v2568 = vpow.pop %v2567
    %v2569 = vadd.f32 %v2568, 1.0
    %v2570 = vrcp.pop %v2569
    %v2571 = vmul.f32 1.0, %v2570
    %v2572 = vxor.u32 %v2564, 2147483648
    %v2573 = vmul.f32 %v2572, 1.442695
    %v2574 = vpow.pop %v2573
    %v2575 = vadd.f32 %v2574, 1.0
    %v2576 = vrcp.pop %v2575
    %v2577 = vmul.f32 1.0, %v2576
    %v2578 = vmul.f32 %v2577, 2.0
    %v2579 = vsub.f32 %v2578, 1.0
    %v2580 = vsel %vm92, %v2579, %v2577
    %2581 = vrot.lane.b32.xlu0 %v2571, 64
    %v2582 = vpop.permute.xlu0 %2581
    %2583 = vrot.lane.b32.xlu0 %v2580, 64
    %v2584 = vpop.permute.xlu0 %2583
    %v2585 = vld [vmem:[#allocation5] sm:$0xff]
    %v2586 = vmul.f32 %v2582, %v2585
    %v2587 = vmul.f32 %v2571, %v2580
    %v2588 = vadd.f32 %v2586, %v2587
    %v2589 = vtanh.pop %v2588
    %v2590 = vmul.f32 %v2584, %v2589
    %2591 = vst [vmem:[#allocation5] sm:$0xff] %v2588
    %2592 = vst [vmem:[#allocation4] sm:$0xff] %v2590
    %2593 = vst [vmem:[%s512] sm:$0xff] %v2590
    %v2594 = vld [vmem:[#allocation4] sm:$0xff]
    %v2595 = vld [vmem:[%s515] sm:$0xff]
    %v2596 = vld [vmem:[%s515 + $0x8] sm:$0xff]
    %2597 = vmatprep.subr.mxu0 %v2207
    %2598 = vmatpush1.msra.mxu0 %v2206
    %2599 = vmatprep.subr.mxu0 %v2209
    %2600 = vmatpush1.msra.mxu0 %v2208
    %2601 = vmatprep.subr.mxu0 %v2211
    %2602 = vmatpush1.msra.mxu0 %v2210
    %2603 = vmatprep.subr.mxu0 %v2213
    %2604 = vmatpush1.msra.mxu0 %v2212
    %2605 = vmatprep.subr.mxu0 %v2215
    %2606 = vmatpush1.msra.mxu0 %v2214
    %2607 = vmatprep.subr.mxu0 %v2217
    %2608 = vmatpush1.msra.mxu0 %v2216
    %2609 = vmatprep.subr.mxu0 %v2219
    %2610 = vmatpush1.msra.mxu0 %v2218
    %2611 = vmatprep.subr.mxu0 %v2221
    %2612 = vmatpush1.msra.mxu0 %v2220
    %2613 = vmatprep.subr.mxu0 %v2223
    %2614 = vmatpush1.msra.mxu0 %v2222
    %2615 = vmatprep.subr.mxu0 %v2225
    %2616 = vmatpush1.msra.mxu0 %v2224
    %2617 = vmatprep.subr.mxu0 %v2227
    %2618 = vmatpush1.msra.mxu0 %v2226
    %2619 = vmatprep.subr.mxu0 %v2229
    %2620 = vmatpush1.msra.mxu0 %v2228
    %2621 = vmatprep.subr.mxu0 %v2231
    %2622 = vmatpush1.msra.mxu0 %v2230
    %2623 = vmatprep.subr.mxu0 %v2233
    %2624 = vmatpush1.msra.mxu0 %v2232
    %2625 = vmatprep.subr.mxu0 %v2235
    %2626 = vmatpush1.msra.mxu0 %v2234
    %2627 = vmatprep.subr.mxu0 %v2237
    %2628 = vmatpush1.msra.mxu0 %v2236
    %2629 = vmatprep.subr.mxu0 0.0
    %2630 = vmatpush1.msra.mxu0 0.0
    %2631 = vmatprep.subr.mxu0 0.0
    %2632 = vmatpush1.msra.mxu0 0.0
    %2633 = vmatprep.subr.mxu0 0.0
    %2634 = vmatpush1.msra.mxu0 0.0
    %2635 = vmatprep.subr.mxu0 0.0
    %2636 = vmatpush1.msra.mxu0 0.0
    %2637 = vmatprep.subr.mxu0 0.0
    %2638 = vmatpush1.msra.mxu0 0.0
    %2639 = vmatprep.subr.mxu0 0.0
    %2640 = vmatpush1.msra.mxu0 0.0
    %2641 = vmatprep.subr.mxu0 0.0
    %2642 = vmatpush1.msra.mxu0 0.0
    %2643 = vmatprep.subr.mxu0 0.0
    %2644 = vmatpush1.msra.mxu0 0.0
    %2645 = vmatprep.subr.mxu0 0.0
    %2646 = vmatpush1.msra.mxu0 0.0
    %2647 = vmatprep.subr.mxu0 0.0
    %2648 = vmatpush1.msra.mxu0 0.0
    %2649 = vmatprep.subr.mxu0 0.0
    %2650 = vmatpush1.msra.mxu0 0.0
    %2651 = vmatprep.subr.mxu0 0.0
    %2652 = vmatpush1.msra.mxu0 0.0
    %2653 = vmatprep.subr.mxu0 0.0
    %2654 = vmatpush1.msra.mxu0 0.0
    %2655 = vmatprep.subr.mxu0 0.0
    %2656 = vmatpush1.msra.mxu0 0.0
    %2657 = vmatprep.subr.mxu0 0.0
    %2658 = vmatpush1.msra.mxu0 0.0
    %2659 = vmatprep.subr.mxu0 0.0
    %2660 = vmatpush1.msra.mxu0 0.0
    %2661 = vmatprep.mubr.f32.mxu0 0.0
    %2662 = vmatmul.mubr.f32.gmra.mrb[0].mxu0 %v2594
    %v2663 = vpop.f32.mrb[0].mxu0
    %v2664 = vadd.f32 %v2595, %v2663
    %v2665 = vpop.f32.mrb[0].mxu0
    %v2666 = vadd.f32 %v2596, %v2665
    %2667 = vdwg.mxu0
    %v2668 = vxor.u32 %v2664, 2147483648
    %v2669 = vmul.f32 %v2668, 1.442695
    %v2670 = vpow.pop %v2669
    %v2671 = vadd.f32 %v2670, 1.0
    %v2672 = vrcp.pop %v2671
    %v2673 = vmul.f32 1.0, %v2672
    %v2674 = vxor.u32 %v2666, 2147483648
    %v2675 = vmul.f32 %v2674, 1.442695
    %v2676 = vpow.pop %v2675
    %v2677 = vadd.f32 %v2676, 1.0
    %v2678 = vrcp.pop %v2677
    %v2679 = vmul.f32 1.0, %v2678
    %v2680 = vmul.f32 %v2679, 2.0
    %v2681 = vsub.f32 %v2680, 1.0
    %v2682 = vsel %vm92, %v2681, %v2679
    %2683 = vrot.lane.b32.xlu0 %v2673, 64
    %v2684 = vpop.permute.xlu0 %2683
    %2685 = vrot.lane.b32.xlu0 %v2682, 64
    %v2686 = vpop.permute.xlu0 %2685
    %v2687 = vld [vmem:[#allocation5] sm:$0xff]
    %v2688 = vmul.f32 %v2684, %v2687
    %v2689 = vmul.f32 %v2673, %v2682
    %v2690 = vadd.f32 %v2688, %v2689
    %v2691 = vtanh.pop %v2690
    %v2692 = vmul.f32 %v2686, %v2691
    %2693 = vst [vmem:[#allocation5] sm:$0xff] %v2690
    %2694 = vst [vmem:[#allocation4] sm:$0xff] %v2692
    %2695 = vst [vmem:[%s616] sm:$0xff] %v2692
    %v2696 = vld [vmem:[#allocation4] sm:$0xff]
    %v2697 = vld [vmem:[%s619] sm:$0xff]
    %v2698 = vld [vmem:[%s619 + $0x8] sm:$0xff]
    %2699 = vmatprep.subr.mxu0 %v2207
    %2700 = vmatpush1.msra.mxu0 %v2206
    %2701 = vmatprep.subr.mxu0 %v2209
    %2702 = vmatpush1.msra.mxu0 %v2208
    %2703 = vmatprep.subr.mxu0 %v2211
    %2704 = vmatpush1.msra.mxu0 %v2210
    %2705 = vmatprep.subr.mxu0 %v2213
    %2706 = vmatpush1.msra.mxu0 %v2212
    %2707 = vmatprep.subr.mxu0 %v2215
    %2708 = vmatpush1.msra.mxu0 %v2214
    %2709 = vmatprep.subr.mxu0 %v2217
    %2710 = vmatpush1.msra.mxu0 %v2216
    %2711 = vmatprep.subr.mxu0 %v2219
    %2712 = vmatpush1.msra.mxu0 %v2218
    %2713 = vmatprep.subr.mxu0 %v2221
    %2714 = vmatpush1.msra.mxu0 %v2220
    %2715 = vmatprep.subr.mxu0 %v2223
    %2716 = vmatpush1.msra.mxu0 %v2222
    %2717 = vmatprep.subr.mxu0 %v2225
    %2718 = vmatpush1.msra.mxu0 %v2224
    %2719 = vmatprep.subr.mxu0 %v2227
    %2720 = vmatpush1.msra.mxu0 %v2226
    %2721 = vmatprep.subr.mxu0 %v2229
    %2722 = vmatpush1.msra.mxu0 %v2228
    %2723 = vmatprep.subr.mxu0 %v2231
    %2724 = vmatpush1.msra.mxu0 %v2230
    %2725 = vmatprep.subr.mxu0 %v2233
    %2726 = vmatpush1.msra.mxu0 %v2232
    %2727 = vmatprep.subr.mxu0 %v2235
    %2728 = vmatpush1.msra.mxu0 %v2234
    %2729 = vmatprep.subr.mxu0 %v2237
    %2730 = vmatpush1.msra.mxu0 %v2236
    %2731 = vmatprep.subr.mxu0 0.0
    %2732 = vmatpush1.msra.mxu0 0.0
    %2733 = vmatprep.subr.mxu0 0.0
    %2734 = vmatpush1.msra.mxu0 0.0
    %2735 = vmatprep.subr.mxu0 0.0
    %2736 = vmatpush1.msra.mxu0 0.0
    %2737 = vmatprep.subr.mxu0 0.0
    %2738 = vmatpush1.msra.mxu0 0.0
    %2739 = vmatprep.subr.mxu0 0.0
    %2740 = vmatpush1.msra.mxu0 0.0
    %2741 = vmatprep.subr.mxu0 0.0
    %2742 = vmatpush1.msra.mxu0 0.0
    %2743 = vmatprep.subr.mxu0 0.0
    %2744 = vmatpush1.msra.mxu0 0.0
    %2745 = vmatprep.subr.mxu0 0.0
    %2746 = vmatpush1.msra.mxu0 0.0
    %2747 = vmatprep.subr.mxu0 0.0
    %2748 = vmatpush1.msra.mxu0 0.0
    %2749 = vmatprep.subr.mxu0 0.0
    %2750 = vmatpush1.msra.mxu0 0.0
    %2751 = vmatprep.subr.mxu0 0.0
    %2752 = vmatpush1.msra.mxu0 0.0
    %2753 = vmatprep.subr.mxu0 0.0
    %2754 = vmatpush1.msra.mxu0 0.0
    %2755 = vmatprep.subr.mxu0 0.0
    %2756 = vmatpush1.msra.mxu0 0.0
    %2757 = vmatprep.subr.mxu0 0.0
    %2758 = vmatpush1.msra.mxu0 0.0
    %2759 = vmatprep.subr.mxu0 0.0
    %2760 = vmatpush1.msra.mxu0 0.0
    %2761 = vmatprep.subr.mxu0 0.0
    %2762 = vmatpush1.msra.mxu0 0.0
    %2763 = vmatprep.mubr.f32.mxu0 0.0
    %2764 = vmatmul.mubr.f32.gmra.mrb[0].mxu0 %v2696
    %v2765 = vpop.f32.mrb[0].mxu0
    %v2766 = vadd.f32 %v2697, %v2765
    %v2767 = vpop.f32.mrb[0].mxu0
    %v2768 = vadd.f32 %v2698, %v2767
    %2769 = vdwg.mxu0
    %v2770 = vxor.u32 %v2766, 2147483648
    %v2771 = vmul.f32 %v2770, 1.442695
    %v2772 = vpow.pop %v2771
    %v2773 = vadd.f32 %v2772, 1.0
    %v2774 = vrcp.pop %v2773
    %v2775 = vmul.f32 1.0, %v2774
    %v2776 = vxor.u32 %v2768, 2147483648
    %v2777 = vmul.f32 %v2776, 1.442695
    %v2778 = vpow.pop %v2777
    %v2779 = vadd.f32 %v2778, 1.0
    %v2780 = vrcp.pop %v2779
    %v2781 = vmul.f32 1.0, %v2780
    %v2782 = vmul.f32 %v2781, 2.0
    %v2783 = vsub.f32 %v2782, 1.0
    %v2784 = vsel %vm92, %v2783, %v2781
    %2785 = vrot.lane.b32.xlu0 %v2775, 64
    %v2786 = vpop.permute.xlu0 %2785
    %2787 = vrot.lane.b32.xlu0 %v2784, 64
    %v2788 = vpop.permute.xlu0 %2787
    %v2789 = vld [vmem:[#allocation5] sm:$0xff]
    %v2790 = vmul.f32 %v2786, %v2789
    %v2791 = vmul.f32 %v2775, %v2784
    %v2792 = vadd.f32 %v2790, %v2791
    %v2793 = vtanh.pop %v2792
    %v2794 = vmul.f32 %v2788, %v2793
    %2795 = vst [vmem:[#allocation5] sm:$0xff] %v2792
    %2796 = vst [vmem:[#allocation4] sm:$0xff] %v2794
    %2797 = vst [vmem:[%s720] sm:$0xff] %v2794
    %v2798 = vld [vmem:[#allocation4] sm:$0xff]
    %v2799 = vld [vmem:[%s723] sm:$0xff]
    %v2800 = vld [vmem:[%s723 + $0x8] sm:$0xff]
    %2801 = vmatprep.subr.mxu0 %v2207
    %2802 = vmatpush1.msra.mxu0 %v2206
    %2803 = vmatprep.subr.mxu0 %v2209
    %2804 = vmatpush1.msra.mxu0 %v2208
    %2805 = vmatprep.subr.mxu0 %v2211
    %2806 = vmatpush1.msra.mxu0 %v2210
    %2807 = vmatprep.subr.mxu0 %v2213
    %2808 = vmatpush1.msra.mxu0 %v2212
    %2809 = vmatprep.subr.mxu0 %v2215
    %2810 = vmatpush1.msra.mxu0 %v2214
    %2811 = vmatprep.subr.mxu0 %v2217
    %2812 = vmatpush1.msra.mxu0 %v2216
    %2813 = vmatprep.subr.mxu0 %v2219
    %2814 = vmatpush1.msra.mxu0 %v2218
    %2815 = vmatprep.subr.mxu0 %v2221
    %2816 = vmatpush1.msra.mxu0 %v2220
    %2817 = vmatprep.subr.mxu0 %v2223
    %2818 = vmatpush1.msra.mxu0 %v2222
    %2819 = vmatprep.subr.mxu0 %v2225
    %2820 = vmatpush1.msra.mxu0 %v2224
    %2821 = vmatprep.subr.mxu0 %v2227
    %2822 = vmatpush1.msra.mxu0 %v2226
    %2823 = vmatprep.subr.mxu0 %v2229
    %2824 = vmatpush1.msra.mxu0 %v2228
    %2825 = vmatprep.subr.mxu0 %v2231
    %2826 = vmatpush1.msra.mxu0 %v2230
    %2827 = vmatprep.subr.mxu0 %v2233
    %2828 = vmatpush1.msra.mxu0 %v2232
    %2829 = vmatprep.subr.mxu0 %v2235
    %2830 = vmatpush1.msra.mxu0 %v2234
    %2831 = vmatprep.subr.mxu0 %v2237
    %2832 = vmatpush1.msra.mxu0 %v2236
    %2833 = vmatprep.subr.mxu0 0.0
    %2834 = vmatpush1.msra.mxu0 0.0
    %2835 = vmatprep.subr.mxu0 0.0
    %2836 = vmatpush1.msra.mxu0 0.0
    %2837 = vmatprep.subr.mxu0 0.0
    %2838 = vmatpush1.msra.mxu0 0.0
    %2839 = vmatprep.subr.mxu0 0.0
    %2840 = vmatpush1.msra.mxu0 0.0
    %2841 = vmatprep.subr.mxu0 0.0
    %2842 = vmatpush1.msra.mxu0 0.0
    %2843 = vmatprep.subr.mxu0 0.0
    %2844 = vmatpush1.msra.mxu0 0.0
    %2845 = vmatprep.subr.mxu0 0.0
    %2846 = vmatpush1.msra.mxu0 0.0
    %2847 = vmatprep.subr.mxu0 0.0
    %2848 = vmatpush1.msra.mxu0 0.0
    %2849 = vmatprep.subr.mxu0 0.0
    %2850 = vmatpush1.msra.mxu0 0.0
    %2851 = vmatprep.subr.mxu0 0.0
    %2852 = vmatpush1.msra.mxu0 0.0
    %2853 = vmatprep.subr.mxu0 0.0
    %2854 = vmatpush1.msra.mxu0 0.0
    %2855 = vmatprep.subr.mxu0 0.0
    %2856 = vmatpush1.msra.mxu0 0.0
    %2857 = vmatprep.subr.mxu0 0.0
    %2858 = vmatpush1.msra.mxu0 0.0
    %2859 = vmatprep.subr.mxu0 0.0
    %2860 = vmatpush1.msra.mxu0 0.0
    %2861 = vmatprep.subr.mxu0 0.0
    %2862 = vmatpush1.msra.mxu0 0.0
    %2863 = vmatprep.subr.mxu0 0.0
    %2864 = vmatpush1.msra.mxu0 0.0
    %2865 = vmatprep.mubr.f32.mxu0 0.0
    %2866 = vmatmul.mubr.f32.gmra.mrb[0].mxu0 %v2798
    %v2867 = vpop.f32.mrb[0].mxu0
    %v2868 = vadd.f32 %v2799, %v2867
    %v2869 = vpop.f32.mrb[0].mxu0
    %v2870 = vadd.f32 %v2800, %v2869
    %2871 = vdwg.mxu0
    %v2872 = vxor.u32 %v2868, 2147483648
    %v2873 = vmul.f32 %v2872, 1.442695
    %v2874 = vpow.pop %v2873
    %v2875 = vadd.f32 %v2874, 1.0
    %v2876 = vrcp.pop %v2875
    %v2877 = vmul.f32 1.0, %v2876
    %v2878 = vxor.u32 %v2870, 2147483648
    %v2879 = vmul.f32 %v2878, 1.442695
    %v2880 = vpow.pop %v2879
    %v2881 = vadd.f32 %v2880, 1.0
    %v2882 = vrcp.pop %v2881
    %v2883 = vmul.f32 1.0, %v2882
    %v2884 = vmul.f32 %v2883, 2.0
    %v2885 = vsub.f32 %v2884, 1.0
    %v2886 = vsel %vm92, %v2885, %v2883
    %2887 = vrot.lane.b32.xlu0 %v2877, 64
    %v2888 = vpop.permute.xlu0 %2887
    %2889 = vrot.lane.b32.xlu0 %v2886, 64
    %v2890 = vpop.permute.xlu0 %2889
    %v2891 = vld [vmem:[#allocation5] sm:$0xff]
    %v2892 = vmul.f32 %v2888, %v2891
    %v2893 = vmul.f32 %v2877, %v2886
    %v2894 = vadd.f32 %v2892, %v2893
    %v2895 = vtanh.pop %v2894
    %v2896 = vmul.f32 %v2890, %v2895
    %2897 = vst [vmem:[#allocation5] sm:$0xff] %v2894
    %2898 = vst [vmem:[#allocation4] sm:$0xff] %v2896
    %2899 = vst [vmem:[%s824] sm:$0xff] %v2896
    %v2900 = vld [vmem:[#allocation4] sm:$0xff]
    %v2901 = vld [vmem:[%s827] sm:$0xff]
    %v2902 = vld [vmem:[%s827 + $0x8] sm:$0xff]
    %2903 = vmatprep.subr.mxu0 %v2207
    %2904 = vmatpush1.msra.mxu0 %v2206
    %2905 = vmatprep.subr.mxu0 %v2209
    %2906 = vmatpush1.msra.mxu0 %v2208
    %2907 = vmatprep.subr.mxu0 %v2211
    %2908 = vmatpush1.msra.mxu0 %v2210
    %2909 = vmatprep.subr.mxu0 %v2213
    %2910 = vmatpush1.msra.mxu0 %v2212
    %2911 = vmatprep.subr.mxu0 %v2215
    %2912 = vmatpush1.msra.mxu0 %v2214
    %2913 = vmatprep.subr.mxu0 %v2217
    %2914 = vmatpush1.msra.mxu0 %v2216
    %2915 = vmatprep.subr.mxu0 %v2219
    %2916 = vmatpush1.msra.mxu0 %v2218
    %2917 = vmatprep.subr.mxu0 %v2221
    %2918 = vmatpush1.msra.mxu0 %v2220
    %2919 = vmatprep.subr.mxu0 %v2223
    %2920 = vmatpush1.msra.mxu0 %v2222
    %2921 = vmatprep.subr.mxu0 %v2225
    %2922 = vmatpush1.msra.mxu0 %v2224
    %2923 = vmatprep.subr.mxu0 %v2227
    %2924 = vmatpush1.msra.mxu0 %v2226
    %2925 = vmatprep.subr.mxu0 %v2229
    %2926 = vmatpush1.msra.mxu0 %v2228
    %2927 = vmatprep.subr.mxu0 %v2231
    %2928 = vmatpush1.msra.mxu0 %v2230
    %2929 = vmatprep.subr.mxu0 %v2233
    %2930 = vmatpush1.msra.mxu0 %v2232
    %2931 = vmatprep.subr.mxu0 %v2235
    %2932 = vmatpush1.msra.mxu0 %v2234
    %2933 = vmatprep.subr.mxu0 %v2237
    %2934 = vmatpush1.msra.mxu0 %v2236
    %2935 = vmatprep.subr.mxu0 0.0
    %2936 = vmatpush1.msra.mxu0 0.0
    %2937 = vmatprep.subr.mxu0 0.0
    %2938 = vmatpush1.msra.mxu0 0.0
    %2939 = vmatprep.subr.mxu0 0.0
    %2940 = vmatpush1.msra.mxu0 0.0
    %2941 = vmatprep.subr.mxu0 0.0
    %2942 = vmatpush1.msra.mxu0 0.0
    %2943 = vmatprep.subr.mxu0 0.0
    %2944 = vmatpush1.msra.mxu0 0.0
    %2945 = vmatprep.subr.mxu0 0.0
    %2946 = vmatpush1.msra.mxu0 0.0
    %2947 = vmatprep.subr.mxu0 0.0
    %2948 = vmatpush1.msra.mxu0 0.0
    %2949 = vmatprep.subr.mxu0 0.0
    %2950 = vmatpush1.msra.mxu0 0.0
    %2951 = vmatprep.subr.mxu0 0.0
    %2952 = vmatpush1.msra.mxu0 0.0
    %2953 = vmatprep.subr.mxu0 0.0
    %2954 = vmatpush1.msra.mxu0 0.0
    %2955 = vmatprep.subr.mxu0 0.0
    %2956 = vmatpush1.msra.mxu0 0.0
    %2957 = vmatprep.subr.mxu0 0.0
    %2958 = vmatpush1.msra.mxu0 0.0
    %2959 = vmatprep.subr.mxu0 0.0
    %2960 = vmatpush1.msra.mxu0 0.0
    %2961 = vmatprep.subr.mxu0 0.0
    %2962 = vmatpush1.msra.mxu0 0.0
    %2963 = vmatprep.subr.mxu0 0.0
    %2964 = vmatpush1.msra.mxu0 0.0
    %2965 = vmatprep.subr.mxu0 0.0
    %2966 = vmatpush1.msra.mxu0 0.0
    %2967 = vmatprep.mubr.f32.mxu0 0.0
    %2968 = vmatmul.mubr.f32.gmra.mrb[0].mxu0 %v2900
    %v2969 = vpop.f32.mrb[0].mxu0
    %v2970 = vadd.f32 %v2901, %v2969
    %v2971 = vpop.f32.mrb[0].mxu0
    %v2972 = vadd.f32 %v2902, %v2971
    %2973 = vdwg.mxu0
    %v2974 = vxor.u32 %v2970, 2147483648
    %v2975 = vmul.f32 %v2974, 1.442695
    %v2976 = vpow.pop %v2975
    %v2977 = vadd.f32 %v2976, 1.0
    %v2978 = vrcp.pop %v2977
    %v2979 = vmul.f32 1.0, %v2978
    %v2980 = vxor.u32 %v2972, 2147483648
    %v2981 = vmul.f32 %v2980, 1.442695
    %v2982 = vpow.pop %v2981
    %v2983 = vadd.f32 %v2982, 1.0
    %v2984 = vrcp.pop %v2983
    %v2985 = vmul.f32 1.0, %v2984
    %v2986 = vmul.f32 %v2985, 2.0
    %v2987 = vsub.f32 %v2986, 1.0
    %v2988 = vsel %vm92, %v2987, %v2985
    %2989 = vrot.lane.b32.xlu0 %v2979, 64
    %v2990 = vpop.permute.xlu0 %2989
    %2991 = vrot.lane.b32.xlu0 %v2988, 64
    %v2992 = vpop.permute.xlu0 %2991
    %v2993 = vld [vmem:[#allocation5] sm:$0xff]
    %v2994 = vmul.f32 %v2990, %v2993
    %v2995 = vmul.f32 %v2979, %v2988
    %v2996 = vadd.f32 %v2994, %v2995
    %v2997 = vtanh.pop %v2996
    %v2998 = vmul.f32 %v2992, %v2997
    %2999 = vst [vmem:[#allocation5] sm:$0xff] %v2996
    %3000 = vst [vmem:[#allocation4] sm:$0xff] %v2998
    %3001 = vst [vmem:[%s928] sm:$0xff] %v2998
    %v3002 = vld [vmem:[#allocation4] sm:$0xff]
    %v3003 = vld [vmem:[%s931] sm:$0xff]
    %v3004 = vld [vmem:[%s931 + $0x8] sm:$0xff]
    %3005 = vmatprep.subr.mxu0 %v2207
    %3006 = vmatpush1.msra.mxu0 %v2206
    %3007 = vmatprep.subr.mxu0 %v2209
    %3008 = vmatpush1.msra.mxu0 %v2208
    %3009 = vmatprep.subr.mxu0 %v2211
    %3010 = vmatpush1.msra.mxu0 %v2210
    %3011 = vmatprep.subr.mxu0 %v2213
    %3012 = vmatpush1.msra.mxu0 %v2212
    %3013 = vmatprep.subr.mxu0 %v2215
    %3014 = vmatpush1.msra.mxu0 %v2214
    %3015 = vmatprep.subr.mxu0 %v2217
    %3016 = vmatpush1.msra.mxu0 %v2216
    %3017 = vmatprep.subr.mxu0 %v2219
    %3018 = vmatpush1.msra.mxu0 %v2218
    %3019 = vmatprep.subr.mxu0 %v2221
    %3020 = vmatpush1.msra.mxu0 %v2220
    %3021 = vmatprep.subr.mxu0 %v2223
    %3022 = vmatpush1.msra.mxu0 %v2222
    %3023 = vmatprep.subr.mxu0 %v2225
    %3024 = vmatpush1.msra.mxu0 %v2224
    %3025 = vmatprep.subr.mxu0 %v2227
    %3026 = vmatpush1.msra.mxu0 %v2226
    %3027 = vmatprep.subr.mxu0 %v2229
    %3028 = vmatpush1.msra.mxu0 %v2228
    %3029 = vmatprep.subr.mxu0 %v2231
    %3030 = vmatpush1.msra.mxu0 %v2230
    %3031 = vmatprep.subr.mxu0 %v2233
    %3032 = vmatpush1.msra.mxu0 %v2232
    %3033 = vmatprep.subr.mxu0 %v2235
    %3034 = vmatpush1.msra.mxu0 %v2234
    %3035 = vmatprep.subr.mxu0 %v2237
    %3036 = vmatpush1.msra.mxu0 %v2236
    %3037 = vmatprep.subr.mxu0 0.0
    %3038 = vmatpush1.msra.mxu0 0.0
    %3039 = vmatprep.subr.mxu0 0.0
    %3040 = vmatpush1.msra.mxu0 0.0
    %3041 = vmatprep.subr.mxu0 0.0
    %3042 = vmatpush1.msra.mxu0 0.0
    %3043 = vmatprep.subr.mxu0 0.0
    %3044 = vmatpush1.msra.mxu0 0.0
    %3045 = vmatprep.subr.mxu0 0.0
    %3046 = vmatpush1.msra.mxu0 0.0
    %3047 = vmatprep.subr.mxu0 0.0
    %3048 = vmatpush1.msra.mxu0 0.0
    %3049 = vmatprep.subr.mxu0 0.0
    %3050 = vmatpush1.msra.mxu0 0.0
    %3051 = vmatprep.subr.mxu0 0.0
    %3052 = vmatpush1.msra.mxu0 0.0
    %3053 = vmatprep.subr.mxu0 0.0
    %3054 = vmatpush1.msra.mxu0 0.0
    %3055 = vmatprep.subr.mxu0 0.0
    %3056 = vmatpush1.msra.mxu0 0.0
    %3057 = vmatprep.subr.mxu0 0.0
    %3058 = vmatpush1.msra.mxu0 0.0
    %3059 = vmatprep.subr.mxu0 0.0
    %3060 = vmatpush1.msra.mxu0 0.0
    %3061 = vmatprep.subr.mxu0 0.0
    %3062 = vmatpush1.msra.mxu0 0.0
    %3063 = vmatprep.subr.mxu0 0.0
    %3064 = vmatpush1.msra.mxu0 0.0
    %3065 = vmatprep.subr.mxu0 0.0
    %3066 = vmatpush1.msra.mxu0 0.0
    %3067 = vmatprep.subr.mxu0 0.0
    %3068 = vmatpush1.msra.mxu0 0.0
    %3069 = vmatprep.mubr.f32.mxu0 0.0
    %3070 = vmatmul.mubr.f32.gmra.mrb[0].mxu0 %v3002
    %v3071 = vpop.f32.mrb[0].mxu0
    %v3072 = vadd.f32 %v3003, %v3071
    %v3073 = vpop.f32.mrb[0].mxu0
    %v3074 = vadd.f32 %v3004, %v3073
    %3075 = vdwg.mxu0
    %v3076 = vxor.u32 %v3072, 2147483648
    %v3077 = vmul.f32 %v3076, 1.442695
    %v3078 = vpow.pop %v3077
    %v3079 = vadd.f32 %v3078, 1.0
    %v3080 = vrcp.pop %v3079
    %v3081 = vmul.f32 1.0, %v3080
    %v3082 = vxor.u32 %v3074, 2147483648
    %v3083 = vmul.f32 %v3082, 1.442695
    %v3084 = vpow.pop %v3083
    %v3085 = vadd.f32 %v3084, 1.0
    %v3086 = vrcp.pop %v3085
    %v3087 = vmul.f32 1.0, %v3086
    %v3088 = vmul.f32 %v3087, 2.0
    %v3089 = vsub.f32 %v3088, 1.0
    %v3090 = vsel %vm92, %v3089, %v3087
    %3091 = vrot.lane.b32.xlu0 %v3081, 64
    %v3092 = vpop.permute.xlu0 %3091
    %3093 = vrot.lane.b32.xlu0 %v3090, 64
    %v3094 = vpop.permute.xlu0 %3093
    %v3095 = vld [vmem:[#allocation5] sm:$0xff]
    %v3096 = vmul.f32 %v3092, %v3095
    %v3097 = vmul.f32 %v3081, %v3090
    %v3098 = vadd.f32 %v3096, %v3097
    %v3099 = vtanh.pop %v3098
    %v3100 = vmul.f32 %v3094, %v3099
    %3101 = vst [vmem:[#allocation5] sm:$0xff] %v3098
    %3102 = vst [vmem:[#allocation4] sm:$0xff] %v3100
    %3103 = vst [vmem:[%s1032] sm:$0xff] %v3100
    %v3104 = vld [vmem:[#allocation4] sm:$0xff]
    %v3105 = vld [vmem:[%s1035] sm:$0xff]
    %v3106 = vld [vmem:[%s1035 + $0x8] sm:$0xff]
    %3107 = vmatprep.subr.mxu0 %v2207
    %3108 = vmatpush1.msra.mxu0 %v2206
    %3109 = vmatprep.subr.mxu0 %v2209
    %3110 = vmatpush1.msra.mxu0 %v2208
    %3111 = vmatprep.subr.mxu0 %v2211
    %3112 = vmatpush1.msra.mxu0 %v2210
    %3113 = vmatprep.subr.mxu0 %v2213
    %3114 = vmatpush1.msra.mxu0 %v2212
    %3115 = vmatprep.subr.mxu0 %v2215
    %3116 = vmatpush1.msra.mxu0 %v2214
    %3117 = vmatprep.subr.mxu0 %v2217
    %3118 = vmatpush1.msra.mxu0 %v2216
    %3119 = vmatprep.subr.mxu0 %v2219
    %3120 = vmatpush1.msra.mxu0 %v2218
    %3121 = vmatprep.subr.mxu0 %v2221
    %3122 = vmatpush1.msra.mxu0 %v2220
    %3123 = vmatprep.subr.mxu0 %v2223
    %3124 = vmatpush1.msra.mxu0 %v2222
    %3125 = vmatprep.subr.mxu0 %v2225
    %3126 = vmatpush1.msra.mxu0 %v2224
    %3127 = vmatprep.subr.mxu0 %v2227
    %3128 = vmatpush1.msra.mxu0 %v2226
    %3129 = vmatprep.subr.mxu0 %v2229
    %3130 = vmatpush1.msra.mxu0 %v2228
    %3131 = vmatprep.subr.mxu0 %v2231
    %3132 = vmatpush1.msra.mxu0 %v2230
    %3133 = vmatprep.subr.mxu0 %v2233
    %3134 = vmatpush1.msra.mxu0 %v2232
    %3135 = vmatprep.subr.mxu0 %v2235
    %3136 = vmatpush1.msra.mxu0 %v2234
    %3137 = vmatprep.subr.mxu0 %v2237
    %3138 = vmatpush1.msra.mxu0 %v2236
    %3139 = vmatprep.subr.mxu0 0.0
    %3140 = vmatpush1.msra.mxu0 0.0
    %3141 = vmatprep.subr.mxu0 0.0
    %3142 = vmatpush1.msra.mxu0 0.0
    %3143 = vmatprep.subr.mxu0 0.0
    %3144 = vmatpush1.msra.mxu0 0.0
    %3145 = vmatprep.subr.mxu0 0.0
    %3146 = vmatpush1.msra.mxu0 0.0
    %3147 = vmatprep.subr.mxu0 0.0
    %3148 = vmatpush1.msra.mxu0 0.0
    %3149 = vmatprep.subr.mxu0 0.0
    %3150 = vmatpush1.msra.mxu0 0.0
    %3151 = vmatprep.subr.mxu0 0.0
    %3152 = vmatpush1.msra.mxu0 0.0
    %3153 = vmatprep.subr.mxu0 0.0
    %3154 = vmatpush1.msra.mxu0 0.0
    %3155 = vmatprep.subr.mxu0 0.0
    %3156 = vmatpush1.msra.mxu0 0.0
    %3157 = vmatprep.subr.mxu0 0.0
    %3158 = vmatpush1.msra.mxu0 0.0
    %3159 = vmatprep.subr.mxu0 0.0
    %3160 = vmatpush1.msra.mxu0 0.0
    %3161 = vmatprep.subr.mxu0 0.0
    %3162 = vmatpush1.msra.mxu0 0.0
    %3163 = vmatprep.subr.mxu0 0.0
    %3164 = vmatpush1.msra.mxu0 0.0
    %3165 = vmatprep.subr.mxu0 0.0
    %3166 = vmatpush1.msra.mxu0 0.0
    %3167 = vmatprep.subr.mxu0 0.0
    %3168 = vmatpush1.msra.mxu0 0.0
    %3169 = vmatprep.subr.mxu0 0.0
    %3170 = vmatpush1.msra.mxu0 0.0
    %3171 = vmatprep.mubr.f32.mxu0 0.0
    %3172 = vmatmul.mubr.f32.gmra.mrb[0].mxu0 %v3104
    %v3173 = vpop.f32.mrb[0].mxu0
    %v3174 = vadd.f32 %v3105, %v3173
    %v3175 = vpop.f32.mrb[0].mxu0
    %v3176 = vadd.f32 %v3106, %v3175
    %3177 = vdwg.mxu0
    %v3178 = vxor.u32 %v3174, 2147483648
    %v3179 = vmul.f32 %v3178, 1.442695
    %v3180 = vpow.pop %v3179
    %v3181 = vadd.f32 %v3180, 1.0
    %v3182 = vrcp.pop %v3181
    %v3183 = vmul.f32 1.0, %v3182
    %v3184 = vxor.u32 %v3176, 2147483648
    %v3185 = vmul.f32 %v3184, 1.442695
    %v3186 = vpow.pop %v3185
    %v3187 = vadd.f32 %v3186, 1.0
    %v3188 = vrcp.pop %v3187
    %v3189 = vmul.f32 1.0, %v3188
    %v3190 = vmul.f32 %v3189, 2.0
    %v3191 = vsub.f32 %v3190, 1.0
    %v3192 = vsel %vm92, %v3191, %v3189
    %3193 = vrot.lane.b32.xlu0 %v3183, 64
    %v3194 = vpop.permute.xlu0 %3193
    %3195 = vrot.lane.b32.xlu0 %v3192, 64
    %v3196 = vpop.permute.xlu0 %3195
    %v3197 = vld [vmem:[#allocation5] sm:$0xff]
    %v3198 = vmul.f32 %v3194, %v3197
    %v3199 = vmul.f32 %v3183, %v3192
    %v3200 = vadd.f32 %v3198, %v3199
    %v3201 = vtanh.pop %v3200
    %v3202 = vmul.f32 %v3196, %v3201
    %3203 = vst [vmem:[#allocation5] sm:$0xff] %v3200
    %3204 = vst [vmem:[#allocation4] sm:$0xff] %v3202
    %3205 = vst [vmem:[%s1136] sm:$0xff] %v3202
    %s3206 = scalar_lea.vmem [#allocation9], 768
    %v3207 = vld [vmem:[%s3206] sm:$0xff]
    %v3208 = vld [vmem:[%s3206 + $0x8] sm:$0xff]
    %v3209 = vld [vmem:[%s3206 + $0x10] sm:$0xff]
    %v3210 = vld [vmem:[%s3206 + $0x18] sm:$0xff]
    %v3211 = vld [vmem:[%s3206 + $0x20] sm:$0xff]
    %v3212 = vld [vmem:[%s3206 + $0x28] sm:$0xff]
    %v3213 = vld [vmem:[%s3206 + $0x30] sm:$0xff]
    %v3214 = vld [vmem:[%s3206 + $0x38] sm:$0xff]
    %v3215 = vld [vmem:[%s3206 + $0x40] sm:$0xff]
    %v3216 = vld [vmem:[%s3206 + $0x48] sm:$0xff]
    %v3217 = vld [vmem:[%s3206 + $0x50] sm:$0xff]
    %v3218 = vld [vmem:[%s3206 + $0x58] sm:$0xff]
    %v3219 = vld [vmem:[%s3206 + $0x60] sm:$0xff]
    %v3220 = vld [vmem:[%s3206 + $0x68] sm:$0xff]
    %v3221 = vld [vmem:[%s3206 + $0x70] sm:$0xff]
    %v3222 = vld [vmem:[%s3206 + $0x78] sm:$0xff]
    %v3223 = vld [vmem:[%s3206 + $0x80] sm:$0xff]
    %v3224 = vld [vmem:[%s3206 + $0x88] sm:$0xff]
    %v3225 = vld [vmem:[%s3206 + $0x90] sm:$0xff]
    %v3226 = vld [vmem:[%s3206 + $0x98] sm:$0xff]
    %v3227 = vld [vmem:[%s3206 + $0xa0] sm:$0xff]
    %v3228 = vld [vmem:[%s3206 + $0xa8] sm:$0xff]
    %v3229 = vld [vmem:[%s3206 + $0xb0] sm:$0xff]
    %v3230 = vld [vmem:[%s3206 + $0xb8] sm:$0xff]
    %v3231 = vld [vmem:[%s3206 + $0xc0] sm:$0xff]
    %v3232 = vld [vmem:[%s3206 + $0xc8] sm:$0xff]
    %v3233 = vld [vmem:[%s3206 + $0xd0] sm:$0xff]
    %v3234 = vld [vmem:[%s3206 + $0xd8] sm:$0xff]
    %v3235 = vld [vmem:[%s3206 + $0xe0] sm:$0xff]
    %v3236 = vld [vmem:[%s3206 + $0xe8] sm:$0xff]
    %v3237 = vld [vmem:[%s3206 + $0xf0] sm:$0xff]
    %v3238 = vld [vmem:[%s3206 + $0xf8] sm:$0xff]
    %s3239 = scalar_lea.vmem [#allocation11], 768
    %v3240 = vld [vmem:[%s3239] sm:$0xff]
    %v3241 = vld [vmem:[%s3239 + $0x8] sm:$0xff]
    %v3242 = vld [vmem:[%s3239 + $0x10] sm:$0xff]
    %v3243 = vld [vmem:[%s3239 + $0x18] sm:$0xff]
    %v3244 = vld [vmem:[%s3239 + $0x20] sm:$0xff]
    %v3245 = vld [vmem:[%s3239 + $0x28] sm:$0xff]
    %v3246 = vld [vmem:[%s3239 + $0x30] sm:$0xff]
    %v3247 = vld [vmem:[%s3239 + $0x38] sm:$0xff]
    %v3248 = vld [vmem:[%s3239 + $0x40] sm:$0xff]
    %v3249 = vld [vmem:[%s3239 + $0x48] sm:$0xff]
    %v3250 = vld [vmem:[%s3239 + $0x50] sm:$0xff]
    %v3251 = vld [vmem:[%s3239 + $0x58] sm:$0xff]
    %v3252 = vld [vmem:[%s3239 + $0x60] sm:$0xff]
    %v3253 = vld [vmem:[%s3239 + $0x68] sm:$0xff]
    %v3254 = vld [vmem:[%s3239 + $0x70] sm:$0xff]
    %v3255 = vld [vmem:[%s3239 + $0x78] sm:$0xff]
    %v3256 = vld [vmem:[%s3239 + $0x80] sm:$0xff]
    %v3257 = vld [vmem:[%s3239 + $0x88] sm:$0xff]
    %v3258 = vld [vmem:[%s3239 + $0x90] sm:$0xff]
    %v3259 = vld [vmem:[%s3239 + $0x98] sm:$0xff]
    %v3260 = vld [vmem:[%s3239 + $0xa0] sm:$0xff]
    %v3261 = vld [vmem:[%s3239 + $0xa8] sm:$0xff]
    %v3262 = vld [vmem:[%s3239 + $0xb0] sm:$0xff]
    %v3263 = vld [vmem:[%s3239 + $0xb8] sm:$0xff]
    %v3264 = vld [vmem:[%s3239 + $0xc0] sm:$0xff]
    %v3265 = vld [vmem:[%s3239 + $0xc8] sm:$0xff]
    %v3266 = vld [vmem:[%s3239 + $0xd0] sm:$0xff]
    %v3267 = vld [vmem:[%s3239 + $0xd8] sm:$0xff]
    %v3268 = vld [vmem:[%s3239 + $0xe0] sm:$0xff]
    %v3269 = vld [vmem:[%s3239 + $0xe8] sm:$0xff]
    %v3270 = vld [vmem:[%s3239 + $0xf0] sm:$0xff]
    %v3271 = vld [vmem:[%s3239 + $0xf8] sm:$0xff]
    %s3272 = scalar_lea.vmem [#allocation12], 3
    %v3273 = vld [vmem:[%s3272] ss:$8 sm:$0x3]
    %v3274 = vld [vmem:[#allocation2] sm:$0xff]
    %v3275 = vld [vmem:[#allocation2 + $0x8] sm:$0xff]
    %v3276 = vld [vmem:[#allocation2 + $0x10] sm:$0xff]
    %v3277 = vld [vmem:[#allocation2 + $0x18] sm:$0xff]
    %v3278 = vld [vmem:[#allocation2 + $0x20] sm:$0xff]
    %v3279 = vld [vmem:[#allocation2 + $0x28] sm:$0xff]
    %v3280 = vld [vmem:[#allocation2 + $0x30] sm:$0xff]
    %v3281 = vld [vmem:[#allocation2 + $0x38] sm:$0xff]
    %v3283 = vlaneseq
    %v3284 = vshrl.u32 %v3283, 7
    %v3285 = vsub.s32 0, %v3284
    %v3286 = vrot.slane %v3273, %v3285
    %v3287 = vlaneseq
    %v3288 = vshrl.u32 %v3287, 7
    %v3289 = vsub.s32 1, %v3288
    %v3290 = vrot.slane %v3273, %v3289
    %3293 = vmatprep.subr.mxu0 %v3208
    %3294 = vmatpush1.msra.mxu0 %v3207
    %3295 = vmatprep.subr.mxu0 %v3210
    %3296 = vmatpush1.msra.mxu0 %v3209
    %3297 = vmatprep.subr.mxu0 %v3212
    %3298 = vmatpush1.msra.mxu0 %v3211
    %3299 = vmatprep.subr.mxu0 %v3214
    %3300 = vmatpush1.msra.mxu0 %v3213
    %3301 = vmatprep.subr.mxu0 %v3216
    %3302 = vmatpush1.msra.mxu0 %v3215
    %3303 = vmatprep.subr.mxu0 %v3218
    %3304 = vmatpush1.msra.mxu0 %v3217
    %3305 = vmatprep.subr.mxu0 %v3220
    %3306 = vmatpush1.msra.mxu0 %v3219
    %3307 = vmatprep.subr.mxu0 %v3222
    %3308 = vmatpush1.msra.mxu0 %v3221
    %3309 = vmatprep.subr.mxu0 %v3224
    %3310 = vmatpush1.msra.mxu0 %v3223
    %3311 = vmatprep.subr.mxu0 %v3226
    %3312 = vmatpush1.msra.mxu0 %v3225
    %3313 = vmatprep.subr.mxu0 %v3228
    %3314 = vmatpush1.msra.mxu0 %v3227
    %3315 = vmatprep.subr.mxu0 %v3230
    %3316 = vmatpush1.msra.mxu0 %v3229
    %3317 = vmatprep.subr.mxu0 %v3232
    %3318 = vmatpush1.msra.mxu0 %v3231
    %3319 = vmatprep.subr.mxu0 %v3234
    %3320 = vmatpush1.msra.mxu0 %v3233
    %3321 = vmatprep.subr.mxu0 %v3236
    %3322 = vmatpush1.msra.mxu0 %v3235
    %3323 = vmatprep.subr.mxu0 %v3238
    %3324 = vmatpush1.msra.mxu0 %v3237
    %3325 = vmatprep.subr.mxu0 0.0
    %3326 = vmatpush1.msra.mxu0 0.0
    %3327 = vmatprep.subr.mxu0 0.0
    %3328 = vmatpush1.msra.mxu0 0.0
    %3329 = vmatprep.subr.mxu0 0.0
    %3330 = vmatpush1.msra.mxu0 0.0
    %3331 = vmatprep.subr.mxu0 0.0
    %3332 = vmatpush1.msra.mxu0 0.0
    %3333 = vmatprep.subr.mxu0 0.0
    %3334 = vmatpush1.msra.mxu0 0.0
    %3335 = vmatprep.subr.mxu0 0.0
    %3336 = vmatpush1.msra.mxu0 0.0
    %3337 = vmatprep.subr.mxu0 0.0
    %3338 = vmatpush1.msra.mxu0 0.0
    %3339 = vmatprep.subr.mxu0 0.0
    %3340 = vmatpush1.msra.mxu0 0.0
    %3341 = vmatprep.subr.mxu0 0.0
    %3342 = vmatpush1.msra.mxu0 0.0
    %3343 = vmatprep.subr.mxu0 0.0
    %3344 = vmatpush1.msra.mxu0 0.0
    %3345 = vmatprep.subr.mxu0 0.0
    %3346 = vmatpush1.msra.mxu0 0.0
    %3347 = vmatprep.subr.mxu0 0.0
    %3348 = vmatpush1.msra.mxu0 0.0
    %3349 = vmatprep.subr.mxu0 0.0
    %3350 = vmatpush1.msra.mxu0 0.0
    %3351 = vmatprep.subr.mxu0 0.0
    %3352 = vmatpush1.msra.mxu0 0.0
    %3353 = vmatprep.subr.mxu0 0.0
    %3354 = vmatpush1.msra.mxu0 0.0
    %3355 = vmatprep.subr.mxu0 0.0
    %3356 = vmatpush1.msra.mxu0 0.0
    %3357 = vmatprep.mubr.f32.mxu0 0.0
    %3358 = vmatmul.mubr.f32.gmra.mrb[0].mxu0 %v3274
    %v3359 = vpop.f32.mrb[0].mxu0
    %v3360 = vadd.f32 %v3286, %v3359
    %v3361 = vpop.f32.mrb[0].mxu0
    %v3362 = vadd.f32 %v3290, %v3361
    %3363 = vmatprep.mubr.f32.mxu0 0.0
    %3364 = vmatmul.mubr.f32.gmra.mrb[0].mxu0 %v3275
    %v3365 = vpop.f32.mrb[0].mxu0
    %v3366 = vadd.f32 %v3286, %v3365
    %v3367 = vpop.f32.mrb[0].mxu0
    %v3368 = vadd.f32 %v3290, %v3367
    %3369 = vmatprep.mubr.f32.mxu0 0.0
    %3370 = vmatmul.mubr.f32.gmra.mrb[0].mxu0 %v3276
    %v3371 = vpop.f32.mrb[0].mxu0
    %v3372 = vadd.f32 %v3286, %v3371
    %v3373 = vpop.f32.mrb[0].mxu0
    %v3374 = vadd.f32 %v3290, %v3373
    %3375 = vmatprep.mubr.f32.mxu0 0.0
    %3376 = vmatmul.mubr.f32.gmra.mrb[0].mxu0 %v3277
    %v3377 = vpop.f32.mrb[0].mxu0
    %v3378 = vadd.f32 %v3286, %v3377
    %v3379 = vpop.f32.mrb[0].mxu0
    %v3380 = vadd.f32 %v3290, %v3379
    %3381 = vmatprep.mubr.f32.mxu0 0.0
    %3382 = vmatmul.mubr.f32.gmra.mrb[0].mxu0 %v3278
    %v3383 = vpop.f32.mrb[0].mxu0
    %v3384 = vadd.f32 %v3286, %v3383
    %v3385 = vpop.f32.mrb[0].mxu0
    %v3386 = vadd.f32 %v3290, %v3385
    %3387 = vmatprep.mubr.f32.mxu0 0.0
    %3388 = vmatmul.mubr.f32.gmra.mrb[0].mxu0 %v3279
    %v3389 = vpop.f32.mrb[0].mxu0
    %v3390 = vadd.f32 %v3286, %v3389
    %v3391 = vpop.f32.mrb[0].mxu0
    %v3392 = vadd.f32 %v3290, %v3391
    %3393 = vmatprep.mubr.f32.mxu0 0.0
    %3394 = vmatmul.mubr.f32.gmra.mrb[0].mxu0 %v3280
    %v3395 = vpop.f32.mrb[0].mxu0
    %v3396 = vadd.f32 %v3286, %v3395
    %v3397 = vpop.f32.mrb[0].mxu0
    %v3398 = vadd.f32 %v3290, %v3397
    %3399 = vmatprep.mubr.f32.mxu0 0.0
    %3400 = vmatmul.mubr.f32.gmra.mrb[0].mxu0 %v3281
    %v3401 = vpop.f32.mrb[0].mxu0
    %v3402 = vadd.f32 %v3286, %v3401
    %v3403 = vpop.f32.mrb[0].mxu0
    %v3404 = vadd.f32 %v3290, %v3403
    %3405 = vdwg.mxu0
    %3406 = vst [vmem:[#allocation3] sm:$0xff] %v3360
    %3407 = vst [vmem:[#allocation3 + $0x8] sm:$0xff] %v3362
    %3408 = vst [vmem:[#allocation3 + $0x10] sm:$0xff] %v3366
    %3409 = vst [vmem:[#allocation3 + $0x18] sm:$0xff] %v3368
    %3410 = vst [vmem:[#allocation3 + $0x20] sm:$0xff] %v3372
    %3411 = vst [vmem:[#allocation3 + $0x28] sm:$0xff] %v3374
    %3412 = vst [vmem:[#allocation3 + $0x30] sm:$0xff] %v3378
    %3413 = vst [vmem:[#allocation3 + $0x38] sm:$0xff] %v3380
    %3414 = vst [vmem:[#allocation3 + $0x40] sm:$0xff] %v3384
    %3415 = vst [vmem:[#allocation3 + $0x48] sm:$0xff] %v3386
    %3416 = vst [vmem:[#allocation3 + $0x50] sm:$0xff] %v3390
    %3417 = vst [vmem:[#allocation3 + $0x58] sm:$0xff] %v3392
    %3418 = vst [vmem:[#allocation3 + $0x60] sm:$0xff] %v3396
    %3419 = vst [vmem:[#allocation3 + $0x68] sm:$0xff] %v3398
    %3420 = vst [vmem:[#allocation3 + $0x70] sm:$0xff] %v3402
    %3421 = vst [vmem:[#allocation3 + $0x78] sm:$0xff] %v3404
    %3422 = vst [vmem:[#allocation4] sm:$0xff] 0.0
    %3423 = vst [vmem:[#allocation5] sm:$0xff] 0.0
    %v3424 = vld [vmem:[#allocation4] sm:$0xff]
    %v3425 = vld [vmem:[#allocation3] sm:$0xff]
    %v3426 = vld [vmem:[#allocation3 + $0x8] sm:$0xff]
    %3427 = vmatprep.subr.mxu0 %v3241
    %3428 = vmatpush1.msra.mxu0 %v3240
    %3429 = vmatprep.subr.mxu0 %v3243
    %3430 = vmatpush1.msra.mxu0 %v3242
    %3431 = vmatprep.subr.mxu0 %v3245
    %3432 = vmatpush1.msra.mxu0 %v3244
    %3433 = vmatprep.subr.mxu0 %v3247
    %3434 = vmatpush1.msra.mxu0 %v3246
    %3435 = vmatprep.subr.mxu0 %v3249
    %3436 = vmatpush1.msra.mxu0 %v3248
    %3437 = vmatprep.subr.mxu0 %v3251
    %3438 = vmatpush1.msra.mxu0 %v3250
    %3439 = vmatprep.subr.mxu0 %v3253
    %3440 = vmatpush1.msra.mxu0 %v3252
    %3441 = vmatprep.subr.mxu0 %v3255
    %3442 = vmatpush1.msra.mxu0 %v3254
    %3443 = vmatprep.subr.mxu0 %v3257
    %3444 = vmatpush1.msra.mxu0 %v3256
    %3445 = vmatprep.subr.mxu0 %v3259
    %3446 = vmatpush1.msra.mxu0 %v3258
    %3447 = vmatprep.subr.mxu0 %v3261
    %3448 = vmatpush1.msra.mxu0 %v3260
    %3449 = vmatprep.subr.mxu0 %v3263
    %3450 = vmatpush1.msra.mxu0 %v3262
    %3451 = vmatprep.subr.mxu0 %v3265
    %3452 = vmatpush1.msra.mxu0 %v3264
    %3453 = vmatprep.subr.mxu0 %v3267
    %3454 = vmatpush1.msra.mxu0 %v3266
    %3455 = vmatprep.subr.mxu0 %v3269
    %3456 = vmatpush1.msra.mxu0 %v3268
    %3457 = vmatprep.subr.mxu0 %v3271
    %3458 = vmatpush1.msra.mxu0 %v3270
    %3459 = vmatprep.subr.mxu0 0.0
    %3460 = vmatpush1.msra.mxu0 0.0
    %3461 = vmatprep.subr.mxu0 0.0
    %3462 = vmatpush1.msra.mxu0 0.0
    %3463 = vmatprep.subr.mxu0 0.0
    %3464 = vmatpush1.msra.mxu0 0.0
    %3465 = vmatprep.subr.mxu0 0.0
    %3466 = vmatpush1.msra.mxu0 0.0
    %3467 = vmatprep.subr.mxu0 0.0
    %3468 = vmatpush1.msra.mxu0 0.0
    %3469 = vmatprep.subr.mxu0 0.0
    %3470 = vmatpush1.msra.mxu0 0.0
    %3471 = vmatprep.subr.mxu0 0.0
    %3472 = vmatpush1.msra.mxu0 0.0
    %3473 = vmatprep.subr.mxu0 0.0
    %3474 = vmatpush1.msra.mxu0 0.0
    %3475 = vmatprep.subr.mxu0 0.0
    %3476 = vmatpush1.msra.mxu0 0.0
    %3477 = vmatprep.subr.mxu0 0.0
    %3478 = vmatpush1.msra.mxu0 0.0
    %3479 = vmatprep.subr.mxu0 0.0
    %3480 = vmatpush1.msra.mxu0 0.0
    %3481 = vmatprep.subr.mxu0 0.0
    %3482 = vmatpush1.msra.mxu0 0.0
    %3483 = vmatprep.subr.mxu0 0.0
    %3484 = vmatpush1.msra.mxu0 0.0
    %3485 = vmatprep.subr.mxu0 0.0
    %3486 = vmatpush1.msra.mxu0 0.0
    %3487 = vmatprep.subr.mxu0 0.0
    %3488 = vmatpush1.msra.mxu0 0.0
    %3489 = vmatprep.subr.mxu0 0.0
    %3490 = vmatpush1.msra.mxu0 0.0
    %3491 = vmatprep.mubr.f32.mxu0 0.0
    %3492 = vmatmul.mubr.f32.gmra.mrb[0].mxu0 %v3424
    %v3493 = vpop.f32.mrb[0].mxu0
    %v3494 = vadd.f32 %v3425, %v3493
    %v3495 = vpop.f32.mrb[0].mxu0
    %v3496 = vadd.f32 %v3426, %v3495
    %3497 = vdwg.mxu0
    %v3498 = vxor.u32 %v3494, 2147483648
    %v3499 = vmul.f32 %v3498, 1.442695
    %v3500 = vpow.pop %v3499
    %v3501 = vadd.f32 %v3500, 1.0
    %v3502 = vrcp.pop %v3501
    %v3503 = vmul.f32 1.0, %v3502
    %v3504 = vxor.u32 %v3496, 2147483648
    %v3505 = vmul.f32 %v3504, 1.442695
    %v3506 = vpow.pop %v3505
    %v3507 = vadd.f32 %v3506, 1.0
    %v3508 = vrcp.pop %v3507
    %v3509 = vmul.f32 1.0, %v3508
    %v3510 = vmul.f32 %v3509, 2.0
    %v3511 = vsub.f32 %v3510, 1.0
    %v3512 = vsel %vm92, %v3511, %v3509
    %3513 = vrot.lane.b32.xlu0 %v3503, 64
    %v3514 = vpop.permute.xlu0 %3513
    %3515 = vrot.lane.b32.xlu0 %v3512, 64
    %v3516 = vpop.permute.xlu0 %3515
    %v3517 = vld [vmem:[#allocation5] sm:$0xff]
    %v3518 = vmul.f32 %v3514, %v3517
    %v3519 = vmul.f32 %v3503, %v3512
    %v3520 = vadd.f32 %v3518, %v3519
    %v3521 = vtanh.pop %v3520
    %v3522 = vmul.f32 %v3516, %v3521
    %3523 = vst [vmem:[#allocation5] sm:$0xff] %v3520
    %3524 = vst [vmem:[#allocation4] sm:$0xff] %v3522
    %3525 = vst [vmem:[#allocation2] sm:$0xff] %v3522
    %v3526 = vld [vmem:[#allocation4] sm:$0xff]
    %v3527 = vld [vmem:[%s411] sm:$0xff]
    %v3528 = vld [vmem:[%s411 + $0x8] sm:$0xff]
    %3529 = vmatprep.subr.mxu0 %v3241
    %3530 = vmatpush1.msra.mxu0 %v3240
    %3531 = vmatprep.subr.mxu0 %v3243
    %3532 = vmatpush1.msra.mxu0 %v3242
    %3533 = vmatprep.subr.mxu0 %v3245
    %3534 = vmatpush1.msra.mxu0 %v3244
    %3535 = vmatprep.subr.mxu0 %v3247
    %3536 = vmatpush1.msra.mxu0 %v3246
    %3537 = vmatprep.subr.mxu0 %v3249
    %3538 = vmatpush1.msra.mxu0 %v3248
    %3539 = vmatprep.subr.mxu0 %v3251
    %3540 = vmatpush1.msra.mxu0 %v3250
    %3541 = vmatprep.subr.mxu0 %v3253
    %3542 = vmatpush1.msra.mxu0 %v3252
    %3543 = vmatprep.subr.mxu0 %v3255
    %3544 = vmatpush1.msra.mxu0 %v3254
    %3545 = vmatprep.subr.mxu0 %v3257
    %3546 = vmatpush1.msra.mxu0 %v3256
    %3547 = vmatprep.subr.mxu0 %v3259
    %3548 = vmatpush1.msra.mxu0 %v3258
    %3549 = vmatprep.subr.mxu0 %v3261
    %3550 = vmatpush1.msra.mxu0 %v3260
    %3551 = vmatprep.subr.mxu0 %v3263
    %3552 = vmatpush1.msra.mxu0 %v3262
    %3553 = vmatprep.subr.mxu0 %v3265
    %3554 = vmatpush1.msra.mxu0 %v3264
    %3555 = vmatprep.subr.mxu0 %v3267
    %3556 = vmatpush1.msra.mxu0 %v3266
    %3557 = vmatprep.subr.mxu0 %v3269
    %3558 = vmatpush1.msra.mxu0 %v3268
    %3559 = vmatprep.subr.mxu0 %v3271
    %3560 = vmatpush1.msra.mxu0 %v3270
    %3561 = vmatprep.subr.mxu0 0.0
    %3562 = vmatpush1.msra.mxu0 0.0
    %3563 = vmatprep.subr.mxu0 0.0
    %3564 = vmatpush1.msra.mxu0 0.0
    %3565 = vmatprep.subr.mxu0 0.0
    %3566 = vmatpush1.msra.mxu0 0.0
    %3567 = vmatprep.subr.mxu0 0.0
    %3568 = vmatpush1.msra.mxu0 0.0
    %3569 = vmatprep.subr.mxu0 0.0
    %3570 = vmatpush1.msra.mxu0 0.0
    %3571 = vmatprep.subr.mxu0 0.0
    %3572 = vmatpush1.msra.mxu0 0.0
    %3573 = vmatprep.subr.mxu0 0.0
    %3574 = vmatpush1.msra.mxu0 0.0
    %3575 = vmatprep.subr.mxu0 0.0
    %3576 = vmatpush1.msra.mxu0 0.0
    %3577 = vmatprep.subr.mxu0 0.0
    %3578 = vmatpush1.msra.mxu0 0.0
    %3579 = vmatprep.subr.mxu0 0.0
    %3580 = vmatpush1.msra.mxu0 0.0
    %3581 = vmatprep.subr.mxu0 0.0
    %3582 = vmatpush1.msra.mxu0 0.0
    %3583 = vmatprep.subr.mxu0 0.0
    %3584 = vmatpush1.msra.mxu0 0.0
    %3585 = vmatprep.subr.mxu0 0.0
    %3586 = vmatpush1.msra.mxu0 0.0
    %3587 = vmatprep.subr.mxu0 0.0
    %3588 = vmatpush1.msra.mxu0 0.0
    %3589 = vmatprep.subr.mxu0 0.0
    %3590 = vmatpush1.msra.mxu0 0.0
    %3591 = vmatprep.subr.mxu0 0.0
    %3592 = vmatpush1.msra.mxu0 0.0
    %3593 = vmatprep.mubr.f32.mxu0 0.0
    %3594 = vmatmul.mubr.f32.gmra.mrb[0].mxu0 %v3526
    %v3595 = vpop.f32.mrb[0].mxu0
    %v3596 = vadd.f32 %v3527, %v3595
    %v3597 = vpop.f32.mrb[0].mxu0
    %v3598 = vadd.f32 %v3528, %v3597
    %3599 = vdwg.mxu0
    %v3600 = vxor.u32 %v3596, 2147483648
    %v3601 = vmul.f32 %v3600, 1.442695
    %v3602 = vpow.pop %v3601
    %v3603 = vadd.f32 %v3602, 1.0
    %v3604 = vrcp.pop %v3603
    %v3605 = vmul.f32 1.0, %v3604
    %v3606 = vxor.u32 %v3598, 2147483648
    %v3607 = vmul.f32 %v3606, 1.442695
    %v3608 = vpow.pop %v3607
    %v3609 = vadd.f32 %v3608, 1.0
    %v3610 = vrcp.pop %v3609
    %v3611 = vmul.f32 1.0, %v3610
    %v3612 = vmul.f32 %v3611, 2.0
    %v3613 = vsub.f32 %v3612, 1.0
    %v3614 = vsel %vm92, %v3613, %v3611
    %3615 = vrot.lane.b32.xlu0 %v3605, 64
    %v3616 = vpop.permute.xlu0 %3615
    %3617 = vrot.lane.b32.xlu0 %v3614, 64
    %v3618 = vpop.permute.xlu0 %3617
    %v3619 = vld [vmem:[#allocation5] sm:$0xff]
    %v3620 = vmul.f32 %v3616, %v3619
    %v3621 = vmul.f32 %v3605, %v3614
    %v3622 = vadd.f32 %v3620, %v3621
    %v3623 = vtanh.pop %v3622
    %v3624 = vmul.f32 %v3618, %v3623
    %3625 = vst [vmem:[#allocation5] sm:$0xff] %v3622
    %3626 = vst [vmem:[#allocation4] sm:$0xff] %v3624
    %3627 = vst [vmem:[%s512] sm:$0xff] %v3624
    %v3628 = vld [vmem:[#allocation4] sm:$0xff]
    %v3629 = vld [vmem:[%s515] sm:$0xff]
    %v3630 = vld [vmem:[%s515 + $0x8] sm:$0xff]
    %3631 = vmatprep.subr.mxu0 %v3241
    %3632 = vmatpush1.msra.mxu0 %v3240
    %3633 = vmatprep.subr.mxu0 %v3243
    %3634 = vmatpush1.msra.mxu0 %v3242
    %3635 = vmatprep.subr.mxu0 %v3245
    %3636 = vmatpush1.msra.mxu0 %v3244
    %3637 = vmatprep.subr.mxu0 %v3247
    %3638 = vmatpush1.msra.mxu0 %v3246
    %3639 = vmatprep.subr.mxu0 %v3249
    %3640 = vmatpush1.msra.mxu0 %v3248
    %3641 = vmatprep.subr.mxu0 %v3251
    %3642 = vmatpush1.msra.mxu0 %v3250
    %3643 = vmatprep.subr.mxu0 %v3253
    %3644 = vmatpush1.msra.mxu0 %v3252
    %3645 = vmatprep.subr.mxu0 %v3255
    %3646 = vmatpush1.msra.mxu0 %v3254
    %3647 = vmatprep.subr.mxu0 %v3257
    %3648 = vmatpush1.msra.mxu0 %v3256
    %3649 = vmatprep.subr.mxu0 %v3259
    %3650 = vmatpush1.msra.mxu0 %v3258
    %3651 = vmatprep.subr.mxu0 %v3261
    %3652 = vmatpush1.msra.mxu0 %v3260
    %3653 = vmatprep.subr.mxu0 %v3263
    %3654 = vmatpush1.msra.mxu0 %v3262
    %3655 = vmatprep.subr.mxu0 %v3265
    %3656 = vmatpush1.msra.mxu0 %v3264
    %3657 = vmatprep.subr.mxu0 %v3267
    %3658 = vmatpush1.msra.mxu0 %v3266
    %3659 = vmatprep.subr.mxu0 %v3269
    %3660 = vmatpush1.msra.mxu0 %v3268
    %3661 = vmatprep.subr.mxu0 %v3271
    %3662 = vmatpush1.msra.mxu0 %v3270
    %3663 = vmatprep.subr.mxu0 0.0
    %3664 = vmatpush1.msra.mxu0 0.0
    %3665 = vmatprep.subr.mxu0 0.0
    %3666 = vmatpush1.msra.mxu0 0.0
    %3667 = vmatprep.subr.mxu0 0.0
    %3668 = vmatpush1.msra.mxu0 0.0
    %3669 = vmatprep.subr.mxu0 0.0
    %3670 = vmatpush1.msra.mxu0 0.0
    %3671 = vmatprep.subr.mxu0 0.0
    %3672 = vmatpush1.msra.mxu0 0.0
    %3673 = vmatprep.subr.mxu0 0.0
    %3674 = vmatpush1.msra.mxu0 0.0
    %3675 = vmatprep.subr.mxu0 0.0
    %3676 = vmatpush1.msra.mxu0 0.0
    %3677 = vmatprep.subr.mxu0 0.0
    %3678 = vmatpush1.msra.mxu0 0.0
    %3679 = vmatprep.subr.mxu0 0.0
    %3680 = vmatpush1.msra.mxu0 0.0
    %3681 = vmatprep.subr.mxu0 0.0
    %3682 = vmatpush1.msra.mxu0 0.0
    %3683 = vmatprep.subr.mxu0 0.0
    %3684 = vmatpush1.msra.mxu0 0.0
    %3685 = vmatprep.subr.mxu0 0.0
    %3686 = vmatpush1.msra.mxu0 0.0
    %3687 = vmatprep.subr.mxu0 0.0
    %3688 = vmatpush1.msra.mxu0 0.0
    %3689 = vmatprep.subr.mxu0 0.0
    %3690 = vmatpush1.msra.mxu0 0.0
    %3691 = vmatprep.subr.mxu0 0.0
    %3692 = vmatpush1.msra.mxu0 0.0
    %3693 = vmatprep.subr.mxu0 0.0
    %3694 = vmatpush1.msra.mxu0 0.0
    %3695 = vmatprep.mubr.f32.mxu0 0.0
    %3696 = vmatmul.mubr.f32.gmra.mrb[0].mxu0 %v3628
    %v3697 = vpop.f32.mrb[0].mxu0
    %v3698 = vadd.f32 %v3629, %v3697
    %v3699 = vpop.f32.mrb[0].mxu0
    %v3700 = vadd.f32 %v3630, %v3699
    %3701 = vdwg.mxu0
    %v3702 = vxor.u32 %v3698, 2147483648
    %v3703 = vmul.f32 %v3702, 1.442695
    %v3704 = vpow.pop %v3703
    %v3705 = vadd.f32 %v3704, 1.0
    %v3706 = vrcp.pop %v3705
    %v3707 = vmul.f32 1.0, %v3706
    %v3708 = vxor.u32 %v3700, 2147483648
    %v3709 = vmul.f32 %v3708, 1.442695
    %v3710 = vpow.pop %v3709
    %v3711 = vadd.f32 %v3710, 1.0
    %v3712 = vrcp.pop %v3711
    %v3713 = vmul.f32 1.0, %v3712
    %v3714 = vmul.f32 %v3713, 2.0
    %v3715 = vsub.f32 %v3714, 1.0
    %v3716 = vsel %vm92, %v3715, %v3713
    %3717 = vrot.lane.b32.xlu0 %v3707, 64
    %v3718 = vpop.permute.xlu0 %3717
    %3719 = vrot.lane.b32.xlu0 %v3716, 64
    %v3720 = vpop.permute.xlu0 %3719
    %v3721 = vld [vmem:[#allocation5] sm:$0xff]
    %v3722 = vmul.f32 %v3718, %v3721
    %v3723 = vmul.f32 %v3707, %v3716
    %v3724 = vadd.f32 %v3722, %v3723
    %v3725 = vtanh.pop %v3724
    %v3726 = vmul.f32 %v3720, %v3725
    %3727 = vst [vmem:[#allocation5] sm:$0xff] %v3724
    %3728 = vst [vmem:[#allocation4] sm:$0xff] %v3726
    %3729 = vst [vmem:[%s616] sm:$0xff] %v3726
    %v3730 = vld [vmem:[#allocation4] sm:$0xff]
    %v3731 = vld [vmem:[%s619] sm:$0xff]
    %v3732 = vld [vmem:[%s619 + $0x8] sm:$0xff]
    %3733 = vmatprep.subr.mxu0 %v3241
    %3734 = vmatpush1.msra.mxu0 %v3240
    %3735 = vmatprep.subr.mxu0 %v3243
    %3736 = vmatpush1.msra.mxu0 %v3242
    %3737 = vmatprep.subr.mxu0 %v3245
    %3738 = vmatpush1.msra.mxu0 %v3244
    %3739 = vmatprep.subr.mxu0 %v3247
    %3740 = vmatpush1.msra.mxu0 %v3246
    %3741 = vmatprep.subr.mxu0 %v3249
    %3742 = vmatpush1.msra.mxu0 %v3248
    %3743 = vmatprep.subr.mxu0 %v3251
    %3744 = vmatpush1.msra.mxu0 %v3250
    %3745 = vmatprep.subr.mxu0 %v3253
    %3746 = vmatpush1.msra.mxu0 %v3252
    %3747 = vmatprep.subr.mxu0 %v3255
    %3748 = vmatpush1.msra.mxu0 %v3254
    %3749 = vmatprep.subr.mxu0 %v3257
    %3750 = vmatpush1.msra.mxu0 %v3256
    %3751 = vmatprep.subr.mxu0 %v3259
    %3752 = vmatpush1.msra.mxu0 %v3258
    %3753 = vmatprep.subr.mxu0 %v3261
    %3754 = vmatpush1.msra.mxu0 %v3260
    %3755 = vmatprep.subr.mxu0 %v3263
    %3756 = vmatpush1.msra.mxu0 %v3262
    %3757 = vmatprep.subr.mxu0 %v3265
    %3758 = vmatpush1.msra.mxu0 %v3264
    %3759 = vmatprep.subr.mxu0 %v3267
    %3760 = vmatpush1.msra.mxu0 %v3266
    %3761 = vmatprep.subr.mxu0 %v3269
    %3762 = vmatpush1.msra.mxu0 %v3268
    %3763 = vmatprep.subr.mxu0 %v3271
    %3764 = vmatpush1.msra.mxu0 %v3270
    %3765 = vmatprep.subr.mxu0 0.0
    %3766 = vmatpush1.msra.mxu0 0.0
    %3767 = vmatprep.subr.mxu0 0.0
    %3768 = vmatpush1.msra.mxu0 0.0
    %3769 = vmatprep.subr.mxu0 0.0
    %3770 = vmatpush1.msra.mxu0 0.0
    %3771 = vmatprep.subr.mxu0 0.0
    %3772 = vmatpush1.msra.mxu0 0.0
    %3773 = vmatprep.subr.mxu0 0.0
    %3774 = vmatpush1.msra.mxu0 0.0
    %3775 = vmatprep.subr.mxu0 0.0
    %3776 = vmatpush1.msra.mxu0 0.0
    %3777 = vmatprep.subr.mxu0 0.0
    %3778 = vmatpush1.msra.mxu0 0.0
    %3779 = vmatprep.subr.mxu0 0.0
    %3780 = vmatpush1.msra.mxu0 0.0
    %3781 = vmatprep.subr.mxu0 0.0
    %3782 = vmatpush1.msra.mxu0 0.0
    %3783 = vmatprep.subr.mxu0 0.0
    %3784 = vmatpush1.msra.mxu0 0.0
    %3785 = vmatprep.subr.mxu0 0.0
    %3786 = vmatpush1.msra.mxu0 0.0
    %3787 = vmatprep.subr.mxu0 0.0
    %3788 = vmatpush1.msra.mxu0 0.0
    %3789 = vmatprep.subr.mxu0 0.0
    %3790 = vmatpush1.msra.mxu0 0.0
    %3791 = vmatprep.subr.mxu0 0.0
    %3792 = vmatpush1.msra.mxu0 0.0
    %3793 = vmatprep.subr.mxu0 0.0
    %3794 = vmatpush1.msra.mxu0 0.0
    %3795 = vmatprep.subr.mxu0 0.0
    %3796 = vmatpush1.msra.mxu0 0.0
    %3797 = vmatprep.mubr.f32.mxu0 0.0
    %3798 = vmatmul.mubr.f32.gmra.mrb[0].mxu0 %v3730
    %v3799 = vpop.f32.mrb[0].mxu0
    %v3800 = vadd.f32 %v3731, %v3799
    %v3801 = vpop.f32.mrb[0].mxu0
    %v3802 = vadd.f32 %v3732, %v3801
    %3803 = vdwg.mxu0
    %v3804 = vxor.u32 %v3800, 2147483648
    %v3805 = vmul.f32 %v3804, 1.442695
    %v3806 = vpow.pop %v3805
    %v3807 = vadd.f32 %v3806, 1.0
    %v3808 = vrcp.pop %v3807
    %v3809 = vmul.f32 1.0, %v3808
    %v3810 = vxor.u32 %v3802, 2147483648
    %v3811 = vmul.f32 %v3810, 1.442695
    %v3812 = vpow.pop %v3811
    %v3813 = vadd.f32 %v3812, 1.0
    %v3814 = vrcp.pop %v3813
    %v3815 = vmul.f32 1.0, %v3814
    %v3816 = vmul.f32 %v3815, 2.0
    %v3817 = vsub.f32 %v3816, 1.0
    %v3818 = vsel %vm92, %v3817, %v3815
    %3819 = vrot.lane.b32.xlu0 %v3809, 64
    %v3820 = vpop.permute.xlu0 %3819
    %3821 = vrot.lane.b32.xlu0 %v3818, 64
    %v3822 = vpop.permute.xlu0 %3821
    %v3823 = vld [vmem:[#allocation5] sm:$0xff]
    %v3824 = vmul.f32 %v3820, %v3823
    %v3825 = vmul.f32 %v3809, %v3818
    %v3826 = vadd.f32 %v3824, %v3825
    %v3827 = vtanh.pop %v3826
    %v3828 = vmul.f32 %v3822, %v3827
    %3829 = vst [vmem:[#allocation5] sm:$0xff] %v3826
    %3830 = vst [vmem:[#allocation4] sm:$0xff] %v3828
    %3831 = vst [vmem:[%s720] sm:$0xff] %v3828
    %v3832 = vld [vmem:[#allocation4] sm:$0xff]
    %v3833 = vld [vmem:[%s723] sm:$0xff]
    %v3834 = vld [vmem:[%s723 + $0x8] sm:$0xff]
    %3835 = vmatprep.subr.mxu0 %v3241
    %3836 = vmatpush1.msra.mxu0 %v3240
    %3837 = vmatprep.subr.mxu0 %v3243
    %3838 = vmatpush1.msra.mxu0 %v3242
    %3839 = vmatprep.subr.mxu0 %v3245
    %3840 = vmatpush1.msra.mxu0 %v3244
    %3841 = vmatprep.subr.mxu0 %v3247
    %3842 = vmatpush1.msra.mxu0 %v3246
    %3843 = vmatprep.subr.mxu0 %v3249
    %3844 = vmatpush1.msra.mxu0 %v3248
    %3845 = vmatprep.subr.mxu0 %v3251
    %3846 = vmatpush1.msra.mxu0 %v3250
    %3847 = vmatprep.subr.mxu0 %v3253
    %3848 = vmatpush1.msra.mxu0 %v3252
    %3849 = vmatprep.subr.mxu0 %v3255
    %3850 = vmatpush1.msra.mxu0 %v3254
    %3851 = vmatprep.subr.mxu0 %v3257
    %3852 = vmatpush1.msra.mxu0 %v3256
    %3853 = vmatprep.subr.mxu0 %v3259
    %3854 = vmatpush1.msra.mxu0 %v3258
    %3855 = vmatprep.subr.mxu0 %v3261
    %3856 = vmatpush1.msra.mxu0 %v3260
    %3857 = vmatprep.subr.mxu0 %v3263
    %3858 = vmatpush1.msra.mxu0 %v3262
    %3859 = vmatprep.subr.mxu0 %v3265
    %3860 = vmatpush1.msra.mxu0 %v3264
    %3861 = vmatprep.subr.mxu0 %v3267
    %3862 = vmatpush1.msra.mxu0 %v3266
    %3863 = vmatprep.subr.mxu0 %v3269
    %3864 = vmatpush1.msra.mxu0 %v3268
    %3865 = vmatprep.subr.mxu0 %v3271
    %3866 = vmatpush1.msra.mxu0 %v3270
    %3867 = vmatprep.subr.mxu0 0.0
    %3868 = vmatpush1.msra.mxu0 0.0
    %3869 = vmatprep.subr.mxu0 0.0
    %3870 = vmatpush1.msra.mxu0 0.0
    %3871 = vmatprep.subr.mxu0 0.0
    %3872 = vmatpush1.msra.mxu0 0.0
    %3873 = vmatprep.subr.mxu0 0.0
    %3874 = vmatpush1.msra.mxu0 0.0
    %3875 = vmatprep.subr.mxu0 0.0
    %3876 = vmatpush1.msra.mxu0 0.0
    %3877 = vmatprep.subr.mxu0 0.0
    %3878 = vmatpush1.msra.mxu0 0.0
    %3879 = vmatprep.subr.mxu0 0.0
    %3880 = vmatpush1.msra.mxu0 0.0
    %3881 = vmatprep.subr.mxu0 0.0
    %3882 = vmatpush1.msra.mxu0 0.0
    %3883 = vmatprep.subr.mxu0 0.0
    %3884 = vmatpush1.msra.mxu0 0.0
    %3885 = vmatprep.subr.mxu0 0.0
    %3886 = vmatpush1.msra.mxu0 0.0
    %3887 = vmatprep.subr.mxu0 0.0
    %3888 = vmatpush1.msra.mxu0 0.0
    %3889 = vmatprep.subr.mxu0 0.0
    %3890 = vmatpush1.msra.mxu0 0.0
    %3891 = vmatprep.subr.mxu0 0.0
    %3892 = vmatpush1.msra.mxu0 0.0
    %3893 = vmatprep.subr.mxu0 0.0
    %3894 = vmatpush1.msra.mxu0 0.0
    %3895 = vmatprep.subr.mxu0 0.0
    %3896 = vmatpush1.msra.mxu0 0.0
    %3897 = vmatprep.subr.mxu0 0.0
    %3898 = vmatpush1.msra.mxu0 0.0
    %3899 = vmatprep.mubr.f32.mxu0 0.0
    %3900 = vmatmul.mubr.f32.gmra.mrb[0].mxu0 %v3832
    %v3901 = vpop.f32.mrb[0].mxu0
    %v3902 = vadd.f32 %v3833, %v3901
    %v3903 = vpop.f32.mrb[0].mxu0
    %v3904 = vadd.f32 %v3834, %v3903
    %3905 = vdwg.mxu0
    %v3906 = vxor.u32 %v3902, 2147483648
    %v3907 = vmul.f32 %v3906, 1.442695
    %v3908 = vpow.pop %v3907
    %v3909 = vadd.f32 %v3908, 1.0
    %v3910 = vrcp.pop %v3909
    %v3911 = vmul.f32 1.0, %v3910
    %v3912 = vxor.u32 %v3904, 2147483648
    %v3913 = vmul.f32 %v3912, 1.442695
    %v3914 = vpow.pop %v3913
    %v3915 = vadd.f32 %v3914, 1.0
    %v3916 = vrcp.pop %v3915
    %v3917 = vmul.f32 1.0, %v3916
    %v3918 = vmul.f32 %v3917, 2.0
    %v3919 = vsub.f32 %v3918, 1.0
    %v3920 = vsel %vm92, %v3919, %v3917
    %3921 = vrot.lane.b32.xlu0 %v3911, 64
    %v3922 = vpop.permute.xlu0 %3921
    %3923 = vrot.lane.b32.xlu0 %v3920, 64
    %v3924 = vpop.permute.xlu0 %3923
    %v3925 = vld [vmem:[#allocation5] sm:$0xff]
    %v3926 = vmul.f32 %v3922, %v3925
    %v3927 = vmul.f32 %v3911, %v3920
    %v3928 = vadd.f32 %v3926, %v3927
    %v3929 = vtanh.pop %v3928
    %v3930 = vmul.f32 %v3924, %v3929
    %3931 = vst [vmem:[#allocation5] sm:$0xff] %v3928
    %3932 = vst [vmem:[#allocation4] sm:$0xff] %v3930
    %3933 = vst [vmem:[%s824] sm:$0xff] %v3930
    %v3934 = vld [vmem:[#allocation4] sm:$0xff]
    %v3935 = vld [vmem:[%s827] sm:$0xff]
    %v3936 = vld [vmem:[%s827 + $0x8] sm:$0xff]
    %3937 = vmatprep.subr.mxu0 %v3241
    %3938 = vmatpush1.msra.mxu0 %v3240
    %3939 = vmatprep.subr.mxu0 %v3243
    %3940 = vmatpush1.msra.mxu0 %v3242
    %3941 = vmatprep.subr.mxu0 %v3245
    %3942 = vmatpush1.msra.mxu0 %v3244
    %3943 = vmatprep.subr.mxu0 %v3247
    %3944 = vmatpush1.msra.mxu0 %v3246
    %3945 = vmatprep.subr.mxu0 %v3249
    %3946 = vmatpush1.msra.mxu0 %v3248
    %3947 = vmatprep.subr.mxu0 %v3251
    %3948 = vmatpush1.msra.mxu0 %v3250
    %3949 = vmatprep.subr.mxu0 %v3253
    %3950 = vmatpush1.msra.mxu0 %v3252
    %3951 = vmatprep.subr.mxu0 %v3255
    %3952 = vmatpush1.msra.mxu0 %v3254
    %3953 = vmatprep.subr.mxu0 %v3257
    %3954 = vmatpush1.msra.mxu0 %v3256
    %3955 = vmatprep.subr.mxu0 %v3259
    %3956 = vmatpush1.msra.mxu0 %v3258
    %3957 = vmatprep.subr.mxu0 %v3261
    %3958 = vmatpush1.msra.mxu0 %v3260
    %3959 = vmatprep.subr.mxu0 %v3263
    %3960 = vmatpush1.msra.mxu0 %v3262
    %3961 = vmatprep.subr.mxu0 %v3265
    %3962 = vmatpush1.msra.mxu0 %v3264
    %3963 = vmatprep.subr.mxu0 %v3267
    %3964 = vmatpush1.msra.mxu0 %v3266
    %3965 = vmatprep.subr.mxu0 %v3269
    %3966 = vmatpush1.msra.mxu0 %v3268
    %3967 = vmatprep.subr.mxu0 %v3271
    %3968 = vmatpush1.msra.mxu0 %v3270
    %3969 = vmatprep.subr.mxu0 0.0
    %3970 = vmatpush1.msra.mxu0 0.0
    %3971 = vmatprep.subr.mxu0 0.0
    %3972 = vmatpush1.msra.mxu0 0.0
    %3973 = vmatprep.subr.mxu0 0.0
    %3974 = vmatpush1.msra.mxu0 0.0
    %3975 = vmatprep.subr.mxu0 0.0
    %3976 = vmatpush1.msra.mxu0 0.0
    %3977 = vmatprep.subr.mxu0 0.0
    %3978 = vmatpush1.msra.mxu0 0.0
    %3979 = vmatprep.subr.mxu0 0.0
    %3980 = vmatpush1.msra.mxu0 0.0
    %3981 = vmatprep.subr.mxu0 0.0
    %3982 = vmatpush1.msra.mxu0 0.0
    %3983 = vmatprep.subr.mxu0 0.0
    %3984 = vmatpush1.msra.mxu0 0.0
    %3985 = vmatprep.subr.mxu0 0.0
    %3986 = vmatpush1.msra.mxu0 0.0
    %3987 = vmatprep.subr.mxu0 0.0
    %3988 = vmatpush1.msra.mxu0 0.0
    %3989 = vmatprep.subr.mxu0 0.0
    %3990 = vmatpush1.msra.mxu0 0.0
    %3991 = vmatprep.subr.mxu0 0.0
    %3992 = vmatpush1.msra.mxu0 0.0
    %3993 = vmatprep.subr.mxu0 0.0
    %3994 = vmatpush1.msra.mxu0 0.0
    %3995 = vmatprep.subr.mxu0 0.0
    %3996 = vmatpush1.msra.mxu0 0.0
    %3997 = vmatprep.subr.mxu0 0.0
    %3998 = vmatpush1.msra.mxu0 0.0
    %3999 = vmatprep.subr.mxu0 0.0
    %4000 = vmatpush1.msra.mxu0 0.0
    %4001 = vmatprep.mubr.f32.mxu0 0.0
    %4002 = vmatmul.mubr.f32.gmra.mrb[0].mxu0 %v3934
    %v4003 = vpop.f32.mrb[0].mxu0
    %v4004 = vadd.f32 %v3935, %v4003
    %v4005 = vpop.f32.mrb[0].mxu0
    %v4006 = vadd.f32 %v3936, %v4005
    %4007 = vdwg.mxu0
    %v4008 = vxor.u32 %v4004, 2147483648
    %v4009 = vmul.f32 %v4008, 1.442695
    %v4010 = vpow.pop %v4009
    %v4011 = vadd.f32 %v4010, 1.0
    %v4012 = vrcp.pop %v4011
    %v4013 = vmul.f32 1.0, %v4012
    %v4014 = vxor.u32 %v4006, 2147483648
    %v4015 = vmul.f32 %v4014, 1.442695
    %v4016 = vpow.pop %v4015
    %v4017 = vadd.f32 %v4016, 1.0
    %v4018 = vrcp.pop %v4017
    %v4019 = vmul.f32 1.0, %v4018
    %v4020 = vmul.f32 %v4019, 2.0
    %v4021 = vsub.f32 %v4020, 1.0
    %v4022 = vsel %vm92, %v4021, %v4019
    %4023 = vrot.lane.b32.xlu0 %v4013, 64
    %v4024 = vpop.permute.xlu0 %4023
    %4025 = vrot.lane.b32.xlu0 %v4022, 64
    %v4026 = vpop.permute.xlu0 %4025
    %v4027 = vld [vmem:[#allocation5] sm:$0xff]
    %v4028 = vmul.f32 %v4024, %v4027
    %v4029 = vmul.f32 %v4013, %v4022
    %v4030 = vadd.f32 %v4028, %v4029
    %v4031 = vtanh.pop %v4030
    %v4032 = vmul.f32 %v4026, %v4031
    %4033 = vst [vmem:[#allocation5] sm:$0xff] %v4030
    %4034 = vst [vmem:[#allocation4] sm:$0xff] %v4032
    %4035 = vst [vmem:[%s928] sm:$0xff] %v4032
    %v4036 = vld [vmem:[#allocation4] sm:$0xff]
    %v4037 = vld [vmem:[%s931] sm:$0xff]
    %v4038 = vld [vmem:[%s931 + $0x8] sm:$0xff]
    %4039 = vmatprep.subr.mxu0 %v3241
    %4040 = vmatpush1.msra.mxu0 %v3240
    %4041 = vmatprep.subr.mxu0 %v3243
    %4042 = vmatpush1.msra.mxu0 %v3242
    %4043 = vmatprep.subr.mxu0 %v3245
    %4044 = vmatpush1.msra.mxu0 %v3244
    %4045 = vmatprep.subr.mxu0 %v3247
    %4046 = vmatpush1.msra.mxu0 %v3246
    %4047 = vmatprep.subr.mxu0 %v3249
    %4048 = vmatpush1.msra.mxu0 %v3248
    %4049 = vmatprep.subr.mxu0 %v3251
    %4050 = vmatpush1.msra.mxu0 %v3250
    %4051 = vmatprep.subr.mxu0 %v3253
    %4052 = vmatpush1.msra.mxu0 %v3252
    %4053 = vmatprep.subr.mxu0 %v3255
    %4054 = vmatpush1.msra.mxu0 %v3254
    %4055 = vmatprep.subr.mxu0 %v3257
    %4056 = vmatpush1.msra.mxu0 %v3256
    %4057 = vmatprep.subr.mxu0 %v3259
    %4058 = vmatpush1.msra.mxu0 %v3258
    %4059 = vmatprep.subr.mxu0 %v3261
    %4060 = vmatpush1.msra.mxu0 %v3260
    %4061 = vmatprep.subr.mxu0 %v3263
    %4062 = vmatpush1.msra.mxu0 %v3262
    %4063 = vmatprep.subr.mxu0 %v3265
    %4064 = vmatpush1.msra.mxu0 %v3264
    %4065 = vmatprep.subr.mxu0 %v3267
    %4066 = vmatpush1.msra.mxu0 %v3266
    %4067 = vmatprep.subr.mxu0 %v3269
    %4068 = vmatpush1.msra.mxu0 %v3268
    %4069 = vmatprep.subr.mxu0 %v3271
    %4070 = vmatpush1.msra.mxu0 %v3270
    %4071 = vmatprep.subr.mxu0 0.0
    %4072 = vmatpush1.msra.mxu0 0.0
    %4073 = vmatprep.subr.mxu0 0.0
    %4074 = vmatpush1.msra.mxu0 0.0
    %4075 = vmatprep.subr.mxu0 0.0
    %4076 = vmatpush1.msra.mxu0 0.0
    %4077 = vmatprep.subr.mxu0 0.0
    %4078 = vmatpush1.msra.mxu0 0.0
    %4079 = vmatprep.subr.mxu0 0.0
    %4080 = vmatpush1.msra.mxu0 0.0
    %4081 = vmatprep.subr.mxu0 0.0
    %4082 = vmatpush1.msra.mxu0 0.0
    %4083 = vmatprep.subr.mxu0 0.0
    %4084 = vmatpush1.msra.mxu0 0.0
    %4085 = vmatprep.subr.mxu0 0.0
    %4086 = vmatpush1.msra.mxu0 0.0
    %4087 = vmatprep.subr.mxu0 0.0
    %4088 = vmatpush1.msra.mxu0 0.0
    %4089 = vmatprep.subr.mxu0 0.0
    %4090 = vmatpush1.msra.mxu0 0.0
    %4091 = vmatprep.subr.mxu0 0.0
    %4092 = vmatpush1.msra.mxu0 0.0
    %4093 = vmatprep.subr.mxu0 0.0
    %4094 = vmatpush1.msra.mxu0 0.0
    %4095 = vmatprep.subr.mxu0 0.0
    %4096 = vmatpush1.msra.mxu0 0.0
    %4097 = vmatprep.subr.mxu0 0.0
    %4098 = vmatpush1.msra.mxu0 0.0
    %4099 = vmatprep.subr.mxu0 0.0
    %4100 = vmatpush1.msra.mxu0 0.0
    %4101 = vmatprep.subr.mxu0 0.0
    %4102 = vmatpush1.msra.mxu0 0.0
    %4103 = vmatprep.mubr.f32.mxu0 0.0
    %4104 = vmatmul.mubr.f32.gmra.mrb[0].mxu0 %v4036
    %v4105 = vpop.f32.mrb[0].mxu0
    %v4106 = vadd.f32 %v4037, %v4105
    %v4107 = vpop.f32.mrb[0].mxu0
    %v4108 = vadd.f32 %v4038, %v4107
    %4109 = vdwg.mxu0
    %v4110 = vxor.u32 %v4106, 2147483648
    %v4111 = vmul.f32 %v4110, 1.442695
    %v4112 = vpow.pop %v4111
    %v4113 = vadd.f32 %v4112, 1.0
    %v4114 = vrcp.pop %v4113
    %v4115 = vmul.f32 1.0, %v4114
    %v4116 = vxor.u32 %v4108, 2147483648
    %v4117 = vmul.f32 %v4116, 1.442695
    %v4118 = vpow.pop %v4117
    %v4119 = vadd.f32 %v4118, 1.0
    %v4120 = vrcp.pop %v4119
    %v4121 = vmul.f32 1.0, %v4120
    %v4122 = vmul.f32 %v4121, 2.0
    %v4123 = vsub.f32 %v4122, 1.0
    %v4124 = vsel %vm92, %v4123, %v4121
    %4125 = vrot.lane.b32.xlu0 %v4115, 64
    %v4126 = vpop.permute.xlu0 %4125
    %4127 = vrot.lane.b32.xlu0 %v4124, 64
    %v4128 = vpop.permute.xlu0 %4127
    %v4129 = vld [vmem:[#allocation5] sm:$0xff]
    %v4130 = vmul.f32 %v4126, %v4129
    %v4131 = vmul.f32 %v4115, %v4124
    %v4132 = vadd.f32 %v4130, %v4131
    %v4133 = vtanh.pop %v4132
    %v4134 = vmul.f32 %v4128, %v4133
    %4135 = vst [vmem:[#allocation5] sm:$0xff] %v4132
    %4136 = vst [vmem:[#allocation4] sm:$0xff] %v4134
    %4137 = vst [vmem:[%s1032] sm:$0xff] %v4134
    %v4138 = vld [vmem:[#allocation4] sm:$0xff]
    %v4139 = vld [vmem:[%s1035] sm:$0xff]
    %v4140 = vld [vmem:[%s1035 + $0x8] sm:$0xff]
    %4141 = vmatprep.subr.mxu0 %v3241
    %4142 = vmatpush1.msra.mxu0 %v3240
    %4143 = vmatprep.subr.mxu0 %v3243
    %4144 = vmatpush1.msra.mxu0 %v3242
    %4145 = vmatprep.subr.mxu0 %v3245
    %4146 = vmatpush1.msra.mxu0 %v3244
    %4147 = vmatprep.subr.mxu0 %v3247
    %4148 = vmatpush1.msra.mxu0 %v3246
    %4149 = vmatprep.subr.mxu0 %v3249
    %4150 = vmatpush1.msra.mxu0 %v3248
    %4151 = vmatprep.subr.mxu0 %v3251
    %4152 = vmatpush1.msra.mxu0 %v3250
    %4153 = vmatprep.subr.mxu0 %v3253
    %4154 = vmatpush1.msra.mxu0 %v3252
    %4155 = vmatprep.subr.mxu0 %v3255
    %4156 = vmatpush1.msra.mxu0 %v3254
    %4157 = vmatprep.subr.mxu0 %v3257
    %4158 = vmatpush1.msra.mxu0 %v3256
    %4159 = vmatprep.subr.mxu0 %v3259
    %4160 = vmatpush1.msra.mxu0 %v3258
    %4161 = vmatprep.subr.mxu0 %v3261
    %4162 = vmatpush1.msra.mxu0 %v3260
    %4163 = vmatprep.subr.mxu0 %v3263
    %4164 = vmatpush1.msra.mxu0 %v3262
    %4165 = vmatprep.subr.mxu0 %v3265
    %4166 = vmatpush1.msra.mxu0 %v3264
    %4167 = vmatprep.subr.mxu0 %v3267
    %4168 = vmatpush1.msra.mxu0 %v3266
    %4169 = vmatprep.subr.mxu0 %v3269
    %4170 = vmatpush1.msra.mxu0 %v3268
    %4171 = vmatprep.subr.mxu0 %v3271
    %4172 = vmatpush1.msra.mxu0 %v3270
    %4173 = vmatprep.subr.mxu0 0.0
    %4174 = vmatpush1.msra.mxu0 0.0
    %4175 = vmatprep.subr.mxu0 0.0
    %4176 = vmatpush1.msra.mxu0 0.0
    %4177 = vmatprep.subr.mxu0 0.0
    %4178 = vmatpush1.msra.mxu0 0.0
    %4179 = vmatprep.subr.mxu0 0.0
    %4180 = vmatpush1.msra.mxu0 0.0
    %4181 = vmatprep.subr.mxu0 0.0
    %4182 = vmatpush1.msra.mxu0 0.0
    %4183 = vmatprep.subr.mxu0 0.0
    %4184 = vmatpush1.msra.mxu0 0.0
    %4185 = vmatprep.subr.mxu0 0.0
    %4186 = vmatpush1.msra.mxu0 0.0
    %4187 = vmatprep.subr.mxu0 0.0
    %4188 = vmatpush1.msra.mxu0 0.0
    %4189 = vmatprep.subr.mxu0 0.0
    %4190 = vmatpush1.msra.mxu0 0.0
    %4191 = vmatprep.subr.mxu0 0.0
    %4192 = vmatpush1.msra.mxu0 0.0
    %4193 = vmatprep.subr.mxu0 0.0
    %4194 = vmatpush1.msra.mxu0 0.0
    %4195 = vmatprep.subr.mxu0 0.0
    %4196 = vmatpush1.msra.mxu0 0.0
    %4197 = vmatprep.subr.mxu0 0.0
    %4198 = vmatpush1.msra.mxu0 0.0
    %4199 = vmatprep.subr.mxu0 0.0
    %4200 = vmatpush1.msra.mxu0 0.0
    %4201 = vmatprep.subr.mxu0 0.0
    %4202 = vmatpush1.msra.mxu0 0.0
    %4203 = vmatprep.subr.mxu0 0.0
    %4204 = vmatpush1.msra.mxu0 0.0
    %4205 = vmatprep.mubr.f32.mxu0 0.0
    %4206 = vmatmul.mubr.f32.gmra.mrb[0].mxu0 %v4138
    %v4207 = vpop.f32.mrb[0].mxu0
    %v4208 = vadd.f32 %v4139, %v4207
    %v4209 = vpop.f32.mrb[0].mxu0
    %v4210 = vadd.f32 %v4140, %v4209
    %4211 = vdwg.mxu0
    %v4212 = vxor.u32 %v4208, 2147483648
    %v4213 = vmul.f32 %v4212, 1.442695
    %v4214 = vpow.pop %v4213
    %v4215 = vadd.f32 %v4214, 1.0
    %v4216 = vrcp.pop %v4215
    %v4217 = vmul.f32 1.0, %v4216
    %v4218 = vxor.u32 %v4210, 2147483648
    %v4219 = vmul.f32 %v4218, 1.442695
    %v4220 = vpow.pop %v4219
    %v4221 = vadd.f32 %v4220, 1.0
    %v4222 = vrcp.pop %v4221
    %v4223 = vmul.f32 1.0, %v4222
    %v4224 = vmul.f32 %v4223, 2.0
    %v4225 = vsub.f32 %v4224, 1.0
    %v4226 = vsel %vm92, %v4225, %v4223
    %4227 = vrot.lane.b32.xlu0 %v4217, 64
    %v4228 = vpop.permute.xlu0 %4227
    %4229 = vrot.lane.b32.xlu0 %v4226, 64
    %v4230 = vpop.permute.xlu0 %4229
    %v4231 = vld [vmem:[#allocation5] sm:$0xff]
    %v4232 = vmul.f32 %v4228, %v4231
    %v4233 = vmul.f32 %v4217, %v4226
    %v4234 = vadd.f32 %v4232, %v4233
    %v4235 = vtanh.pop %v4234
    %v4236 = vmul.f32 %v4230, %v4235
    %4237 = vst [vmem:[#allocation5] sm:$0xff] %v4234
    %4238 = vst [vmem:[#allocation4] sm:$0xff] %v4236
    %4239 = vst [vmem:[%s1136] sm:$0xff] %v4236
    %s4240 = scalar_lea.vmem [#allocation9], 1024
    %v4241 = vld [vmem:[%s4240] sm:$0xff]
    %v4242 = vld [vmem:[%s4240 + $0x8] sm:$0xff]
    %v4243 = vld [vmem:[%s4240 + $0x10] sm:$0xff]
    %v4244 = vld [vmem:[%s4240 + $0x18] sm:$0xff]
    %v4245 = vld [vmem:[%s4240 + $0x20] sm:$0xff]
    %v4246 = vld [vmem:[%s4240 + $0x28] sm:$0xff]
    %v4247 = vld [vmem:[%s4240 + $0x30] sm:$0xff]
    %v4248 = vld [vmem:[%s4240 + $0x38] sm:$0xff]
    %v4249 = vld [vmem:[%s4240 + $0x40] sm:$0xff]
    %v4250 = vld [vmem:[%s4240 + $0x48] sm:$0xff]
    %v4251 = vld [vmem:[%s4240 + $0x50] sm:$0xff]
    %v4252 = vld [vmem:[%s4240 + $0x58] sm:$0xff]
    %v4253 = vld [vmem:[%s4240 + $0x60] sm:$0xff]
    %v4254 = vld [vmem:[%s4240 + $0x68] sm:$0xff]
    %v4255 = vld [vmem:[%s4240 + $0x70] sm:$0xff]
    %v4256 = vld [vmem:[%s4240 + $0x78] sm:$0xff]
    %v4257 = vld [vmem:[%s4240 + $0x80] sm:$0xff]
    %v4258 = vld [vmem:[%s4240 + $0x88] sm:$0xff]
    %v4259 = vld [vmem:[%s4240 + $0x90] sm:$0xff]
    %v4260 = vld [vmem:[%s4240 + $0x98] sm:$0xff]
    %v4261 = vld [vmem:[%s4240 + $0xa0] sm:$0xff]
    %v4262 = vld [vmem:[%s4240 + $0xa8] sm:$0xff]
    %v4263 = vld [vmem:[%s4240 + $0xb0] sm:$0xff]
    %v4264 = vld [vmem:[%s4240 + $0xb8] sm:$0xff]
    %v4265 = vld [vmem:[%s4240 + $0xc0] sm:$0xff]
    %v4266 = vld [vmem:[%s4240 + $0xc8] sm:$0xff]
    %v4267 = vld [vmem:[%s4240 + $0xd0] sm:$0xff]
    %v4268 = vld [vmem:[%s4240 + $0xd8] sm:$0xff]
    %v4269 = vld [vmem:[%s4240 + $0xe0] sm:$0xff]
    %v4270 = vld [vmem:[%s4240 + $0xe8] sm:$0xff]
    %v4271 = vld [vmem:[%s4240 + $0xf0] sm:$0xff]
    %v4272 = vld [vmem:[%s4240 + $0xf8] sm:$0xff]
    %s4273 = scalar_lea.vmem [#allocation11], 1024
    %v4274 = vld [vmem:[%s4273] sm:$0xff]
    %v4275 = vld [vmem:[%s4273 + $0x8] sm:$0xff]
    %v4276 = vld [vmem:[%s4273 + $0x10] sm:$0xff]
    %v4277 = vld [vmem:[%s4273 + $0x18] sm:$0xff]
    %v4278 = vld [vmem:[%s4273 + $0x20] sm:$0xff]
    %v4279 = vld [vmem:[%s4273 + $0x28] sm:$0xff]
    %v4280 = vld [vmem:[%s4273 + $0x30] sm:$0xff]
    %v4281 = vld [vmem:[%s4273 + $0x38] sm:$0xff]
    %v4282 = vld [vmem:[%s4273 + $0x40] sm:$0xff]
    %v4283 = vld [vmem:[%s4273 + $0x48] sm:$0xff]
    %v4284 = vld [vmem:[%s4273 + $0x50] sm:$0xff]
    %v4285 = vld [vmem:[%s4273 + $0x58] sm:$0xff]
    %v4286 = vld [vmem:[%s4273 + $0x60] sm:$0xff]
    %v4287 = vld [vmem:[%s4273 + $0x68] sm:$0xff]
    %v4288 = vld [vmem:[%s4273 + $0x70] sm:$0xff]
    %v4289 = vld [vmem:[%s4273 + $0x78] sm:$0xff]
    %v4290 = vld [vmem:[%s4273 + $0x80] sm:$0xff]
    %v4291 = vld [vmem:[%s4273 + $0x88] sm:$0xff]
    %v4292 = vld [vmem:[%s4273 + $0x90] sm:$0xff]
    %v4293 = vld [vmem:[%s4273 + $0x98] sm:$0xff]
    %v4294 = vld [vmem:[%s4273 + $0xa0] sm:$0xff]
    %v4295 = vld [vmem:[%s4273 + $0xa8] sm:$0xff]
    %v4296 = vld [vmem:[%s4273 + $0xb0] sm:$0xff]
    %v4297 = vld [vmem:[%s4273 + $0xb8] sm:$0xff]
    %v4298 = vld [vmem:[%s4273 + $0xc0] sm:$0xff]
    %v4299 = vld [vmem:[%s4273 + $0xc8] sm:$0xff]
    %v4300 = vld [vmem:[%s4273 + $0xd0] sm:$0xff]
    %v4301 = vld [vmem:[%s4273 + $0xd8] sm:$0xff]
    %v4302 = vld [vmem:[%s4273 + $0xe0] sm:$0xff]
    %v4303 = vld [vmem:[%s4273 + $0xe8] sm:$0xff]
    %v4304 = vld [vmem:[%s4273 + $0xf0] sm:$0xff]
    %v4305 = vld [vmem:[%s4273 + $0xf8] sm:$0xff]
    %s4306 = scalar_lea.vmem [#allocation12], 4
    %v4307 = vld [vmem:[%s4306] ss:$8 sm:$0x3]
    %v4308 = vld [vmem:[#allocation2] sm:$0xff]
    %v4309 = vld [vmem:[#allocation2 + $0x8] sm:$0xff]
    %v4310 = vld [vmem:[#allocation2 + $0x10] sm:$0xff]
    %v4311 = vld [vmem:[#allocation2 + $0x18] sm:$0xff]
    %v4312 = vld [vmem:[#allocation2 + $0x20] sm:$0xff]
    %v4313 = vld [vmem:[#allocation2 + $0x28] sm:$0xff]
    %v4314 = vld [vmem:[#allocation2 + $0x30] sm:$0xff]
    %v4315 = vld [vmem:[#allocation2 + $0x38] sm:$0xff]
    %v4317 = vlaneseq
    %v4318 = vshrl.u32 %v4317, 7
    %v4319 = vsub.s32 0, %v4318
    %v4320 = vrot.slane %v4307, %v4319
    %v4321 = vlaneseq
    %v4322 = vshrl.u32 %v4321, 7
    %v4323 = vsub.s32 1, %v4322
    %v4324 = vrot.slane %v4307, %v4323
    %4327 = vmatprep.subr.mxu0 %v4242
    %4328 = vmatpush1.msra.mxu0 %v4241
    %4329 = vmatprep.subr.mxu0 %v4244
    %4330 = vmatpush1.msra.mxu0 %v4243
    %4331 = vmatprep.subr.mxu0 %v4246
    %4332 = vmatpush1.msra.mxu0 %v4245
    %4333 = vmatprep.subr.mxu0 %v4248
    %4334 = vmatpush1.msra.mxu0 %v4247
    %4335 = vmatprep.subr.mxu0 %v4250
    %4336 = vmatpush1.msra.mxu0 %v4249
    %4337 = vmatprep.subr.mxu0 %v4252
    %4338 = vmatpush1.msra.mxu0 %v4251
    %4339 = vmatprep.subr.mxu0 %v4254
    %4340 = vmatpush1.msra.mxu0 %v4253
    %4341 = vmatprep.subr.mxu0 %v4256
    %4342 = vmatpush1.msra.mxu0 %v4255
    %4343 = vmatprep.subr.mxu0 %v4258
    %4344 = vmatpush1.msra.mxu0 %v4257
    %4345 = vmatprep.subr.mxu0 %v4260
    %4346 = vmatpush1.msra.mxu0 %v4259
    %4347 = vmatprep.subr.mxu0 %v4262
    %4348 = vmatpush1.msra.mxu0 %v4261
    %4349 = vmatprep.subr.mxu0 %v4264
    %4350 = vmatpush1.msra.mxu0 %v4263
    %4351 = vmatprep.subr.mxu0 %v4266
    %4352 = vmatpush1.msra.mxu0 %v4265
    %4353 = vmatprep.subr.mxu0 %v4268
    %4354 = vmatpush1.msra.mxu0 %v4267
    %4355 = vmatprep.subr.mxu0 %v4270
    %4356 = vmatpush1.msra.mxu0 %v4269
    %4357 = vmatprep.subr.mxu0 %v4272
    %4358 = vmatpush1.msra.mxu0 %v4271
    %4359 = vmatprep.subr.mxu0 0.0
    %4360 = vmatpush1.msra.mxu0 0.0
    %4361 = vmatprep.subr.mxu0 0.0
    %4362 = vmatpush1.msra.mxu0 0.0
    %4363 = vmatprep.subr.mxu0 0.0
    %4364 = vmatpush1.msra.mxu0 0.0
    %4365 = vmatprep.subr.mxu0 0.0
    %4366 = vmatpush1.msra.mxu0 0.0
    %4367 = vmatprep.subr.mxu0 0.0
    %4368 = vmatpush1.msra.mxu0 0.0
    %4369 = vmatprep.subr.mxu0 0.0
    %4370 = vmatpush1.msra.mxu0 0.0
    %4371 = vmatprep.subr.mxu0 0.0
    %4372 = vmatpush1.msra.mxu0 0.0
    %4373 = vmatprep.subr.mxu0 0.0
    %4374 = vmatpush1.msra.mxu0 0.0
    %4375 = vmatprep.subr.mxu0 0.0
    %4376 = vmatpush1.msra.mxu0 0.0
    %4377 = vmatprep.subr.mxu0 0.0
    %4378 = vmatpush1.msra.mxu0 0.0
    %4379 = vmatprep.subr.mxu0 0.0
    %4380 = vmatpush1.msra.mxu0 0.0
    %4381 = vmatprep.subr.mxu0 0.0
    %4382 = vmatpush1.msra.mxu0 0.0
    %4383 = vmatprep.subr.mxu0 0.0
    %4384 = vmatpush1.msra.mxu0 0.0
    %4385 = vmatprep.subr.mxu0 0.0
    %4386 = vmatpush1.msra.mxu0 0.0
    %4387 = vmatprep.subr.mxu0 0.0
    %4388 = vmatpush1.msra.mxu0 0.0
    %4389 = vmatprep.subr.mxu0 0.0
    %4390 = vmatpush1.msra.mxu0 0.0
    %4391 = vmatprep.mubr.f32.mxu0 0.0
    %4392 = vmatmul.mubr.f32.gmra.mrb[0].mxu0 %v4308
    %v4393 = vpop.f32.mrb[0].mxu0
    %v4394 = vadd.f32 %v4320, %v4393
    %v4395 = vpop.f32.mrb[0].mxu0
    %v4396 = vadd.f32 %v4324, %v4395
    %4397 = vmatprep.mubr.f32.mxu0 0.0
    %4398 = vmatmul.mubr.f32.gmra.mrb[0].mxu0 %v4309
    %v4399 = vpop.f32.mrb[0].mxu0
    %v4400 = vadd.f32 %v4320, %v4399
    %v4401 = vpop.f32.mrb[0].mxu0
    %v4402 = vadd.f32 %v4324, %v4401
    %4403 = vmatprep.mubr.f32.mxu0 0.0
    %4404 = vmatmul.mubr.f32.gmra.mrb[0].mxu0 %v4310
    %v4405 = vpop.f32.mrb[0].mxu0
    %v4406 = vadd.f32 %v4320, %v4405
    %v4407 = vpop.f32.mrb[0].mxu0
    %v4408 = vadd.f32 %v4324, %v4407
    %4409 = vmatprep.mubr.f32.mxu0 0.0
    %4410 = vmatmul.mubr.f32.gmra.mrb[0].mxu0 %v4311
    %v4411 = vpop.f32.mrb[0].mxu0
    %v4412 = vadd.f32 %v4320, %v4411
    %v4413 = vpop.f32.mrb[0].mxu0
    %v4414 = vadd.f32 %v4324, %v4413
    %4415 = vmatprep.mubr.f32.mxu0 0.0
    %4416 = vmatmul.mubr.f32.gmra.mrb[0].mxu0 %v4312
    %v4417 = vpop.f32.mrb[0].mxu0
    %v4418 = vadd.f32 %v4320, %v4417
    %v4419 = vpop.f32.mrb[0].mxu0
    %v4420 = vadd.f32 %v4324, %v4419
    %4421 = vmatprep.mubr.f32.mxu0 0.0
    %4422 = vmatmul.mubr.f32.gmra.mrb[0].mxu0 %v4313
    %v4423 = vpop.f32.mrb[0].mxu0
    %v4424 = vadd.f32 %v4320, %v4423
    %v4425 = vpop.f32.mrb[0].mxu0
    %v4426 = vadd.f32 %v4324, %v4425
    %4427 = vmatprep.mubr.f32.mxu0 0.0
    %4428 = vmatmul.mubr.f32.gmra.mrb[0].mxu0 %v4314
    %v4429 = vpop.f32.mrb[0].mxu0
    %v4430 = vadd.f32 %v4320, %v4429
    %v4431 = vpop.f32.mrb[0].mxu0
    %v4432 = vadd.f32 %v4324, %v4431
    %4433 = vmatprep.mubr.f32.mxu0 0.0
    %4434 = vmatmul.mubr.f32.gmra.mrb[0].mxu0 %v4315
    %v4435 = vpop.f32.mrb[0].mxu0
    %v4436 = vadd.f32 %v4320, %v4435
    %v4437 = vpop.f32.mrb[0].mxu0
    %v4438 = vadd.f32 %v4324, %v4437
    %4439 = vdwg.mxu0
    %4440 = vst [vmem:[#allocation3] sm:$0xff] %v4394
    %4441 = vst [vmem:[#allocation3 + $0x8] sm:$0xff] %v4396
    %4442 = vst [vmem:[#allocation3 + $0x10] sm:$0xff] %v4400
    %4443 = vst [vmem:[#allocation3 + $0x18] sm:$0xff] %v4402
    %4444 = vst [vmem:[#allocation3 + $0x20] sm:$0xff] %v4406
    %4445 = vst [vmem:[#allocation3 + $0x28] sm:$0xff] %v4408
    %4446 = vst [vmem:[#allocation3 + $0x30] sm:$0xff] %v4412
    %4447 = vst [vmem:[#allocation3 + $0x38] sm:$0xff] %v4414
    %4448 = vst [vmem:[#allocation3 + $0x40] sm:$0xff] %v4418
    %4449 = vst [vmem:[#allocation3 + $0x48] sm:$0xff] %v4420
    %4450 = vst [vmem:[#allocation3 + $0x50] sm:$0xff] %v4424
    %4451 = vst [vmem:[#allocation3 + $0x58] sm:$0xff] %v4426
    %4452 = vst [vmem:[#allocation3 + $0x60] sm:$0xff] %v4430
    %4453 = vst [vmem:[#allocation3 + $0x68] sm:$0xff] %v4432
    %4454 = vst [vmem:[#allocation3 + $0x70] sm:$0xff] %v4436
    %4455 = vst [vmem:[#allocation3 + $0x78] sm:$0xff] %v4438
    %4456 = vst [vmem:[#allocation4] sm:$0xff] 0.0
    %4457 = vst [vmem:[#allocation5] sm:$0xff] 0.0
    %v4458 = vld [vmem:[#allocation4] sm:$0xff]
    %v4459 = vld [vmem:[#allocation3] sm:$0xff]
    %v4460 = vld [vmem:[#allocation3 + $0x8] sm:$0xff]
    %4461 = vmatprep.subr.mxu0 %v4275
    %4462 = vmatpush1.msra.mxu0 %v4274
    %4463 = vmatprep.subr.mxu0 %v4277
    %4464 = vmatpush1.msra.mxu0 %v4276
    %4465 = vmatprep.subr.mxu0 %v4279
    %4466 = vmatpush1.msra.mxu0 %v4278
    %4467 = vmatprep.subr.mxu0 %v4281
    %4468 = vmatpush1.msra.mxu0 %v4280
    %4469 = vmatprep.subr.mxu0 %v4283
    %4470 = vmatpush1.msra.mxu0 %v4282
    %4471 = vmatprep.subr.mxu0 %v4285
    %4472 = vmatpush1.msra.mxu0 %v4284
    %4473 = vmatprep.subr.mxu0 %v4287
    %4474 = vmatpush1.msra.mxu0 %v4286
    %4475 = vmatprep.subr.mxu0 %v4289
    %4476 = vmatpush1.msra.mxu0 %v4288
    %4477 = vmatprep.subr.mxu0 %v4291
    %4478 = vmatpush1.msra.mxu0 %v4290
    %4479 = vmatprep.subr.mxu0 %v4293
    %4480 = vmatpush1.msra.mxu0 %v4292
    %4481 = vmatprep.subr.mxu0 %v4295
    %4482 = vmatpush1.msra.mxu0 %v4294
    %4483 = vmatprep.subr.mxu0 %v4297
    %4484 = vmatpush1.msra.mxu0 %v4296
    %4485 = vmatprep.subr.mxu0 %v4299
    %4486 = vmatpush1.msra.mxu0 %v4298
    %4487 = vmatprep.subr.mxu0 %v4301
    %4488 = vmatpush1.msra.mxu0 %v4300
    %4489 = vmatprep.subr.mxu0 %v4303
    %4490 = vmatpush1.msra.mxu0 %v4302
    %4491 = vmatprep.subr.mxu0 %v4305
    %4492 = vmatpush1.msra.mxu0 %v4304
    %4493 = vmatprep.subr.mxu0 0.0
    %4494 = vmatpush1.msra.mxu0 0.0
    %4495 = vmatprep.subr.mxu0 0.0
    %4496 = vmatpush1.msra.mxu0 0.0
    %4497 = vmatprep.subr.mxu0 0.0
    %4498 = vmatpush1.msra.mxu0 0.0
    %4499 = vmatprep.subr.mxu0 0.0
    %4500 = vmatpush1.msra.mxu0 0.0
    %4501 = vmatprep.subr.mxu0 0.0
    %4502 = vmatpush1.msra.mxu0 0.0
    %4503 = vmatprep.subr.mxu0 0.0
    %4504 = vmatpush1.msra.mxu0 0.0
    %4505 = vmatprep.subr.mxu0 0.0
    %4506 = vmatpush1.msra.mxu0 0.0
    %4507 = vmatprep.subr.mxu0 0.0
    %4508 = vmatpush1.msra.mxu0 0.0
    %4509 = vmatprep.subr.mxu0 0.0
    %4510 = vmatpush1.msra.mxu0 0.0
    %4511 = vmatprep.subr.mxu0 0.0
    %4512 = vmatpush1.msra.mxu0 0.0
    %4513 = vmatprep.subr.mxu0 0.0
    %4514 = vmatpush1.msra.mxu0 0.0
    %4515 = vmatprep.subr.mxu0 0.0
    %4516 = vmatpush1.msra.mxu0 0.0
    %4517 = vmatprep.subr.mxu0 0.0
    %4518 = vmatpush1.msra.mxu0 0.0
    %4519 = vmatprep.subr.mxu0 0.0
    %4520 = vmatpush1.msra.mxu0 0.0
    %4521 = vmatprep.subr.mxu0 0.0
    %4522 = vmatpush1.msra.mxu0 0.0
    %4523 = vmatprep.subr.mxu0 0.0
    %4524 = vmatpush1.msra.mxu0 0.0
    %4525 = vmatprep.mubr.f32.mxu0 0.0
    %4526 = vmatmul.mubr.f32.gmra.mrb[0].mxu0 %v4458
    %v4527 = vpop.f32.mrb[0].mxu0
    %v4528 = vadd.f32 %v4459, %v4527
    %v4529 = vpop.f32.mrb[0].mxu0
    %v4530 = vadd.f32 %v4460, %v4529
    %4531 = vdwg.mxu0
    %v4532 = vxor.u32 %v4528, 2147483648
    %v4533 = vmul.f32 %v4532, 1.442695
    %v4534 = vpow.pop %v4533
    %v4535 = vadd.f32 %v4534, 1.0
    %v4536 = vrcp.pop %v4535
    %v4537 = vmul.f32 1.0, %v4536
    %v4538 = vxor.u32 %v4530, 2147483648
    %v4539 = vmul.f32 %v4538, 1.442695
    %v4540 = vpow.pop %v4539
    %v4541 = vadd.f32 %v4540, 1.0
    %v4542 = vrcp.pop %v4541
    %v4543 = vmul.f32 1.0, %v4542
    %v4544 = vmul.f32 %v4543, 2.0
    %v4545 = vsub.f32 %v4544, 1.0
    %v4546 = vsel %vm92, %v4545, %v4543
    %4547 = vrot.lane.b32.xlu0 %v4537, 64
    %v4548 = vpop.permute.xlu0 %4547
    %4549 = vrot.lane.b32.xlu0 %v4546, 64
    %v4550 = vpop.permute.xlu0 %4549
    %v4551 = vld [vmem:[#allocation5] sm:$0xff]
    %v4552 = vmul.f32 %v4548, %v4551
    %v4553 = vmul.f32 %v4537, %v4546
    %v4554 = vadd.f32 %v4552, %v4553
    %v4555 = vtanh.pop %v4554
    %v4556 = vmul.f32 %v4550, %v4555
    %4557 = vst [vmem:[#allocation5] sm:$0xff] %v4554
    %4558 = vst [vmem:[#allocation4] sm:$0xff] %v4556
    %4559 = vst [vmem:[#allocation2] sm:$0xff] %v4556
    %v4560 = vld [vmem:[#allocation4] sm:$0xff]
    %v4561 = vld [vmem:[%s411] sm:$0xff]
    %v4562 = vld [vmem:[%s411 + $0x8] sm:$0xff]
    %4563 = vmatprep.subr.mxu0 %v4275
    %4564 = vmatpush1.msra.mxu0 %v4274
    %4565 = vmatprep.subr.mxu0 %v4277
    %4566 = vmatpush1.msra.mxu0 %v4276
    %4567 = vmatprep.subr.mxu0 %v4279
    %4568 = vmatpush1.msra.mxu0 %v4278
    %4569 = vmatprep.subr.mxu0 %v4281
    %4570 = vmatpush1.msra.mxu0 %v4280
    %4571 = vmatprep.subr.mxu0 %v4283
    %4572 = vmatpush1.msra.mxu0 %v4282
    %4573 = vmatprep.subr.mxu0 %v4285
    %4574 = vmatpush1.msra.mxu0 %v4284
    %4575 = vmatprep.subr.mxu0 %v4287
    %4576 = vmatpush1.msra.mxu0 %v4286
    %4577 = vmatprep.subr.mxu0 %v4289
    %4578 = vmatpush1.msra.mxu0 %v4288
    %4579 = vmatprep.subr.mxu0 %v4291
    %4580 = vmatpush1.msra.mxu0 %v4290
    %4581 = vmatprep.subr.mxu0 %v4293
    %4582 = vmatpush1.msra.mxu0 %v4292
    %4583 = vmatprep.subr.mxu0 %v4295
    %4584 = vmatpush1.msra.mxu0 %v4294
    %4585 = vmatprep.subr.mxu0 %v4297
    %4586 = vmatpush1.msra.mxu0 %v4296
    %4587 = vmatprep.subr.mxu0 %v4299
    %4588 = vmatpush1.msra.mxu0 %v4298
    %4589 = vmatprep.subr.mxu0 %v4301
    %4590 = vmatpush1.msra.mxu0 %v4300
    %4591 = vmatprep.subr.mxu0 %v4303
    %4592 = vmatpush1.msra.mxu0 %v4302
    %4593 = vmatprep.subr.mxu0 %v4305
    %4594 = vmatpush1.msra.mxu0 %v4304
    %4595 = vmatprep.subr.mxu0 0.0
    %4596 = vmatpush1.msra.mxu0 0.0
    %4597 = vmatprep.subr.mxu0 0.0
    %4598 = vmatpush1.msra.mxu0 0.0
    %4599 = vmatprep.subr.mxu0 0.0
    %4600 = vmatpush1.msra.mxu0 0.0
    %4601 = vmatprep.subr.mxu0 0.0
    %4602 = vmatpush1.msra.mxu0 0.0
    %4603 = vmatprep.subr.mxu0 0.0
    %4604 = vmatpush1.msra.mxu0 0.0
    %4605 = vmatprep.subr.mxu0 0.0
    %4606 = vmatpush1.msra.mxu0 0.0
    %4607 = vmatprep.subr.mxu0 0.0
    %4608 = vmatpush1.msra.mxu0 0.0
    %4609 = vmatprep.subr.mxu0 0.0
    %4610 = vmatpush1.msra.mxu0 0.0
    %4611 = vmatprep.subr.mxu0 0.0
    %4612 = vmatpush1.msra.mxu0 0.0
    %4613 = vmatprep.subr.mxu0 0.0
    %4614 = vmatpush1.msra.mxu0 0.0
    %4615 = vmatprep.subr.mxu0 0.0
    %4616 = vmatpush1.msra.mxu0 0.0
    %4617 = vmatprep.subr.mxu0 0.0
    %4618 = vmatpush1.msra.mxu0 0.0
    %4619 = vmatprep.subr.mxu0 0.0
    %4620 = vmatpush1.msra.mxu0 0.0
    %4621 = vmatprep.subr.mxu0 0.0
    %4622 = vmatpush1.msra.mxu0 0.0
    %4623 = vmatprep.subr.mxu0 0.0
    %4624 = vmatpush1.msra.mxu0 0.0
    %4625 = vmatprep.subr.mxu0 0.0
    %4626 = vmatpush1.msra.mxu0 0.0
    %4627 = vmatprep.mubr.f32.mxu0 0.0
    %4628 = vmatmul.mubr.f32.gmra.mrb[0].mxu0 %v4560
    %v4629 = vpop.f32.mrb[0].mxu0
    %v4630 = vadd.f32 %v4561, %v4629
    %v4631 = vpop.f32.mrb[0].mxu0
    %v4632 = vadd.f32 %v4562, %v4631
    %4633 = vdwg.mxu0
    %v4634 = vxor.u32 %v4630, 2147483648
    %v4635 = vmul.f32 %v4634, 1.442695
    %v4636 = vpow.pop %v4635
    %v4637 = vadd.f32 %v4636, 1.0
    %v4638 = vrcp.pop %v4637
    %v4639 = vmul.f32 1.0, %v4638
    %v4640 = vxor.u32 %v4632, 2147483648
    %v4641 = vmul.f32 %v4640, 1.442695
    %v4642 = vpow.pop %v4641
    %v4643 = vadd.f32 %v4642, 1.0
    %v4644 = vrcp.pop %v4643
    %v4645 = vmul.f32 1.0, %v4644
    %v4646 = vmul.f32 %v4645, 2.0
    %v4647 = vsub.f32 %v4646, 1.0
    %v4648 = vsel %vm92, %v4647, %v4645
    %4649 = vrot.lane.b32.xlu0 %v4639, 64
    %v4650 = vpop.permute.xlu0 %4649
    %4651 = vrot.lane.b32.xlu0 %v4648, 64
    %v4652 = vpop.permute.xlu0 %4651
    %v4653 = vld [vmem:[#allocation5] sm:$0xff]
    %v4654 = vmul.f32 %v4650, %v4653
    %v4655 = vmul.f32 %v4639, %v4648
    %v4656 = vadd.f32 %v4654, %v4655
    %v4657 = vtanh.pop %v4656
    %v4658 = vmul.f32 %v4652, %v4657
    %4659 = vst [vmem:[#allocation5] sm:$0xff] %v4656
    %4660 = vst [vmem:[#allocation4] sm:$0xff] %v4658
    %4661 = vst [vmem:[%s512] sm:$0xff] %v4658
    %v4662 = vld [vmem:[#allocation4] sm:$0xff]
    %v4663 = vld [vmem:[%s515] sm:$0xff]
    %v4664 = vld [vmem:[%s515 + $0x8] sm:$0xff]
    %4665 = vmatprep.subr.mxu0 %v4275
    %4666 = vmatpush1.msra.mxu0 %v4274
    %4667 = vmatprep.subr.mxu0 %v4277
    %4668 = vmatpush1.msra.mxu0 %v4276
    %4669 = vmatprep.subr.mxu0 %v4279
    %4670 = vmatpush1.msra.mxu0 %v4278
    %4671 = vmatprep.subr.mxu0 %v4281
    %4672 = vmatpush1.msra.mxu0 %v4280
    %4673 = vmatprep.subr.mxu0 %v4283
    %4674 = vmatpush1.msra.mxu0 %v4282
    %4675 = vmatprep.subr.mxu0 %v4285
    %4676 = vmatpush1.msra.mxu0 %v4284
    %4677 = vmatprep.subr.mxu0 %v4287
    %4678 = vmatpush1.msra.mxu0 %v4286
    %4679 = vmatprep.subr.mxu0 %v4289
    %4680 = vmatpush1.msra.mxu0 %v4288
    %4681 = vmatprep.subr.mxu0 %v4291
    %4682 = vmatpush1.msra.mxu0 %v4290
    %4683 = vmatprep.subr.mxu0 %v4293
    %4684 = vmatpush1.msra.mxu0 %v4292
    %4685 = vmatprep.subr.mxu0 %v4295
    %4686 = vmatpush1.msra.mxu0 %v4294
    %4687 = vmatprep.subr.mxu0 %v4297
    %4688 = vmatpush1.msra.mxu0 %v4296
    %4689 = vmatprep.subr.mxu0 %v4299
    %4690 = vmatpush1.msra.mxu0 %v4298
    %4691 = vmatprep.subr.mxu0 %v4301
    %4692 = vmatpush1.msra.mxu0 %v4300
    %4693 = vmatprep.subr.mxu0 %v4303
    %4694 = vmatpush1.msra.mxu0 %v4302
    %4695 = vmatprep.subr.mxu0 %v4305
    %4696 = vmatpush1.msra.mxu0 %v4304
    %4697 = vmatprep.subr.mxu0 0.0
    %4698 = vmatpush1.msra.mxu0 0.0
    %4699 = vmatprep.subr.mxu0 0.0
    %4700 = vmatpush1.msra.mxu0 0.0
    %4701 = vmatprep.subr.mxu0 0.0
    %4702 = vmatpush1.msra.mxu0 0.0
    %4703 = vmatprep.subr.mxu0 0.0
    %4704 = vmatpush1.msra.mxu0 0.0
    %4705 = vmatprep.subr.mxu0 0.0
    %4706 = vmatpush1.msra.mxu0 0.0
    %4707 = vmatprep.subr.mxu0 0.0
    %4708 = vmatpush1.msra.mxu0 0.0
    %4709 = vmatprep.subr.mxu0 0.0
    %4710 = vmatpush1.msra.mxu0 0.0
    %4711 = vmatprep.subr.mxu0 0.0
    %4712 = vmatpush1.msra.mxu0 0.0
    %4713 = vmatprep.subr.mxu0 0.0
    %4714 = vmatpush1.msra.mxu0 0.0
    %4715 = vmatprep.subr.mxu0 0.0
    %4716 = vmatpush1.msra.mxu0 0.0
    %4717 = vmatprep.subr.mxu0 0.0
    %4718 = vmatpush1.msra.mxu0 0.0
    %4719 = vmatprep.subr.mxu0 0.0
    %4720 = vmatpush1.msra.mxu0 0.0
    %4721 = vmatprep.subr.mxu0 0.0
    %4722 = vmatpush1.msra.mxu0 0.0
    %4723 = vmatprep.subr.mxu0 0.0
    %4724 = vmatpush1.msra.mxu0 0.0
    %4725 = vmatprep.subr.mxu0 0.0
    %4726 = vmatpush1.msra.mxu0 0.0
    %4727 = vmatprep.subr.mxu0 0.0
    %4728 = vmatpush1.msra.mxu0 0.0
    %4729 = vmatprep.mubr.f32.mxu0 0.0
    %4730 = vmatmul.mubr.f32.gmra.mrb[0].mxu0 %v4662
    %v4731 = vpop.f32.mrb[0].mxu0
    %v4732 = vadd.f32 %v4663, %v4731
    %v4733 = vpop.f32.mrb[0].mxu0
    %v4734 = vadd.f32 %v4664, %v4733
    %4735 = vdwg.mxu0
    %v4736 = vxor.u32 %v4732, 2147483648
    %v4737 = vmul.f32 %v4736, 1.442695
    %v4738 = vpow.pop %v4737
    %v4739 = vadd.f32 %v4738, 1.0
    %v4740 = vrcp.pop %v4739
    %v4741 = vmul.f32 1.0, %v4740
    %v4742 = vxor.u32 %v4734, 2147483648
    %v4743 = vmul.f32 %v4742, 1.442695
    %v4744 = vpow.pop %v4743
    %v4745 = vadd.f32 %v4744, 1.0
    %v4746 = vrcp.pop %v4745
    %v4747 = vmul.f32 1.0, %v4746
    %v4748 = vmul.f32 %v4747, 2.0
    %v4749 = vsub.f32 %v4748, 1.0
    %v4750 = vsel %vm92, %v4749, %v4747
    %4751 = vrot.lane.b32.xlu0 %v4741, 64
    %v4752 = vpop.permute.xlu0 %4751
    %4753 = vrot.lane.b32.xlu0 %v4750, 64
    %v4754 = vpop.permute.xlu0 %4753
    %v4755 = vld [vmem:[#allocation5] sm:$0xff]
    %v4756 = vmul.f32 %v4752, %v4755
    %v4757 = vmul.f32 %v4741, %v4750
    %v4758 = vadd.f32 %v4756, %v4757
    %v4759 = vtanh.pop %v4758
    %v4760 = vmul.f32 %v4754, %v4759
    %4761 = vst [vmem:[#allocation5] sm:$0xff] %v4758
    %4762 = vst [vmem:[#allocation4] sm:$0xff] %v4760
    %4763 = vst [vmem:[%s616] sm:$0xff] %v4760
    %v4764 = vld [vmem:[#allocation4] sm:$0xff]
    %v4765 = vld [vmem:[%s619] sm:$0xff]
    %v4766 = vld [vmem:[%s619 + $0x8] sm:$0xff]
    %4767 = vmatprep.subr.mxu0 %v4275
    %4768 = vmatpush1.msra.mxu0 %v4274
    %4769 = vmatprep.subr.mxu0 %v4277
    %4770 = vmatpush1.msra.mxu0 %v4276
    %4771 = vmatprep.subr.mxu0 %v4279
    %4772 = vmatpush1.msra.mxu0 %v4278
    %4773 = vmatprep.subr.mxu0 %v4281
    %4774 = vmatpush1.msra.mxu0 %v4280
    %4775 = vmatprep.subr.mxu0 %v4283
    %4776 = vmatpush1.msra.mxu0 %v4282
    %4777 = vmatprep.subr.mxu0 %v4285
    %4778 = vmatpush1.msra.mxu0 %v4284
    %4779 = vmatprep.subr.mxu0 %v4287
    %4780 = vmatpush1.msra.mxu0 %v4286
    %4781 = vmatprep.subr.mxu0 %v4289
    %4782 = vmatpush1.msra.mxu0 %v4288
    %4783 = vmatprep.subr.mxu0 %v4291
    %4784 = vmatpush1.msra.mxu0 %v4290
    %4785 = vmatprep.subr.mxu0 %v4293
    %4786 = vmatpush1.msra.mxu0 %v4292
    %4787 = vmatprep.subr.mxu0 %v4295
    %4788 = vmatpush1.msra.mxu0 %v4294
    %4789 = vmatprep.subr.mxu0 %v4297
    %4790 = vmatpush1.msra.mxu0 %v4296
    %4791 = vmatprep.subr.mxu0 %v4299
    %4792 = vmatpush1.msra.mxu0 %v4298
    %4793 = vmatprep.subr.mxu0 %v4301
    %4794 = vmatpush1.msra.mxu0 %v4300
    %4795 = vmatprep.subr.mxu0 %v4303
    %4796 = vmatpush1.msra.mxu0 %v4302
    %4797 = vmatprep.subr.mxu0 %v4305
    %4798 = vmatpush1.msra.mxu0 %v4304
    %4799 = vmatprep.subr.mxu0 0.0
    %4800 = vmatpush1.msra.mxu0 0.0
    %4801 = vmatprep.subr.mxu0 0.0
    %4802 = vmatpush1.msra.mxu0 0.0
    %4803 = vmatprep.subr.mxu0 0.0
    %4804 = vmatpush1.msra.mxu0 0.0
    %4805 = vmatprep.subr.mxu0 0.0
    %4806 = vmatpush1.msra.mxu0 0.0
    %4807 = vmatprep.subr.mxu0 0.0
    %4808 = vmatpush1.msra.mxu0 0.0
    %4809 = vmatprep.subr.mxu0 0.0
    %4810 = vmatpush1.msra.mxu0 0.0
    %4811 = vmatprep.subr.mxu0 0.0
    %4812 = vmatpush1.msra.mxu0 0.0
    %4813 = vmatprep.subr.mxu0 0.0
    %4814 = vmatpush1.msra.mxu0 0.0
    %4815 = vmatprep.subr.mxu0 0.0
    %4816 = vmatpush1.msra.mxu0 0.0
    %4817 = vmatprep.subr.mxu0 0.0
    %4818 = vmatpush1.msra.mxu0 0.0
    %4819 = vmatprep.subr.mxu0 0.0
    %4820 = vmatpush1.msra.mxu0 0.0
    %4821 = vmatprep.subr.mxu0 0.0
    %4822 = vmatpush1.msra.mxu0 0.0
    %4823 = vmatprep.subr.mxu0 0.0
    %4824 = vmatpush1.msra.mxu0 0.0
    %4825 = vmatprep.subr.mxu0 0.0
    %4826 = vmatpush1.msra.mxu0 0.0
    %4827 = vmatprep.subr.mxu0 0.0
    %4828 = vmatpush1.msra.mxu0 0.0
    %4829 = vmatprep.subr.mxu0 0.0
    %4830 = vmatpush1.msra.mxu0 0.0
    %4831 = vmatprep.mubr.f32.mxu0 0.0
    %4832 = vmatmul.mubr.f32.gmra.mrb[0].mxu0 %v4764
    %v4833 = vpop.f32.mrb[0].mxu0
    %v4834 = vadd.f32 %v4765, %v4833
    %v4835 = vpop.f32.mrb[0].mxu0
    %v4836 = vadd.f32 %v4766, %v4835
    %4837 = vdwg.mxu0
    %v4838 = vxor.u32 %v4834, 2147483648
    %v4839 = vmul.f32 %v4838, 1.442695
    %v4840 = vpow.pop %v4839
    %v4841 = vadd.f32 %v4840, 1.0
    %v4842 = vrcp.pop %v4841
    %v4843 = vmul.f32 1.0, %v4842
    %v4844 = vxor.u32 %v4836, 2147483648
    %v4845 = vmul.f32 %v4844, 1.442695
    %v4846 = vpow.pop %v4845
    %v4847 = vadd.f32 %v4846, 1.0
    %v4848 = vrcp.pop %v4847
    %v4849 = vmul.f32 1.0, %v4848
    %v4850 = vmul.f32 %v4849, 2.0
    %v4851 = vsub.f32 %v4850, 1.0
    %v4852 = vsel %vm92, %v4851, %v4849
    %4853 = vrot.lane.b32.xlu0 %v4843, 64
    %v4854 = vpop.permute.xlu0 %4853
    %4855 = vrot.lane.b32.xlu0 %v4852, 64
    %v4856 = vpop.permute.xlu0 %4855
    %v4857 = vld [vmem:[#allocation5] sm:$0xff]
    %v4858 = vmul.f32 %v4854, %v4857
    %v4859 = vmul.f32 %v4843, %v4852
    %v4860 = vadd.f32 %v4858, %v4859
    %v4861 = vtanh.pop %v4860
    %v4862 = vmul.f32 %v4856, %v4861
    %4863 = vst [vmem:[#allocation5] sm:$0xff] %v4860
    %4864 = vst [vmem:[#allocation4] sm:$0xff] %v4862
    %4865 = vst [vmem:[%s720] sm:$0xff] %v4862
    %v4866 = vld [vmem:[#allocation4] sm:$0xff]
    %v4867 = vld [vmem:[%s723] sm:$0xff]
    %v4868 = vld [vmem:[%s723 + $0x8] sm:$0xff]
    %4869 = vmatprep.subr.mxu0 %v4275
    %4870 = vmatpush1.msra.mxu0 %v4274
    %4871 = vmatprep.subr.mxu0 %v4277
    %4872 = vmatpush1.msra.mxu0 %v4276
    %4873 = vmatprep.subr.mxu0 %v4279
    %4874 = vmatpush1.msra.mxu0 %v4278
    %4875 = vmatprep.subr.mxu0 %v4281
    %4876 = vmatpush1.msra.mxu0 %v4280
    %4877 = vmatprep.subr.mxu0 %v4283
    %4878 = vmatpush1.msra.mxu0 %v4282
    %4879 = vmatprep.subr.mxu0 %v4285
    %4880 = vmatpush1.msra.mxu0 %v4284
    %4881 = vmatprep.subr.mxu0 %v4287
    %4882 = vmatpush1.msra.mxu0 %v4286
    %4883 = vmatprep.subr.mxu0 %v4289
    %4884 = vmatpush1.msra.mxu0 %v4288
    %4885 = vmatprep.subr.mxu0 %v4291
    %4886 = vmatpush1.msra.mxu0 %v4290
    %4887 = vmatprep.subr.mxu0 %v4293
    %4888 = vmatpush1.msra.mxu0 %v4292
    %4889 = vmatprep.subr.mxu0 %v4295
    %4890 = vmatpush1.msra.mxu0 %v4294
    %4891 = vmatprep.subr.mxu0 %v4297
    %4892 = vmatpush1.msra.mxu0 %v4296
    %4893 = vmatprep.subr.mxu0 %v4299
    %4894 = vmatpush1.msra.mxu0 %v4298
    %4895 = vmatprep.subr.mxu0 %v4301
    %4896 = vmatpush1.msra.mxu0 %v4300
    %4897 = vmatprep.subr.mxu0 %v4303
    %4898 = vmatpush1.msra.mxu0 %v4302
    %4899 = vmatprep.subr.mxu0 %v4305
    %4900 = vmatpush1.msra.mxu0 %v4304
    %4901 = vmatprep.subr.mxu0 0.0
    %4902 = vmatpush1.msra.mxu0 0.0
    %4903 = vmatprep.subr.mxu0 0.0
    %4904 = vmatpush1.msra.mxu0 0.0
    %4905 = vmatprep.subr.mxu0 0.0
    %4906 = vmatpush1.msra.mxu0 0.0
    %4907 = vmatprep.subr.mxu0 0.0
    %4908 = vmatpush1.msra.mxu0 0.0
    %4909 = vmatprep.subr.mxu0 0.0
    %4910 = vmatpush1.msra.mxu0 0.0
    %4911 = vmatprep.subr.mxu0 0.0
    %4912 = vmatpush1.msra.mxu0 0.0
    %4913 = vmatprep.subr.mxu0 0.0
    %4914 = vmatpush1.msra.mxu0 0.0
    %4915 = vmatprep.subr.mxu0 0.0
    %4916 = vmatpush1.msra.mxu0 0.0
    %4917 = vmatprep.subr.mxu0 0.0
    %4918 = vmatpush1.msra.mxu0 0.0
    %4919 = vmatprep.subr.mxu0 0.0
    %4920 = vmatpush1.msra.mxu0 0.0
    %4921 = vmatprep.subr.mxu0 0.0
    %4922 = vmatpush1.msra.mxu0 0.0
    %4923 = vmatprep.subr.mxu0 0.0
    %4924 = vmatpush1.msra.mxu0 0.0
    %4925 = vmatprep.subr.mxu0 0.0
    %4926 = vmatpush1.msra.mxu0 0.0
    %4927 = vmatprep.subr.mxu0 0.0
    %4928 = vmatpush1.msra.mxu0 0.0
    %4929 = vmatprep.subr.mxu0 0.0
    %4930 = vmatpush1.msra.mxu0 0.0
    %4931 = vmatprep.subr.mxu0 0.0
    %4932 = vmatpush1.msra.mxu0 0.0
    %4933 = vmatprep.mubr.f32.mxu0 0.0
    %4934 = vmatmul.mubr.f32.gmra.mrb[0].mxu0 %v4866
    %v4935 = vpop.f32.mrb[0].mxu0
    %v4936 = vadd.f32 %v4867, %v4935
    %v4937 = vpop.f32.mrb[0].mxu0
    %v4938 = vadd.f32 %v4868, %v4937
    %4939 = vdwg.mxu0
    %v4940 = vxor.u32 %v4936, 2147483648
    %v4941 = vmul.f32 %v4940, 1.442695
    %v4942 = vpow.pop %v4941
    %v4943 = vadd.f32 %v4942, 1.0
    %v4944 = vrcp.pop %v4943
    %v4945 = vmul.f32 1.0, %v4944
    %v4946 = vxor.u32 %v4938, 2147483648
    %v4947 = vmul.f32 %v4946, 1.442695
    %v4948 = vpow.pop %v4947
    %v4949 = vadd.f32 %v4948, 1.0
    %v4950 = vrcp.pop %v4949
    %v4951 = vmul.f32 1.0, %v4950
    %v4952 = vmul.f32 %v4951, 2.0
    %v4953 = vsub.f32 %v4952, 1.0
    %v4954 = vsel %vm92, %v4953, %v4951
    %4955 = vrot.lane.b32.xlu0 %v4945, 64
    %v4956 = vpop.permute.xlu0 %4955
    %4957 = vrot.lane.b32.xlu0 %v4954, 64
    %v4958 = vpop.permute.xlu0 %4957
    %v4959 = vld [vmem:[#allocation5] sm:$0xff]
    %v4960 = vmul.f32 %v4956, %v4959
    %v4961 = vmul.f32 %v4945, %v4954
    %v4962 = vadd.f32 %v4960, %v4961
    %v4963 = vtanh.pop %v4962
    %v4964 = vmul.f32 %v4958, %v4963
    %4965 = vst [vmem:[#allocation5] sm:$0xff] %v4962
    %4966 = vst [vmem:[#allocation4] sm:$0xff] %v4964
    %4967 = vst [vmem:[%s824] sm:$0xff] %v4964
    %v4968 = vld [vmem:[#allocation4] sm:$0xff]
    %v4969 = vld [vmem:[%s827] sm:$0xff]
    %v4970 = vld [vmem:[%s827 + $0x8] sm:$0xff]
    %4971 = vmatprep.subr.mxu0 %v4275
    %4972 = vmatpush1.msra.mxu0 %v4274
    %4973 = vmatprep.subr.mxu0 %v4277
    %4974 = vmatpush1.msra.mxu0 %v4276
    %4975 = vmatprep.subr.mxu0 %v4279
    %4976 = vmatpush1.msra.mxu0 %v4278
    %4977 = vmatprep.subr.mxu0 %v4281
    %4978 = vmatpush1.msra.mxu0 %v4280
    %4979 = vmatprep.subr.mxu0 %v4283
    %4980 = vmatpush1.msra.mxu0 %v4282
    %4981 = vmatprep.subr.mxu0 %v4285
    %4982 = vmatpush1.msra.mxu0 %v4284
    %4983 = vmatprep.subr.mxu0 %v4287
    %4984 = vmatpush1.msra.mxu0 %v4286
    %4985 = vmatprep.subr.mxu0 %v4289
    %4986 = vmatpush1.msra.mxu0 %v4288
    %4987 = vmatprep.subr.mxu0 %v4291
    %4988 = vmatpush1.msra.mxu0 %v4290
    %4989 = vmatprep.subr.mxu0 %v4293
    %4990 = vmatpush1.msra.mxu0 %v4292
    %4991 = vmatprep.subr.mxu0 %v4295
    %4992 = vmatpush1.msra.mxu0 %v4294
    %4993 = vmatprep.subr.mxu0 %v4297
    %4994 = vmatpush1.msra.mxu0 %v4296
    %4995 = vmatprep.subr.mxu0 %v4299
    %4996 = vmatpush1.msra.mxu0 %v4298
    %4997 = vmatprep.subr.mxu0 %v4301
    %4998 = vmatpush1.msra.mxu0 %v4300
    %4999 = vmatprep.subr.mxu0 %v4303
    %5000 = vmatpush1.msra.mxu0 %v4302
    %5001 = vmatprep.subr.mxu0 %v4305
    %5002 = vmatpush1.msra.mxu0 %v4304
    %5003 = vmatprep.subr.mxu0 0.0
    %5004 = vmatpush1.msra.mxu0 0.0
    %5005 = vmatprep.subr.mxu0 0.0
    %5006 = vmatpush1.msra.mxu0 0.0
    %5007 = vmatprep.subr.mxu0 0.0
    %5008 = vmatpush1.msra.mxu0 0.0
    %5009 = vmatprep.subr.mxu0 0.0
    %5010 = vmatpush1.msra.mxu0 0.0
    %5011 = vmatprep.subr.mxu0 0.0
    %5012 = vmatpush1.msra.mxu0 0.0
    %5013 = vmatprep.subr.mxu0 0.0
    %5014 = vmatpush1.msra.mxu0 0.0
    %5015 = vmatprep.subr.mxu0 0.0
    %5016 = vmatpush1.msra.mxu0 0.0
    %5017 = vmatprep.subr.mxu0 0.0
    %5018 = vmatpush1.msra.mxu0 0.0
    %5019 = vmatprep.subr.mxu0 0.0
    %5020 = vmatpush1.msra.mxu0 0.0
    %5021 = vmatprep.subr.mxu0 0.0
    %5022 = vmatpush1.msra.mxu0 0.0
    %5023 = vmatprep.subr.mxu0 0.0
    %5024 = vmatpush1.msra.mxu0 0.0
    %5025 = vmatprep.subr.mxu0 0.0
    %5026 = vmatpush1.msra.mxu0 0.0
    %5027 = vmatprep.subr.mxu0 0.0
    %5028 = vmatpush1.msra.mxu0 0.0
    %5029 = vmatprep.subr.mxu0 0.0
    %5030 = vmatpush1.msra.mxu0 0.0
    %5031 = vmatprep.subr.mxu0 0.0
    %5032 = vmatpush1.msra.mxu0 0.0
    %5033 = vmatprep.subr.mxu0 0.0
    %5034 = vmatpush1.msra.mxu0 0.0
    %5035 = vmatprep.mubr.f32.mxu0 0.0
    %5036 = vmatmul.mubr.f32.gmra.mrb[0].mxu0 %v4968
    %v5037 = vpop.f32.mrb[0].mxu0
    %v5038 = vadd.f32 %v4969, %v5037
    %v5039 = vpop.f32.mrb[0].mxu0
    %v5040 = vadd.f32 %v4970, %v5039
    %5041 = vdwg.mxu0
    %v5042 = vxor.u32 %v5038, 2147483648
    %v5043 = vmul.f32 %v5042, 1.442695
    %v5044 = vpow.pop %v5043
    %v5045 = vadd.f32 %v5044, 1.0
    %v5046 = vrcp.pop %v5045
    %v5047 = vmul.f32 1.0, %v5046
    %v5048 = vxor.u32 %v5040, 2147483648
    %v5049 = vmul.f32 %v5048, 1.442695
    %v5050 = vpow.pop %v5049
    %v5051 = vadd.f32 %v5050, 1.0
    %v5052 = vrcp.pop %v5051
    %v5053 = vmul.f32 1.0, %v5052
    %v5054 = vmul.f32 %v5053, 2.0
    %v5055 = vsub.f32 %v5054, 1.0
    %v5056 = vsel %vm92, %v5055, %v5053
    %5057 = vrot.lane.b32.xlu0 %v5047, 64
    %v5058 = vpop.permute.xlu0 %5057
    %5059 = vrot.lane.b32.xlu0 %v5056, 64
    %v5060 = vpop.permute.xlu0 %5059
    %v5061 = vld [vmem:[#allocation5] sm:$0xff]
    %v5062 = vmul.f32 %v5058, %v5061
    %v5063 = vmul.f32 %v5047, %v5056
    %v5064 = vadd.f32 %v5062, %v5063
    %v5065 = vtanh.pop %v5064
    %v5066 = vmul.f32 %v5060, %v5065
    %5067 = vst [vmem:[#allocation5] sm:$0xff] %v5064
    %5068 = vst [vmem:[#allocation4] sm:$0xff] %v5066
    %5069 = vst [vmem:[%s928] sm:$0xff] %v5066
    %v5070 = vld [vmem:[#allocation4] sm:$0xff]
    %v5071 = vld [vmem:[%s931] sm:$0xff]
    %v5072 = vld [vmem:[%s931 + $0x8] sm:$0xff]
    %5073 = vmatprep.subr.mxu0 %v4275
    %5074 = vmatpush1.msra.mxu0 %v4274
    %5075 = vmatprep.subr.mxu0 %v4277
    %5076 = vmatpush1.msra.mxu0 %v4276
    %5077 = vmatprep.subr.mxu0 %v4279
    %5078 = vmatpush1.msra.mxu0 %v4278
    %5079 = vmatprep.subr.mxu0 %v4281
    %5080 = vmatpush1.msra.mxu0 %v4280
    %5081 = vmatprep.subr.mxu0 %v4283
    %5082 = vmatpush1.msra.mxu0 %v4282
    %5083 = vmatprep.subr.mxu0 %v4285
    %5084 = vmatpush1.msra.mxu0 %v4284
    %5085 = vmatprep.subr.mxu0 %v4287
    %5086 = vmatpush1.msra.mxu0 %v4286
    %5087 = vmatprep.subr.mxu0 %v4289
    %5088 = vmatpush1.msra.mxu0 %v4288
    %5089 = vmatprep.subr.mxu0 %v4291
    %5090 = vmatpush1.msra.mxu0 %v4290
    %5091 = vmatprep.subr.mxu0 %v4293
    %5092 = vmatpush1.msra.mxu0 %v4292
    %5093 = vmatprep.subr.mxu0 %v4295
    %5094 = vmatpush1.msra.mxu0 %v4294
    %5095 = vmatprep.subr.mxu0 %v4297
    %5096 = vmatpush1.msra.mxu0 %v4296
    %5097 = vmatprep.subr.mxu0 %v4299
    %5098 = vmatpush1.msra.mxu0 %v4298
    %5099 = vmatprep.subr.mxu0 %v4301
    %5100 = vmatpush1.msra.mxu0 %v4300
    %5101 = vmatprep.subr.mxu0 %v4303
    %5102 = vmatpush1.msra.mxu0 %v4302
    %5103 = vmatprep.subr.mxu0 %v4305
    %5104 = vmatpush1.msra.mxu0 %v4304
    %5105 = vmatprep.subr.mxu0 0.0
    %5106 = vmatpush1.msra.mxu0 0.0
    %5107 = vmatprep.subr.mxu0 0.0
    %5108 = vmatpush1.msra.mxu0 0.0
    %5109 = vmatprep.subr.mxu0 0.0
    %5110 = vmatpush1.msra.mxu0 0.0
    %5111 = vmatprep.subr.mxu0 0.0
    %5112 = vmatpush1.msra.mxu0 0.0
    %5113 = vmatprep.subr.mxu0 0.0
    %5114 = vmatpush1.msra.mxu0 0.0
    %5115 = vmatprep.subr.mxu0 0.0
    %5116 = vmatpush1.msra.mxu0 0.0
    %5117 = vmatprep.subr.mxu0 0.0
    %5118 = vmatpush1.msra.mxu0 0.0
    %5119 = vmatprep.subr.mxu0 0.0
    %5120 = vmatpush1.msra.mxu0 0.0
    %5121 = vmatprep.subr.mxu0 0.0
    %5122 = vmatpush1.msra.mxu0 0.0
    %5123 = vmatprep.subr.mxu0 0.0
    %5124 = vmatpush1.msra.mxu0 0.0
    %5125 = vmatprep.subr.mxu0 0.0
    %5126 = vmatpush1.msra.mxu0 0.0
    %5127 = vmatprep.subr.mxu0 0.0
    %5128 = vmatpush1.msra.mxu0 0.0
    %5129 = vmatprep.subr.mxu0 0.0
    %5130 = vmatpush1.msra.mxu0 0.0
    %5131 = vmatprep.subr.mxu0 0.0
    %5132 = vmatpush1.msra.mxu0 0.0
    %5133 = vmatprep.subr.mxu0 0.0
    %5134 = vmatpush1.msra.mxu0 0.0
    %5135 = vmatprep.subr.mxu0 0.0
    %5136 = vmatpush1.msra.mxu0 0.0
    %5137 = vmatprep.mubr.f32.mxu0 0.0
    %5138 = vmatmul.mubr.f32.gmra.mrb[0].mxu0 %v5070
    %v5139 = vpop.f32.mrb[0].mxu0
    %v5140 = vadd.f32 %v5071, %v5139
    %v5141 = vpop.f32.mrb[0].mxu0
    %v5142 = vadd.f32 %v5072, %v5141
    %5143 = vdwg.mxu0
    %v5144 = vxor.u32 %v5140, 2147483648
    %v5145 = vmul.f32 %v5144, 1.442695
    %v5146 = vpow.pop %v5145
    %v5147 = vadd.f32 %v5146, 1.0
    %v5148 = vrcp.pop %v5147
    %v5149 = vmul.f32 1.0, %v5148
    %v5150 = vxor.u32 %v5142, 2147483648
    %v5151 = vmul.f32 %v5150, 1.442695
    %v5152 = vpow.pop %v5151
    %v5153 = vadd.f32 %v5152, 1.0
    %v5154 = vrcp.pop %v5153
    %v5155 = vmul.f32 1.0, %v5154
    %v5156 = vmul.f32 %v5155, 2.0
    %v5157 = vsub.f32 %v5156, 1.0
    %v5158 = vsel %vm92, %v5157, %v5155
    %5159 = vrot.lane.b32.xlu0 %v5149, 64
    %v5160 = vpop.permute.xlu0 %5159
    %5161 = vrot.lane.b32.xlu0 %v5158, 64
    %v5162 = vpop.permute.xlu0 %5161
    %v5163 = vld [vmem:[#allocation5] sm:$0xff]
    %v5164 = vmul.f32 %v5160, %v5163
    %v5165 = vmul.f32 %v5149, %v5158
    %v5166 = vadd.f32 %v5164, %v5165
    %v5167 = vtanh.pop %v5166
    %v5168 = vmul.f32 %v5162, %v5167
    %5169 = vst [vmem:[#allocation5] sm:$0xff] %v5166
    %5170 = vst [vmem:[#allocation4] sm:$0xff] %v5168
    %5171 = vst [vmem:[%s1032] sm:$0xff] %v5168
    %v5172 = vld [vmem:[#allocation4] sm:$0xff]
    %v5173 = vld [vmem:[%s1035] sm:$0xff]
    %v5174 = vld [vmem:[%s1035 + $0x8] sm:$0xff]
    %5175 = vmatprep.subr.mxu0 %v4275
    %5176 = vmatpush1.msra.mxu0 %v4274
    %5177 = vmatprep.subr.mxu0 %v4277
    %5178 = vmatpush1.msra.mxu0 %v4276
    %5179 = vmatprep.subr.mxu0 %v4279
    %5180 = vmatpush1.msra.mxu0 %v4278
    %5181 = vmatprep.subr.mxu0 %v4281
    %5182 = vmatpush1.msra.mxu0 %v4280
    %5183 = vmatprep.subr.mxu0 %v4283
    %5184 = vmatpush1.msra.mxu0 %v4282
    %5185 = vmatprep.subr.mxu0 %v4285
    %5186 = vmatpush1.msra.mxu0 %v4284
    %5187 = vmatprep.subr.mxu0 %v4287
    %5188 = vmatpush1.msra.mxu0 %v4286
    %5189 = vmatprep.subr.mxu0 %v4289
    %5190 = vmatpush1.msra.mxu0 %v4288
    %5191 = vmatprep.subr.mxu0 %v4291
    %5192 = vmatpush1.msra.mxu0 %v4290
    %5193 = vmatprep.subr.mxu0 %v4293
    %5194 = vmatpush1.msra.mxu0 %v4292
    %5195 = vmatprep.subr.mxu0 %v4295
    %5196 = vmatpush1.msra.mxu0 %v4294
    %5197 = vmatprep.subr.mxu0 %v4297
    %5198 = vmatpush1.msra.mxu0 %v4296
    %5199 = vmatprep.subr.mxu0 %v4299
    %5200 = vmatpush1.msra.mxu0 %v4298
    %5201 = vmatprep.subr.mxu0 %v4301
    %5202 = vmatpush1.msra.mxu0 %v4300
    %5203 = vmatprep.subr.mxu0 %v4303
    %5204 = vmatpush1.msra.mxu0 %v4302
    %5205 = vmatprep.subr.mxu0 %v4305
    %5206 = vmatpush1.msra.mxu0 %v4304
    %5207 = vmatprep.subr.mxu0 0.0
    %5208 = vmatpush1.msra.mxu0 0.0
    %5209 = vmatprep.subr.mxu0 0.0
    %5210 = vmatpush1.msra.mxu0 0.0
    %5211 = vmatprep.subr.mxu0 0.0
    %5212 = vmatpush1.msra.mxu0 0.0
    %5213 = vmatprep.subr.mxu0 0.0
    %5214 = vmatpush1.msra.mxu0 0.0
    %5215 = vmatprep.subr.mxu0 0.0
    %5216 = vmatpush1.msra.mxu0 0.0
    %5217 = vmatprep.subr.mxu0 0.0
    %5218 = vmatpush1.msra.mxu0 0.0
    %5219 = vmatprep.subr.mxu0 0.0
    %5220 = vmatpush1.msra.mxu0 0.0
    %5221 = vmatprep.subr.mxu0 0.0
    %5222 = vmatpush1.msra.mxu0 0.0
    %5223 = vmatprep.subr.mxu0 0.0
    %5224 = vmatpush1.msra.mxu0 0.0
    %5225 = vmatprep.subr.mxu0 0.0
    %5226 = vmatpush1.msra.mxu0 0.0
    %5227 = vmatprep.subr.mxu0 0.0
    %5228 = vmatpush1.msra.mxu0 0.0
    %5229 = vmatprep.subr.mxu0 0.0
    %5230 = vmatpush1.msra.mxu0 0.0
    %5231 = vmatprep.subr.mxu0 0.0
    %5232 = vmatpush1.msra.mxu0 0.0
    %5233 = vmatprep.subr.mxu0 0.0
    %5234 = vmatpush1.msra.mxu0 0.0
    %5235 = vmatprep.subr.mxu0 0.0
    %5236 = vmatpush1.msra.mxu0 0.0
    %5237 = vmatprep.subr.mxu0 0.0
    %5238 = vmatpush1.msra.mxu0 0.0
    %5239 = vmatprep.mubr.f32.mxu0 0.0
    %5240 = vmatmul.mubr.f32.gmra.mrb[0].mxu0 %v5172
    %v5241 = vpop.f32.mrb[0].mxu0
    %v5242 = vadd.f32 %v5173, %v5241
    %v5243 = vpop.f32.mrb[0].mxu0
    %v5244 = vadd.f32 %v5174, %v5243
    %5245 = vdwg.mxu0
    %v5246 = vxor.u32 %v5242, 2147483648
    %v5247 = vmul.f32 %v5246, 1.442695
    %v5248 = vpow.pop %v5247
    %v5249 = vadd.f32 %v5248, 1.0
    %v5250 = vrcp.pop %v5249
    %v5251 = vmul.f32 1.0, %v5250
    %v5252 = vxor.u32 %v5244, 2147483648
    %v5253 = vmul.f32 %v5252, 1.442695
    %v5254 = vpow.pop %v5253
    %v5255 = vadd.f32 %v5254, 1.0
    %v5256 = vrcp.pop %v5255
    %v5257 = vmul.f32 1.0, %v5256
    %v5258 = vmul.f32 %v5257, 2.0
    %v5259 = vsub.f32 %v5258, 1.0
    %v5260 = vsel %vm92, %v5259, %v5257
    %5261 = vrot.lane.b32.xlu0 %v5251, 64
    %v5262 = vpop.permute.xlu0 %5261
    %5263 = vrot.lane.b32.xlu0 %v5260, 64
    %v5264 = vpop.permute.xlu0 %5263
    %v5265 = vld [vmem:[#allocation5] sm:$0xff]
    %v5266 = vmul.f32 %v5262, %v5265
    %v5267 = vmul.f32 %v5251, %v5260
    %v5268 = vadd.f32 %v5266, %v5267
    %v5269 = vtanh.pop %v5268
    %v5270 = vmul.f32 %v5264, %v5269
    %5271 = vst [vmem:[#allocation5] sm:$0xff] %v5268
    %5272 = vst [vmem:[#allocation4] sm:$0xff] %v5270
    %5273 = vst [vmem:[%s1136] sm:$0xff] %v5270
    %v5274 = vld [vmem:[#allocation2] sm:$0xff]
    %v5275 = vld [vmem:[#allocation2 + $0x8] sm:$0xff]
    %v5276 = vld [vmem:[#allocation2 + $0x10] sm:$0xff]
    %v5277 = vld [vmem:[#allocation2 + $0x18] sm:$0xff]
    %v5278 = vld [vmem:[#allocation2 + $0x20] sm:$0xff]
    %v5279 = vld [vmem:[#allocation2 + $0x28] sm:$0xff]
    %v5280 = vld [vmem:[#allocation2 + $0x30] sm:$0xff]
    %v5281 = vld [vmem:[#allocation2 + $0x38] sm:$0xff]
    %v5282 = vld [vmem:[#allocation14] sm:$0xff]
    %v5283 = vld [vmem:[#allocation14 + $0x8] sm:$0xff]
    %v5284 = vld [vmem:[#allocation14 + $0x10] sm:$0xff]
    %v5285 = vld [vmem:[#allocation14 + $0x18] sm:$0xff]
    %v5286 = vld [vmem:[#allocation14 + $0x20] sm:$0xff]
    %v5287 = vld [vmem:[#allocation14 + $0x28] sm:$0xff]
    %v5288 = vld [vmem:[#allocation14 + $0x30] sm:$0xff]
    %v5289 = vld [vmem:[#allocation14 + $0x38] sm:$0xff]
    %v5290 = vld [vmem:[#allocation14 + $0x40] sm:$0xff]
    %v5291 = vld [vmem:[#allocation14 + $0x48] sm:$0xff]
    %v5292 = vld [vmem:[#allocation14 + $0x50] sm:$0xff]
    %v5293 = vld [vmem:[#allocation14 + $0x58] sm:$0xff]
    %v5294 = vld [vmem:[#allocation14 + $0x60] sm:$0xff]
    %v5295 = vld [vmem:[#allocation14 + $0x68] sm:$0xff]
    %v5296 = vld [vmem:[#allocation14 + $0x70] sm:$0xff]
    %v5297 = vld [vmem:[#allocation14 + $0x78] sm:$0xff]
    %v5298 = vld [vmem:[%s5] sm:$0x1]
    %v5300 = vlaneseq
    %v5301 = vshrl.u32 %v5300, 7
    %v5302 = vsub.s32 0, %v5301
    %v5303 = vrot.slane %v5298, %v5302
    %5305 = vmatprep.subr.mxu0 0.0
    %5306 = vmatpush1.msra.mxu0 %v5282
    %5307 = vmatprep.subr.mxu0 0.0
    %5308 = vmatpush1.msra.mxu0 %v5283
    %5309 = vmatprep.subr.mxu0 0.0
    %5310 = vmatpush1.msra.mxu0 %v5284
    %5311 = vmatprep.subr.mxu0 0.0
    %5312 = vmatpush1.msra.mxu0 %v5285
    %5313 = vmatprep.subr.mxu0 0.0
    %5314 = vmatpush1.msra.mxu0 %v5286
    %5315 = vmatprep.subr.mxu0 0.0
    %5316 = vmatpush1.msra.mxu0 %v5287
    %5317 = vmatprep.subr.mxu0 0.0
    %5318 = vmatpush1.msra.mxu0 %v5288
    %5319 = vmatprep.subr.mxu0 0.0
    %5320 = vmatpush1.msra.mxu0 %v5289
    %5321 = vmatprep.subr.mxu0 0.0
    %5322 = vmatpush1.msra.mxu0 %v5290
    %5323 = vmatprep.subr.mxu0 0.0
    %5324 = vmatpush1.msra.mxu0 %v5291
    %5325 = vmatprep.subr.mxu0 0.0
    %5326 = vmatpush1.msra.mxu0 %v5292
    %5327 = vmatprep.subr.mxu0 0.0
    %5328 = vmatpush1.msra.mxu0 %v5293
    %5329 = vmatprep.subr.mxu0 0.0
    %5330 = vmatpush1.msra.mxu0 %v5294
    %5331 = vmatprep.subr.mxu0 0.0
    %5332 = vmatpush1.msra.mxu0 %v5295
    %5333 = vmatprep.subr.mxu0 0.0
    %5334 = vmatpush1.msra.mxu0 %v5296
    %5335 = vmatprep.subr.mxu0 0.0
    %5336 = vmatpush1.msra.mxu0 %v5297
    %5337 = vmatprep.subr.mxu0 0.0
    %5338 = vmatpush1.msra.mxu0 0.0
    %5339 = vmatprep.subr.mxu0 0.0
    %5340 = vmatpush1.msra.mxu0 0.0
    %5341 = vmatprep.subr.mxu0 0.0
    %5342 = vmatpush1.msra.mxu0 0.0
    %5343 = vmatprep.subr.mxu0 0.0
    %5344 = vmatpush1.msra.mxu0 0.0
    %5345 = vmatprep.subr.mxu0 0.0
    %5346 = vmatpush1.msra.mxu0 0.0
    %5347 = vmatprep.subr.mxu0 0.0
    %5348 = vmatpush1.msra.mxu0 0.0
    %5349 = vmatprep.subr.mxu0 0.0
    %5350 = vmatpush1.msra.mxu0 0.0
    %5351 = vmatprep.subr.mxu0 0.0
    %5352 = vmatpush1.msra.mxu0 0.0
    %5353 = vmatprep.subr.mxu0 0.0
    %5354 = vmatpush1.msra.mxu0 0.0
    %5355 = vmatprep.subr.mxu0 0.0
    %5356 = vmatpush1.msra.mxu0 0.0
    %5357 = vmatprep.subr.mxu0 0.0
    %5358 = vmatpush1.msra.mxu0 0.0
    %5359 = vmatprep.subr.mxu0 0.0
    %5360 = vmatpush1.msra.mxu0 0.0
    %5361 = vmatprep.subr.mxu0 0.0
    %5362 = vmatpush1.msra.mxu0 0.0
    %5363 = vmatprep.subr.mxu0 0.0
    %5364 = vmatpush1.msra.mxu0 0.0
    %5365 = vmatprep.subr.mxu0 0.0
    %5366 = vmatpush1.msra.mxu0 0.0
    %5367 = vmatprep.subr.mxu0 0.0
    %5368 = vmatpush1.msra.mxu0 0.0
    %5369 = vmatprep.mubr.f32.mxu0 0.0
    %5370 = vmatmul.mubr.f32.gmra.mrb[0].mxu0 %v5274
    %v5371 = vpop.f32.mrb[0].mxu0
    %v5372 = vadd.f32 %v5303, %v5371
    %v5373 = vpop.f32.mrb[0].mxu0
    %5374 = vmatprep.mubr.f32.mxu0 0.0
    %5375 = vmatmul.mubr.f32.gmra.mrb[0].mxu0 %v5275
    %v5376 = vpop.f32.mrb[0].mxu0
    %v5377 = vadd.f32 %v5303, %v5376
    %v5378 = vpop.f32.mrb[0].mxu0
    %5379 = vmatprep.mubr.f32.mxu0 0.0
    %5380 = vmatmul.mubr.f32.gmra.mrb[0].mxu0 %v5276
    %v5381 = vpop.f32.mrb[0].mxu0
    %v5382 = vadd.f32 %v5303, %v5381
    %v5383 = vpop.f32.mrb[0].mxu0
    %5384 = vmatprep.mubr.f32.mxu0 0.0
    %5385 = vmatmul.mubr.f32.gmra.mrb[0].mxu0 %v5277
    %v5386 = vpop.f32.mrb[0].mxu0
    %v5387 = vadd.f32 %v5303, %v5386
    %v5388 = vpop.f32.mrb[0].mxu0
    %5389 = vmatprep.mubr.f32.mxu0 0.0
    %5390 = vmatmul.mubr.f32.gmra.mrb[0].mxu0 %v5278
    %v5391 = vpop.f32.mrb[0].mxu0
    %v5392 = vadd.f32 %v5303, %v5391
    %v5393 = vpop.f32.mrb[0].mxu0
    %5394 = vmatprep.mubr.f32.mxu0 0.0
    %5395 = vmatmul.mubr.f32.gmra.mrb[0].mxu0 %v5279
    %v5396 = vpop.f32.mrb[0].mxu0
    %v5397 = vadd.f32 %v5303, %v5396
    %v5398 = vpop.f32.mrb[0].mxu0
    %5399 = vmatprep.mubr.f32.mxu0 0.0
    %5400 = vmatmul.mubr.f32.gmra.mrb[0].mxu0 %v5280
    %v5401 = vpop.f32.mrb[0].mxu0
    %v5402 = vadd.f32 %v5303, %v5401
    %v5403 = vpop.f32.mrb[0].mxu0
    %5404 = vmatprep.mubr.f32.mxu0 0.0
    %5405 = vmatmul.mubr.f32.gmra.mrb[0].mxu0 %v5281
    %v5406 = vpop.f32.mrb[0].mxu0
    %v5407 = vadd.f32 %v5303, %v5406
    %v5408 = vpop.f32.mrb[0].mxu0
    %5409 = vdwg.mxu0
    %5410 = vst [vmem:[#allocation15] sm:$0xff] %v5372
    %5411 = vst [vmem:[#allocation15 + $0x8] sm:$0xff] %v5377
    %5412 = vst [vmem:[#allocation15 + $0x10] sm:$0xff] %v5382
    %5413 = vst [vmem:[#allocation15 + $0x18] sm:$0xff] %v5387
    %5414 = vst [vmem:[#allocation15 + $0x20] sm:$0xff] %v5392
    %5415 = vst [vmem:[#allocation15 + $0x28] sm:$0xff] %v5397
    %5416 = vst [vmem:[#allocation15 + $0x30] sm:$0xff] %v5402
    %5417 = vst [vmem:[#allocation15 + $0x38] sm:$0xff] %v5407
    // Predicated region
    $region46: #{tpu_custom_call.1} parent=1 // pred_check
      _
    $region47: #{tpu_custom_call.1} parent=1 // pred_check_branch
      %5419 = sbr.rel (0) target = $region49
    $region48: #{tpu_custom_call.1} parent=1 // pred_region
      %s5421 = ssub.s32 1024, 1024
      %5422 = vsyncadd [#allocation8], %s5421
      %s5423 = sshll.u32 [#allocation15], 4
      %s5424 = int_to_ptr.vmem [resolvable:$true] %s5423
      %5429 = dma.vmem_to_hbm [thread:$0]  %s5424, 1024, %s6, [#allocation8], 128, 128, 8
    $region49: #{tpu_custom_call.1} parent=1 // pred_fallthru
      _
    // Predicated region
    $region50: #{tpu_custom_call.1} parent=1 // pred_check
      _
    $region51: #{tpu_custom_call.1} parent=1 // pred_check_branch
      %5431 = sbr.rel (0) target = $region53
    $region52: #{tpu_custom_call.1} parent=1 // pred_region
      %5432 = dma.done [#allocation8], 1024
    $region53: #{tpu_custom_call.1} parent=1 // pred_fallthru
      _
    %5433 = vsyncpa [#allocation7], 1
    %5434 = vsyncpa [#allocation10], 1
    %5435 = vsyncpa [#allocation13], 1
    %5436 = vsyncpa [#allocation8], 1

</llo_original>
